<compile_context>
chip_gen: v6e
topology: v6e:2x2x1
jax: 0.10.0
libtpu: 0.0.40
codegen_flags: <defaults>
</compile_context>

<pallas_src>
import jax
import jax.numpy as jnp
from jax import lax
from jax.experimental import pallas as pl
from jax.experimental.pallas import tpu as pltpu

BN_EPS = 1e-5
LANE = 128            # conv output channels padded to this width (lane-dense stores)
MIN_GRID_STEPS = 8    # target grid length (pipelining + v7x megacore sharding)


def _round_up(x, m):
    return (x + m - 1) // m * m


def _vmem_limit_bytes():
    """~3/4 of physical VMEM, capped at 96 MiB (v5e/v6e -> 96 MiB, v7x -> 48 MiB)."""
    try:
        cap = int(pltpu.get_tpu_info().vmem_capacity_bytes)
    except Exception:
        cap = 64 * 1024 * 1024
    return int(min(96 * 1024 * 1024, max(32 * 1024 * 1024, cap * 3 // 4)))


def _choose_batch_tile(n, per_image_bytes, fixed_bytes, budget_bytes):
    """Largest divisor of n that fits the VMEM budget while keeping the grid at
    least MIN_GRID_STEPS long (when the batch size allows it)."""
    max_tb = max(1, n // min(MIN_GRID_STEPS, n))
    best = 1
    for tb in range(1, max_tb + 1):
        if n % tb == 0 and fixed_bytes + tb * per_image_bytes <= budget_bytes:
            best = tb
    return best


def _per_image_bytes(hp, wp, cin, ho, wo, cp):
    """Rough per-image VMEM footprint of one conv grid step (double-buffered
    bf16 input, f32 working copy, f32 accumulator, double-buffered bf16 out)."""
    return (2 * hp * wp * cin * 2 + hp * wp * max(cin, cp) * 4
            + 2 * ho * wo * cp * 4 + 2 * ho * wo * cp * 2)


# ----------------------------------------------------------------------------
# Conv pass 1: 3x3 conv as 9 shifted bf16 matmuls (f32 accumulate) + BN partials
# ----------------------------------------------------------------------------
def _conv_stats_pass(phases, w_taps, taps, *, tb, ho, wo, vmem_limit):
    """conv[n, i, j, :] = sum_t phases[p_t][n, i+dh_t, j+dw_t, :] @ w_taps[t]
    plus per-block channel sum / sum-of-squares partials (for BatchNorm)."""
    n = phases[0].shape[0]
    nb = n // tb
    nph = len(phases)
    cp = w_taps.shape[-1]
    m_rows = tb * ho * wo

    def kernel(*refs):
        phase_refs = refs[:nph]
        w_ref, conv_ref, stat_ref = refs[nph:]
        # f32 working copies: keep slicing/reshaping in f32 tiles, cast the 2D
        # patch to bf16 right before feeding the MXU.
        xs = [r[...].astype(jnp.float32) for r in phase_refs]
        acc = jnp.zeros((m_rows, cp), jnp.float32)
        for t, (p, dh, dw) in enumerate(taps):
            patch = xs[p][:, dh:dh + ho, dw:dw + wo, :]
            patch = patch.reshape(m_rows, patch.shape[-1]).astype(jnp.bfloat16)
            acc = acc + jnp.dot(patch, w_ref[t],
                                preferred_element_type=jnp.float32)
        conv_ref[...] = acc.reshape(tb, ho, wo, cp).astype(conv_ref.dtype)
        stat_ref[...] = jnp.zeros((8, cp), jnp.float32)
        stat_ref[0:1, :] = jnp.sum(acc, axis=0, keepdims=True)
        stat_ref[1:2, :] = jnp.sum(acc * acc, axis=0, keepdims=True)

    in_specs = [pl.BlockSpec((tb,) + ph.shape[1:], lambda i: (i, 0, 0, 0))
                for ph in phases]
    in_specs.append(pl.BlockSpec(w_taps.shape, lambda i: (0, 0, 0)))
    conv, stats = pl.pallas_call(
        kernel,
        grid=(nb,),
        in_specs=in_specs,
        out_specs=[pl.BlockSpec((tb, ho, wo, cp), lambda i: (i, 0, 0, 0)),
                   pl.BlockSpec((8, cp), lambda i: (i, 0))],
        out_shape=[jax.ShapeDtypeStruct((n, ho, wo, cp), jnp.bfloat16),
                   jax.ShapeDtypeStruct((nb * 8, cp), jnp.float32)],
        compiler_params=pltpu.CompilerParams(
            dimension_semantics=("parallel",),
            vmem_limit_bytes=vmem_limit),
    )(*phases, w_taps)
    stats = stats.reshape(nb, 8, cp)
    return conv, stats[:, 0, :].sum(axis=0), stats[:, 1, :].sum(axis=0)


# ----------------------------------------------------------------------------
# Conv pass 2: BN1+ReLU fused into conv2's input load, then 9 shifted matmuls
# ----------------------------------------------------------------------------
def _conv_bn_relu_stats_pass(xpad, scale, shift, ring_mask, w_taps, *, tb,
                             vmem_limit):
    """conv2 over a = ring_mask * relu(xpad * scale + shift)  (3x3, stride 1),
    i.e. conv1's BatchNorm + ReLU is applied on the fly to conv1's raw output."""
    n, hp, wp, cin = xpad.shape
    ho, wo = hp - 2, wp - 2
    nb = n // tb
    cp = w_taps.shape[-1]
    m_rows = tb * ho * wo

    def kernel(x_ref, s_ref, b_ref, m_ref, w_ref, conv_ref, stat_ref):
        x = x_ref[...].astype(jnp.float32)
        a = jnp.maximum(x * s_ref[...] + b_ref[...], 0.0)
        # The spatial padding ring holds raw zeros of the *pre-BN* conv1 output;
        # after the affine + ReLU it would be relu(shift) != 0, so re-zero it.
        a = a * m_ref[...]
        acc = jnp.zeros((m_rows, cp), jnp.float32)
        for t in range(9):
            dh, dw = t // 3, t % 3
            patch = a[:, dh:dh + ho, dw:dw + wo, :]
            patch = patch.reshape(m_rows, cin).astype(jnp.bfloat16)
            acc = acc + jnp.dot(patch, w_ref[t],
                                preferred_element_type=jnp.float32)
        conv_ref[...] = acc.reshape(tb, ho, wo, cp).astype(conv_ref.dtype)
        stat_ref[...] = jnp.zeros((8, cp), jnp.float32)
        stat_ref[0:1, :] = jnp.sum(acc, axis=0, keepdims=True)
        stat_ref[1:2, :] = jnp.sum(acc * acc, axis=0, keepdims=True)

    conv, stats = pl.pallas_call(
        kernel,
        grid=(nb,),
        in_specs=[
            pl.BlockSpec((tb, hp, wp, cin), lambda i: (i, 0, 0, 0)),
            pl.BlockSpec((1, 1, 1, cp), lambda i: (0, 0, 0, 0)),
            pl.BlockSpec((1, 1, 1, cp), lambda i: (0, 0, 0, 0)),
            pl.BlockSpec((1, hp, wp, 1), lambda i: (0, 0, 0, 0)),
            pl.BlockSpec(w_taps.shape, lambda i: (0, 0, 0)),
        ],
        out_specs=[pl.BlockSpec((tb, ho, wo, cp), lambda i: (i, 0, 0, 0)),
                   pl.BlockSpec((8, cp), lambda i: (i, 0))],
        out_shape=[jax.ShapeDtypeStruct((n, ho, wo, cp), jnp.bfloat16),
                   jax.ShapeDtypeStruct((nb * 8, cp), jnp.float32)],
        compiler_params=pltpu.CompilerParams(
            dimension_semantics=("parallel",),
            vmem_limit_bytes=vmem_limit),
    )(xpad, scale, shift, ring_mask, w_taps)
    stats = stats.reshape(nb, 8, cp)
    return conv, stats[:, 0, :].sum(axis=0), stats[:, 1, :].sum(axis=0)


# ----------------------------------------------------------------------------
# Final pass: y = conv2 * scale + shift + shortcut (placed via 0/1 matmul), ReLU
# ----------------------------------------------------------------------------
def _bn_shortcut_relu_pass(conv, scale, shift, sc, proj, *, tb, vmem_limit):
    n, ho, wo, cp = conv.shape
    csc = sc.shape[-1]
    nb = n // tb
    m_rows = tb * ho * wo

    def kernel(c_ref, s_ref, b_ref, sc_ref, p_ref, o_ref):
        y = c_ref[...].astype(jnp.float32) * s_ref[...] + b_ref[...]
        scv = sc_ref[...].astype(jnp.float32).reshape(m_rows, csc)
        add = jnp.dot(scv, p_ref[...], preferred_element_type=jnp.float32)
        y = y + add.reshape(tb, ho, wo, cp)
        o_ref[...] = jnp.maximum(y, 0.0).astype(o_ref.dtype)

    return pl.pallas_call(
        kernel,
        grid=(nb,),
        in_specs=[
            pl.BlockSpec((tb, ho, wo, cp), lambda i: (i, 0, 0, 0)),
            pl.BlockSpec((1, 1, 1, cp), lambda i: (0, 0, 0, 0)),
            pl.BlockSpec((1, 1, 1, cp), lambda i: (0, 0, 0, 0)),
            pl.BlockSpec((tb, ho, wo, csc), lambda i: (i, 0, 0, 0)),
            pl.BlockSpec(proj.shape, lambda i: (0, 0)),
        ],
        out_specs=pl.BlockSpec((tb, ho, wo, cp), lambda i: (i, 0, 0, 0)),
        out_shape=jax.ShapeDtypeStruct((n, ho, wo, cp), jnp.bfloat16),
        compiler_params=pltpu.CompilerParams(
            dimension_semantics=("parallel",),
            vmem_limit_bytes=vmem_limit),
    )(conv, scale, shift, sc, proj)


# ----------------------------------------------------------------------------
# JAX-side glue: phase split, BN stat folding, parameter padding
# ----------------------------------------------------------------------------
def _phase_split(xpad, stride):
    """Space-to-batch phase split so every in-kernel tap slice is unit-stride."""
    if stride == 1:
        return [xpad]
    return [xpad[:, ph::stride, pw::stride, :]
            for ph in range(stride) for pw in range(stride)]


def _conv_taps(stride):
    """tap t=(kh,kw) -> (phase index, row offset, col offset) in the phase split."""
    return [((kh % stride) * stride + (kw % stride), kh // stride, kw // stride)
            for kh in range(3) for kw in range(3)]


def _shortcut_projection(csc, offset, cp):
    """0/1 matrix placing csc shortcut channels at [offset, offset+csc) of cp lanes."""
    idx = jnp.arange(csc)
    return jnp.zeros((csc, cp), jnp.float32).at[idx, offset + idx].set(1.0)


def _pad_param_vec(v, cp):
    return jnp.zeros((1, 1, 1, cp), jnp.float32).at[0, 0, 0, :v.shape[0]].set(
        v.astype(jnp.float32))


def _bn_fold(csum, csq, gamma_pad, beta_pad, m):
    """Fold training-mode BN (global batch stats, biased variance) into scale/shift."""
    mean = (csum / m).reshape(1, 1, 1, -1)
    var = jnp.maximum((csq / m).reshape(1, 1, 1, -1) - mean * mean, 0.0)
    scale = gamma_pad * lax.rsqrt(var + BN_EPS)
    shift = beta_pad - mean * scale
    return scale, shift


# ----------------------------------------------------------------------------
# Parameter init (deterministic, in-script) and forward pass
# ----------------------------------------------------------------------------
def init_basic_block_params(key, in_planes, planes):
    k1, k2, k3, k4, k5, k6 = jax.random.split(key, 6)
    w1 = jax.random.normal(k1, (3, 3, in_planes, planes), jnp.float32) \
        * (2.0 / (9 * in_planes)) ** 0.5
    w2 = jax.random.normal(k2, (3, 3, planes, planes), jnp.float32) \
        * (2.0 / (9 * planes)) ** 0.5
    g1 = 1.0 + 0.1 * jax.random.normal(k3, (planes,), jnp.float32)
    b1 = 0.1 * jax.random.normal(k4, (planes,), jnp.float32)
    g2 = 1.0 + 0.1 * jax.random.normal(k5, (planes,), jnp.float32)
    b2 = 0.1 * jax.random.normal(k6, (planes,), jnp.float32)
    return (w1, g1, b1, w2, g2, b2)


def basic_block_forward(x_nchw, params, *, stride=1, option="A"):
    """Pallas implementation of BasicBlock.forward. Input/output are NCHW f32."""
    w1, g1, b1, w2, g2, b2 = params
    in_planes, planes = w1.shape[2], w1.shape[3]
    cp = _round_up(planes, LANE)
    vmem_limit = _vmem_limit_bytes()

    x = jnp.transpose(x_nchw, (0, 2, 3, 1)).astype(jnp.float32)   # NCHW -> NHWC
    n, h, w_in, _ = x.shape
    ho = (h - 1) // stride + 1
    wo = (w_in - 1) // stride + 1
    m = n * ho * wo

    x_bf = x.astype(jnp.bfloat16)
    xpad = jnp.pad(x_bf, ((0, 0), (1, 1), (1, 1), (0, 0)))
    phases = _phase_split(xpad, stride)
    taps = _conv_taps(stride)

    # ---- conv1 (pre-BN) + batch statistics ----
    hp1, wp1 = phases[0].shape[1], phases[0].shape[2]
    tb1 = _choose_batch_tile(
        n, len(phases) * _per_image_bytes(hp1, wp1, in_planes, ho, wo, cp),
        2 * 9 * max(in_planes, cp) * cp * 2, vmem_limit // 2)
    w1m = jnp.pad(w1, ((0, 0), (0, 0), (0, 0), (0, cp - planes))) \
        .reshape(9, in_planes, cp).astype(jnp.bfloat16)
    conv1, s1, q1 = _conv_stats_pass(phases, w1m, taps, tb=tb1, ho=ho, wo=wo,
                                     vmem_limit=vmem_limit)
    scale1, shift1 = _bn_fold(s1, q1, _pad_param_vec(g1, cp),
                              _pad_param_vec(b1, cp), m)

    # ---- conv2 (pre-BN) with BN1 + ReLU fused into its input load ----
    conv1_pad = jnp.pad(conv1, ((0, 0), (1, 1), (1, 1), (0, 0)))
    ring_mask = jnp.pad(jnp.ones((1, ho, wo, 1), jnp.float32),
                        ((0, 0), (1, 1), (1, 1), (0, 0)))
    w2m = jnp.pad(w2, ((0, 0), (0, 0), (0, cp - planes), (0, cp - planes))) \
        .reshape(9, cp, cp).astype(jnp.bfloat16)
    tb2 = _choose_batch_tile(
        n, _per_image_bytes(ho + 2, wo + 2, cp, ho, wo, cp),
        2 * 9 * cp * cp * 2, vmem_limit // 2)
    conv2, s2, q2 = _conv_bn_relu_stats_pass(conv1_pad, scale1, shift1,
                                             ring_mask, w2m, tb=tb2,
                                             vmem_limit=vmem_limit)
    scale2, shift2 = _bn_fold(s2, q2, _pad_param_vec(g2, cp),
                              _pad_param_vec(b2, cp), m)

    # ---- shortcut(x): narrow tile; channel placement happens in-kernel ----
    if stride != 1 or in_planes != planes:
        if option == "A":
            sc = x_bf[:, ::2, ::2, :]
            proj = _shortcut_projection(in_planes, planes // 4, cp)
        else:
            # TODO(synk): option 'B' shortcut (1x1 conv + BN) not implemented.
            raise NotImplementedError("option B shortcut not implemented")
    else:
        sc = x_bf
        proj = _shortcut_projection(in_planes, 0, cp)

    # ---- out = relu(bn2(conv2) + shortcut) ----
    per_img3 = (3 * ho * wo * cp * 4 + 2 * ho * wo * cp * 2
                + 2 * ho * wo * in_planes * 2)
    tb3 = _choose_batch_tile(n, per_img3, 2 * in_planes * cp * 4,
                             vmem_limit // 2)
    out = _bn_shortcut_relu_pass(conv2, scale2, shift2, sc, proj, tb=tb3,
                                 vmem_limit=vmem_limit)
    out = out[..., :planes]
    return jnp.transpose(out, (0, 3, 1, 2)).astype(jnp.float32)   # NHWC -> NCHW


# ----------------------------------------------------------------------------
# Pure-JAX f32 reference (for correctness check only)
# ----------------------------------------------------------------------------
def basic_block_reference(x_nchw, params, *, stride=1):
    w1, g1, b1, w2, g2, b2 = params
    in_planes, planes = w1.shape[2], w1.shape[3]
    x = jnp.transpose(x_nchw, (0, 2, 3, 1)).astype(jnp.float32)
    dn = ("NHWC", "HWIO", "NHWC")

    def bn(y, g, b):
        mean = jnp.mean(y, axis=(0, 1, 2), keepdims=True)
        var = jnp.mean((y - mean) ** 2, axis=(0, 1, 2), keepdims=True)
        return (y - mean) * lax.rsqrt(var + BN_EPS) * g + b

    o = lax.conv_general_dilated(x, w1, (stride, stride), [(1, 1), (1, 1)],
                                 dimension_numbers=dn,
                                 precision=lax.Precision.HIGHEST)
    o = jax.nn.relu(bn(o, g1, b1))
    o = lax.conv_general_dilated(o, w2, (1, 1), [(1, 1), (1, 1)],
                                 dimension_numbers=dn,
                                 precision=lax.Precision.HIGHEST)
    o = bn(o, g2, b2)
    if stride != 1 or in_planes != planes:
        sc = x[:, ::2, ::2, :]
        pc = planes // 4
        sc = jnp.pad(sc, ((0, 0), (0, 0), (0, 0), (pc, pc)))
    else:
        sc = x
    o = jax.nn.relu(o + sc)
    return jnp.transpose(o, (0, 3, 1, 2))


# ----------------------------------------------------------------------------
if __name__ == "__main__":
    key = jax.random.PRNGKey(0)
    kx, kp1, kp2 = jax.random.split(key, 3)

    # Input matches nn.Conv2d's NCHW convention.
    x = jax.random.normal(kx, (2, 8, 16, 16), jnp.float32)

    # Case 1: stride=1, in_planes == planes  -> identity shortcut
    params1 = init_basic_block_params(kp1, 8, 8)
    fwd1 = jax.jit(lambda a: basic_block_forward(a, params1, stride=1))
    y1 = jax.block_until_ready(fwd1(x))
    r1 = basic_block_reference(x, params1, stride=1)
    assert y1.shape == (2, 8, 16, 16)
    # bf16 MXU matmuls + bf16 intermediates -> compare at ~3e-2 tolerance.
    assert jnp.allclose(y1, r1, rtol=3e-2, atol=3e-2), \
        float(jnp.max(jnp.abs(y1 - r1)))

    # Case 2: stride=2, planes = 2*in_planes -> option 'A' pad/subsample shortcut
    params2 = init_basic_block_params(kp2, 8, 16)
    fwd2 = jax.jit(lambda a: basic_block_forward(a, params2, stride=2, option="A"))
    y2 = jax.block_until_ready(fwd2(x))
    r2 = basic_block_reference(x, params2, stride=2)
    assert y2.shape == (2, 16, 8, 8)
    assert jnp.allclose(y2, r2, rtol=3e-2, atol=3e-2), \
        float(jnp.max(jnp.abs(y2 - r2)))

    print("KERNEL_OK")
</pallas_src>

<mosaic_0001>
module attributes {stable_mosaic.version = 11 : i64} {
  func.func @kernel(%arg0: i32, %arg1: memref<1x18x18x8xbf16, #tpu.memory_space<vmem>>, %arg2: memref<9x8x128xbf16, #tpu.memory_space<vmem>>, %arg3: memref<1x16x16x128xbf16, #tpu.memory_space<vmem>>, %arg4: memref<8x128xf32, #tpu.memory_space<vmem>>) attributes {dimension_semantics = [#tpu.dimension_semantics<parallel>], iteration_bounds = array<i64: 2>, scalar_prefetch = 0 : i64, scratch_operands = 0 : i64, tpu.core_type = #tpu.core_type<tc>, window_params = [{transform_indices = @transform_0, window_bounds = array<i64: 1, 18, 18, 8>}, {pipeline_mode = #tpu.pipeline_mode<synchronous>, transform_indices = @transform_1, window_bounds = array<i64: 9, 8, 128>}, {transform_indices = @transform_2, window_bounds = array<i64: 1, 16, 16, 128>}, {transform_indices = @transform_3, window_bounds = array<i64: 8, 128>}]} {
    %c0 = arith.constant 0 : index
    %c0_0 = arith.constant 0 : index
    %c0_1 = arith.constant 0 : index
    %c0_2 = arith.constant 0 : index
    %0 = vector.load %arg1[%c0, %c0_0, %c0_1, %c0_2] : memref<1x18x18x8xbf16, #tpu.memory_space<vmem>>, vector<1x18x18x8xbf16>
    %1 = arith.extf %0 : vector<1x18x18x8xbf16> to vector<1x18x18x8xf32>
    %cst = arith.constant 0.000000e+00 : f32
    %2 = vector.broadcast %cst : f32 to vector<256x128xf32>
    %3 = vector.extract_strided_slice %1 {offsets = [0, 0, 0, 0], sizes = [1, 16, 16, 8], strides = [1, 1, 1, 1]} : vector<1x18x18x8xf32> to vector<1x16x16x8xf32>
    %4 = vector.shape_cast %3 : vector<1x16x16x8xf32> to vector<256x8xf32>
    %5 = arith.truncf %4 : vector<256x8xf32> to vector<256x8xbf16>
    %c0_3 = arith.constant 0 : index
    %c0_4 = arith.constant 0 : index
    %c0_5 = arith.constant 0 : index
    %6 = vector.load %arg2[%c0_3, %c0_4, %c0_5] : memref<9x8x128xbf16, #tpu.memory_space<vmem>>, vector<1x8x128xbf16>
    %7 = vector.shape_cast %6 : vector<1x8x128xbf16> to vector<8x128xbf16>
    %cst_6 = arith.constant dense<0.000000e+00> : vector<256x128xf32>
    %8 = tpu.matmul %5, %7, %cst_6 {dimension_numbers = #tpu.dot_dimension_numbers<[1], [0], [0], [1], [0, 0, 1, 1], [], []>} : vector<256x8xbf16>, vector<8x128xbf16>, vector<256x128xf32> -> vector<256x128xf32>
    %9 = arith.addf %2, %8 : vector<256x128xf32>
    %10 = vector.extract_strided_slice %1 {offsets = [0, 0, 1, 0], sizes = [1, 16, 16, 8], strides = [1, 1, 1, 1]} : vector<1x18x18x8xf32> to vector<1x16x16x8xf32>
    %11 = vector.shape_cast %10 : vector<1x16x16x8xf32> to vector<256x8xf32>
    %12 = arith.truncf %11 : vector<256x8xf32> to vector<256x8xbf16>
    %c1 = arith.constant 1 : index
    %c0_7 = arith.constant 0 : index
    %c0_8 = arith.constant 0 : index
    %13 = vector.load %arg2[%c1, %c0_7, %c0_8] : memref<9x8x128xbf16, #tpu.memory_space<vmem>>, vector<1x8x128xbf16>
    %14 = vector.shape_cast %13 : vector<1x8x128xbf16> to vector<8x128xbf16>
    %cst_9 = arith.constant dense<0.000000e+00> : vector<256x128xf32>
    %15 = tpu.matmul %12, %14, %cst_9 {dimension_numbers = #tpu.dot_dimension_numbers<[1], [0], [0], [1], [0, 0, 1, 1], [], []>} : vector<256x8xbf16>, vector<8x128xbf16>, vector<256x128xf32> -> vector<256x128xf32>
    %16 = arith.addf %9, %15 : vector<256x128xf32>
    %17 = vector.extract_strided_slice %1 {offsets = [0, 0, 2, 0], sizes = [1, 16, 16, 8], strides = [1, 1, 1, 1]} : vector<1x18x18x8xf32> to vector<1x16x16x8xf32>
    %18 = vector.shape_cast %17 : vector<1x16x16x8xf32> to vector<256x8xf32>
    %19 = arith.truncf %18 : vector<256x8xf32> to vector<256x8xbf16>
    %c2 = arith.constant 2 : index
    %c0_10 = arith.constant 0 : index
    %c0_11 = arith.constant 0 : index
    %20 = vector.load %arg2[%c2, %c0_10, %c0_11] : memref<9x8x128xbf16, #tpu.memory_space<vmem>>, vector<1x8x128xbf16>
    %21 = vector.shape_cast %20 : vector<1x8x128xbf16> to vector<8x128xbf16>
    %cst_12 = arith.constant dense<0.000000e+00> : vector<256x128xf32>
    %22 = tpu.matmul %19, %21, %cst_12 {dimension_numbers = #tpu.dot_dimension_numbers<[1], [0], [0], [1], [0, 0, 1, 1], [], []>} : vector<256x8xbf16>, vector<8x128xbf16>, vector<256x128xf32> -> vector<256x128xf32>
    %23 = arith.addf %16, %22 : vector<256x128xf32>
    %24 = vector.extract_strided_slice %1 {offsets = [0, 1, 0, 0], sizes = [1, 16, 16, 8], strides = [1, 1, 1, 1]} : vector<1x18x18x8xf32> to vector<1x16x16x8xf32>
    %25 = vector.shape_cast %24 : vector<1x16x16x8xf32> to vector<256x8xf32>
    %26 = arith.truncf %25 : vector<256x8xf32> to vector<256x8xbf16>
    %c3 = arith.constant 3 : index
    %c0_13 = arith.constant 0 : index
    %c0_14 = arith.constant 0 : index
    %27 = vector.load %arg2[%c3, %c0_13, %c0_14] : memref<9x8x128xbf16, #tpu.memory_space<vmem>>, vector<1x8x128xbf16>
    %28 = vector.shape_cast %27 : vector<1x8x128xbf16> to vector<8x128xbf16>
    %cst_15 = arith.constant dense<0.000000e+00> : vector<256x128xf32>
    %29 = tpu.matmul %26, %28, %cst_15 {dimension_numbers = #tpu.dot_dimension_numbers<[1], [0], [0], [1], [0, 0, 1, 1], [], []>} : vector<256x8xbf16>, vector<8x128xbf16>, vector<256x128xf32> -> vector<256x128xf32>
    %30 = arith.addf %23, %29 : vector<256x128xf32>
    %31 = vector.extract_strided_slice %1 {offsets = [0, 1, 1, 0], sizes = [1, 16, 16, 8], strides = [1, 1, 1, 1]} : vector<1x18x18x8xf32> to vector<1x16x16x8xf32>
    %32 = vector.shape_cast %31 : vector<1x16x16x8xf32> to vector<256x8xf32>
    %33 = arith.truncf %32 : vector<256x8xf32> to vector<256x8xbf16>
    %c4 = arith.constant 4 : index
    %c0_16 = arith.constant 0 : index
    %c0_17 = arith.constant 0 : index
    %34 = vector.load %arg2[%c4, %c0_16, %c0_17] : memref<9x8x128xbf16, #tpu.memory_space<vmem>>, vector<1x8x128xbf16>
    %35 = vector.shape_cast %34 : vector<1x8x128xbf16> to vector<8x128xbf16>
    %cst_18 = arith.constant dense<0.000000e+00> : vector<256x128xf32>
    %36 = tpu.matmul %33, %35, %cst_18 {dimension_numbers = #tpu.dot_dimension_numbers<[1], [0], [0], [1], [0, 0, 1, 1], [], []>} : vector<256x8xbf16>, vector<8x128xbf16>, vector<256x128xf32> -> vector<256x128xf32>
    %37 = arith.addf %30, %36 : vector<256x128xf32>
    %38 = vector.extract_strided_slice %1 {offsets = [0, 1, 2, 0], sizes = [1, 16, 16, 8], strides = [1, 1, 1, 1]} : vector<1x18x18x8xf32> to vector<1x16x16x8xf32>
    %39 = vector.shape_cast %38 : vector<1x16x16x8xf32> to vector<256x8xf32>
    %40 = arith.truncf %39 : vector<256x8xf32> to vector<256x8xbf16>
    %c5 = arith.constant 5 : index
    %c0_19 = arith.constant 0 : index
    %c0_20 = arith.constant 0 : index
    %41 = vector.load %arg2[%c5, %c0_19, %c0_20] : memref<9x8x128xbf16, #tpu.memory_space<vmem>>, vector<1x8x128xbf16>
    %42 = vector.shape_cast %41 : vector<1x8x128xbf16> to vector<8x128xbf16>
    %cst_21 = arith.constant dense<0.000000e+00> : vector<256x128xf32>
    %43 = tpu.matmul %40, %42, %cst_21 {dimension_numbers = #tpu.dot_dimension_numbers<[1], [0], [0], [1], [0, 0, 1, 1], [], []>} : vector<256x8xbf16>, vector<8x128xbf16>, vector<256x128xf32> -> vector<256x128xf32>
    %44 = arith.addf %37, %43 : vector<256x128xf32>
    %45 = vector.extract_strided_slice %1 {offsets = [0, 2, 0, 0], sizes = [1, 16, 16, 8], strides = [1, 1, 1, 1]} : vector<1x18x18x8xf32> to vector<1x16x16x8xf32>
    %46 = vector.shape_cast %45 : vector<1x16x16x8xf32> to vector<256x8xf32>
    %47 = arith.truncf %46 : vector<256x8xf32> to vector<256x8xbf16>
    %c6 = arith.constant 6 : index
    %c0_22 = arith.constant 0 : index
    %c0_23 = arith.constant 0 : index
    %48 = vector.load %arg2[%c6, %c0_22, %c0_23] : memref<9x8x128xbf16, #tpu.memory_space<vmem>>, vector<1x8x128xbf16>
    %49 = vector.shape_cast %48 : vector<1x8x128xbf16> to vector<8x128xbf16>
    %cst_24 = arith.constant dense<0.000000e+00> : vector<256x128xf32>
    %50 = tpu.matmul %47, %49, %cst_24 {dimension_numbers = #tpu.dot_dimension_numbers<[1], [0], [0], [1], [0, 0, 1, 1], [], []>} : vector<256x8xbf16>, vector<8x128xbf16>, vector<256x128xf32> -> vector<256x128xf32>
    %51 = arith.addf %44, %50 : vector<256x128xf32>
    %52 = vector.extract_strided_slice %1 {offsets = [0, 2, 1, 0], sizes = [1, 16, 16, 8], strides = [1, 1, 1, 1]} : vector<1x18x18x8xf32> to vector<1x16x16x8xf32>
    %53 = vector.shape_cast %52 : vector<1x16x16x8xf32> to vector<256x8xf32>
    %54 = arith.truncf %53 : vector<256x8xf32> to vector<256x8xbf16>
    %c7 = arith.constant 7 : index
    %c0_25 = arith.constant 0 : index
    %c0_26 = arith.constant 0 : index
    %55 = vector.load %arg2[%c7, %c0_25, %c0_26] : memref<9x8x128xbf16, #tpu.memory_space<vmem>>, vector<1x8x128xbf16>
    %56 = vector.shape_cast %55 : vector<1x8x128xbf16> to vector<8x128xbf16>
    %cst_27 = arith.constant dense<0.000000e+00> : vector<256x128xf32>
    %57 = tpu.matmul %54, %56, %cst_27 {dimension_numbers = #tpu.dot_dimension_numbers<[1], [0], [0], [1], [0, 0, 1, 1], [], []>} : vector<256x8xbf16>, vector<8x128xbf16>, vector<256x128xf32> -> vector<256x128xf32>
    %58 = arith.addf %51, %57 : vector<256x128xf32>
    %59 = vector.extract_strided_slice %1 {offsets = [0, 2, 2, 0], sizes = [1, 16, 16, 8], strides = [1, 1, 1, 1]} : vector<1x18x18x8xf32> to vector<1x16x16x8xf32>
    %60 = vector.shape_cast %59 : vector<1x16x16x8xf32> to vector<256x8xf32>
    %61 = arith.truncf %60 : vector<256x8xf32> to vector<256x8xbf16>
    %c8 = arith.constant 8 : index
    %c0_28 = arith.constant 0 : index
    %c0_29 = arith.constant 0 : index
    %62 = vector.load %arg2[%c8, %c0_28, %c0_29] : memref<9x8x128xbf16, #tpu.memory_space<vmem>>, vector<1x8x128xbf16>
    %63 = vector.shape_cast %62 : vector<1x8x128xbf16> to vector<8x128xbf16>
    %cst_30 = arith.constant dense<0.000000e+00> : vector<256x128xf32>
    %64 = tpu.matmul %61, %63, %cst_30 {dimension_numbers = #tpu.dot_dimension_numbers<[1], [0], [0], [1], [0, 0, 1, 1], [], []>} : vector<256x8xbf16>, vector<8x128xbf16>, vector<256x128xf32> -> vector<256x128xf32>
    %65 = arith.addf %58, %64 : vector<256x128xf32>
    %66 = vector.shape_cast %65 : vector<256x128xf32> to vector<1x16x16x128xf32>
    %67 = arith.truncf %66 : vector<1x16x16x128xf32> to vector<1x16x16x128xbf16>
    %c0_31 = arith.constant 0 : index
    %c0_32 = arith.constant 0 : index
    %c0_33 = arith.constant 0 : index
    %c0_34 = arith.constant 0 : index
    %68 = vector.load %arg3[%c0_31, %c0_32, %c0_33, %c0_34] : memref<1x16x16x128xbf16, #tpu.memory_space<vmem>>, vector<1x16x16x128xbf16>
    tpu.vector_store %arg3[%c0_31, %c0_32, %c0_33, %c0_34], %67 {strides = array<i32>} : memref<1x16x16x128xbf16, #tpu.memory_space<vmem>>, vector<1x16x16x128xbf16>,
    %cst_35 = arith.constant 0.000000e+00 : f32
    %69 = vector.broadcast %cst_35 : f32 to vector<8x128xf32>
    %c0_36 = arith.constant 0 : index
    %c0_37 = arith.constant 0 : index
    %70 = vector.load %arg4[%c0_36, %c0_37] : memref<8x128xf32, #tpu.memory_space<vmem>>, vector<8x128xf32>
    tpu.vector_store %arg4[%c0_36, %c0_37], %69 {strides = array<i32>} : memref<8x128xf32, #tpu.memory_space<vmem>>, vector<8x128xf32>,
    %cst_38 = arith.constant dense<0.000000e+00> : vector<128xf32>
    %71 = vector.multi_reduction <add>, %65, %cst_38 [0] : vector<256x128xf32> to vector<128xf32>
    %72 = vector.shape_cast %71 : vector<128xf32> to vector<1x128xf32>
    %c0_39 = arith.constant 0 : index
    %c0_40 = arith.constant 0 : index
    %73 = vector.load %arg4[%c0_39, %c0_40] : memref<8x128xf32, #tpu.memory_space<vmem>>, vector<1x128xf32>
    tpu.vector_store %arg4[%c0_39, %c0_40], %72 {strides = array<i32>} : memref<8x128xf32, #tpu.memory_space<vmem>>, vector<1x128xf32>,
    %74 = arith.mulf %65, %65 : vector<256x128xf32>
    %cst_41 = arith.constant dense<0.000000e+00> : vector<128xf32>
    %75 = vector.multi_reduction <add>, %74, %cst_41 [0] : vector<256x128xf32> to vector<128xf32>
    %76 = vector.shape_cast %75 : vector<128xf32> to vector<1x128xf32>
    %c1_42 = arith.constant 1 : index
    %c0_43 = arith.constant 0 : index
    %77 = vector.load %arg4[%c1_42, %c0_43] : memref<8x128xf32, #tpu.memory_space<vmem>>, vector<1x128xf32>
    tpu.vector_store %arg4[%c1_42, %c0_43], %76 {strides = array<i32>} : memref<8x128xf32, #tpu.memory_space<vmem>>, vector<1x128xf32>,
    return
  }
  func.func @transform_0(%arg0: i32) -> (i32, i32, i32, i32) {
    %c0_i32 = arith.constant 0 : i32
    %c0_i32_0 = arith.constant 0 : i32
    %c0_i32_1 = arith.constant 0 : i32
    %c0_i32_2 = arith.constant 0 : i32
    return %arg0, %c0_i32, %c0_i32_0, %c0_i32_1 : i32, i32, i32, i32
  }
  func.func @transform_1(%arg0: i32) -> (i32, i32, i32) {
    %c0_i32 = arith.constant 0 : i32
    %c0_i32_0 = arith.constant 0 : i32
    %c0_i32_1 = arith.constant 0 : i32
    %c0_i32_2 = arith.constant 0 : i32
    return %c0_i32, %c0_i32_0, %c0_i32_1 : i32, i32, i32
  }
  func.func @transform_2(%arg0: i32) -> (i32, i32, i32, i32) {
    %c0_i32 = arith.constant 0 : i32
    %c0_i32_0 = arith.constant 0 : i32
    %c0_i32_1 = arith.constant 0 : i32
    %c0_i32_2 = arith.constant 0 : i32
    return %arg0, %c0_i32, %c0_i32_0, %c0_i32_1 : i32, i32, i32, i32
  }
  func.func @transform_3(%arg0: i32) -> (i32, i32) {
    %c0_i32 = arith.constant 0 : i32
    %c0_i32_0 = arith.constant 0 : i32
    return %arg0, %c0_i32 : i32, i32
  }
}

module attributes {stable_mosaic.version = 11 : i64} {
  func.func @kernel(%arg0: i32, %arg1: memref<1x18x18x128xbf16, #tpu.memory_space<vmem>>, %arg2: memref<1x1x1x128xf32, #tpu.memory_space<vmem>>, %arg3: memref<1x1x1x128xf32, #tpu.memory_space<vmem>>, %arg4: memref<1x18x18x1xf32, #tpu.memory_space<vmem>>, %arg5: memref<9x128x128xbf16, #tpu.memory_space<vmem>>, %arg6: memref<1x16x16x128xbf16, #tpu.memory_space<vmem>>, %arg7: memref<8x128xf32, #tpu.memory_space<vmem>>) attributes {dimension_semantics = [#tpu.dimension_semantics<parallel>], iteration_bounds = array<i64: 2>, scalar_prefetch = 0 : i64, scratch_operands = 0 : i64, tpu.core_type = #tpu.core_type<tc>, window_params = [{transform_indices = @transform_0, window_bounds = array<i64: 1, 18, 18, 128>}, {pipeline_mode = #tpu.pipeline_mode<synchronous>, transform_indices = @transform_1, window_bounds = array<i64: 1, 1, 1, 128>}, {pipeline_mode = #tpu.pipeline_mode<synchronous>, transform_indices = @transform_2, window_bounds = array<i64: 1, 1, 1, 128>}, {pipeline_mode = #tpu.pipeline_mode<synchronous>, transform_indices = @transform_3, window_bounds = array<i64: 1, 18, 18, 1>}, {pipeline_mode = #tpu.pipeline_mode<synchronous>, transform_indices = @transform_4, window_bounds = array<i64: 9, 128, 128>}, {transform_indices = @transform_5, window_bounds = array<i64: 1, 16, 16, 128>}, {transform_indices = @transform_6, window_bounds = array<i64: 8, 128>}]} {
    %c0 = arith.constant 0 : index
    %c0_0 = arith.constant 0 : index
    %c0_1 = arith.constant 0 : index
    %c0_2 = arith.constant 0 : index
    %0 = vector.load %arg1[%c0, %c0_0, %c0_1, %c0_2] : memref<1x18x18x128xbf16, #tpu.memory_space<vmem>>, vector<1x18x18x128xbf16>
    %1 = arith.extf %0 : vector<1x18x18x128xbf16> to vector<1x18x18x128xf32>
    %c0_3 = arith.constant 0 : index
    %c0_4 = arith.constant 0 : index
    %c0_5 = arith.constant 0 : index
    %c0_6 = arith.constant 0 : index
    %2 = vector.load %arg2[%c0_3, %c0_4, %c0_5, %c0_6] : memref<1x1x1x128xf32, #tpu.memory_space<vmem>>, vector<1x1x1x128xf32>
    %3 = vector.broadcast %2 : vector<1x1x1x128xf32> to vector<1x18x18x128xf32>
    %4 = arith.mulf %1, %3 : vector<1x18x18x128xf32>
    %c0_7 = arith.constant 0 : index
    %c0_8 = arith.constant 0 : index
    %c0_9 = arith.constant 0 : index
    %c0_10 = arith.constant 0 : index
    %5 = vector.load %arg3[%c0_7, %c0_8, %c0_9, %c0_10] : memref<1x1x1x128xf32, #tpu.memory_space<vmem>>, vector<1x1x1x128xf32>
    %6 = vector.broadcast %5 : vector<1x1x1x128xf32> to vector<1x18x18x128xf32>
    %7 = arith.addf %4, %6 : vector<1x18x18x128xf32>
    %cst = arith.constant 0.000000e+00 : f32
    %8 = vector.broadcast %cst : f32 to vector<1x18x18x128xf32>
    %9 = arith.maximumf %7, %8 : vector<1x18x18x128xf32>
    %c0_11 = arith.constant 0 : index
    %c0_12 = arith.constant 0 : index
    %c0_13 = arith.constant 0 : index
    %c0_14 = arith.constant 0 : index
    %10 = vector.load %arg4[%c0_11, %c0_12, %c0_13, %c0_14] : memref<1x18x18x1xf32, #tpu.memory_space<vmem>>, vector<1x18x18x1xf32>
    %11 = vector.broadcast %10 : vector<1x18x18x1xf32> to vector<1x18x18x128xf32>
    %12 = arith.mulf %9, %11 : vector<1x18x18x128xf32>
    %cst_15 = arith.constant 0.000000e+00 : f32
    %13 = vector.broadcast %cst_15 : f32 to vector<256x128xf32>
    %14 = vector.extract_strided_slice %12 {offsets = [0, 0, 0, 0], sizes = [1, 16, 16, 128], strides = [1, 1, 1, 1]} : vector<1x18x18x128xf32> to vector<1x16x16x128xf32>
    %15 = vector.shape_cast %14 : vector<1x16x16x128xf32> to vector<256x128xf32>
    %16 = arith.truncf %15 : vector<256x128xf32> to vector<256x128xbf16>
    %c0_16 = arith.constant 0 : index
    %c0_17 = arith.constant 0 : index
    %c0_18 = arith.constant 0 : index
    %17 = vector.load %arg5[%c0_16, %c0_17, %c0_18] : memref<9x128x128xbf16, #tpu.memory_space<vmem>>, vector<1x128x128xbf16>
    %18 = vector.shape_cast %17 : vector<1x128x128xbf16> to vector<128x128xbf16>
    %cst_19 = arith.constant dense<0.000000e+00> : vector<256x128xf32>
    %19 = tpu.matmul %16, %18, %cst_19 {dimension_numbers = #tpu.dot_dimension_numbers<[1], [0], [0], [1], [0, 0, 1, 1], [], []>} : vector<256x128xbf16>, vector<128x128xbf16>, vector<256x128xf32> -> vector<256x128xf32>
    %20 = arith.addf %13, %19 : vector<256x128xf32>
    %21 = vector.extract_strided_slice %12 {offsets = [0, 0, 1, 0], sizes = [1, 16, 16, 128], strides = [1, 1, 1, 1]} : vector<1x18x18x128xf32> to vector<1x16x16x128xf32>
    %22 = vector.shape_cast %21 : vector<1x16x16x128xf32> to vector<256x128xf32>
    %23 = arith.truncf %22 : vector<256x128xf32> to vector<256x128xbf16>
    %c1 = arith.constant 1 : index
    %c0_20 = arith.constant 0 : index
    %c0_21 = arith.constant 0 : index
    %24 = vector.load %arg5[%c1, %c0_20, %c0_21] : memref<9x128x128xbf16, #tpu.memory_space<vmem>>, vector<1x128x128xbf16>
    %25 = vector.shape_cast %24 : vector<1x128x128xbf16> to vector<128x128xbf16>
    %cst_22 = arith.constant dense<0.000000e+00> : vector<256x128xf32>
    %26 = tpu.matmul %23, %25, %cst_22 {dimension_numbers = #tpu.dot_dimension_numbers<[1], [0], [0], [1], [0, 0, 1, 1], [], []>} : vector<256x128xbf16>, vector<128x128xbf16>, vector<256x128xf32> -> vector<256x128xf32>
    %27 = arith.addf %20, %26 : vector<256x128xf32>
    %28 = vector.extract_strided_slice %12 {offsets = [0, 0, 2, 0], sizes = [1, 16, 16, 128], strides = [1, 1, 1, 1]} : vector<1x18x18x128xf32> to vector<1x16x16x128xf32>
    %29 = vector.shape_cast %28 : vector<1x16x16x128xf32> to vector<256x128xf32>
    %30 = arith.truncf %29 : vector<256x128xf32> to vector<256x128xbf16>
    %c2 = arith.constant 2 : index
    %c0_23 = arith.constant 0 : index
    %c0_24 = arith.constant 0 : index
    %31 = vector.load %arg5[%c2, %c0_23, %c0_24] : memref<9x128x128xbf16, #tpu.memory_space<vmem>>, vector<1x128x128xbf16>
    %32 = vector.shape_cast %31 : vector<1x128x128xbf16> to vector<128x128xbf16>
    %cst_25 = arith.constant dense<0.000000e+00> : vector<256x128xf32>
    %33 = tpu.matmul %30, %32, %cst_25 {dimension_numbers = #tpu.dot_dimension_numbers<[1], [0], [0], [1], [0, 0, 1, 1], [], []>} : vector<256x128xbf16>, vector<128x128xbf16>, vector<256x128xf32> -> vector<256x128xf32>
    %34 = arith.addf %27, %33 : vector<256x128xf32>
    %35 = vector.extract_strided_slice %12 {offsets = [0, 1, 0, 0], sizes = [1, 16, 16, 128], strides = [1, 1, 1, 1]} : vector<1x18x18x128xf32> to vector<1x16x16x128xf32>
    %36 = vector.shape_cast %35 : vector<1x16x16x128xf32> to vector<256x128xf32>
    %37 = arith.truncf %36 : vector<256x128xf32> to vector<256x128xbf16>
    %c3 = arith.constant 3 : index
    %c0_26 = arith.constant 0 : index
    %c0_27 = arith.constant 0 : index
    %38 = vector.load %arg5[%c3, %c0_26, %c0_27] : memref<9x128x128xbf16, #tpu.memory_space<vmem>>, vector<1x128x128xbf16>
    %39 = vector.shape_cast %38 : vector<1x128x128xbf16> to vector<128x128xbf16>
    %cst_28 = arith.constant dense<0.000000e+00> : vector<256x128xf32>
    %40 = tpu.matmul %37, %39, %cst_28 {dimension_numbers = #tpu.dot_dimension_numbers<[1], [0], [0], [1], [0, 0, 1, 1], [], []>} : vector<256x128xbf16>, vector<128x128xbf16>, vector<256x128xf32> -> vector<256x128xf32>
    %41 = arith.addf %34, %40 : vector<256x128xf32>
    %42 = vector.extract_strided_slice %12 {offsets = [0, 1, 1, 0], sizes = [1, 16, 16, 128], strides = [1, 1, 1, 1]} : vector<1x18x18x128xf32> to vector<1x16x16x128xf32>
    %43 = vector.shape_cast %42 : vector<1x16x16x128xf32> to vector<256x128xf32>
    %44 = arith.truncf %43 : vector<256x128xf32> to vector<256x128xbf16>
    %c4 = arith.constant 4 : index
    %c0_29 = arith.constant 0 : index
    %c0_30 = arith.constant 0 : index
    %45 = vector.load %arg5[%c4, %c0_29, %c0_30] : memref<9x128x128xbf16, #tpu.memory_space<vmem>>, vector<1x128x128xbf16>
    %46 = vector.shape_cast %45 : vector<1x128x128xbf16> to vector<128x128xbf16>
    %cst_31 = arith.constant dense<0.000000e+00> : vector<256x128xf32>
    %47 = tpu.matmul %44, %46, %cst_31 {dimension_numbers = #tpu.dot_dimension_numbers<[1], [0], [0], [1], [0, 0, 1, 1], [], []>} : vector<256x128xbf16>, vector<128x128xbf16>, vector<256x128xf32> -> vector<256x128xf32>
    %48 = arith.addf %41, %47 : vector<256x128xf32>
    %49 = vector.extract_strided_slice %12 {offsets = [0, 1, 2, 0], sizes = [1, 16, 16, 128], strides = [1, 1, 1, 1]} : vector<1x18x18x128xf32> to vector<1x16x16x128xf32>
    %50 = vector.shape_cast %49 : vector<1x16x16x128xf32> to vector<256x128xf32>
    %51 = arith.truncf %50 : vector<256x128xf32> to vector<256x128xbf16>
    %c5 = arith.constant 5 : index
    %c0_32 = arith.constant 0 : index
    %c0_33 = arith.constant 0 : index
    %52 = vector.load %arg5[%c5, %c0_32, %c0_33] : memref<9x128x128xbf16, #tpu.memory_space<vmem>>, vector<1x128x128xbf16>
    %53 = vector.shape_cast %52 : vector<1x128x128xbf16> to vector<128x128xbf16>
    %cst_34 = arith.constant dense<0.000000e+00> : vector<256x128xf32>
    %54 = tpu.matmul %51, %53, %cst_34 {dimension_numbers = #tpu.dot_dimension_numbers<[1], [0], [0], [1], [0, 0, 1, 1], [], []>} : vector<256x128xbf16>, vector<128x128xbf16>, vector<256x128xf32> -> vector<256x128xf32>
    %55 = arith.addf %48, %54 : vector<256x128xf32>
    %56 = vector.extract_strided_slice %12 {offsets = [0, 2, 0, 0], sizes = [1, 16, 16, 128], strides = [1, 1, 1, 1]} : vector<1x18x18x128xf32> to vector<1x16x16x128xf32>
    %57 = vector.shape_cast %56 : vector<1x16x16x128xf32> to vector<256x128xf32>
    %58 = arith.truncf %57 : vector<256x128xf32> to vector<256x128xbf16>
    %c6 = arith.constant 6 : index
    %c0_35 = arith.constant 0 : index
    %c0_36 = arith.constant 0 : index
    %59 = vector.load %arg5[%c6, %c0_35, %c0_36] : memref<9x128x128xbf16, #tpu.memory_space<vmem>>, vector<1x128x128xbf16>
    %60 = vector.shape_cast %59 : vector<1x128x128xbf16> to vector<128x128xbf16>
    %cst_37 = arith.constant dense<0.000000e+00> : vector<256x128xf32>
    %61 = tpu.matmul %58, %60, %cst_37 {dimension_numbers = #tpu.dot_dimension_numbers<[1], [0], [0], [1], [0, 0, 1, 1], [], []>} : vector<256x128xbf16>, vector<128x128xbf16>, vector<256x128xf32> -> vector<256x128xf32>
    %62 = arith.addf %55, %61 : vector<256x128xf32>
    %63 = vector.extract_strided_slice %12 {offsets = [0, 2, 1, 0], sizes = [1, 16, 16, 128], strides = [1, 1, 1, 1]} : vector<1x18x18x128xf32> to vector<1x16x16x128xf32>
    %64 = vector.shape_cast %63 : vector<1x16x16x128xf32> to vector<256x128xf32>
    %65 = arith.truncf %64 : vector<256x128xf32> to vector<256x128xbf16>
    %c7 = arith.constant 7 : index
    %c0_38 = arith.constant 0 : index
    %c0_39 = arith.constant 0 : index
    %66 = vector.load %arg5[%c7, %c0_38, %c0_39] : memref<9x128x128xbf16, #tpu.memory_space<vmem>>, vector<1x128x128xbf16>
    %67 = vector.shape_cast %66 : vector<1x128x128xbf16> to vector<128x128xbf16>
    %cst_40 = arith.constant dense<0.000000e+00> : vector<256x128xf32>
    %68 = tpu.matmul %65, %67, %cst_40 {dimension_numbers = #tpu.dot_dimension_numbers<[1], [0], [0], [1], [0, 0, 1, 1], [], []>} : vector<256x128xbf16>, vector<128x128xbf16>, vector<256x128xf32> -> vector<256x128xf32>
    %69 = arith.addf %62, %68 : vector<256x128xf32>
    %70 = vector.extract_strided_slice %12 {offsets = [0, 2, 2, 0], sizes = [1, 16, 16, 128], strides = [1, 1, 1, 1]} : vector<1x18x18x128xf32> to vector<1x16x16x128xf32>
    %71 = vector.shape_cast %70 : vector<1x16x16x128xf32> to vector<256x128xf32>
    %72 = arith.truncf %71 : vector<256x128xf32> to vector<256x128xbf16>
    %c8 = arith.constant 8 : index
    %c0_41 = arith.constant 0 : index
    %c0_42 = arith.constant 0 : index
    %73 = vector.load %arg5[%c8, %c0_41, %c0_42] : memref<9x128x128xbf16, #tpu.memory_space<vmem>>, vector<1x128x128xbf16>
    %74 = vector.shape_cast %73 : vector<1x128x128xbf16> to vector<128x128xbf16>
    %cst_43 = arith.constant dense<0.000000e+00> : vector<256x128xf32>
    %75 = tpu.matmul %72, %74, %cst_43 {dimension_numbers = #tpu.dot_dimension_numbers<[1], [0], [0], [1], [0, 0, 1, 1], [], []>} : vector<256x128xbf16>, vector<128x128xbf16>, vector<256x128xf32> -> vector<256x128xf32>
    %76 = arith.addf %69, %75 : vector<256x128xf32>
    %77 = vector.shape_cast %76 : vector<256x128xf32> to vector<1x16x16x128xf32>
    %78 = arith.truncf %77 : vector<1x16x16x128xf32> to vector<1x16x16x128xbf16>
    %c0_44 = arith.constant 0 : index
    %c0_45 = arith.constant 0 : index
    %c0_46 = arith.constant 0 : index
    %c0_47 = arith.constant 0 : index
    %79 = vector.load %arg6[%c0_44, %c0_45, %c0_46, %c0_47] : memref<1x16x16x128xbf16, #tpu.memory_space<vmem>>, vector<1x16x16x128xbf16>
    tpu.vector_store %arg6[%c0_44, %c0_45, %c0_46, %c0_47], %78 {strides = array<i32>} : memref<1x16x16x128xbf16, #tpu.memory_space<vmem>>, vector<1x16x16x128xbf16>,
    %cst_48 = arith.constant 0.000000e+00 : f32
    %80 = vector.broadcast %cst_48 : f32 to vector<8x128xf32>
    %c0_49 = arith.constant 0 : index
    %c0_50 = arith.constant 0 : index
    %81 = vector.load %arg7[%c0_49, %c0_50] : memref<8x128xf32, #tpu.memory_space<vmem>>, vector<8x128xf32>
    tpu.vector_store %arg7[%c0_49, %c0_50], %80 {strides = array<i32>} : memref<8x128xf32, #tpu.memory_space<vmem>>, vector<8x128xf32>,
    %cst_51 = arith.constant dense<0.000000e+00> : vector<128xf32>
    %82 = vector.multi_reduction <add>, %76, %cst_51 [0] : vector<256x128xf32> to vector<128xf32>
    %83 = vector.shape_cast %82 : vector<128xf32> to vector<1x128xf32>
    %c0_52 = arith.constant 0 : index
    %c0_53 = arith.constant 0 : index
    %84 = vector.load %arg7[%c0_52, %c0_53] : memref<8x128xf32, #tpu.memory_space<vmem>>, vector<1x128xf32>
    tpu.vector_store %arg7[%c0_52, %c0_53], %83 {strides = array<i32>} : memref<8x128xf32, #tpu.memory_space<vmem>>, vector<1x128xf32>,
    %85 = arith.mulf %76, %76 : vector<256x128xf32>
    %cst_54 = arith.constant dense<0.000000e+00> : vector<128xf32>
    %86 = vector.multi_reduction <add>, %85, %cst_54 [0] : vector<256x128xf32> to vector<128xf32>
    %87 = vector.shape_cast %86 : vector<128xf32> to vector<1x128xf32>
    %c1_55 = arith.constant 1 : index
    %c0_56 = arith.constant 0 : index
    %88 = vector.load %arg7[%c1_55, %c0_56] : memref<8x128xf32, #tpu.memory_space<vmem>>, vector<1x128xf32>
    tpu.vector_store %arg7[%c1_55, %c0_56], %87 {strides = array<i32>} : memref<8x128xf32, #tpu.memory_space<vmem>>, vector<1x128xf32>,
    return
  }
  func.func @transform_0(%arg0: i32) -> (i32, i32, i32, i32) {
    %c0_i32 = arith.constant 0 : i32
    %c0_i32_0 = arith.constant 0 : i32
    %c0_i32_1 = arith.constant 0 : i32
    %c0_i32_2 = arith.constant 0 : i32
    return %arg0, %c0_i32, %c0_i32_0, %c0_i32_1 : i32, i32, i32, i32
  }
  func.func @transform_1(%arg0: i32) -> (i32, i32, i32, i32) {
    %c0_i32 = arith.constant 0 : i32
    %c0_i32_0 = arith.constant 0 : i32
    %c0_i32_1 = arith.constant 0 : i32
    %c0_i32_2 = arith.constant 0 : i32
    %c0_i32_3 = arith.constant 0 : i32
    return %c0_i32, %c0_i32_0, %c0_i32_1, %c0_i32_2 : i32, i32, i32, i32
  }
  func.func @transform_2(%arg0: i32) -> (i32, i32, i32, i32) {
    %c0_i32 = arith.constant 0 : i32
    %c0_i32_0 = arith.constant 0 : i32
    %c0_i32_1 = arith.constant 0 : i32
    %c0_i32_2 = arith.constant 0 : i32
    %c0_i32_3 = arith.constant 0 : i32
    return %c0_i32, %c0_i32_0, %c0_i32_1, %c0_i32_2 : i32, i32, i32, i32
  }
  func.func @transform_3(%arg0: i32) -> (i32, i32, i32, i32) {
    %c0_i32 = arith.constant 0 : i32
    %c0_i32_0 = arith.constant 0 : i32
    %c0_i32_1 = arith.constant 0 : i32
    %c0_i32_2 = arith.constant 0 : i32
    %c0_i32_3 = arith.constant 0 : i32
    return %c0_i32, %c0_i32_0, %c0_i32_1, %c0_i32_2 : i32, i32, i32, i32
  }
  func.func @transform_4(%arg0: i32) -> (i32, i32, i32) {
    %c0_i32 = arith.constant 0 : i32
    %c0_i32_0 = arith.constant 0 : i32
    %c0_i32_1 = arith.constant 0 : i32
    %c0_i32_2 = arith.constant 0 : i32
    return %c0_i32, %c0_i32_0, %c0_i32_1 : i32, i32, i32
  }
  func.func @transform_5(%arg0: i32) -> (i32, i32, i32, i32) {
    %c0_i32 = arith.constant 0 : i32
    %c0_i32_0 = arith.constant 0 : i32
    %c0_i32_1 = arith.constant 0 : i32
    %c0_i32_2 = arith.constant 0 : i32
    return %arg0, %c0_i32, %c0_i32_0, %c0_i32_1 : i32, i32, i32, i32
  }
  func.func @transform_6(%arg0: i32) -> (i32, i32) {
    %c0_i32 = arith.constant 0 : i32
    %c0_i32_0 = arith.constant 0 : i32
    return %arg0, %c0_i32 : i32, i32
  }
}

module attributes {stable_mosaic.version = 11 : i64} {
  func.func @kernel(%arg0: i32, %arg1: memref<1x16x16x128xbf16, #tpu.memory_space<vmem>>, %arg2: memref<1x1x1x128xf32, #tpu.memory_space<vmem>>, %arg3: memref<1x1x1x128xf32, #tpu.memory_space<vmem>>, %arg4: memref<1x16x16x8xbf16, #tpu.memory_space<vmem>>, %arg5: memref<8x128xf32, #tpu.memory_space<vmem>>, %arg6: memref<1x16x16x128xbf16, #tpu.memory_space<vmem>>) attributes {dimension_semantics = [#tpu.dimension_semantics<parallel>], iteration_bounds = array<i64: 2>, scalar_prefetch = 0 : i64, scratch_operands = 0 : i64, tpu.core_type = #tpu.core_type<tc>, window_params = [{transform_indices = @transform_0, window_bounds = array<i64: 1, 16, 16, 128>}, {pipeline_mode = #tpu.pipeline_mode<synchronous>, transform_indices = @transform_1, window_bounds = array<i64: 1, 1, 1, 128>}, {pipeline_mode = #tpu.pipeline_mode<synchronous>, transform_indices = @transform_2, window_bounds = array<i64: 1, 1, 1, 128>}, {transform_indices = @transform_3, window_bounds = array<i64: 1, 16, 16, 8>}, {pipeline_mode = #tpu.pipeline_mode<synchronous>, transform_indices = @transform_4, window_bounds = array<i64: 8, 128>}, {transform_indices = @transform_5, window_bounds = array<i64: 1, 16, 16, 128>}]} {
    %c0 = arith.constant 0 : index
    %c0_0 = arith.constant 0 : index
    %c0_1 = arith.constant 0 : index
    %c0_2 = arith.constant 0 : index
    %0 = vector.load %arg1[%c0, %c0_0, %c0_1, %c0_2] : memref<1x16x16x128xbf16, #tpu.memory_space<vmem>>, vector<1x16x16x128xbf16>
    %1 = arith.extf %0 : vector<1x16x16x128xbf16> to vector<1x16x16x128xf32>
    %c0_3 = arith.constant 0 : index
    %c0_4 = arith.constant 0 : index
    %c0_5 = arith.constant 0 : index
    %c0_6 = arith.constant 0 : index
    %2 = vector.load %arg2[%c0_3, %c0_4, %c0_5, %c0_6] : memref<1x1x1x128xf32, #tpu.memory_space<vmem>>, vector<1x1x1x128xf32>
    %3 = vector.broadcast %2 : vector<1x1x1x128xf32> to vector<1x16x16x128xf32>
    %4 = arith.mulf %1, %3 : vector<1x16x16x128xf32>
    %c0_7 = arith.constant 0 : index
    %c0_8 = arith.constant 0 : index
    %c0_9 = arith.constant 0 : index
    %c0_10 = arith.constant 0 : index
    %5 = vector.load %arg3[%c0_7, %c0_8, %c0_9, %c0_10] : memref<1x1x1x128xf32, #tpu.memory_space<vmem>>, vector<1x1x1x128xf32>
    %6 = vector.broadcast %5 : vector<1x1x1x128xf32> to vector<1x16x16x128xf32>
    %7 = arith.addf %4, %6 : vector<1x16x16x128xf32>
    %c0_11 = arith.constant 0 : index
    %c0_12 = arith.constant 0 : index
    %c0_13 = arith.constant 0 : index
    %c0_14 = arith.constant 0 : index
    %8 = vector.load %arg4[%c0_11, %c0_12, %c0_13, %c0_14] : memref<1x16x16x8xbf16, #tpu.memory_space<vmem>>, vector<1x16x16x8xbf16>
    %9 = arith.extf %8 : vector<1x16x16x8xbf16> to vector<1x16x16x8xf32>
    %10 = vector.shape_cast %9 : vector<1x16x16x8xf32> to vector<256x8xf32>
    %c0_15 = arith.constant 0 : index
    %c0_16 = arith.constant 0 : index
    %11 = vector.load %arg5[%c0_15, %c0_16] : memref<8x128xf32, #tpu.memory_space<vmem>>, vector<8x128xf32>
    %cst = arith.constant dense<0.000000e+00> : vector<256x128xf32>
    %12 = tpu.matmul %10, %11, %cst {dimension_numbers = #tpu.dot_dimension_numbers<[1], [0], [0], [1], [0, 0, 1, 1], [], []>} : vector<256x8xf32>, vector<8x128xf32>, vector<256x128xf32> -> vector<256x128xf32>
    %13 = vector.shape_cast %12 : vector<256x128xf32> to vector<1x16x16x128xf32>
    %14 = arith.addf %7, %13 : vector<1x16x16x128xf32>
    %cst_17 = arith.constant 0.000000e+00 : f32
    %15 = vector.broadcast %cst_17 : f32 to vector<1x16x16x128xf32>
    %16 = arith.maximumf %14, %15 : vector<1x16x16x128xf32>
    %17 = arith.truncf %16 : vector<1x16x16x128xf32> to vector<1x16x16x128xbf16>
    %c0_18 = arith.constant 0 : index
    %c0_19 = arith.constant 0 : index
    %c0_20 = arith.constant 0 : index
    %c0_21 = arith.constant 0 : index
    %18 = vector.load %arg6[%c0_18, %c0_19, %c0_20, %c0_21] : memref<1x16x16x128xbf16, #tpu.memory_space<vmem>>, vector<1x16x16x128xbf16>
    tpu.vector_store %arg6[%c0_18, %c0_19, %c0_20, %c0_21], %17 {strides = array<i32>} : memref<1x16x16x128xbf16, #tpu.memory_space<vmem>>, vector<1x16x16x128xbf16>,
    return
  }
  func.func @transform_0(%arg0: i32) -> (i32, i32, i32, i32) {
    %c0_i32 = arith.constant 0 : i32
    %c0_i32_0 = arith.constant 0 : i32
    %c0_i32_1 = arith.constant 0 : i32
    %c0_i32_2 = arith.constant 0 : i32
    return %arg0, %c0_i32, %c0_i32_0, %c0_i32_1 : i32, i32, i32, i32
  }
  func.func @transform_1(%arg0: i32) -> (i32, i32, i32, i32) {
    %c0_i32 = arith.constant 0 : i32
    %c0_i32_0 = arith.constant 0 : i32
    %c0_i32_1 = arith.constant 0 : i32
    %c0_i32_2 = arith.constant 0 : i32
    %c0_i32_3 = arith.constant 0 : i32
    return %c0_i32, %c0_i32_0, %c0_i32_1, %c0_i32_2 : i32, i32, i32, i32
  }
  func.func @transform_2(%arg0: i32) -> (i32, i32, i32, i32) {
    %c0_i32 = arith.constant 0 : i32
    %c0_i32_0 = arith.constant 0 : i32
    %c0_i32_1 = arith.constant 0 : i32
    %c0_i32_2 = arith.constant 0 : i32
    %c0_i32_3 = arith.constant 0 : i32
    return %c0_i32, %c0_i32_0, %c0_i32_1, %c0_i32_2 : i32, i32, i32, i32
  }
  func.func @transform_3(%arg0: i32) -> (i32, i32, i32, i32) {
    %c0_i32 = arith.constant 0 : i32
    %c0_i32_0 = arith.constant 0 : i32
    %c0_i32_1 = arith.constant 0 : i32
    %c0_i32_2 = arith.constant 0 : i32
    return %arg0, %c0_i32, %c0_i32_0, %c0_i32_1 : i32, i32, i32, i32
  }
  func.func @transform_4(%arg0: i32) -> (i32, i32) {
    %c0_i32 = arith.constant 0 : i32
    %c0_i32_0 = arith.constant 0 : i32
    %c0_i32_1 = arith.constant 0 : i32
    return %c0_i32, %c0_i32_0 : i32, i32
  }
  func.func @transform_5(%arg0: i32) -> (i32, i32, i32, i32) {
    %c0_i32 = arith.constant 0 : i32
    %c0_i32_0 = arith.constant 0 : i32
    %c0_i32_1 = arith.constant 0 : i32
    %c0_i32_2 = arith.constant 0 : i32
    return %arg0, %c0_i32, %c0_i32_0, %c0_i32_1 : i32, i32, i32, i32
  }
}

</mosaic_0001>

<llo_original>
// kernel: _lambda_.3
$region0: #{_lambda_.3}
  #allocation0 [shape = 'u32[]', space=smem, size = 0x4, offset = 0x4, fixed_abs, tag = 'smem constant byte address 0x4 - core index']
  #allocation1 [shape = 'u32[144,128]{1,0:T(1,128)}', space=vmem, size = 0x12000, scoped, tag = 'internal scratch']
  %s0 = inlined_call_operand.vmem [shape: bf16[2,18,18,8], index: 0, kind: input, shape index: {}]
  %s1 = inlined_call_operand.vmem [shape: bf16[9,8,128], index: 1, kind: input, shape index: {}]
  %s2 = inlined_call_operand.vmem [shape: bf16[2,16,16,128], index: 2, kind: output, shape index: {0}]
  %s3 = inlined_call_operand.vmem [shape: f32[16,128], index: 3, kind: output, shape index: {1}]
  %4 = xla_tuple %s2, %s3
  %s5 = sld [smem:[#allocation0]]
  $region49: #{_lambda_.3} parent=0
    _
  %s7 = ssub.s32 1, %s5
  %s8 = scalar_select 0, %s7, %s5
  loop: start=0, step=1, limit=4
  $region2: #{_lambda_.3} parent=0 // loop_pre_header
    _
  $region3: #{_lambda_.3} parent=0 // loop_header
    %s10 = sphi 0, %s14
    %p11 = scmp.ge.s32.totalorder %s10, 4
    %s20 = sphi 0, %s22
    %s23 = sphi 0, %s20
    %s24 = sphi 0, %s23
    %s40 = sphi 0, %s24
    %s44 = sphi 0, %s44
    %s46 = sphi 0, %s44
    %s47 = sphi 0, %s46
    %s61 = sphi 0, %s47
    %s67 = sphi 0, %s69
    %s70 = sphi 0, %s67
    %s71 = sphi 0, %s70
    %s87 = sphi 0, %s71
    %s93 = sphi 0, %s95
    %s96 = sphi 0, %s93
    %s97 = sphi 0, %s96
    %s113 = sphi 0, %s97
  $region4: #{_lambda_.3} parent=0 // loop_header_branch
    %13 = sbr.rel (%p11) target = $region8
  $region5: #{_lambda_.3} parent=0 // loop_body
    %s15 = ssub.s32 %s10, 1
    %s16 = ssub.s32 %s10, 2
    %s17 = sadd.s32 %s10, 1
    %s18 = ssub.s32 %s10, %s17
    %p19 = scmp.eq.s32.totalorder %s18, 0
    %s21 = sadd.s32 %s20, 1
    %s22 = scalar_select %p19, %s20, %s21
    %p25 = pneg %p19
    %p26 = scmp.eq.s32.totalorder %s10, 1
    %p27 = por %p25, %p26
    %p28 = scmp.ne.s32.totalorder %s20, %s23
    %p29 = scmp.eq.s32.totalorder %s10, 0
    %p30 = por %p28, %p29
    %p31 = scmp.ne.s32.totalorder %s20, %s23
    %p32 = scmp.eq.s32.totalorder %s15, 1
    %p33 = por %p31, %p32
    %p34 = scmp.ne.s32.totalorder %s23, %s24
    %p35 = scmp.eq.s32.totalorder %s15, 0
    %p36 = por %p34, %p35
    %p37 = scmp.ne.s32.totalorder %s23, %s24
    %p38 = scmp.eq.s32.totalorder %s16, 1
    %p39 = por %p37, %p38
    %p41 = scmp.ne.s32.totalorder %s24, %s40
    %p42 = scmp.eq.s32.totalorder %s16, 0
    %p43 = por %p41, %p42
    %s45 = sadd.s32 %s44, 1
    %p48 = scmp.eq.s32.totalorder %s10, 1
    %p49 = scmp.ne.s32.totalorder %s44, %s46
    %p50 = scmp.eq.s32.totalorder %s10, 0
    %p51 = por %p49, %p50
    %p52 = scmp.ne.s32.totalorder %s44, %s46
    %p53 = scmp.eq.s32.totalorder %s15, 1
    %p54 = por %p52, %p53
    %p55 = scmp.ne.s32.totalorder %s46, %s47
    %p56 = scmp.eq.s32.totalorder %s15, 0
    %p57 = por %p55, %p56
    %p58 = scmp.ne.s32.totalorder %s46, %s47
    %p59 = scmp.eq.s32.totalorder %s16, 1
    %p60 = por %p58, %p59
    %p62 = scmp.ne.s32.totalorder %s47, %s61
    %p63 = scmp.eq.s32.totalorder %s16, 0
    %p64 = por %p62, %p63
    %s65 = ssub.s32 %s10, %s17
    %p66 = scmp.eq.s32.totalorder %s65, 0
    %s68 = sadd.s32 %s67, 1
    %s69 = scalar_select %p66, %s67, %s68
    %p72 = pneg %p66
    %p73 = scmp.eq.s32.totalorder %s10, 1
    %p74 = por %p72, %p73
    %p75 = scmp.ne.s32.totalorder %s67, %s70
    %p76 = scmp.eq.s32.totalorder %s10, 0
    %p77 = por %p75, %p76
    %p78 = scmp.ne.s32.totalorder %s67, %s70
    %p79 = scmp.eq.s32.totalorder %s15, 1
    %p80 = por %p78, %p79
    %p81 = scmp.ne.s32.totalorder %s70, %s71
    %p82 = scmp.eq.s32.totalorder %s15, 0
    %p83 = por %p81, %p82
    %p84 = scmp.ne.s32.totalorder %s70, %s71
    %p85 = scmp.eq.s32.totalorder %s16, 1
    %p86 = por %p84, %p85
    %p88 = scmp.ne.s32.totalorder %s71, %s87
    %p89 = scmp.eq.s32.totalorder %s16, 0
    %p90 = por %p88, %p89
    %s91 = ssub.s32 %s10, %s17
    %p92 = scmp.eq.s32.totalorder %s91, 0
    %s94 = sadd.s32 %s93, 1
    %s95 = scalar_select %p92, %s93, %s94
    %p98 = pneg %p92
    %p99 = scmp.eq.s32.totalorder %s10, 1
    %p100 = por %p98, %p99
    %p101 = scmp.ne.s32.totalorder %s93, %s96
    %p102 = scmp.eq.s32.totalorder %s10, 0
    %p103 = por %p101, %p102
    %p104 = scmp.ne.s32.totalorder %s93, %s96
    %p105 = scmp.eq.s32.totalorder %s15, 1
    %p106 = por %p104, %p105
    %p107 = scmp.ne.s32.totalorder %s96, %s97
    %p108 = scmp.eq.s32.totalorder %s15, 0
    %p109 = por %p107, %p108
    %p110 = scmp.ne.s32.totalorder %s96, %s97
    %p111 = scmp.eq.s32.totalorder %s16, 1
    %p112 = por %p110, %p111
    %p114 = scmp.ne.s32.totalorder %s97, %s113
    %p115 = scmp.eq.s32.totalorder %s16, 0
    %p116 = por %p114, %p115
    %p117 = scmp.le.s32.totalorder 1, %s10
    %p118 = scmp.lt.s32.totalorder %s10, 3
    %p119 = pnand %p117, %p118
    %p120 = pneg %p119
    // Predicated region
    $region9: #{_lambda_.3} parent=5 // pred_check
      _
    $region10: #{_lambda_.3} parent=5 // pred_check_branch
      %122 = sbr.rel (%p119) target = $region12
    $region11: #{_lambda_.3} parent=5 // pred_region
      %s123 = ssub.s32 %s10, 1
      // Predicated region
      $region13: #{_lambda_.3} parent=11 // pred_check
        %p124 = pneg %p57
      $region14: #{_lambda_.3} parent=11 // pred_check_branch
        %126 = sbr.rel (%p124) target = $region16
      $region15: #{_lambda_.3} parent=11 // pred_region
        _
      $region16: #{_lambda_.3} parent=11 // pred_fallthru
        _
    $region12: #{_lambda_.3} parent=5 // pred_fallthru
      _
    %p127 = scmp.lt.s32.totalorder %s10, 2
    // Predicated region
    $region17: #{_lambda_.3} parent=5 // pred_check
      %p128 = pneg %p127
    $region18: #{_lambda_.3} parent=5 // pred_check_branch
      %130 = sbr.rel (%p128) target = $region20
    $region19: #{_lambda_.3} parent=5 // pred_region
      // Predicated region
      $region21: #{_lambda_.3} parent=19 // pred_check
        %p131 = pneg %p30
      $region22: #{_lambda_.3} parent=19 // pred_check_branch
        %133 = sbr.rel (%p131) target = $region24
      $region23: #{_lambda_.3} parent=19 // pred_region
        %p134 = scmp.lt.s32.totalorder %s10, 1
        %s135 = scalar_select %p134, %s10, 1
        %s136 = smul.addr %s135, 54
        %s137 = smul.addr %s136, 4
        %s138 = scalar_lea.vmem %s0, %s137
      $region24: #{_lambda_.3} parent=19 // pred_fallthru
        _
    $region20: #{_lambda_.3} parent=5 // pred_fallthru
      _
    %p139 = scmp.le.s32.totalorder 1, %s10
    %p140 = scmp.lt.s32.totalorder %s10, 3
    %p141 = pnand %p139, %p140
    %p142 = pneg %p141
    // Predicated region
    $region25: #{_lambda_.3} parent=5 // pred_check
      _
    $region26: #{_lambda_.3} parent=5 // pred_check_branch
      %144 = sbr.rel (%p141) target = $region28
    $region27: #{_lambda_.3} parent=5 // pred_region
      %s145 = ssub.s32 %s10, 1
      %p146 = scmp.lt.s32.totalorder %s15, 1
      %s147 = scalar_select %p146, %s15, 1
      %s148 = smul.addr %s147, 54
      %s149 = smul.addr %s148, 4
      %s150 = scalar_lea.vmem %s0, %s149
      %p151 = pneg %p36
      %p152 = pneg %p33
      %p153 = pneg %p57
      %p154 = pneg %p54
      %p155 = pneg %p83
      %p156 = pneg %p80
      %p157 = scmp.lt.s32.totalorder %s15, 1
      %s158 = scalar_select %p157, %s15, 1
      %s159 = smul.addr %s158, 32
      %s160 = smul.addr %s159, 4
      %s161 = scalar_lea.vmem %s2, %s160
      %p162 = pneg %p109
      %p163 = pneg %p106
      %p164 = scmp.lt.s32.totalorder %s15, 1
      %s165 = scalar_select %p164, %s15, 1
      %s166 = smul.addr %s165, 8
      %s167 = scalar_lea.vmem %s3, %s166
      %p168 = scmp.lt.s32.totalorder %s15, 1
      %s169 = scalar_select %p168, %s15, 1
      %s170 = smul.addr %s169, 54
      %s171 = smul.addr %s170, 4
      %s172 = scalar_lea.vmem %s0, %s171
      %p173 = scmp.lt.s32.totalorder %s15, 1
      %s174 = scalar_select %p173, %s15, 1
      %s175 = smul.addr %s174, 32
      %s176 = smul.addr %s175, 4
      %s177 = scalar_lea.vmem %s2, %s176
      %p178 = scmp.lt.s32.totalorder %s15, 1
      %s179 = scalar_select %p178, %s15, 1
      %s180 = smul.addr %s179, 8
      %s181 = scalar_lea.vmem %s3, %s180
      %v183 = vld [vmem:[%s172] sm:$0xf]
      %v184 = vld [vmem:[%s172 + $0x4] sm:$0xf]
      %v185 = vld [vmem:[%s172 + $0x8] sm:$0x1]
      %v186 = vld [vmem:[%s172 + $0xc] sm:$0xf]
      %v187 = vld [vmem:[%s172 + $0x10] sm:$0xf]
      %v188 = vld [vmem:[%s172 + $0x14] sm:$0x1]
      %v189 = vld [vmem:[%s172 + $0x18] sm:$0xf]
      %v190 = vld [vmem:[%s172 + $0x1c] sm:$0xf]
      %v191 = vld [vmem:[%s172 + $0x20] sm:$0x1]
      %v192 = vld [vmem:[%s172 + $0x24] sm:$0xf]
      %v193 = vld [vmem:[%s172 + $0x28] sm:$0xf]
      %v194 = vld [vmem:[%s172 + $0x2c] sm:$0x1]
      %v195 = vld [vmem:[%s172 + $0x30] sm:$0xf]
      %v196 = vld [vmem:[%s172 + $0x34] sm:$0xf]
      %v197 = vld [vmem:[%s172 + $0x38] sm:$0x1]
      %v198 = vld [vmem:[%s172 + $0x3c] sm:$0xf]
      %v199 = vld [vmem:[%s172 + $0x40] sm:$0xf]
      %v200 = vld [vmem:[%s172 + $0x44] sm:$0x1]
      %v201 = vld [vmem:[%s172 + $0x48] sm:$0xf]
      %v202 = vld [vmem:[%s172 + $0x4c] sm:$0xf]
      %v203 = vld [vmem:[%s172 + $0x50] sm:$0x1]
      %v204 = vld [vmem:[%s172 + $0x54] sm:$0xf]
      %v205 = vld [vmem:[%s172 + $0x58] sm:$0xf]
      %v206 = vld [vmem:[%s172 + $0x5c] sm:$0x1]
      %v207 = vld [vmem:[%s172 + $0x60] sm:$0xf]
      %v208 = vld [vmem:[%s172 + $0x64] sm:$0xf]
      %v209 = vld [vmem:[%s172 + $0x68] sm:$0x1]
      %v210 = vld [vmem:[%s172 + $0x6c] sm:$0xf]
      %v211 = vld [vmem:[%s172 + $0x70] sm:$0xf]
      %v212 = vld [vmem:[%s172 + $0x74] sm:$0x1]
      %v213 = vld [vmem:[%s172 + $0x78] sm:$0xf]
      %v214 = vld [vmem:[%s172 + $0x7c] sm:$0xf]
      %v215 = vld [vmem:[%s172 + $0x80] sm:$0x1]
      %v216 = vld [vmem:[%s172 + $0x84] sm:$0xf]
      %v217 = vld [vmem:[%s172 + $0x88] sm:$0xf]
      %v218 = vld [vmem:[%s172 + $0x8c] sm:$0x1]
      %v219 = vld [vmem:[%s172 + $0x90] sm:$0xf]
      %v220 = vld [vmem:[%s172 + $0x94] sm:$0xf]
      %v221 = vld [vmem:[%s172 + $0x98] sm:$0x1]
      %v222 = vld [vmem:[%s172 + $0x9c] sm:$0xf]
      %v223 = vld [vmem:[%s172 + $0xa0] sm:$0xf]
      %v224 = vld [vmem:[%s172 + $0xa4] sm:$0x1]
      %v225 = vld [vmem:[%s172 + $0xa8] sm:$0xf]
      %v226 = vld [vmem:[%s172 + $0xac] sm:$0xf]
      %v227 = vld [vmem:[%s172 + $0xb0] sm:$0x1]
      %v228 = vld [vmem:[%s172 + $0xb4] sm:$0xf]
      %v229 = vld [vmem:[%s172 + $0xb8] sm:$0xf]
      %v230 = vld [vmem:[%s172 + $0xbc] sm:$0x1]
      %v231 = vld [vmem:[%s172 + $0xc0] sm:$0xf]
      %v232 = vld [vmem:[%s172 + $0xc4] sm:$0xf]
      %v233 = vld [vmem:[%s172 + $0xc8] sm:$0x1]
      %v234 = vld [vmem:[%s172 + $0xcc] sm:$0xf]
      %v235 = vld [vmem:[%s172 + $0xd0] sm:$0xf]
      %v236 = vld [vmem:[%s172 + $0xd4] sm:$0x1]
      %v237 = vunpack.c.l.bf16 %v183
      %v238 = vunpack.c.l.bf16 %v184
      %v239 = vunpack.c.l.bf16 %v185
      %v240 = vunpack.c.l.bf16 %v186
      %v241 = vunpack.c.l.bf16 %v187
      %v242 = vunpack.c.l.bf16 %v188
      %v243 = vunpack.c.l.bf16 %v189
      %v244 = vunpack.c.l.bf16 %v190
      %v245 = vunpack.c.l.bf16 %v191
      %v246 = vunpack.c.l.bf16 %v192
      %v247 = vunpack.c.l.bf16 %v193
      %v248 = vunpack.c.l.bf16 %v194
      %v249 = vunpack.c.l.bf16 %v195
      %v250 = vunpack.c.l.bf16 %v196
      %v251 = vunpack.c.l.bf16 %v197
      %v252 = vunpack.c.l.bf16 %v198
      %v253 = vunpack.c.l.bf16 %v199
      %v254 = vunpack.c.l.bf16 %v200
      %v255 = vunpack.c.l.bf16 %v201
      %v256 = vunpack.c.l.bf16 %v202
      %v257 = vunpack.c.l.bf16 %v203
      %v258 = vunpack.c.l.bf16 %v204
      %v259 = vunpack.c.l.bf16 %v205
      %v260 = vunpack.c.l.bf16 %v206
      %v261 = vunpack.c.l.bf16 %v207
      %v262 = vunpack.c.l.bf16 %v208
      %v263 = vunpack.c.l.bf16 %v209
      %v264 = vunpack.c.l.bf16 %v210
      %v265 = vunpack.c.l.bf16 %v211
      %v266 = vunpack.c.l.bf16 %v212
      %v267 = vunpack.c.l.bf16 %v213
      %v268 = vunpack.c.l.bf16 %v214
      %v269 = vunpack.c.l.bf16 %v215
      %v270 = vunpack.c.l.bf16 %v216
      %v271 = vunpack.c.l.bf16 %v217
      %v272 = vunpack.c.l.bf16 %v218
      %v273 = vunpack.c.l.bf16 %v219
      %v274 = vunpack.c.l.bf16 %v220
      %v275 = vunpack.c.l.bf16 %v221
      %v276 = vunpack.c.l.bf16 %v222
      %v277 = vunpack.c.l.bf16 %v223
      %v278 = vunpack.c.l.bf16 %v224
      %v279 = vunpack.c.l.bf16 %v225
      %v280 = vunpack.c.l.bf16 %v226
      %v281 = vunpack.c.l.bf16 %v227
      %v282 = vunpack.c.l.bf16 %v228
      %v283 = vunpack.c.l.bf16 %v229
      %v284 = vunpack.c.l.bf16 %v230
      %v285 = vunpack.c.l.bf16 %v231
      %v286 = vunpack.c.l.bf16 %v232
      %v287 = vunpack.c.l.bf16 %v233
      %v288 = vunpack.c.l.bf16 %v234
      %v289 = vunpack.c.l.bf16 %v235
      %v290 = vunpack.c.l.bf16 %v236
      %v291 = vpack.c.bf16 %v238, %v237
      %v292 = vpack.c.bf16 %v241, %v240
      %v293 = vpack.c.bf16 %v244, %v243
      %v294 = vpack.c.bf16 %v247, %v246
      %v295 = vpack.c.bf16 %v250, %v249
      %v296 = vpack.c.bf16 %v253, %v252
      %v297 = vpack.c.bf16 %v256, %v255
      %v298 = vpack.c.bf16 %v259, %v258
      %v299 = vpack.c.bf16 %v262, %v261
      %v300 = vpack.c.bf16 %v265, %v264
      %v301 = vpack.c.bf16 %v268, %v267
      %v302 = vpack.c.bf16 %v271, %v270
      %v303 = vpack.c.bf16 %v274, %v273
      %v304 = vpack.c.bf16 %v277, %v276
      %v305 = vpack.c.bf16 %v280, %v279
      %v306 = vpack.c.bf16 %v283, %v282
      %v307 = vld [vmem:[%s1] sm:$0xf]
      %vm356 = vcmask 1046528
      %v357 = vrot.slane %v237, 1
      %v358 = vrot.slane %v238, 1
      %v359 = vsel %vm356, %v357, %v358
      %v360 = vrot.slane %v239, 1
      %v361 = vsel %vm356, %v358, %v360
      %v362 = vrot.slane %v240, 1
      %v363 = vrot.slane %v241, 1
      %v364 = vsel %vm356, %v362, %v363
      %v365 = vrot.slane %v242, 1
      %v366 = vsel %vm356, %v363, %v365
      %v367 = vrot.slane %v243, 1
      %v368 = vrot.slane %v244, 1
      %v369 = vsel %vm356, %v367, %v368
      %v370 = vrot.slane %v245, 1
      %v371 = vsel %vm356, %v368, %v370
      %v372 = vrot.slane %v246, 1
      %v373 = vrot.slane %v247, 1
      %v374 = vsel %vm356, %v372, %v373
      %v375 = vrot.slane %v248, 1
      %v376 = vsel %vm356, %v373, %v375
      %v377 = vrot.slane %v249, 1
      %v378 = vrot.slane %v250, 1
      %v379 = vsel %vm356, %v377, %v378
      %v380 = vrot.slane %v251, 1
      %v381 = vsel %vm356, %v378, %v380
      %v382 = vrot.slane %v252, 1
      %v383 = vrot.slane %v253, 1
      %v384 = vsel %vm356, %v382, %v383
      %v385 = vrot.slane %v254, 1
      %v386 = vsel %vm356, %v383, %v385
      %v387 = vrot.slane %v255, 1
      %v388 = vrot.slane %v256, 1
      %v389 = vsel %vm356, %v387, %v388
      %v390 = vrot.slane %v257, 1
      %v391 = vsel %vm356, %v388, %v390
      %v392 = vrot.slane %v258, 1
      %v393 = vrot.slane %v259, 1
      %v394 = vsel %vm356, %v392, %v393
      %v395 = vrot.slane %v260, 1
      %v396 = vsel %vm356, %v393, %v395
      %v397 = vrot.slane %v261, 1
      %v398 = vrot.slane %v262, 1
      %v399 = vsel %vm356, %v397, %v398
      %v400 = vrot.slane %v263, 1
      %v401 = vsel %vm356, %v398, %v400
      %v402 = vrot.slane %v264, 1
      %v403 = vrot.slane %v265, 1
      %v404 = vsel %vm356, %v402, %v403
      %v405 = vrot.slane %v266, 1
      %v406 = vsel %vm356, %v403, %v405
      %v407 = vrot.slane %v267, 1
      %v408 = vrot.slane %v268, 1
      %v409 = vsel %vm356, %v407, %v408
      %v410 = vrot.slane %v269, 1
      %v411 = vsel %vm356, %v408, %v410
      %v412 = vrot.slane %v270, 1
      %v413 = vrot.slane %v271, 1
      %v414 = vsel %vm356, %v412, %v413
      %v415 = vrot.slane %v272, 1
      %v416 = vsel %vm356, %v413, %v415
      %v417 = vrot.slane %v273, 1
      %v418 = vrot.slane %v274, 1
      %v419 = vsel %vm356, %v417, %v418
      %v420 = vrot.slane %v275, 1
      %v421 = vsel %vm356, %v418, %v420
      %v422 = vrot.slane %v276, 1
      %v423 = vrot.slane %v277, 1
      %v424 = vsel %vm356, %v422, %v423
      %v425 = vrot.slane %v278, 1
      %v426 = vsel %vm356, %v423, %v425
      %v427 = vrot.slane %v279, 1
      %v428 = vrot.slane %v280, 1
      %v429 = vsel %vm356, %v427, %v428
      %v430 = vrot.slane %v281, 1
      %v431 = vsel %vm356, %v428, %v430
      %v432 = vrot.slane %v282, 1
      %v433 = vrot.slane %v283, 1
      %v434 = vsel %vm356, %v432, %v433
      %v435 = vrot.slane %v284, 1
      %v436 = vsel %vm356, %v433, %v435
      %v469 = vpack.c.bf16 %v361, %v359
      %v470 = vpack.c.bf16 %v366, %v364
      %v471 = vpack.c.bf16 %v371, %v369
      %v472 = vpack.c.bf16 %v376, %v374
      %v473 = vpack.c.bf16 %v381, %v379
      %v474 = vpack.c.bf16 %v386, %v384
      %v475 = vpack.c.bf16 %v391, %v389
      %v476 = vpack.c.bf16 %v396, %v394
      %v477 = vpack.c.bf16 %v401, %v399
      %v478 = vpack.c.bf16 %v406, %v404
      %v479 = vpack.c.bf16 %v411, %v409
      %v480 = vpack.c.bf16 %v416, %v414
      %v481 = vpack.c.bf16 %v421, %v419
      %v482 = vpack.c.bf16 %v426, %v424
      %v483 = vpack.c.bf16 %v431, %v429
      %v484 = vpack.c.bf16 %v436, %v434
      %s485 = scalar_lea.vmem %s1, 4
      %v486 = vld [vmem:[%s485] sm:$0xf]
      %vm487 = vcmask 64512
      %v489 = vsel %vm487, %v469, 0
      %v492 = vsel %vm487, %v470, 0
      %v495 = vsel %vm487, %v471, 0
      %v498 = vsel %vm487, %v472, 0
      %v501 = vsel %vm487, %v473, 0
      %v504 = vsel %vm487, %v474, 0
      %v507 = vsel %vm487, %v475, 0
      %v510 = vsel %vm487, %v476, 0
      %v513 = vsel %vm487, %v477, 0
      %v516 = vsel %vm487, %v478, 0
      %v519 = vsel %vm487, %v479, 0
      %v522 = vsel %vm487, %v480, 0
      %v525 = vsel %vm487, %v481, 0
      %v528 = vsel %vm487, %v482, 0
      %v531 = vsel %vm487, %v483, 0
      %v534 = vsel %vm487, %v484, 0
      %vm536 = vcmask 1043456
      %v538 = vsel %vm536, %v486, 0
      %540 = vmatprep.subr.bf16.mxu0 0
      %541 = vmatpush1.bf16.msra.mxu0 0
      %542 = vmatprep.subr.bf16.mxu0 0
      %543 = vmatpush1.bf16.msra.mxu0 0
      %544 = vmatprep.subr.bf16.mxu0 0
      %545 = vmatpush1.bf16.msra.mxu0 0
      %546 = vmatprep.subr.bf16.mxu0 0
      %547 = vmatpush1.bf16.msra.mxu0 0
      %548 = vmatprep.subr.bf16.mxu0 0
      %549 = vmatpush1.bf16.msra.mxu0 0
      %550 = vmatprep.subr.bf16.mxu0 0
      %551 = vmatpush1.bf16.msra.mxu0 0
      %552 = vmatprep.subr.bf16.mxu0 0
      %553 = vmatpush1.bf16.msra.mxu0 0
      %554 = vmatprep.subr.bf16.mxu0 0
      %555 = vmatpush1.bf16.msra.mxu0 %v538
      %556 = vmatprep.subr.bf16.mxu0 0
      %557 = vmatpush2.bf16.msra.mxu0 0
      %558 = vmatprep.subr.bf16.mxu0 0
      %559 = vmatpush2.bf16.msra.mxu0 0
      %560 = vmatprep.subr.bf16.mxu0 0
      %561 = vmatpush2.bf16.msra.mxu0 0
      %562 = vmatprep.subr.bf16.mxu0 0
      %563 = vmatpush2.bf16.msra.mxu0 0
      %564 = vmatprep.subr.bf16.mxu0 0
      %565 = vmatpush2.bf16.msra.mxu0 0
      %566 = vmatprep.subr.bf16.mxu0 0
      %567 = vmatpush2.bf16.msra.mxu0 0
      %568 = vmatprep.subr.bf16.mxu0 0
      %569 = vmatpush2.bf16.msra.mxu0 0
      %570 = vmatprep.subr.bf16.mxu0 0
      %571 = vmatpush2.bf16.msra.mxu0 0
      %572 = vmatprep.mubr.bf16.mxu0 0
      %573 = vmatmul.mubr.bf16.gmra.mxu0 %v489
      %v574 = vpop.f32.mrf.mxu0
      %v575 = vadd.f32 0.0, %v574
      %v576 = vpop.f32.mrf.mxu0
      %v577 = vpop.f32.mrf.mxu0
      %v578 = vadd.f32 0.0, %v577
      %v579 = vpop.f32.mrf.mxu0
      %580 = vmatprep.mubr.bf16.mxu0 0
      %581 = vmatmul.mubr.bf16.gmra.mxu0 %v492
      %v582 = vpop.f32.mrf.mxu0
      %v583 = vadd.f32 0.0, %v582
      %v584 = vpop.f32.mrf.mxu0
      %v585 = vpop.f32.mrf.mxu0
      %v586 = vadd.f32 0.0, %v585
      %v587 = vpop.f32.mrf.mxu0
      %588 = vmatprep.mubr.bf16.mxu0 0
      %589 = vmatmul.mubr.bf16.gmra.mxu0 %v495
      %v590 = vpop.f32.mrf.mxu0
      %v591 = vadd.f32 0.0, %v590
      %v592 = vpop.f32.mrf.mxu0
      %v593 = vpop.f32.mrf.mxu0
      %v594 = vadd.f32 0.0, %v593
      %v595 = vpop.f32.mrf.mxu0
      %596 = vmatprep.mubr.bf16.mxu0 0
      %597 = vmatmul.mubr.bf16.gmra.mxu0 %v498
      %v598 = vpop.f32.mrf.mxu0
      %v599 = vadd.f32 0.0, %v598
      %v600 = vpop.f32.mrf.mxu0
      %v601 = vpop.f32.mrf.mxu0
      %v602 = vadd.f32 0.0, %v601
      %v603 = vpop.f32.mrf.mxu0
      %604 = vmatprep.mubr.bf16.mxu0 0
      %605 = vmatmul.mubr.bf16.gmra.mxu0 %v501
      %v606 = vpop.f32.mrf.mxu0
      %v607 = vadd.f32 0.0, %v606
      %v608 = vpop.f32.mrf.mxu0
      %v609 = vpop.f32.mrf.mxu0
      %v610 = vadd.f32 0.0, %v609
      %v611 = vpop.f32.mrf.mxu0
      %612 = vmatprep.mubr.bf16.mxu0 0
      %613 = vmatmul.mubr.bf16.gmra.mxu0 %v504
      %v614 = vpop.f32.mrf.mxu0
      %v615 = vadd.f32 0.0, %v614
      %v616 = vpop.f32.mrf.mxu0
      %v617 = vpop.f32.mrf.mxu0
      %v618 = vadd.f32 0.0, %v617
      %v619 = vpop.f32.mrf.mxu0
      %620 = vmatprep.mubr.bf16.mxu0 0
      %621 = vmatmul.mubr.bf16.gmra.mxu0 %v507
      %v622 = vpop.f32.mrf.mxu0
      %v623 = vadd.f32 0.0, %v622
      %v624 = vpop.f32.mrf.mxu0
      %v625 = vpop.f32.mrf.mxu0
      %v626 = vadd.f32 0.0, %v625
      %v627 = vpop.f32.mrf.mxu0
      %628 = vmatprep.mubr.bf16.mxu0 0
      %629 = vmatmul.mubr.bf16.gmra.mxu0 %v510
      %v630 = vpop.f32.mrf.mxu0
      %v631 = vadd.f32 0.0, %v630
      %v632 = vpop.f32.mrf.mxu0
      %v633 = vpop.f32.mrf.mxu0
      %v634 = vadd.f32 0.0, %v633
      %v635 = vpop.f32.mrf.mxu0
      %636 = vmatprep.mubr.bf16.mxu0 0
      %637 = vmatmul.mubr.bf16.gmra.mxu0 %v513
      %v638 = vpop.f32.mrf.mxu0
      %v639 = vadd.f32 0.0, %v638
      %v640 = vpop.f32.mrf.mxu0
      %v641 = vpop.f32.mrf.mxu0
      %v642 = vadd.f32 0.0, %v641
      %v643 = vpop.f32.mrf.mxu0
      %644 = vmatprep.mubr.bf16.mxu0 0
      %645 = vmatmul.mubr.bf16.gmra.mxu0 %v516
      %v646 = vpop.f32.mrf.mxu0
      %v647 = vadd.f32 0.0, %v646
      %v648 = vpop.f32.mrf.mxu0
      %v649 = vpop.f32.mrf.mxu0
      %v650 = vadd.f32 0.0, %v649
      %v651 = vpop.f32.mrf.mxu0
      %652 = vmatprep.mubr.bf16.mxu0 0
      %653 = vmatmul.mubr.bf16.gmra.mxu0 %v519
      %v654 = vpop.f32.mrf.mxu0
      %v655 = vadd.f32 0.0, %v654
      %v656 = vpop.f32.mrf.mxu0
      %v657 = vpop.f32.mrf.mxu0
      %v658 = vadd.f32 0.0, %v657
      %v659 = vpop.f32.mrf.mxu0
      %660 = vmatprep.mubr.bf16.mxu0 0
      %661 = vmatmul.mubr.bf16.gmra.mxu0 %v522
      %v662 = vpop.f32.mrf.mxu0
      %v663 = vadd.f32 0.0, %v662
      %v664 = vpop.f32.mrf.mxu0
      %v665 = vpop.f32.mrf.mxu0
      %v666 = vadd.f32 0.0, %v665
      %v667 = vpop.f32.mrf.mxu0
      %668 = vmatprep.mubr.bf16.mxu0 0
      %669 = vmatmul.mubr.bf16.gmra.mxu0 %v525
      %v670 = vpop.f32.mrf.mxu0
      %v671 = vadd.f32 0.0, %v670
      %v672 = vpop.f32.mrf.mxu0
      %v673 = vpop.f32.mrf.mxu0
      %v674 = vadd.f32 0.0, %v673
      %v675 = vpop.f32.mrf.mxu0
      %676 = vmatprep.mubr.bf16.mxu0 0
      %677 = vmatmul.mubr.bf16.gmra.mxu0 %v528
      %v678 = vpop.f32.mrf.mxu0
      %v679 = vadd.f32 0.0, %v678
      %v680 = vpop.f32.mrf.mxu0
      %v681 = vpop.f32.mrf.mxu0
      %v682 = vadd.f32 0.0, %v681
      %v683 = vpop.f32.mrf.mxu0
      %684 = vmatprep.mubr.bf16.mxu0 0
      %685 = vmatmul.mubr.bf16.gmra.mxu0 %v531
      %v686 = vpop.f32.mrf.mxu0
      %v687 = vadd.f32 0.0, %v686
      %v688 = vpop.f32.mrf.mxu0
      %v689 = vpop.f32.mrf.mxu0
      %v690 = vadd.f32 0.0, %v689
      %v691 = vpop.f32.mrf.mxu0
      %692 = vmatprep.mubr.bf16.mxu0 0
      %693 = vmatmul.mubr.bf16.gmra.mxu0 %v534
      %v694 = vpop.f32.mrf.mxu0
      %v695 = vadd.f32 0.0, %v694
      %v696 = vpop.f32.mrf.mxu0
      %v697 = vpop.f32.mrf.mxu0
      %v698 = vadd.f32 0.0, %v697
      %v699 = vpop.f32.mrf.mxu0
      %700 = vdwg.mxu0
      %v702 = vsel %vm487, %v291, 0
      %v705 = vsel %vm487, %v292, 0
      %v708 = vsel %vm487, %v293, 0
      %v711 = vsel %vm487, %v294, 0
      %v714 = vsel %vm487, %v295, 0
      %v717 = vsel %vm487, %v296, 0
      %v720 = vsel %vm487, %v297, 0
      %v723 = vsel %vm487, %v298, 0
      %v726 = vsel %vm487, %v299, 0
      %v729 = vsel %vm487, %v300, 0
      %v732 = vsel %vm487, %v301, 0
      %v735 = vsel %vm487, %v302, 0
      %v738 = vsel %vm487, %v303, 0
      %v741 = vsel %vm487, %v304, 0
      %v744 = vsel %vm487, %v305, 0
      %v747 = vsel %vm487, %v306, 0
      %v750 = vsel %vm536, %v307, 0
      %752 = vmatprep.subr.bf16.mxu0 0
      %753 = vmatpush1.bf16.msra.mxu0 0
      %754 = vmatprep.subr.bf16.mxu0 0
      %755 = vmatpush1.bf16.msra.mxu0 0
      %756 = vmatprep.subr.bf16.mxu0 0
      %757 = vmatpush1.bf16.msra.mxu0 0
      %758 = vmatprep.subr.bf16.mxu0 0
      %759 = vmatpush1.bf16.msra.mxu0 0
      %760 = vmatprep.subr.bf16.mxu0 0
      %761 = vmatpush1.bf16.msra.mxu0 0
      %762 = vmatprep.subr.bf16.mxu0 0
      %763 = vmatpush1.bf16.msra.mxu0 0
      %764 = vmatprep.subr.bf16.mxu0 0
      %765 = vmatpush1.bf16.msra.mxu0 0
      %766 = vmatprep.subr.bf16.mxu0 0
      %767 = vmatpush1.bf16.msra.mxu0 %v750
      %768 = vmatprep.subr.bf16.mxu0 0
      %769 = vmatpush2.bf16.msra.mxu0 0
      %770 = vmatprep.subr.bf16.mxu0 0
      %771 = vmatpush2.bf16.msra.mxu0 0
      %772 = vmatprep.subr.bf16.mxu0 0
      %773 = vmatpush2.bf16.msra.mxu0 0
      %774 = vmatprep.subr.bf16.mxu0 0
      %775 = vmatpush2.bf16.msra.mxu0 0
      %776 = vmatprep.subr.bf16.mxu0 0
      %777 = vmatpush2.bf16.msra.mxu0 0
      %778 = vmatprep.subr.bf16.mxu0 0
      %779 = vmatpush2.bf16.msra.mxu0 0
      %780 = vmatprep.subr.bf16.mxu0 0
      %781 = vmatpush2.bf16.msra.mxu0 0
      %782 = vmatprep.subr.bf16.mxu0 0
      %783 = vmatpush2.bf16.msra.mxu0 0
      %784 = vmatprep.mubr.bf16.mxu0 0
      %785 = vmatmul.mubr.bf16.gmra.mxu0 %v702
      %v786 = vpop.f32.mrf.mxu0
      %v787 = vadd.f32 %v575, %v786
      %v788 = vpop.f32.mrf.mxu0
      %v789 = vpop.f32.mrf.mxu0
      %v790 = vadd.f32 %v578, %v789
      %v791 = vpop.f32.mrf.mxu0
      %792 = vmatprep.mubr.bf16.mxu0 0
      %793 = vmatmul.mubr.bf16.gmra.mxu0 %v705
      %v794 = vpop.f32.mrf.mxu0
      %v795 = vadd.f32 %v583, %v794
      %v796 = vpop.f32.mrf.mxu0
      %v797 = vpop.f32.mrf.mxu0
      %v798 = vadd.f32 %v586, %v797
      %v799 = vpop.f32.mrf.mxu0
      %800 = vmatprep.mubr.bf16.mxu0 0
      %801 = vmatmul.mubr.bf16.gmra.mxu0 %v708
      %v802 = vpop.f32.mrf.mxu0
      %v803 = vadd.f32 %v591, %v802
      %v804 = vpop.f32.mrf.mxu0
      %v805 = vpop.f32.mrf.mxu0
      %v806 = vadd.f32 %v594, %v805
      %v807 = vpop.f32.mrf.mxu0
      %808 = vmatprep.mubr.bf16.mxu0 0
      %809 = vmatmul.mubr.bf16.gmra.mxu0 %v711
      %v810 = vpop.f32.mrf.mxu0
      %v811 = vadd.f32 %v599, %v810
      %v812 = vpop.f32.mrf.mxu0
      %v813 = vpop.f32.mrf.mxu0
      %v814 = vadd.f32 %v602, %v813
      %v815 = vpop.f32.mrf.mxu0
      %816 = vmatprep.mubr.bf16.mxu0 0
      %817 = vmatmul.mubr.bf16.gmra.mxu0 %v714
      %v818 = vpop.f32.mrf.mxu0
      %v819 = vadd.f32 %v607, %v818
      %v820 = vpop.f32.mrf.mxu0
      %v821 = vpop.f32.mrf.mxu0
      %v822 = vadd.f32 %v610, %v821
      %v823 = vpop.f32.mrf.mxu0
      %824 = vmatprep.mubr.bf16.mxu0 0
      %825 = vmatmul.mubr.bf16.gmra.mxu0 %v717
      %v826 = vpop.f32.mrf.mxu0
      %v827 = vadd.f32 %v615, %v826
      %v828 = vpop.f32.mrf.mxu0
      %v829 = vpop.f32.mrf.mxu0
      %v830 = vadd.f32 %v618, %v829
      %v831 = vpop.f32.mrf.mxu0
      %832 = vmatprep.mubr.bf16.mxu0 0
      %833 = vmatmul.mubr.bf16.gmra.mxu0 %v720
      %v834 = vpop.f32.mrf.mxu0
      %v835 = vadd.f32 %v623, %v834
      %v836 = vpop.f32.mrf.mxu0
      %v837 = vpop.f32.mrf.mxu0
      %v838 = vadd.f32 %v626, %v837
      %v839 = vpop.f32.mrf.mxu0
      %840 = vmatprep.mubr.bf16.mxu0 0
      %841 = vmatmul.mubr.bf16.gmra.mxu0 %v723
      %v842 = vpop.f32.mrf.mxu0
      %v843 = vadd.f32 %v631, %v842
      %v844 = vpop.f32.mrf.mxu0
      %v845 = vpop.f32.mrf.mxu0
      %v846 = vadd.f32 %v634, %v845
      %v847 = vpop.f32.mrf.mxu0
      %848 = vmatprep.mubr.bf16.mxu0 0
      %849 = vmatmul.mubr.bf16.gmra.mxu0 %v726
      %v850 = vpop.f32.mrf.mxu0
      %v851 = vadd.f32 %v639, %v850
      %v852 = vpop.f32.mrf.mxu0
      %v853 = vpop.f32.mrf.mxu0
      %v854 = vadd.f32 %v642, %v853
      %v855 = vpop.f32.mrf.mxu0
      %856 = vmatprep.mubr.bf16.mxu0 0
      %857 = vmatmul.mubr.bf16.gmra.mxu0 %v729
      %v858 = vpop.f32.mrf.mxu0
      %v859 = vadd.f32 %v647, %v858
      %v860 = vpop.f32.mrf.mxu0
      %v861 = vpop.f32.mrf.mxu0
      %v862 = vadd.f32 %v650, %v861
      %v863 = vpop.f32.mrf.mxu0
      %864 = vmatprep.mubr.bf16.mxu0 0
      %865 = vmatmul.mubr.bf16.gmra.mxu0 %v732
      %v866 = vpop.f32.mrf.mxu0
      %v867 = vadd.f32 %v655, %v866
      %v868 = vpop.f32.mrf.mxu0
      %v869 = vpop.f32.mrf.mxu0
      %v870 = vadd.f32 %v658, %v869
      %v871 = vpop.f32.mrf.mxu0
      %872 = vmatprep.mubr.bf16.mxu0 0
      %873 = vmatmul.mubr.bf16.gmra.mxu0 %v735
      %v874 = vpop.f32.mrf.mxu0
      %v875 = vadd.f32 %v663, %v874
      %v876 = vpop.f32.mrf.mxu0
      %v877 = vpop.f32.mrf.mxu0
      %v878 = vadd.f32 %v666, %v877
      %v879 = vpop.f32.mrf.mxu0
      %880 = vmatprep.mubr.bf16.mxu0 0
      %881 = vmatmul.mubr.bf16.gmra.mxu0 %v738
      %v882 = vpop.f32.mrf.mxu0
      %v883 = vadd.f32 %v671, %v882
      %v884 = vpop.f32.mrf.mxu0
      %v885 = vpop.f32.mrf.mxu0
      %v886 = vadd.f32 %v674, %v885
      %v887 = vpop.f32.mrf.mxu0
      %888 = vmatprep.mubr.bf16.mxu0 0
      %889 = vmatmul.mubr.bf16.gmra.mxu0 %v741
      %v890 = vpop.f32.mrf.mxu0
      %v891 = vadd.f32 %v679, %v890
      %v892 = vpop.f32.mrf.mxu0
      %v893 = vpop.f32.mrf.mxu0
      %v894 = vadd.f32 %v682, %v893
      %v895 = vpop.f32.mrf.mxu0
      %896 = vmatprep.mubr.bf16.mxu0 0
      %897 = vmatmul.mubr.bf16.gmra.mxu0 %v744
      %v898 = vpop.f32.mrf.mxu0
      %v899 = vadd.f32 %v687, %v898
      %v900 = vpop.f32.mrf.mxu0
      %v901 = vpop.f32.mrf.mxu0
      %v902 = vadd.f32 %v690, %v901
      %v903 = vpop.f32.mrf.mxu0
      %904 = vmatprep.mubr.bf16.mxu0 0
      %905 = vmatmul.mubr.bf16.gmra.mxu0 %v747
      %v906 = vpop.f32.mrf.mxu0
      %v907 = vadd.f32 %v695, %v906
      %v908 = vpop.f32.mrf.mxu0
      %v909 = vpop.f32.mrf.mxu0
      %v910 = vadd.f32 %v698, %v909
      %v911 = vpop.f32.mrf.mxu0
      %912 = vdwg.mxu0
      %vm913 = vcmask 1045504
      %v914 = vrot.slane %v237, 2
      %v915 = vrot.slane %v238, 2
      %v916 = vsel %vm913, %v914, %v915
      %v917 = vrot.slane %v239, 2
      %v918 = vsel %vm913, %v915, %v917
      %v919 = vrot.slane %v240, 2
      %v920 = vrot.slane %v241, 2
      %v921 = vsel %vm913, %v919, %v920
      %v922 = vrot.slane %v242, 2
      %v923 = vsel %vm913, %v920, %v922
      %v924 = vrot.slane %v243, 2
      %v925 = vrot.slane %v244, 2
      %v926 = vsel %vm913, %v924, %v925
      %v927 = vrot.slane %v245, 2
      %v928 = vsel %vm913, %v925, %v927
      %v929 = vrot.slane %v246, 2
      %v930 = vrot.slane %v247, 2
      %v931 = vsel %vm913, %v929, %v930
      %v932 = vrot.slane %v248, 2
      %v933 = vsel %vm913, %v930, %v932
      %v934 = vrot.slane %v249, 2
      %v935 = vrot.slane %v250, 2
      %v936 = vsel %vm913, %v934, %v935
      %v937 = vrot.slane %v251, 2
      %v938 = vsel %vm913, %v935, %v937
      %v939 = vrot.slane %v252, 2
      %v940 = vrot.slane %v253, 2
      %v941 = vsel %vm913, %v939, %v940
      %v942 = vrot.slane %v254, 2
      %v943 = vsel %vm913, %v940, %v942
      %v944 = vrot.slane %v255, 2
      %v945 = vrot.slane %v256, 2
      %v946 = vsel %vm913, %v944, %v945
      %v947 = vrot.slane %v257, 2
      %v948 = vsel %vm913, %v945, %v947
      %v949 = vrot.slane %v258, 2
      %v950 = vrot.slane %v259, 2
      %v951 = vsel %vm913, %v949, %v950
      %v952 = vrot.slane %v260, 2
      %v953 = vsel %vm913, %v950, %v952
      %v954 = vrot.slane %v261, 2
      %v955 = vrot.slane %v262, 2
      %v956 = vsel %vm913, %v954, %v955
      %v957 = vrot.slane %v263, 2
      %v958 = vsel %vm913, %v955, %v957
      %v959 = vrot.slane %v264, 2
      %v960 = vrot.slane %v265, 2
      %v961 = vsel %vm913, %v959, %v960
      %v962 = vrot.slane %v266, 2
      %v963 = vsel %vm913, %v960, %v962
      %v964 = vrot.slane %v267, 2
      %v965 = vrot.slane %v268, 2
      %v966 = vsel %vm913, %v964, %v965
      %v967 = vrot.slane %v269, 2
      %v968 = vsel %vm913, %v965, %v967
      %v969 = vrot.slane %v270, 2
      %v970 = vrot.slane %v271, 2
      %v971 = vsel %vm913, %v969, %v970
      %v972 = vrot.slane %v272, 2
      %v973 = vsel %vm913, %v970, %v972
      %v974 = vrot.slane %v273, 2
      %v975 = vrot.slane %v274, 2
      %v976 = vsel %vm913, %v974, %v975
      %v977 = vrot.slane %v275, 2
      %v978 = vsel %vm913, %v975, %v977
      %v979 = vrot.slane %v276, 2
      %v980 = vrot.slane %v277, 2
      %v981 = vsel %vm913, %v979, %v980
      %v982 = vrot.slane %v278, 2
      %v983 = vsel %vm913, %v980, %v982
      %v984 = vrot.slane %v279, 2
      %v985 = vrot.slane %v280, 2
      %v986 = vsel %vm913, %v984, %v985
      %v987 = vrot.slane %v281, 2
      %v988 = vsel %vm913, %v985, %v987
      %v989 = vrot.slane %v282, 2
      %v990 = vrot.slane %v283, 2
      %v991 = vsel %vm913, %v989, %v990
      %v992 = vrot.slane %v284, 2
      %v993 = vsel %vm913, %v990, %v992
      %v1026 = vpack.c.bf16 %v918, %v916
      %v1027 = vpack.c.bf16 %v923, %v921
      %v1028 = vpack.c.bf16 %v928, %v926
      %v1029 = vpack.c.bf16 %v933, %v931
      %v1030 = vpack.c.bf16 %v938, %v936
      %v1031 = vpack.c.bf16 %v943, %v941
      %v1032 = vpack.c.bf16 %v948, %v946
      %v1033 = vpack.c.bf16 %v953, %v951
      %v1034 = vpack.c.bf16 %v958, %v956
      %v1035 = vpack.c.bf16 %v963, %v961
      %v1036 = vpack.c.bf16 %v968, %v966
      %v1037 = vpack.c.bf16 %v973, %v971
      %v1038 = vpack.c.bf16 %v978, %v976
      %v1039 = vpack.c.bf16 %v983, %v981
      %v1040 = vpack.c.bf16 %v988, %v986
      %v1041 = vpack.c.bf16 %v993, %v991
      %s1042 = scalar_lea.vmem %s1, 8
      %v1043 = vld [vmem:[%s1042] sm:$0xf]
      %v1045 = vsel %vm487, %v1026, 0
      %v1048 = vsel %vm487, %v1027, 0
      %v1051 = vsel %vm487, %v1028, 0
      %v1054 = vsel %vm487, %v1029, 0
      %v1057 = vsel %vm487, %v1030, 0
      %v1060 = vsel %vm487, %v1031, 0
      %v1063 = vsel %vm487, %v1032, 0
      %v1066 = vsel %vm487, %v1033, 0
      %v1069 = vsel %vm487, %v1034, 0
      %v1072 = vsel %vm487, %v1035, 0
      %v1075 = vsel %vm487, %v1036, 0
      %v1078 = vsel %vm487, %v1037, 0
      %v1081 = vsel %vm487, %v1038, 0
      %v1084 = vsel %vm487, %v1039, 0
      %v1087 = vsel %vm487, %v1040, 0
      %v1090 = vsel %vm487, %v1041, 0
      %v1093 = vsel %vm536, %v1043, 0
      %1095 = vmatprep.subr.bf16.mxu0 0
      %1096 = vmatpush1.bf16.msra.mxu0 0
      %1097 = vmatprep.subr.bf16.mxu0 0
      %1098 = vmatpush1.bf16.msra.mxu0 0
      %1099 = vmatprep.subr.bf16.mxu0 0
      %1100 = vmatpush1.bf16.msra.mxu0 0
      %1101 = vmatprep.subr.bf16.mxu0 0
      %1102 = vmatpush1.bf16.msra.mxu0 0
      %1103 = vmatprep.subr.bf16.mxu0 0
      %1104 = vmatpush1.bf16.msra.mxu0 0
      %1105 = vmatprep.subr.bf16.mxu0 0
      %1106 = vmatpush1.bf16.msra.mxu0 0
      %1107 = vmatprep.subr.bf16.mxu0 0
      %1108 = vmatpush1.bf16.msra.mxu0 0
      %1109 = vmatprep.subr.bf16.mxu0 0
      %1110 = vmatpush1.bf16.msra.mxu0 %v1093
      %1111 = vmatprep.subr.bf16.mxu0 0
      %1112 = vmatpush2.bf16.msra.mxu0 0
      %1113 = vmatprep.subr.bf16.mxu0 0
      %1114 = vmatpush2.bf16.msra.mxu0 0
      %1115 = vmatprep.subr.bf16.mxu0 0
      %1116 = vmatpush2.bf16.msra.mxu0 0
      %1117 = vmatprep.subr.bf16.mxu0 0
      %1118 = vmatpush2.bf16.msra.mxu0 0
      %1119 = vmatprep.subr.bf16.mxu0 0
      %1120 = vmatpush2.bf16.msra.mxu0 0
      %1121 = vmatprep.subr.bf16.mxu0 0
      %1122 = vmatpush2.bf16.msra.mxu0 0
      %1123 = vmatprep.subr.bf16.mxu0 0
      %1124 = vmatpush2.bf16.msra.mxu0 0
      %1125 = vmatprep.subr.bf16.mxu0 0
      %1126 = vmatpush2.bf16.msra.mxu0 0
      %1127 = vmatprep.mubr.bf16.mxu0 0
      %1128 = vmatmul.mubr.bf16.gmra.mxu0 %v1045
      %v1129 = vpop.f32.mrf.mxu0
      %v1130 = vadd.f32 0.0, %v1129
      %v1131 = vpop.f32.mrf.mxu0
      %v1132 = vpop.f32.mrf.mxu0
      %v1133 = vadd.f32 0.0, %v1132
      %v1134 = vpop.f32.mrf.mxu0
      %1135 = vmatprep.mubr.bf16.mxu0 0
      %1136 = vmatmul.mubr.bf16.gmra.mxu0 %v1048
      %v1137 = vpop.f32.mrf.mxu0
      %v1138 = vadd.f32 0.0, %v1137
      %v1139 = vpop.f32.mrf.mxu0
      %v1140 = vpop.f32.mrf.mxu0
      %v1141 = vadd.f32 0.0, %v1140
      %v1142 = vpop.f32.mrf.mxu0
      %1143 = vmatprep.mubr.bf16.mxu0 0
      %1144 = vmatmul.mubr.bf16.gmra.mxu0 %v1051
      %v1145 = vpop.f32.mrf.mxu0
      %v1146 = vadd.f32 0.0, %v1145
      %v1147 = vpop.f32.mrf.mxu0
      %v1148 = vpop.f32.mrf.mxu0
      %v1149 = vadd.f32 0.0, %v1148
      %v1150 = vpop.f32.mrf.mxu0
      %1151 = vmatprep.mubr.bf16.mxu0 0
      %1152 = vmatmul.mubr.bf16.gmra.mxu0 %v1054
      %v1153 = vpop.f32.mrf.mxu0
      %v1154 = vadd.f32 0.0, %v1153
      %v1155 = vpop.f32.mrf.mxu0
      %v1156 = vpop.f32.mrf.mxu0
      %v1157 = vadd.f32 0.0, %v1156
      %v1158 = vpop.f32.mrf.mxu0
      %1159 = vmatprep.mubr.bf16.mxu0 0
      %1160 = vmatmul.mubr.bf16.gmra.mxu0 %v1057
      %v1161 = vpop.f32.mrf.mxu0
      %v1162 = vadd.f32 0.0, %v1161
      %v1163 = vpop.f32.mrf.mxu0
      %v1164 = vpop.f32.mrf.mxu0
      %v1165 = vadd.f32 0.0, %v1164
      %v1166 = vpop.f32.mrf.mxu0
      %1167 = vmatprep.mubr.bf16.mxu0 0
      %1168 = vmatmul.mubr.bf16.gmra.mxu0 %v1060
      %v1169 = vpop.f32.mrf.mxu0
      %v1170 = vadd.f32 0.0, %v1169
      %v1171 = vpop.f32.mrf.mxu0
      %v1172 = vpop.f32.mrf.mxu0
      %v1173 = vadd.f32 0.0, %v1172
      %v1174 = vpop.f32.mrf.mxu0
      %1175 = vmatprep.mubr.bf16.mxu0 0
      %1176 = vmatmul.mubr.bf16.gmra.mxu0 %v1063
      %v1177 = vpop.f32.mrf.mxu0
      %v1178 = vadd.f32 0.0, %v1177
      %v1179 = vpop.f32.mrf.mxu0
      %v1180 = vpop.f32.mrf.mxu0
      %v1181 = vadd.f32 0.0, %v1180
      %v1182 = vpop.f32.mrf.mxu0
      %1183 = vmatprep.mubr.bf16.mxu0 0
      %1184 = vmatmul.mubr.bf16.gmra.mxu0 %v1066
      %v1185 = vpop.f32.mrf.mxu0
      %v1186 = vadd.f32 0.0, %v1185
      %v1187 = vpop.f32.mrf.mxu0
      %v1188 = vpop.f32.mrf.mxu0
      %v1189 = vadd.f32 0.0, %v1188
      %v1190 = vpop.f32.mrf.mxu0
      %1191 = vmatprep.mubr.bf16.mxu0 0
      %1192 = vmatmul.mubr.bf16.gmra.mxu0 %v1069
      %v1193 = vpop.f32.mrf.mxu0
      %v1194 = vadd.f32 0.0, %v1193
      %v1195 = vpop.f32.mrf.mxu0
      %v1196 = vpop.f32.mrf.mxu0
      %v1197 = vadd.f32 0.0, %v1196
      %v1198 = vpop.f32.mrf.mxu0
      %1199 = vmatprep.mubr.bf16.mxu0 0
      %1200 = vmatmul.mubr.bf16.gmra.mxu0 %v1072
      %v1201 = vpop.f32.mrf.mxu0
      %v1202 = vadd.f32 0.0, %v1201
      %v1203 = vpop.f32.mrf.mxu0
      %v1204 = vpop.f32.mrf.mxu0
      %v1205 = vadd.f32 0.0, %v1204
      %v1206 = vpop.f32.mrf.mxu0
      %1207 = vmatprep.mubr.bf16.mxu0 0
      %1208 = vmatmul.mubr.bf16.gmra.mxu0 %v1075
      %v1209 = vpop.f32.mrf.mxu0
      %v1210 = vadd.f32 0.0, %v1209
      %v1211 = vpop.f32.mrf.mxu0
      %v1212 = vpop.f32.mrf.mxu0
      %v1213 = vadd.f32 0.0, %v1212
      %v1214 = vpop.f32.mrf.mxu0
      %1215 = vmatprep.mubr.bf16.mxu0 0
      %1216 = vmatmul.mubr.bf16.gmra.mxu0 %v1078
      %v1217 = vpop.f32.mrf.mxu0
      %v1218 = vadd.f32 0.0, %v1217
      %v1219 = vpop.f32.mrf.mxu0
      %v1220 = vpop.f32.mrf.mxu0
      %v1221 = vadd.f32 0.0, %v1220
      %v1222 = vpop.f32.mrf.mxu0
      %1223 = vmatprep.mubr.bf16.mxu0 0
      %1224 = vmatmul.mubr.bf16.gmra.mxu0 %v1081
      %v1225 = vpop.f32.mrf.mxu0
      %v1226 = vadd.f32 0.0, %v1225
      %v1227 = vpop.f32.mrf.mxu0
      %v1228 = vpop.f32.mrf.mxu0
      %v1229 = vadd.f32 0.0, %v1228
      %v1230 = vpop.f32.mrf.mxu0
      %1231 = vmatprep.mubr.bf16.mxu0 0
      %1232 = vmatmul.mubr.bf16.gmra.mxu0 %v1084
      %v1233 = vpop.f32.mrf.mxu0
      %v1234 = vadd.f32 0.0, %v1233
      %v1235 = vpop.f32.mrf.mxu0
      %v1236 = vpop.f32.mrf.mxu0
      %v1237 = vadd.f32 0.0, %v1236
      %v1238 = vpop.f32.mrf.mxu0
      %1239 = vmatprep.mubr.bf16.mxu0 0
      %1240 = vmatmul.mubr.bf16.gmra.mxu0 %v1087
      %v1241 = vpop.f32.mrf.mxu0
      %v1242 = vadd.f32 0.0, %v1241
      %v1243 = vpop.f32.mrf.mxu0
      %v1244 = vpop.f32.mrf.mxu0
      %v1245 = vadd.f32 0.0, %v1244
      %v1246 = vpop.f32.mrf.mxu0
      %1247 = vmatprep.mubr.bf16.mxu0 0
      %1248 = vmatmul.mubr.bf16.gmra.mxu0 %v1090
      %v1249 = vpop.f32.mrf.mxu0
      %v1250 = vadd.f32 0.0, %v1249
      %v1251 = vpop.f32.mrf.mxu0
      %v1252 = vpop.f32.mrf.mxu0
      %v1253 = vadd.f32 0.0, %v1252
      %v1254 = vpop.f32.mrf.mxu0
      %1255 = vdwg.mxu0
      %v1256 = vadd.f32 %v787, %v1130
      %v1257 = vadd.f32 %v790, %v1133
      %v1258 = vadd.f32 %v795, %v1138
      %v1259 = vadd.f32 %v798, %v1141
      %v1260 = vadd.f32 %v803, %v1146
      %v1261 = vadd.f32 %v806, %v1149
      %v1262 = vadd.f32 %v811, %v1154
      %v1263 = vadd.f32 %v814, %v1157
      %v1264 = vadd.f32 %v819, %v1162
      %v1265 = vadd.f32 %v822, %v1165
      %v1266 = vadd.f32 %v827, %v1170
      %v1267 = vadd.f32 %v830, %v1173
      %v1268 = vadd.f32 %v835, %v1178
      %v1269 = vadd.f32 %v838, %v1181
      %v1270 = vadd.f32 %v843, %v1186
      %v1271 = vadd.f32 %v846, %v1189
      %v1272 = vadd.f32 %v851, %v1194
      %v1273 = vadd.f32 %v854, %v1197
      %v1274 = vadd.f32 %v859, %v1202
      %v1275 = vadd.f32 %v862, %v1205
      %v1276 = vadd.f32 %v867, %v1210
      %v1277 = vadd.f32 %v870, %v1213
      %v1278 = vadd.f32 %v875, %v1218
      %v1279 = vadd.f32 %v878, %v1221
      %v1280 = vadd.f32 %v883, %v1226
      %v1281 = vadd.f32 %v886, %v1229
      %v1282 = vadd.f32 %v891, %v1234
      %v1283 = vadd.f32 %v894, %v1237
      %v1284 = vadd.f32 %v899, %v1242
      %v1285 = vadd.f32 %v902, %v1245
      %v1286 = vadd.f32 %v907, %v1250
      %v1287 = vadd.f32 %v910, %v1253
      %v1288 = vpack.c.bf16 %v286, %v285
      %s1289 = scalar_lea.vmem %s1, 12
      %v1290 = vld [vmem:[%s1289] sm:$0xf]
      %v1292 = vsel %vm487, %v1288, 0
      %v1295 = vsel %vm536, %v1290, 0
      %1297 = vmatprep.subr.bf16.mxu0 0
      %1298 = vmatpush1.bf16.msra.mxu0 0
      %1299 = vmatprep.subr.bf16.mxu0 0
      %1300 = vmatpush1.bf16.msra.mxu0 0
      %1301 = vmatprep.subr.bf16.mxu0 0
      %1302 = vmatpush1.bf16.msra.mxu0 0
      %1303 = vmatprep.subr.bf16.mxu0 0
      %1304 = vmatpush1.bf16.msra.mxu0 0
      %1305 = vmatprep.subr.bf16.mxu0 0
      %1306 = vmatpush1.bf16.msra.mxu0 0
      %1307 = vmatprep.subr.bf16.mxu0 0
      %1308 = vmatpush1.bf16.msra.mxu0 0
      %1309 = vmatprep.subr.bf16.mxu0 0
      %1310 = vmatpush1.bf16.msra.mxu0 0
      %1311 = vmatprep.subr.bf16.mxu0 0
      %1312 = vmatpush1.bf16.msra.mxu0 %v1295
      %1313 = vmatprep.subr.bf16.mxu0 0
      %1314 = vmatpush2.bf16.msra.mxu0 0
      %1315 = vmatprep.subr.bf16.mxu0 0
      %1316 = vmatpush2.bf16.msra.mxu0 0
      %1317 = vmatprep.subr.bf16.mxu0 0
      %1318 = vmatpush2.bf16.msra.mxu0 0
      %1319 = vmatprep.subr.bf16.mxu0 0
      %1320 = vmatpush2.bf16.msra.mxu0 0
      %1321 = vmatprep.subr.bf16.mxu0 0
      %1322 = vmatpush2.bf16.msra.mxu0 0
      %1323 = vmatprep.subr.bf16.mxu0 0
      %1324 = vmatpush2.bf16.msra.mxu0 0
      %1325 = vmatprep.subr.bf16.mxu0 0
      %1326 = vmatpush2.bf16.msra.mxu0 0
      %1327 = vmatprep.subr.bf16.mxu0 0
      %1328 = vmatpush2.bf16.msra.mxu0 0
      %1329 = vmatprep.mubr.bf16.mxu0 0
      %1330 = vmatmul.mubr.bf16.gmra.mxu0 %v705
      %v1331 = vpop.f32.mrf.mxu0
      %v1332 = vadd.f32 0.0, %v1331
      %v1333 = vpop.f32.mrf.mxu0
      %v1334 = vpop.f32.mrf.mxu0
      %v1335 = vadd.f32 0.0, %v1334
      %v1336 = vpop.f32.mrf.mxu0
      %1337 = vmatprep.mubr.bf16.mxu0 0
      %1338 = vmatmul.mubr.bf16.gmra.mxu0 %v708
      %v1339 = vpop.f32.mrf.mxu0
      %v1340 = vadd.f32 0.0, %v1339
      %v1341 = vpop.f32.mrf.mxu0
      %v1342 = vpop.f32.mrf.mxu0
      %v1343 = vadd.f32 0.0, %v1342
      %v1344 = vpop.f32.mrf.mxu0
      %1345 = vmatprep.mubr.bf16.mxu0 0
      %1346 = vmatmul.mubr.bf16.gmra.mxu0 %v711
      %v1347 = vpop.f32.mrf.mxu0
      %v1348 = vadd.f32 0.0, %v1347
      %v1349 = vpop.f32.mrf.mxu0
      %v1350 = vpop.f32.mrf.mxu0
      %v1351 = vadd.f32 0.0, %v1350
      %v1352 = vpop.f32.mrf.mxu0
      %1353 = vmatprep.mubr.bf16.mxu0 0
      %1354 = vmatmul.mubr.bf16.gmra.mxu0 %v714
      %v1355 = vpop.f32.mrf.mxu0
      %v1356 = vadd.f32 0.0, %v1355
      %v1357 = vpop.f32.mrf.mxu0
      %v1358 = vpop.f32.mrf.mxu0
      %v1359 = vadd.f32 0.0, %v1358
      %v1360 = vpop.f32.mrf.mxu0
      %1361 = vmatprep.mubr.bf16.mxu0 0
      %1362 = vmatmul.mubr.bf16.gmra.mxu0 %v717
      %v1363 = vpop.f32.mrf.mxu0
      %v1364 = vadd.f32 0.0, %v1363
      %v1365 = vpop.f32.mrf.mxu0
      %v1366 = vpop.f32.mrf.mxu0
      %v1367 = vadd.f32 0.0, %v1366
      %v1368 = vpop.f32.mrf.mxu0
      %1369 = vmatprep.mubr.bf16.mxu0 0
      %1370 = vmatmul.mubr.bf16.gmra.mxu0 %v720
      %v1371 = vpop.f32.mrf.mxu0
      %v1372 = vadd.f32 0.0, %v1371
      %v1373 = vpop.f32.mrf.mxu0
      %v1374 = vpop.f32.mrf.mxu0
      %v1375 = vadd.f32 0.0, %v1374
      %v1376 = vpop.f32.mrf.mxu0
      %1377 = vmatprep.mubr.bf16.mxu0 0
      %1378 = vmatmul.mubr.bf16.gmra.mxu0 %v723
      %v1379 = vpop.f32.mrf.mxu0
      %v1380 = vadd.f32 0.0, %v1379
      %v1381 = vpop.f32.mrf.mxu0
      %v1382 = vpop.f32.mrf.mxu0
      %v1383 = vadd.f32 0.0, %v1382
      %v1384 = vpop.f32.mrf.mxu0
      %1385 = vmatprep.mubr.bf16.mxu0 0
      %1386 = vmatmul.mubr.bf16.gmra.mxu0 %v726
      %v1387 = vpop.f32.mrf.mxu0
      %v1388 = vadd.f32 0.0, %v1387
      %v1389 = vpop.f32.mrf.mxu0
      %v1390 = vpop.f32.mrf.mxu0
      %v1391 = vadd.f32 0.0, %v1390
      %v1392 = vpop.f32.mrf.mxu0
      %1393 = vmatprep.mubr.bf16.mxu0 0
      %1394 = vmatmul.mubr.bf16.gmra.mxu0 %v729
      %v1395 = vpop.f32.mrf.mxu0
      %v1396 = vadd.f32 0.0, %v1395
      %v1397 = vpop.f32.mrf.mxu0
      %v1398 = vpop.f32.mrf.mxu0
      %v1399 = vadd.f32 0.0, %v1398
      %v1400 = vpop.f32.mrf.mxu0
      %1401 = vmatprep.mubr.bf16.mxu0 0
      %1402 = vmatmul.mubr.bf16.gmra.mxu0 %v732
      %v1403 = vpop.f32.mrf.mxu0
      %v1404 = vadd.f32 0.0, %v1403
      %v1405 = vpop.f32.mrf.mxu0
      %v1406 = vpop.f32.mrf.mxu0
      %v1407 = vadd.f32 0.0, %v1406
      %v1408 = vpop.f32.mrf.mxu0
      %1409 = vmatprep.mubr.bf16.mxu0 0
      %1410 = vmatmul.mubr.bf16.gmra.mxu0 %v735
      %v1411 = vpop.f32.mrf.mxu0
      %v1412 = vadd.f32 0.0, %v1411
      %v1413 = vpop.f32.mrf.mxu0
      %v1414 = vpop.f32.mrf.mxu0
      %v1415 = vadd.f32 0.0, %v1414
      %v1416 = vpop.f32.mrf.mxu0
      %1417 = vmatprep.mubr.bf16.mxu0 0
      %1418 = vmatmul.mubr.bf16.gmra.mxu0 %v738
      %v1419 = vpop.f32.mrf.mxu0
      %v1420 = vadd.f32 0.0, %v1419
      %v1421 = vpop.f32.mrf.mxu0
      %v1422 = vpop.f32.mrf.mxu0
      %v1423 = vadd.f32 0.0, %v1422
      %v1424 = vpop.f32.mrf.mxu0
      %1425 = vmatprep.mubr.bf16.mxu0 0
      %1426 = vmatmul.mubr.bf16.gmra.mxu0 %v741
      %v1427 = vpop.f32.mrf.mxu0
      %v1428 = vadd.f32 0.0, %v1427
      %v1429 = vpop.f32.mrf.mxu0
      %v1430 = vpop.f32.mrf.mxu0
      %v1431 = vadd.f32 0.0, %v1430
      %v1432 = vpop.f32.mrf.mxu0
      %1433 = vmatprep.mubr.bf16.mxu0 0
      %1434 = vmatmul.mubr.bf16.gmra.mxu0 %v744
      %v1435 = vpop.f32.mrf.mxu0
      %v1436 = vadd.f32 0.0, %v1435
      %v1437 = vpop.f32.mrf.mxu0
      %v1438 = vpop.f32.mrf.mxu0
      %v1439 = vadd.f32 0.0, %v1438
      %v1440 = vpop.f32.mrf.mxu0
      %1441 = vmatprep.mubr.bf16.mxu0 0
      %1442 = vmatmul.mubr.bf16.gmra.mxu0 %v747
      %v1443 = vpop.f32.mrf.mxu0
      %v1444 = vadd.f32 0.0, %v1443
      %v1445 = vpop.f32.mrf.mxu0
      %v1446 = vpop.f32.mrf.mxu0
      %v1447 = vadd.f32 0.0, %v1446
      %v1448 = vpop.f32.mrf.mxu0
      %1449 = vmatprep.mubr.bf16.mxu0 0
      %1450 = vmatmul.mubr.bf16.gmra.mxu0 %v1292
      %v1451 = vpop.f32.mrf.mxu0
      %v1452 = vadd.f32 0.0, %v1451
      %v1453 = vpop.f32.mrf.mxu0
      %v1454 = vpop.f32.mrf.mxu0
      %v1455 = vadd.f32 0.0, %v1454
      %v1456 = vpop.f32.mrf.mxu0
      %1457 = vdwg.mxu0
      %v1458 = vadd.f32 %v1256, %v1332
      %v1459 = vadd.f32 %v1257, %v1335
      %v1460 = vadd.f32 %v1258, %v1340
      %v1461 = vadd.f32 %v1259, %v1343
      %v1462 = vadd.f32 %v1260, %v1348
      %v1463 = vadd.f32 %v1261, %v1351
      %v1464 = vadd.f32 %v1262, %v1356
      %v1465 = vadd.f32 %v1263, %v1359
      %v1466 = vadd.f32 %v1264, %v1364
      %v1467 = vadd.f32 %v1265, %v1367
      %v1468 = vadd.f32 %v1266, %v1372
      %v1469 = vadd.f32 %v1267, %v1375
      %v1470 = vadd.f32 %v1268, %v1380
      %v1471 = vadd.f32 %v1269, %v1383
      %v1472 = vadd.f32 %v1270, %v1388
      %v1473 = vadd.f32 %v1271, %v1391
      %v1474 = vadd.f32 %v1272, %v1396
      %v1475 = vadd.f32 %v1273, %v1399
      %v1476 = vadd.f32 %v1274, %v1404
      %v1477 = vadd.f32 %v1275, %v1407
      %v1478 = vadd.f32 %v1276, %v1412
      %v1479 = vadd.f32 %v1277, %v1415
      %v1480 = vadd.f32 %v1278, %v1420
      %v1481 = vadd.f32 %v1279, %v1423
      %v1482 = vadd.f32 %v1280, %v1428
      %v1483 = vadd.f32 %v1281, %v1431
      %v1484 = vadd.f32 %v1282, %v1436
      %v1485 = vadd.f32 %v1283, %v1439
      %v1486 = vadd.f32 %v1284, %v1444
      %v1487 = vadd.f32 %v1285, %v1447
      %v1488 = vadd.f32 %v1286, %v1452
      %v1489 = vadd.f32 %v1287, %v1455
      %v1493 = vrot.slane %v285, 1
      %v1494 = vrot.slane %v286, 1
      %v1495 = vsel %vm356, %v1493, %v1494
      %v1496 = vrot.slane %v287, 1
      %v1497 = vsel %vm356, %v1494, %v1496
      %v1500 = vpack.c.bf16 %v1497, %v1495
      %s1501 = scalar_lea.vmem %s1, 16
      %v1502 = vld [vmem:[%s1501] sm:$0xf]
      %v1504 = vsel %vm487, %v1500, 0
      %v1507 = vsel %vm536, %v1502, 0
      %1509 = vmatprep.subr.bf16.mxu0 0
      %1510 = vmatpush1.bf16.msra.mxu0 0
      %1511 = vmatprep.subr.bf16.mxu0 0
      %1512 = vmatpush1.bf16.msra.mxu0 0
      %1513 = vmatprep.subr.bf16.mxu0 0
      %1514 = vmatpush1.bf16.msra.mxu0 0
      %1515 = vmatprep.subr.bf16.mxu0 0
      %1516 = vmatpush1.bf16.msra.mxu0 0
      %1517 = vmatprep.subr.bf16.mxu0 0
      %1518 = vmatpush1.bf16.msra.mxu0 0
      %1519 = vmatprep.subr.bf16.mxu0 0
      %1520 = vmatpush1.bf16.msra.mxu0 0
      %1521 = vmatprep.subr.bf16.mxu0 0
      %1522 = vmatpush1.bf16.msra.mxu0 0
      %1523 = vmatprep.subr.bf16.mxu0 0
      %1524 = vmatpush1.bf16.msra.mxu0 %v1507
      %1525 = vmatprep.subr.bf16.mxu0 0
      %1526 = vmatpush2.bf16.msra.mxu0 0
      %1527 = vmatprep.subr.bf16.mxu0 0
      %1528 = vmatpush2.bf16.msra.mxu0 0
      %1529 = vmatprep.subr.bf16.mxu0 0
      %1530 = vmatpush2.bf16.msra.mxu0 0
      %1531 = vmatprep.subr.bf16.mxu0 0
      %1532 = vmatpush2.bf16.msra.mxu0 0
      %1533 = vmatprep.subr.bf16.mxu0 0
      %1534 = vmatpush2.bf16.msra.mxu0 0
      %1535 = vmatprep.subr.bf16.mxu0 0
      %1536 = vmatpush2.bf16.msra.mxu0 0
      %1537 = vmatprep.subr.bf16.mxu0 0
      %1538 = vmatpush2.bf16.msra.mxu0 0
      %1539 = vmatprep.subr.bf16.mxu0 0
      %1540 = vmatpush2.bf16.msra.mxu0 0
      %1541 = vmatprep.mubr.bf16.mxu0 0
      %1542 = vmatmul.mubr.bf16.gmra.mxu0 %v492
      %v1543 = vpop.f32.mrf.mxu0
      %v1544 = vadd.f32 0.0, %v1543
      %v1545 = vpop.f32.mrf.mxu0
      %v1546 = vpop.f32.mrf.mxu0
      %v1547 = vadd.f32 0.0, %v1546
      %v1548 = vpop.f32.mrf.mxu0
      %1549 = vmatprep.mubr.bf16.mxu0 0
      %1550 = vmatmul.mubr.bf16.gmra.mxu0 %v495
      %v1551 = vpop.f32.mrf.mxu0
      %v1552 = vadd.f32 0.0, %v1551
      %v1553 = vpop.f32.mrf.mxu0
      %v1554 = vpop.f32.mrf.mxu0
      %v1555 = vadd.f32 0.0, %v1554
      %v1556 = vpop.f32.mrf.mxu0
      %1557 = vmatprep.mubr.bf16.mxu0 0
      %1558 = vmatmul.mubr.bf16.gmra.mxu0 %v498
      %v1559 = vpop.f32.mrf.mxu0
      %v1560 = vadd.f32 0.0, %v1559
      %v1561 = vpop.f32.mrf.mxu0
      %v1562 = vpop.f32.mrf.mxu0
      %v1563 = vadd.f32 0.0, %v1562
      %v1564 = vpop.f32.mrf.mxu0
      %1565 = vmatprep.mubr.bf16.mxu0 0
      %1566 = vmatmul.mubr.bf16.gmra.mxu0 %v501
      %v1567 = vpop.f32.mrf.mxu0
      %v1568 = vadd.f32 0.0, %v1567
      %v1569 = vpop.f32.mrf.mxu0
      %v1570 = vpop.f32.mrf.mxu0
      %v1571 = vadd.f32 0.0, %v1570
      %v1572 = vpop.f32.mrf.mxu0
      %1573 = vmatprep.mubr.bf16.mxu0 0
      %1574 = vmatmul.mubr.bf16.gmra.mxu0 %v504
      %v1575 = vpop.f32.mrf.mxu0
      %v1576 = vadd.f32 0.0, %v1575
      %v1577 = vpop.f32.mrf.mxu0
      %v1578 = vpop.f32.mrf.mxu0
      %v1579 = vadd.f32 0.0, %v1578
      %v1580 = vpop.f32.mrf.mxu0
      %1581 = vmatprep.mubr.bf16.mxu0 0
      %1582 = vmatmul.mubr.bf16.gmra.mxu0 %v507
      %v1583 = vpop.f32.mrf.mxu0
      %v1584 = vadd.f32 0.0, %v1583
      %v1585 = vpop.f32.mrf.mxu0
      %v1586 = vpop.f32.mrf.mxu0
      %v1587 = vadd.f32 0.0, %v1586
      %v1588 = vpop.f32.mrf.mxu0
      %1589 = vmatprep.mubr.bf16.mxu0 0
      %1590 = vmatmul.mubr.bf16.gmra.mxu0 %v510
      %v1591 = vpop.f32.mrf.mxu0
      %v1592 = vadd.f32 0.0, %v1591
      %v1593 = vpop.f32.mrf.mxu0
      %v1594 = vpop.f32.mrf.mxu0
      %v1595 = vadd.f32 0.0, %v1594
      %v1596 = vpop.f32.mrf.mxu0
      %1597 = vmatprep.mubr.bf16.mxu0 0
      %1598 = vmatmul.mubr.bf16.gmra.mxu0 %v513
      %v1599 = vpop.f32.mrf.mxu0
      %v1600 = vadd.f32 0.0, %v1599
      %v1601 = vpop.f32.mrf.mxu0
      %v1602 = vpop.f32.mrf.mxu0
      %v1603 = vadd.f32 0.0, %v1602
      %v1604 = vpop.f32.mrf.mxu0
      %1605 = vmatprep.mubr.bf16.mxu0 0
      %1606 = vmatmul.mubr.bf16.gmra.mxu0 %v516
      %v1607 = vpop.f32.mrf.mxu0
      %v1608 = vadd.f32 0.0, %v1607
      %v1609 = vpop.f32.mrf.mxu0
      %v1610 = vpop.f32.mrf.mxu0
      %v1611 = vadd.f32 0.0, %v1610
      %v1612 = vpop.f32.mrf.mxu0
      %1613 = vmatprep.mubr.bf16.mxu0 0
      %1614 = vmatmul.mubr.bf16.gmra.mxu0 %v519
      %v1615 = vpop.f32.mrf.mxu0
      %v1616 = vadd.f32 0.0, %v1615
      %v1617 = vpop.f32.mrf.mxu0
      %v1618 = vpop.f32.mrf.mxu0
      %v1619 = vadd.f32 0.0, %v1618
      %v1620 = vpop.f32.mrf.mxu0
      %1621 = vmatprep.mubr.bf16.mxu0 0
      %1622 = vmatmul.mubr.bf16.gmra.mxu0 %v522
      %v1623 = vpop.f32.mrf.mxu0
      %v1624 = vadd.f32 0.0, %v1623
      %v1625 = vpop.f32.mrf.mxu0
      %v1626 = vpop.f32.mrf.mxu0
      %v1627 = vadd.f32 0.0, %v1626
      %v1628 = vpop.f32.mrf.mxu0
      %1629 = vmatprep.mubr.bf16.mxu0 0
      %1630 = vmatmul.mubr.bf16.gmra.mxu0 %v525
      %v1631 = vpop.f32.mrf.mxu0
      %v1632 = vadd.f32 0.0, %v1631
      %v1633 = vpop.f32.mrf.mxu0
      %v1634 = vpop.f32.mrf.mxu0
      %v1635 = vadd.f32 0.0, %v1634
      %v1636 = vpop.f32.mrf.mxu0
      %1637 = vmatprep.mubr.bf16.mxu0 0
      %1638 = vmatmul.mubr.bf16.gmra.mxu0 %v528
      %v1639 = vpop.f32.mrf.mxu0
      %v1640 = vadd.f32 0.0, %v1639
      %v1641 = vpop.f32.mrf.mxu0
      %v1642 = vpop.f32.mrf.mxu0
      %v1643 = vadd.f32 0.0, %v1642
      %v1644 = vpop.f32.mrf.mxu0
      %1645 = vmatprep.mubr.bf16.mxu0 0
      %1646 = vmatmul.mubr.bf16.gmra.mxu0 %v531
      %v1647 = vpop.f32.mrf.mxu0
      %v1648 = vadd.f32 0.0, %v1647
      %v1649 = vpop.f32.mrf.mxu0
      %v1650 = vpop.f32.mrf.mxu0
      %v1651 = vadd.f32 0.0, %v1650
      %v1652 = vpop.f32.mrf.mxu0
      %1653 = vmatprep.mubr.bf16.mxu0 0
      %1654 = vmatmul.mubr.bf16.gmra.mxu0 %v534
      %v1655 = vpop.f32.mrf.mxu0
      %v1656 = vadd.f32 0.0, %v1655
      %v1657 = vpop.f32.mrf.mxu0
      %v1658 = vpop.f32.mrf.mxu0
      %v1659 = vadd.f32 0.0, %v1658
      %v1660 = vpop.f32.mrf.mxu0
      %1661 = vmatprep.mubr.bf16.mxu0 0
      %1662 = vmatmul.mubr.bf16.gmra.mxu0 %v1504
      %v1663 = vpop.f32.mrf.mxu0
      %v1664 = vadd.f32 0.0, %v1663
      %v1665 = vpop.f32.mrf.mxu0
      %v1666 = vpop.f32.mrf.mxu0
      %v1667 = vadd.f32 0.0, %v1666
      %v1668 = vpop.f32.mrf.mxu0
      %1669 = vdwg.mxu0
      %v1670 = vadd.f32 %v1458, %v1544
      %v1671 = vadd.f32 %v1459, %v1547
      %v1672 = vadd.f32 %v1460, %v1552
      %v1673 = vadd.f32 %v1461, %v1555
      %v1674 = vadd.f32 %v1462, %v1560
      %v1675 = vadd.f32 %v1463, %v1563
      %v1676 = vadd.f32 %v1464, %v1568
      %v1677 = vadd.f32 %v1465, %v1571
      %v1678 = vadd.f32 %v1466, %v1576
      %v1679 = vadd.f32 %v1467, %v1579
      %v1680 = vadd.f32 %v1468, %v1584
      %v1681 = vadd.f32 %v1469, %v1587
      %v1682 = vadd.f32 %v1470, %v1592
      %v1683 = vadd.f32 %v1471, %v1595
      %v1684 = vadd.f32 %v1472, %v1600
      %v1685 = vadd.f32 %v1473, %v1603
      %v1686 = vadd.f32 %v1474, %v1608
      %v1687 = vadd.f32 %v1475, %v1611
      %v1688 = vadd.f32 %v1476, %v1616
      %v1689 = vadd.f32 %v1477, %v1619
      %v1690 = vadd.f32 %v1478, %v1624
      %v1691 = vadd.f32 %v1479, %v1627
      %v1692 = vadd.f32 %v1480, %v1632
      %v1693 = vadd.f32 %v1481, %v1635
      %v1694 = vadd.f32 %v1482, %v1640
      %v1695 = vadd.f32 %v1483, %v1643
      %v1696 = vadd.f32 %v1484, %v1648
      %v1697 = vadd.f32 %v1485, %v1651
      %v1698 = vadd.f32 %v1486, %v1656
      %v1699 = vadd.f32 %v1487, %v1659
      %v1700 = vadd.f32 %v1488, %v1664
      %v1701 = vadd.f32 %v1489, %v1667
      %v1702 = vrot.slane %v285, 2
      %v1703 = vrot.slane %v286, 2
      %v1704 = vsel %vm913, %v1702, %v1703
      %v1705 = vrot.slane %v287, 2
      %v1706 = vsel %vm913, %v1703, %v1705
      %v1709 = vpack.c.bf16 %v1706, %v1704
      %s1710 = scalar_lea.vmem %s1, 20
      %v1711 = vld [vmem:[%s1710] sm:$0xf]
      %v1713 = vsel %vm487, %v1709, 0
      %v1716 = vsel %vm536, %v1711, 0
      %1718 = vmatprep.subr.bf16.mxu0 0
      %1719 = vmatpush1.bf16.msra.mxu0 0
      %1720 = vmatprep.subr.bf16.mxu0 0
      %1721 = vmatpush1.bf16.msra.mxu0 0
      %1722 = vmatprep.subr.bf16.mxu0 0
      %1723 = vmatpush1.bf16.msra.mxu0 0
      %1724 = vmatprep.subr.bf16.mxu0 0
      %1725 = vmatpush1.bf16.msra.mxu0 0
      %1726 = vmatprep.subr.bf16.mxu0 0
      %1727 = vmatpush1.bf16.msra.mxu0 0
      %1728 = vmatprep.subr.bf16.mxu0 0
      %1729 = vmatpush1.bf16.msra.mxu0 0
      %1730 = vmatprep.subr.bf16.mxu0 0
      %1731 = vmatpush1.bf16.msra.mxu0 0
      %1732 = vmatprep.subr.bf16.mxu0 0
      %1733 = vmatpush1.bf16.msra.mxu0 %v1716
      %1734 = vmatprep.subr.bf16.mxu0 0
      %1735 = vmatpush2.bf16.msra.mxu0 0
      %1736 = vmatprep.subr.bf16.mxu0 0
      %1737 = vmatpush2.bf16.msra.mxu0 0
      %1738 = vmatprep.subr.bf16.mxu0 0
      %1739 = vmatpush2.bf16.msra.mxu0 0
      %1740 = vmatprep.subr.bf16.mxu0 0
      %1741 = vmatpush2.bf16.msra.mxu0 0
      %1742 = vmatprep.subr.bf16.mxu0 0
      %1743 = vmatpush2.bf16.msra.mxu0 0
      %1744 = vmatprep.subr.bf16.mxu0 0
      %1745 = vmatpush2.bf16.msra.mxu0 0
      %1746 = vmatprep.subr.bf16.mxu0 0
      %1747 = vmatpush2.bf16.msra.mxu0 0
      %1748 = vmatprep.subr.bf16.mxu0 0
      %1749 = vmatpush2.bf16.msra.mxu0 0
      %1750 = vmatprep.mubr.bf16.mxu0 0
      %1751 = vmatmul.mubr.bf16.gmra.mxu0 %v1048
      %v1752 = vpop.f32.mrf.mxu0
      %v1753 = vadd.f32 0.0, %v1752
      %v1754 = vpop.f32.mrf.mxu0
      %v1755 = vpop.f32.mrf.mxu0
      %v1756 = vadd.f32 0.0, %v1755
      %v1757 = vpop.f32.mrf.mxu0
      %1758 = vmatprep.mubr.bf16.mxu0 0
      %1759 = vmatmul.mubr.bf16.gmra.mxu0 %v1051
      %v1760 = vpop.f32.mrf.mxu0
      %v1761 = vadd.f32 0.0, %v1760
      %v1762 = vpop.f32.mrf.mxu0
      %v1763 = vpop.f32.mrf.mxu0
      %v1764 = vadd.f32 0.0, %v1763
      %v1765 = vpop.f32.mrf.mxu0
      %1766 = vmatprep.mubr.bf16.mxu0 0
      %1767 = vmatmul.mubr.bf16.gmra.mxu0 %v1054
      %v1768 = vpop.f32.mrf.mxu0
      %v1769 = vadd.f32 0.0, %v1768
      %v1770 = vpop.f32.mrf.mxu0
      %v1771 = vpop.f32.mrf.mxu0
      %v1772 = vadd.f32 0.0, %v1771
      %v1773 = vpop.f32.mrf.mxu0
      %1774 = vmatprep.mubr.bf16.mxu0 0
      %1775 = vmatmul.mubr.bf16.gmra.mxu0 %v1057
      %v1776 = vpop.f32.mrf.mxu0
      %v1777 = vadd.f32 0.0, %v1776
      %v1778 = vpop.f32.mrf.mxu0
      %v1779 = vpop.f32.mrf.mxu0
      %v1780 = vadd.f32 0.0, %v1779
      %v1781 = vpop.f32.mrf.mxu0
      %1782 = vmatprep.mubr.bf16.mxu0 0
      %1783 = vmatmul.mubr.bf16.gmra.mxu0 %v1060
      %v1784 = vpop.f32.mrf.mxu0
      %v1785 = vadd.f32 0.0, %v1784
      %v1786 = vpop.f32.mrf.mxu0
      %v1787 = vpop.f32.mrf.mxu0
      %v1788 = vadd.f32 0.0, %v1787
      %v1789 = vpop.f32.mrf.mxu0
      %1790 = vmatprep.mubr.bf16.mxu0 0
      %1791 = vmatmul.mubr.bf16.gmra.mxu0 %v1063
      %v1792 = vpop.f32.mrf.mxu0
      %v1793 = vadd.f32 0.0, %v1792
      %v1794 = vpop.f32.mrf.mxu0
      %v1795 = vpop.f32.mrf.mxu0
      %v1796 = vadd.f32 0.0, %v1795
      %v1797 = vpop.f32.mrf.mxu0
      %1798 = vmatprep.mubr.bf16.mxu0 0
      %1799 = vmatmul.mubr.bf16.gmra.mxu0 %v1066
      %v1800 = vpop.f32.mrf.mxu0
      %v1801 = vadd.f32 0.0, %v1800
      %v1802 = vpop.f32.mrf.mxu0
      %v1803 = vpop.f32.mrf.mxu0
      %v1804 = vadd.f32 0.0, %v1803
      %v1805 = vpop.f32.mrf.mxu0
      %1806 = vmatprep.mubr.bf16.mxu0 0
      %1807 = vmatmul.mubr.bf16.gmra.mxu0 %v1069
      %v1808 = vpop.f32.mrf.mxu0
      %v1809 = vadd.f32 0.0, %v1808
      %v1810 = vpop.f32.mrf.mxu0
      %v1811 = vpop.f32.mrf.mxu0
      %v1812 = vadd.f32 0.0, %v1811
      %v1813 = vpop.f32.mrf.mxu0
      %1814 = vmatprep.mubr.bf16.mxu0 0
      %1815 = vmatmul.mubr.bf16.gmra.mxu0 %v1072
      %v1816 = vpop.f32.mrf.mxu0
      %v1817 = vadd.f32 0.0, %v1816
      %v1818 = vpop.f32.mrf.mxu0
      %v1819 = vpop.f32.mrf.mxu0
      %v1820 = vadd.f32 0.0, %v1819
      %v1821 = vpop.f32.mrf.mxu0
      %1822 = vmatprep.mubr.bf16.mxu0 0
      %1823 = vmatmul.mubr.bf16.gmra.mxu0 %v1075
      %v1824 = vpop.f32.mrf.mxu0
      %v1825 = vadd.f32 0.0, %v1824
      %v1826 = vpop.f32.mrf.mxu0
      %v1827 = vpop.f32.mrf.mxu0
      %v1828 = vadd.f32 0.0, %v1827
      %v1829 = vpop.f32.mrf.mxu0
      %1830 = vmatprep.mubr.bf16.mxu0 0
      %1831 = vmatmul.mubr.bf16.gmra.mxu0 %v1078
      %v1832 = vpop.f32.mrf.mxu0
      %v1833 = vadd.f32 0.0, %v1832
      %v1834 = vpop.f32.mrf.mxu0
      %v1835 = vpop.f32.mrf.mxu0
      %v1836 = vadd.f32 0.0, %v1835
      %v1837 = vpop.f32.mrf.mxu0
      %1838 = vmatprep.mubr.bf16.mxu0 0
      %1839 = vmatmul.mubr.bf16.gmra.mxu0 %v1081
      %v1840 = vpop.f32.mrf.mxu0
      %v1841 = vadd.f32 0.0, %v1840
      %v1842 = vpop.f32.mrf.mxu0
      %v1843 = vpop.f32.mrf.mxu0
      %v1844 = vadd.f32 0.0, %v1843
      %v1845 = vpop.f32.mrf.mxu0
      %1846 = vmatprep.mubr.bf16.mxu0 0
      %1847 = vmatmul.mubr.bf16.gmra.mxu0 %v1084
      %v1848 = vpop.f32.mrf.mxu0
      %v1849 = vadd.f32 0.0, %v1848
      %v1850 = vpop.f32.mrf.mxu0
      %v1851 = vpop.f32.mrf.mxu0
      %v1852 = vadd.f32 0.0, %v1851
      %v1853 = vpop.f32.mrf.mxu0
      %1854 = vmatprep.mubr.bf16.mxu0 0
      %1855 = vmatmul.mubr.bf16.gmra.mxu0 %v1087
      %v1856 = vpop.f32.mrf.mxu0
      %v1857 = vadd.f32 0.0, %v1856
      %v1858 = vpop.f32.mrf.mxu0
      %v1859 = vpop.f32.mrf.mxu0
      %v1860 = vadd.f32 0.0, %v1859
      %v1861 = vpop.f32.mrf.mxu0
      %1862 = vmatprep.mubr.bf16.mxu0 0
      %1863 = vmatmul.mubr.bf16.gmra.mxu0 %v1090
      %v1864 = vpop.f32.mrf.mxu0
      %v1865 = vadd.f32 0.0, %v1864
      %v1866 = vpop.f32.mrf.mxu0
      %v1867 = vpop.f32.mrf.mxu0
      %v1868 = vadd.f32 0.0, %v1867
      %v1869 = vpop.f32.mrf.mxu0
      %1870 = vmatprep.mubr.bf16.mxu0 0
      %1871 = vmatmul.mubr.bf16.gmra.mxu0 %v1713
      %v1872 = vpop.f32.mrf.mxu0
      %v1873 = vadd.f32 0.0, %v1872
      %v1874 = vpop.f32.mrf.mxu0
      %v1875 = vpop.f32.mrf.mxu0
      %v1876 = vadd.f32 0.0, %v1875
      %v1877 = vpop.f32.mrf.mxu0
      %1878 = vdwg.mxu0
      %v1879 = vadd.f32 %v1670, %v1753
      %v1880 = vadd.f32 %v1671, %v1756
      %v1881 = vadd.f32 %v1672, %v1761
      %v1882 = vadd.f32 %v1673, %v1764
      %v1883 = vadd.f32 %v1674, %v1769
      %v1884 = vadd.f32 %v1675, %v1772
      %v1885 = vadd.f32 %v1676, %v1777
      %v1886 = vadd.f32 %v1677, %v1780
      %v1887 = vadd.f32 %v1678, %v1785
      %v1888 = vadd.f32 %v1679, %v1788
      %v1889 = vadd.f32 %v1680, %v1793
      %v1890 = vadd.f32 %v1681, %v1796
      %v1891 = vadd.f32 %v1682, %v1801
      %v1892 = vadd.f32 %v1683, %v1804
      %v1893 = vadd.f32 %v1684, %v1809
      %v1894 = vadd.f32 %v1685, %v1812
      %v1895 = vadd.f32 %v1686, %v1817
      %v1896 = vadd.f32 %v1687, %v1820
      %v1897 = vadd.f32 %v1688, %v1825
      %v1898 = vadd.f32 %v1689, %v1828
      %v1899 = vadd.f32 %v1690, %v1833
      %v1900 = vadd.f32 %v1691, %v1836
      %v1901 = vadd.f32 %v1692, %v1841
      %v1902 = vadd.f32 %v1693, %v1844
      %v1903 = vadd.f32 %v1694, %v1849
      %v1904 = vadd.f32 %v1695, %v1852
      %v1905 = vadd.f32 %v1696, %v1857
      %v1906 = vadd.f32 %v1697, %v1860
      %v1907 = vadd.f32 %v1698, %v1865
      %v1908 = vadd.f32 %v1699, %v1868
      %v1909 = vadd.f32 %v1700, %v1873
      %v1910 = vadd.f32 %v1701, %v1876
      %v1911 = vpack.c.bf16 %v289, %v288
      %s1912 = scalar_lea.vmem %s1, 24
      %v1913 = vld [vmem:[%s1912] sm:$0xf]
      %v1915 = vsel %vm487, %v1911, 0
      %v1918 = vsel %vm536, %v1913, 0
      %1920 = vmatprep.subr.bf16.mxu0 0
      %1921 = vmatpush1.bf16.msra.mxu0 0
      %1922 = vmatprep.subr.bf16.mxu0 0
      %1923 = vmatpush1.bf16.msra.mxu0 0
      %1924 = vmatprep.subr.bf16.mxu0 0
      %1925 = vmatpush1.bf16.msra.mxu0 0
      %1926 = vmatprep.subr.bf16.mxu0 0
      %1927 = vmatpush1.bf16.msra.mxu0 0
      %1928 = vmatprep.subr.bf16.mxu0 0
      %1929 = vmatpush1.bf16.msra.mxu0 0
      %1930 = vmatprep.subr.bf16.mxu0 0
      %1931 = vmatpush1.bf16.msra.mxu0 0
      %1932 = vmatprep.subr.bf16.mxu0 0
      %1933 = vmatpush1.bf16.msra.mxu0 0
      %1934 = vmatprep.subr.bf16.mxu0 0
      %1935 = vmatpush1.bf16.msra.mxu0 %v1918
      %1936 = vmatprep.subr.bf16.mxu0 0
      %1937 = vmatpush2.bf16.msra.mxu0 0
      %1938 = vmatprep.subr.bf16.mxu0 0
      %1939 = vmatpush2.bf16.msra.mxu0 0
      %1940 = vmatprep.subr.bf16.mxu0 0
      %1941 = vmatpush2.bf16.msra.mxu0 0
      %1942 = vmatprep.subr.bf16.mxu0 0
      %1943 = vmatpush2.bf16.msra.mxu0 0
      %1944 = vmatprep.subr.bf16.mxu0 0
      %1945 = vmatpush2.bf16.msra.mxu0 0
      %1946 = vmatprep.subr.bf16.mxu0 0
      %1947 = vmatpush2.bf16.msra.mxu0 0
      %1948 = vmatprep.subr.bf16.mxu0 0
      %1949 = vmatpush2.bf16.msra.mxu0 0
      %1950 = vmatprep.subr.bf16.mxu0 0
      %1951 = vmatpush2.bf16.msra.mxu0 0
      %1952 = vmatprep.mubr.bf16.mxu0 0
      %1953 = vmatmul.mubr.bf16.gmra.mxu0 %v708
      %v1954 = vpop.f32.mrf.mxu0
      %v1955 = vadd.f32 0.0, %v1954
      %v1956 = vpop.f32.mrf.mxu0
      %v1957 = vpop.f32.mrf.mxu0
      %v1958 = vadd.f32 0.0, %v1957
      %v1959 = vpop.f32.mrf.mxu0
      %1960 = vmatprep.mubr.bf16.mxu0 0
      %1961 = vmatmul.mubr.bf16.gmra.mxu0 %v711
      %v1962 = vpop.f32.mrf.mxu0
      %v1963 = vadd.f32 0.0, %v1962
      %v1964 = vpop.f32.mrf.mxu0
      %v1965 = vpop.f32.mrf.mxu0
      %v1966 = vadd.f32 0.0, %v1965
      %v1967 = vpop.f32.mrf.mxu0
      %1968 = vmatprep.mubr.bf16.mxu0 0
      %1969 = vmatmul.mubr.bf16.gmra.mxu0 %v714
      %v1970 = vpop.f32.mrf.mxu0
      %v1971 = vadd.f32 0.0, %v1970
      %v1972 = vpop.f32.mrf.mxu0
      %v1973 = vpop.f32.mrf.mxu0
      %v1974 = vadd.f32 0.0, %v1973
      %v1975 = vpop.f32.mrf.mxu0
      %1976 = vmatprep.mubr.bf16.mxu0 0
      %1977 = vmatmul.mubr.bf16.gmra.mxu0 %v717
      %v1978 = vpop.f32.mrf.mxu0
      %v1979 = vadd.f32 0.0, %v1978
      %v1980 = vpop.f32.mrf.mxu0
      %v1981 = vpop.f32.mrf.mxu0
      %v1982 = vadd.f32 0.0, %v1981
      %v1983 = vpop.f32.mrf.mxu0
      %1984 = vmatprep.mubr.bf16.mxu0 0
      %1985 = vmatmul.mubr.bf16.gmra.mxu0 %v720
      %v1986 = vpop.f32.mrf.mxu0
      %v1987 = vadd.f32 0.0, %v1986
      %v1988 = vpop.f32.mrf.mxu0
      %v1989 = vpop.f32.mrf.mxu0
      %v1990 = vadd.f32 0.0, %v1989
      %v1991 = vpop.f32.mrf.mxu0
      %1992 = vmatprep.mubr.bf16.mxu0 0
      %1993 = vmatmul.mubr.bf16.gmra.mxu0 %v723
      %v1994 = vpop.f32.mrf.mxu0
      %v1995 = vadd.f32 0.0, %v1994
      %v1996 = vpop.f32.mrf.mxu0
      %v1997 = vpop.f32.mrf.mxu0
      %v1998 = vadd.f32 0.0, %v1997
      %v1999 = vpop.f32.mrf.mxu0
      %2000 = vmatprep.mubr.bf16.mxu0 0
      %2001 = vmatmul.mubr.bf16.gmra.mxu0 %v726
      %v2002 = vpop.f32.mrf.mxu0
      %v2003 = vadd.f32 0.0, %v2002
      %v2004 = vpop.f32.mrf.mxu0
      %v2005 = vpop.f32.mrf.mxu0
      %v2006 = vadd.f32 0.0, %v2005
      %v2007 = vpop.f32.mrf.mxu0
      %2008 = vmatprep.mubr.bf16.mxu0 0
      %2009 = vmatmul.mubr.bf16.gmra.mxu0 %v729
      %v2010 = vpop.f32.mrf.mxu0
      %v2011 = vadd.f32 0.0, %v2010
      %v2012 = vpop.f32.mrf.mxu0
      %v2013 = vpop.f32.mrf.mxu0
      %v2014 = vadd.f32 0.0, %v2013
      %v2015 = vpop.f32.mrf.mxu0
      %2016 = vmatprep.mubr.bf16.mxu0 0
      %2017 = vmatmul.mubr.bf16.gmra.mxu0 %v732
      %v2018 = vpop.f32.mrf.mxu0
      %v2019 = vadd.f32 0.0, %v2018
      %v2020 = vpop.f32.mrf.mxu0
      %v2021 = vpop.f32.mrf.mxu0
      %v2022 = vadd.f32 0.0, %v2021
      %v2023 = vpop.f32.mrf.mxu0
      %2024 = vmatprep.mubr.bf16.mxu0 0
      %2025 = vmatmul.mubr.bf16.gmra.mxu0 %v735
      %v2026 = vpop.f32.mrf.mxu0
      %v2027 = vadd.f32 0.0, %v2026
      %v2028 = vpop.f32.mrf.mxu0
      %v2029 = vpop.f32.mrf.mxu0
      %v2030 = vadd.f32 0.0, %v2029
      %v2031 = vpop.f32.mrf.mxu0
      %2032 = vmatprep.mubr.bf16.mxu0 0
      %2033 = vmatmul.mubr.bf16.gmra.mxu0 %v738
      %v2034 = vpop.f32.mrf.mxu0
      %v2035 = vadd.f32 0.0, %v2034
      %v2036 = vpop.f32.mrf.mxu0
      %v2037 = vpop.f32.mrf.mxu0
      %v2038 = vadd.f32 0.0, %v2037
      %v2039 = vpop.f32.mrf.mxu0
      %2040 = vmatprep.mubr.bf16.mxu0 0
      %2041 = vmatmul.mubr.bf16.gmra.mxu0 %v741
      %v2042 = vpop.f32.mrf.mxu0
      %v2043 = vadd.f32 0.0, %v2042
      %v2044 = vpop.f32.mrf.mxu0
      %v2045 = vpop.f32.mrf.mxu0
      %v2046 = vadd.f32 0.0, %v2045
      %v2047 = vpop.f32.mrf.mxu0
      %2048 = vmatprep.mubr.bf16.mxu0 0
      %2049 = vmatmul.mubr.bf16.gmra.mxu0 %v744
      %v2050 = vpop.f32.mrf.mxu0
      %v2051 = vadd.f32 0.0, %v2050
      %v2052 = vpop.f32.mrf.mxu0
      %v2053 = vpop.f32.mrf.mxu0
      %v2054 = vadd.f32 0.0, %v2053
      %v2055 = vpop.f32.mrf.mxu0
      %2056 = vmatprep.mubr.bf16.mxu0 0
      %2057 = vmatmul.mubr.bf16.gmra.mxu0 %v747
      %v2058 = vpop.f32.mrf.mxu0
      %v2059 = vadd.f32 0.0, %v2058
      %v2060 = vpop.f32.mrf.mxu0
      %v2061 = vpop.f32.mrf.mxu0
      %v2062 = vadd.f32 0.0, %v2061
      %v2063 = vpop.f32.mrf.mxu0
      %2064 = vmatprep.mubr.bf16.mxu0 0
      %2065 = vmatmul.mubr.bf16.gmra.mxu0 %v1292
      %v2066 = vpop.f32.mrf.mxu0
      %v2067 = vadd.f32 0.0, %v2066
      %v2068 = vpop.f32.mrf.mxu0
      %v2069 = vpop.f32.mrf.mxu0
      %v2070 = vadd.f32 0.0, %v2069
      %v2071 = vpop.f32.mrf.mxu0
      %2072 = vmatprep.mubr.bf16.mxu0 0
      %2073 = vmatmul.mubr.bf16.gmra.mxu0 %v1915
      %v2074 = vpop.f32.mrf.mxu0
      %v2075 = vadd.f32 0.0, %v2074
      %v2076 = vpop.f32.mrf.mxu0
      %v2077 = vpop.f32.mrf.mxu0
      %v2078 = vadd.f32 0.0, %v2077
      %v2079 = vpop.f32.mrf.mxu0
      %2080 = vdwg.mxu0
      %v2081 = vadd.f32 %v1879, %v1955
      %v2082 = vadd.f32 %v1880, %v1958
      %v2083 = vadd.f32 %v1881, %v1963
      %v2084 = vadd.f32 %v1882, %v1966
      %v2085 = vadd.f32 %v1883, %v1971
      %v2086 = vadd.f32 %v1884, %v1974
      %v2087 = vadd.f32 %v1885, %v1979
      %v2088 = vadd.f32 %v1886, %v1982
      %v2089 = vadd.f32 %v1887, %v1987
      %v2090 = vadd.f32 %v1888, %v1990
      %v2091 = vadd.f32 %v1889, %v1995
      %v2092 = vadd.f32 %v1890, %v1998
      %v2093 = vadd.f32 %v1891, %v2003
      %v2094 = vadd.f32 %v1892, %v2006
      %v2095 = vadd.f32 %v1893, %v2011
      %v2096 = vadd.f32 %v1894, %v2014
      %v2097 = vadd.f32 %v1895, %v2019
      %v2098 = vadd.f32 %v1896, %v2022
      %v2099 = vadd.f32 %v1897, %v2027
      %v2100 = vadd.f32 %v1898, %v2030
      %v2101 = vadd.f32 %v1899, %v2035
      %v2102 = vadd.f32 %v1900, %v2038
      %v2103 = vadd.f32 %v1901, %v2043
      %v2104 = vadd.f32 %v1902, %v2046
      %v2105 = vadd.f32 %v1903, %v2051
      %v2106 = vadd.f32 %v1904, %v2054
      %v2107 = vadd.f32 %v1905, %v2059
      %v2108 = vadd.f32 %v1906, %v2062
      %v2109 = vadd.f32 %v1907, %v2067
      %v2110 = vadd.f32 %v1908, %v2070
      %v2111 = vadd.f32 %v1909, %v2075
      %v2112 = vadd.f32 %v1910, %v2078
      %v2116 = vrot.slane %v288, 1
      %v2117 = vrot.slane %v289, 1
      %v2118 = vsel %vm356, %v2116, %v2117
      %v2119 = vrot.slane %v290, 1
      %v2120 = vsel %vm356, %v2117, %v2119
      %v2123 = vpack.c.bf16 %v2120, %v2118
      %s2124 = scalar_lea.vmem %s1, 28
      %v2125 = vld [vmem:[%s2124] sm:$0xf]
      %v2127 = vsel %vm487, %v2123, 0
      %v2130 = vsel %vm536, %v2125, 0
      %2132 = vmatprep.subr.bf16.mxu0 0
      %2133 = vmatpush1.bf16.msra.mxu0 0
      %2134 = vmatprep.subr.bf16.mxu0 0
      %2135 = vmatpush1.bf16.msra.mxu0 0
      %2136 = vmatprep.subr.bf16.mxu0 0
      %2137 = vmatpush1.bf16.msra.mxu0 0
      %2138 = vmatprep.subr.bf16.mxu0 0
      %2139 = vmatpush1.bf16.msra.mxu0 0
      %2140 = vmatprep.subr.bf16.mxu0 0
      %2141 = vmatpush1.bf16.msra.mxu0 0
      %2142 = vmatprep.subr.bf16.mxu0 0
      %2143 = vmatpush1.bf16.msra.mxu0 0
      %2144 = vmatprep.subr.bf16.mxu0 0
      %2145 = vmatpush1.bf16.msra.mxu0 0
      %2146 = vmatprep.subr.bf16.mxu0 0
      %2147 = vmatpush1.bf16.msra.mxu0 %v2130
      %2148 = vmatprep.subr.bf16.mxu0 0
      %2149 = vmatpush2.bf16.msra.mxu0 0
      %2150 = vmatprep.subr.bf16.mxu0 0
      %2151 = vmatpush2.bf16.msra.mxu0 0
      %2152 = vmatprep.subr.bf16.mxu0 0
      %2153 = vmatpush2.bf16.msra.mxu0 0
      %2154 = vmatprep.subr.bf16.mxu0 0
      %2155 = vmatpush2.bf16.msra.mxu0 0
      %2156 = vmatprep.subr.bf16.mxu0 0
      %2157 = vmatpush2.bf16.msra.mxu0 0
      %2158 = vmatprep.subr.bf16.mxu0 0
      %2159 = vmatpush2.bf16.msra.mxu0 0
      %2160 = vmatprep.subr.bf16.mxu0 0
      %2161 = vmatpush2.bf16.msra.mxu0 0
      %2162 = vmatprep.subr.bf16.mxu0 0
      %2163 = vmatpush2.bf16.msra.mxu0 0
      %2164 = vmatprep.mubr.bf16.mxu0 0
      %2165 = vmatmul.mubr.bf16.gmra.mxu0 %v495
      %v2166 = vpop.f32.mrf.mxu0
      %v2167 = vadd.f32 0.0, %v2166
      %v2168 = vpop.f32.mrf.mxu0
      %v2169 = vpop.f32.mrf.mxu0
      %v2170 = vadd.f32 0.0, %v2169
      %v2171 = vpop.f32.mrf.mxu0
      %2172 = vmatprep.mubr.bf16.mxu0 0
      %2173 = vmatmul.mubr.bf16.gmra.mxu0 %v498
      %v2174 = vpop.f32.mrf.mxu0
      %v2175 = vadd.f32 0.0, %v2174
      %v2176 = vpop.f32.mrf.mxu0
      %v2177 = vpop.f32.mrf.mxu0
      %v2178 = vadd.f32 0.0, %v2177
      %v2179 = vpop.f32.mrf.mxu0
      %2180 = vmatprep.mubr.bf16.mxu0 0
      %2181 = vmatmul.mubr.bf16.gmra.mxu0 %v501
      %v2182 = vpop.f32.mrf.mxu0
      %v2183 = vadd.f32 0.0, %v2182
      %v2184 = vpop.f32.mrf.mxu0
      %v2185 = vpop.f32.mrf.mxu0
      %v2186 = vadd.f32 0.0, %v2185
      %v2187 = vpop.f32.mrf.mxu0
      %2188 = vmatprep.mubr.bf16.mxu0 0
      %2189 = vmatmul.mubr.bf16.gmra.mxu0 %v504
      %v2190 = vpop.f32.mrf.mxu0
      %v2191 = vadd.f32 0.0, %v2190
      %v2192 = vpop.f32.mrf.mxu0
      %v2193 = vpop.f32.mrf.mxu0
      %v2194 = vadd.f32 0.0, %v2193
      %v2195 = vpop.f32.mrf.mxu0
      %2196 = vmatprep.mubr.bf16.mxu0 0
      %2197 = vmatmul.mubr.bf16.gmra.mxu0 %v507
      %v2198 = vpop.f32.mrf.mxu0
      %v2199 = vadd.f32 0.0, %v2198
      %v2200 = vpop.f32.mrf.mxu0
      %v2201 = vpop.f32.mrf.mxu0
      %v2202 = vadd.f32 0.0, %v2201
      %v2203 = vpop.f32.mrf.mxu0
      %2204 = vmatprep.mubr.bf16.mxu0 0
      %2205 = vmatmul.mubr.bf16.gmra.mxu0 %v510
      %v2206 = vpop.f32.mrf.mxu0
      %v2207 = vadd.f32 0.0, %v2206
      %v2208 = vpop.f32.mrf.mxu0
      %v2209 = vpop.f32.mrf.mxu0
      %v2210 = vadd.f32 0.0, %v2209
      %v2211 = vpop.f32.mrf.mxu0
      %2212 = vmatprep.mubr.bf16.mxu0 0
      %2213 = vmatmul.mubr.bf16.gmra.mxu0 %v513
      %v2214 = vpop.f32.mrf.mxu0
      %v2215 = vadd.f32 0.0, %v2214
      %v2216 = vpop.f32.mrf.mxu0
      %v2217 = vpop.f32.mrf.mxu0
      %v2218 = vadd.f32 0.0, %v2217
      %v2219 = vpop.f32.mrf.mxu0
      %2220 = vmatprep.mubr.bf16.mxu0 0
      %2221 = vmatmul.mubr.bf16.gmra.mxu0 %v516
      %v2222 = vpop.f32.mrf.mxu0
      %v2223 = vadd.f32 0.0, %v2222
      %v2224 = vpop.f32.mrf.mxu0
      %v2225 = vpop.f32.mrf.mxu0
      %v2226 = vadd.f32 0.0, %v2225
      %v2227 = vpop.f32.mrf.mxu0
      %2228 = vmatprep.mubr.bf16.mxu0 0
      %2229 = vmatmul.mubr.bf16.gmra.mxu0 %v519
      %v2230 = vpop.f32.mrf.mxu0
      %v2231 = vadd.f32 0.0, %v2230
      %v2232 = vpop.f32.mrf.mxu0
      %v2233 = vpop.f32.mrf.mxu0
      %v2234 = vadd.f32 0.0, %v2233
      %v2235 = vpop.f32.mrf.mxu0
      %2236 = vmatprep.mubr.bf16.mxu0 0
      %2237 = vmatmul.mubr.bf16.gmra.mxu0 %v522
      %v2238 = vpop.f32.mrf.mxu0
      %v2239 = vadd.f32 0.0, %v2238
      %v2240 = vpop.f32.mrf.mxu0
      %v2241 = vpop.f32.mrf.mxu0
      %v2242 = vadd.f32 0.0, %v2241
      %v2243 = vpop.f32.mrf.mxu0
      %2244 = vmatprep.mubr.bf16.mxu0 0
      %2245 = vmatmul.mubr.bf16.gmra.mxu0 %v525
      %v2246 = vpop.f32.mrf.mxu0
      %v2247 = vadd.f32 0.0, %v2246
      %v2248 = vpop.f32.mrf.mxu0
      %v2249 = vpop.f32.mrf.mxu0
      %v2250 = vadd.f32 0.0, %v2249
      %v2251 = vpop.f32.mrf.mxu0
      %2252 = vmatprep.mubr.bf16.mxu0 0
      %2253 = vmatmul.mubr.bf16.gmra.mxu0 %v528
      %v2254 = vpop.f32.mrf.mxu0
      %v2255 = vadd.f32 0.0, %v2254
      %v2256 = vpop.f32.mrf.mxu0
      %v2257 = vpop.f32.mrf.mxu0
      %v2258 = vadd.f32 0.0, %v2257
      %v2259 = vpop.f32.mrf.mxu0
      %2260 = vmatprep.mubr.bf16.mxu0 0
      %2261 = vmatmul.mubr.bf16.gmra.mxu0 %v531
      %v2262 = vpop.f32.mrf.mxu0
      %v2263 = vadd.f32 0.0, %v2262
      %v2264 = vpop.f32.mrf.mxu0
      %v2265 = vpop.f32.mrf.mxu0
      %v2266 = vadd.f32 0.0, %v2265
      %v2267 = vpop.f32.mrf.mxu0
      %2268 = vmatprep.mubr.bf16.mxu0 0
      %2269 = vmatmul.mubr.bf16.gmra.mxu0 %v534
      %v2270 = vpop.f32.mrf.mxu0
      %v2271 = vadd.f32 0.0, %v2270
      %v2272 = vpop.f32.mrf.mxu0
      %v2273 = vpop.f32.mrf.mxu0
      %v2274 = vadd.f32 0.0, %v2273
      %v2275 = vpop.f32.mrf.mxu0
      %2276 = vmatprep.mubr.bf16.mxu0 0
      %2277 = vmatmul.mubr.bf16.gmra.mxu0 %v1504
      %v2278 = vpop.f32.mrf.mxu0
      %v2279 = vadd.f32 0.0, %v2278
      %v2280 = vpop.f32.mrf.mxu0
      %v2281 = vpop.f32.mrf.mxu0
      %v2282 = vadd.f32 0.0, %v2281
      %v2283 = vpop.f32.mrf.mxu0
      %2284 = vmatprep.mubr.bf16.mxu0 0
      %2285 = vmatmul.mubr.bf16.gmra.mxu0 %v2127
      %v2286 = vpop.f32.mrf.mxu0
      %v2287 = vadd.f32 0.0, %v2286
      %v2288 = vpop.f32.mrf.mxu0
      %v2289 = vpop.f32.mrf.mxu0
      %v2290 = vadd.f32 0.0, %v2289
      %v2291 = vpop.f32.mrf.mxu0
      %2292 = vdwg.mxu0
      %v2293 = vadd.f32 %v2081, %v2167
      %v2294 = vadd.f32 %v2082, %v2170
      %v2295 = vadd.f32 %v2083, %v2175
      %v2296 = vadd.f32 %v2084, %v2178
      %v2297 = vadd.f32 %v2085, %v2183
      %v2298 = vadd.f32 %v2086, %v2186
      %v2299 = vadd.f32 %v2087, %v2191
      %v2300 = vadd.f32 %v2088, %v2194
      %v2301 = vadd.f32 %v2089, %v2199
      %v2302 = vadd.f32 %v2090, %v2202
      %v2303 = vadd.f32 %v2091, %v2207
      %v2304 = vadd.f32 %v2092, %v2210
      %v2305 = vadd.f32 %v2093, %v2215
      %v2306 = vadd.f32 %v2094, %v2218
      %v2307 = vadd.f32 %v2095, %v2223
      %v2308 = vadd.f32 %v2096, %v2226
      %v2309 = vadd.f32 %v2097, %v2231
      %v2310 = vadd.f32 %v2098, %v2234
      %v2311 = vadd.f32 %v2099, %v2239
      %v2312 = vadd.f32 %v2100, %v2242
      %v2313 = vadd.f32 %v2101, %v2247
      %v2314 = vadd.f32 %v2102, %v2250
      %v2315 = vadd.f32 %v2103, %v2255
      %v2316 = vadd.f32 %v2104, %v2258
      %v2317 = vadd.f32 %v2105, %v2263
      %v2318 = vadd.f32 %v2106, %v2266
      %v2319 = vadd.f32 %v2107, %v2271
      %v2320 = vadd.f32 %v2108, %v2274
      %v2321 = vadd.f32 %v2109, %v2279
      %v2322 = vadd.f32 %v2110, %v2282
      %v2323 = vadd.f32 %v2111, %v2287
      %v2324 = vadd.f32 %v2112, %v2290
      %v2325 = vrot.slane %v288, 2
      %v2326 = vrot.slane %v289, 2
      %v2327 = vsel %vm913, %v2325, %v2326
      %v2328 = vrot.slane %v290, 2
      %v2329 = vsel %vm913, %v2326, %v2328
      %v2332 = vpack.c.bf16 %v2329, %v2327
      %s2333 = scalar_lea.vmem %s1, 32
      %v2334 = vld [vmem:[%s2333] sm:$0xf]
      %v2336 = vsel %vm487, %v2332, 0
      %v2339 = vsel %vm536, %v2334, 0
      %2341 = vmatprep.subr.bf16.mxu0 0
      %2342 = vmatpush1.bf16.msra.mxu0 0
      %2343 = vmatprep.subr.bf16.mxu0 0
      %2344 = vmatpush1.bf16.msra.mxu0 0
      %2345 = vmatprep.subr.bf16.mxu0 0
      %2346 = vmatpush1.bf16.msra.mxu0 0
      %2347 = vmatprep.subr.bf16.mxu0 0
      %2348 = vmatpush1.bf16.msra.mxu0 0
      %2349 = vmatprep.subr.bf16.mxu0 0
      %2350 = vmatpush1.bf16.msra.mxu0 0
      %2351 = vmatprep.subr.bf16.mxu0 0
      %2352 = vmatpush1.bf16.msra.mxu0 0
      %2353 = vmatprep.subr.bf16.mxu0 0
      %2354 = vmatpush1.bf16.msra.mxu0 0
      %2355 = vmatprep.subr.bf16.mxu0 0
      %2356 = vmatpush1.bf16.msra.mxu0 %v2339
      %2357 = vmatprep.subr.bf16.mxu0 0
      %2358 = vmatpush2.bf16.msra.mxu0 0
      %2359 = vmatprep.subr.bf16.mxu0 0
      %2360 = vmatpush2.bf16.msra.mxu0 0
      %2361 = vmatprep.subr.bf16.mxu0 0
      %2362 = vmatpush2.bf16.msra.mxu0 0
      %2363 = vmatprep.subr.bf16.mxu0 0
      %2364 = vmatpush2.bf16.msra.mxu0 0
      %2365 = vmatprep.subr.bf16.mxu0 0
      %2366 = vmatpush2.bf16.msra.mxu0 0
      %2367 = vmatprep.subr.bf16.mxu0 0
      %2368 = vmatpush2.bf16.msra.mxu0 0
      %2369 = vmatprep.subr.bf16.mxu0 0
      %2370 = vmatpush2.bf16.msra.mxu0 0
      %2371 = vmatprep.subr.bf16.mxu0 0
      %2372 = vmatpush2.bf16.msra.mxu0 0
      %2373 = vmatprep.mubr.bf16.mxu0 0
      %2374 = vmatmul.mubr.bf16.gmra.mxu0 %v1051
      %v2375 = vpop.f32.mrf.mxu0
      %v2376 = vadd.f32 0.0, %v2375
      %v2377 = vpop.f32.mrf.mxu0
      %v2378 = vpop.f32.mrf.mxu0
      %v2379 = vadd.f32 0.0, %v2378
      %v2380 = vpop.f32.mrf.mxu0
      %2381 = vmatprep.mubr.bf16.mxu0 0
      %2382 = vmatmul.mubr.bf16.gmra.mxu0 %v1054
      %v2383 = vpop.f32.mrf.mxu0
      %v2384 = vadd.f32 0.0, %v2383
      %v2385 = vpop.f32.mrf.mxu0
      %v2386 = vpop.f32.mrf.mxu0
      %v2387 = vadd.f32 0.0, %v2386
      %v2388 = vpop.f32.mrf.mxu0
      %2389 = vmatprep.mubr.bf16.mxu0 0
      %2390 = vmatmul.mubr.bf16.gmra.mxu0 %v1057
      %v2391 = vpop.f32.mrf.mxu0
      %v2392 = vadd.f32 0.0, %v2391
      %v2393 = vpop.f32.mrf.mxu0
      %v2394 = vpop.f32.mrf.mxu0
      %v2395 = vadd.f32 0.0, %v2394
      %v2396 = vpop.f32.mrf.mxu0
      %2397 = vmatprep.mubr.bf16.mxu0 0
      %2398 = vmatmul.mubr.bf16.gmra.mxu0 %v1060
      %v2399 = vpop.f32.mrf.mxu0
      %v2400 = vadd.f32 0.0, %v2399
      %v2401 = vpop.f32.mrf.mxu0
      %v2402 = vpop.f32.mrf.mxu0
      %v2403 = vadd.f32 0.0, %v2402
      %v2404 = vpop.f32.mrf.mxu0
      %2405 = vmatprep.mubr.bf16.mxu0 0
      %2406 = vmatmul.mubr.bf16.gmra.mxu0 %v1063
      %v2407 = vpop.f32.mrf.mxu0
      %v2408 = vadd.f32 0.0, %v2407
      %v2409 = vpop.f32.mrf.mxu0
      %v2410 = vpop.f32.mrf.mxu0
      %v2411 = vadd.f32 0.0, %v2410
      %v2412 = vpop.f32.mrf.mxu0
      %2413 = vmatprep.mubr.bf16.mxu0 0
      %2414 = vmatmul.mubr.bf16.gmra.mxu0 %v1066
      %v2415 = vpop.f32.mrf.mxu0
      %v2416 = vadd.f32 0.0, %v2415
      %v2417 = vpop.f32.mrf.mxu0
      %v2418 = vpop.f32.mrf.mxu0
      %v2419 = vadd.f32 0.0, %v2418
      %v2420 = vpop.f32.mrf.mxu0
      %2421 = vmatprep.mubr.bf16.mxu0 0
      %2422 = vmatmul.mubr.bf16.gmra.mxu0 %v1069
      %v2423 = vpop.f32.mrf.mxu0
      %v2424 = vadd.f32 0.0, %v2423
      %v2425 = vpop.f32.mrf.mxu0
      %v2426 = vpop.f32.mrf.mxu0
      %v2427 = vadd.f32 0.0, %v2426
      %v2428 = vpop.f32.mrf.mxu0
      %2429 = vmatprep.mubr.bf16.mxu0 0
      %2430 = vmatmul.mubr.bf16.gmra.mxu0 %v1072
      %v2431 = vpop.f32.mrf.mxu0
      %v2432 = vadd.f32 0.0, %v2431
      %v2433 = vpop.f32.mrf.mxu0
      %v2434 = vpop.f32.mrf.mxu0
      %v2435 = vadd.f32 0.0, %v2434
      %v2436 = vpop.f32.mrf.mxu0
      %2437 = vmatprep.mubr.bf16.mxu0 0
      %2438 = vmatmul.mubr.bf16.gmra.mxu0 %v1075
      %v2439 = vpop.f32.mrf.mxu0
      %v2440 = vadd.f32 0.0, %v2439
      %v2441 = vpop.f32.mrf.mxu0
      %v2442 = vpop.f32.mrf.mxu0
      %v2443 = vadd.f32 0.0, %v2442
      %v2444 = vpop.f32.mrf.mxu0
      %2445 = vmatprep.mubr.bf16.mxu0 0
      %2446 = vmatmul.mubr.bf16.gmra.mxu0 %v1078
      %v2447 = vpop.f32.mrf.mxu0
      %v2448 = vadd.f32 0.0, %v2447
      %v2449 = vpop.f32.mrf.mxu0
      %v2450 = vpop.f32.mrf.mxu0
      %v2451 = vadd.f32 0.0, %v2450
      %v2452 = vpop.f32.mrf.mxu0
      %2453 = vmatprep.mubr.bf16.mxu0 0
      %2454 = vmatmul.mubr.bf16.gmra.mxu0 %v1081
      %v2455 = vpop.f32.mrf.mxu0
      %v2456 = vadd.f32 0.0, %v2455
      %v2457 = vpop.f32.mrf.mxu0
      %v2458 = vpop.f32.mrf.mxu0
      %v2459 = vadd.f32 0.0, %v2458
      %v2460 = vpop.f32.mrf.mxu0
      %2461 = vmatprep.mubr.bf16.mxu0 0
      %2462 = vmatmul.mubr.bf16.gmra.mxu0 %v1084
      %v2463 = vpop.f32.mrf.mxu0
      %v2464 = vadd.f32 0.0, %v2463
      %v2465 = vpop.f32.mrf.mxu0
      %v2466 = vpop.f32.mrf.mxu0
      %v2467 = vadd.f32 0.0, %v2466
      %v2468 = vpop.f32.mrf.mxu0
      %2469 = vmatprep.mubr.bf16.mxu0 0
      %2470 = vmatmul.mubr.bf16.gmra.mxu0 %v1087
      %v2471 = vpop.f32.mrf.mxu0
      %v2472 = vadd.f32 0.0, %v2471
      %v2473 = vpop.f32.mrf.mxu0
      %v2474 = vpop.f32.mrf.mxu0
      %v2475 = vadd.f32 0.0, %v2474
      %v2476 = vpop.f32.mrf.mxu0
      %2477 = vmatprep.mubr.bf16.mxu0 0
      %2478 = vmatmul.mubr.bf16.gmra.mxu0 %v1090
      %v2479 = vpop.f32.mrf.mxu0
      %v2480 = vadd.f32 0.0, %v2479
      %v2481 = vpop.f32.mrf.mxu0
      %v2482 = vpop.f32.mrf.mxu0
      %v2483 = vadd.f32 0.0, %v2482
      %v2484 = vpop.f32.mrf.mxu0
      %2485 = vmatprep.mubr.bf16.mxu0 0
      %2486 = vmatmul.mubr.bf16.gmra.mxu0 %v1713
      %v2487 = vpop.f32.mrf.mxu0
      %v2488 = vadd.f32 0.0, %v2487
      %v2489 = vpop.f32.mrf.mxu0
      %v2490 = vpop.f32.mrf.mxu0
      %v2491 = vadd.f32 0.0, %v2490
      %v2492 = vpop.f32.mrf.mxu0
      %2493 = vmatprep.mubr.bf16.mxu0 0
      %2494 = vmatmul.mubr.bf16.gmra.mxu0 %v2336
      %v2495 = vpop.f32.mrf.mxu0
      %v2496 = vadd.f32 0.0, %v2495
      %v2497 = vpop.f32.mrf.mxu0
      %v2498 = vpop.f32.mrf.mxu0
      %v2499 = vadd.f32 0.0, %v2498
      %v2500 = vpop.f32.mrf.mxu0
      %2501 = vdwg.mxu0
      %v2502 = vadd.f32 %v2293, %v2376
      %v2503 = vadd.f32 %v2294, %v2379
      %v2504 = vadd.f32 %v2295, %v2384
      %v2505 = vadd.f32 %v2296, %v2387
      %v2506 = vadd.f32 %v2297, %v2392
      %v2507 = vadd.f32 %v2298, %v2395
      %v2508 = vadd.f32 %v2299, %v2400
      %v2509 = vadd.f32 %v2300, %v2403
      %v2510 = vadd.f32 %v2301, %v2408
      %v2511 = vadd.f32 %v2302, %v2411
      %v2512 = vadd.f32 %v2303, %v2416
      %v2513 = vadd.f32 %v2304, %v2419
      %v2514 = vadd.f32 %v2305, %v2424
      %v2515 = vadd.f32 %v2306, %v2427
      %v2516 = vadd.f32 %v2307, %v2432
      %v2517 = vadd.f32 %v2308, %v2435
      %v2518 = vadd.f32 %v2309, %v2440
      %v2519 = vadd.f32 %v2310, %v2443
      %v2520 = vadd.f32 %v2311, %v2448
      %v2521 = vadd.f32 %v2312, %v2451
      %v2522 = vadd.f32 %v2313, %v2456
      %v2523 = vadd.f32 %v2314, %v2459
      %v2524 = vadd.f32 %v2315, %v2464
      %v2525 = vadd.f32 %v2316, %v2467
      %v2526 = vadd.f32 %v2317, %v2472
      %v2527 = vadd.f32 %v2318, %v2475
      %v2528 = vadd.f32 %v2319, %v2480
      %v2529 = vadd.f32 %v2320, %v2483
      %v2530 = vadd.f32 %v2321, %v2488
      %v2531 = vadd.f32 %v2322, %v2491
      %v2532 = vadd.f32 %v2323, %v2496
      %v2533 = vadd.f32 %v2324, %v2499
      %v2534 = vpack.c.bf16 %v2503, %v2502
      %v2535 = vpack.c.bf16 %v2505, %v2504
      %v2536 = vpack.c.bf16 %v2507, %v2506
      %v2537 = vpack.c.bf16 %v2509, %v2508
      %v2538 = vpack.c.bf16 %v2511, %v2510
      %v2539 = vpack.c.bf16 %v2513, %v2512
      %v2540 = vpack.c.bf16 %v2515, %v2514
      %v2541 = vpack.c.bf16 %v2517, %v2516
      %v2542 = vpack.c.bf16 %v2519, %v2518
      %v2543 = vpack.c.bf16 %v2521, %v2520
      %v2544 = vpack.c.bf16 %v2523, %v2522
      %v2545 = vpack.c.bf16 %v2525, %v2524
      %v2546 = vpack.c.bf16 %v2527, %v2526
      %v2547 = vpack.c.bf16 %v2529, %v2528
      %v2548 = vpack.c.bf16 %v2531, %v2530
      %v2549 = vpack.c.bf16 %v2533, %v2532
      %v2566 = vunpack.c.l.b16 %v2534
      %v2567 = vunpack.c.h.b16 %v2534
      %v2568 = vunpack.c.l.b16 %v2535
      %v2569 = vunpack.c.h.b16 %v2535
      %v2570 = vunpack.c.l.b16 %v2536
      %v2571 = vunpack.c.h.b16 %v2536
      %v2572 = vunpack.c.l.b16 %v2537
      %v2573 = vunpack.c.h.b16 %v2537
      %v2574 = vunpack.c.l.b16 %v2538
      %v2575 = vunpack.c.h.b16 %v2538
      %v2576 = vunpack.c.l.b16 %v2539
      %v2577 = vunpack.c.h.b16 %v2539
      %v2578 = vunpack.c.l.b16 %v2540
      %v2579 = vunpack.c.h.b16 %v2540
      %v2580 = vunpack.c.l.b16 %v2541
      %v2581 = vunpack.c.h.b16 %v2541
      %v2582 = vunpack.c.l.b16 %v2542
      %v2583 = vunpack.c.h.b16 %v2542
      %v2584 = vunpack.c.l.b16 %v2543
      %v2585 = vunpack.c.h.b16 %v2543
      %v2586 = vunpack.c.l.b16 %v2544
      %v2587 = vunpack.c.h.b16 %v2544
      %v2588 = vunpack.c.l.b16 %v2545
      %v2589 = vunpack.c.h.b16 %v2545
      %v2590 = vunpack.c.l.b16 %v2546
      %v2591 = vunpack.c.h.b16 %v2546
      %v2592 = vunpack.c.l.b16 %v2547
      %v2593 = vunpack.c.h.b16 %v2547
      %v2594 = vunpack.c.l.b16 %v2548
      %v2595 = vunpack.c.h.b16 %v2548
      %v2596 = vunpack.c.l.b16 %v2549
      %v2597 = vunpack.c.h.b16 %v2549
      %v2598 = vpack.c.b16 %v2566, %v2566
      %v2599 = vpack.c.b16 %v2567, %v2567
      %v2600 = vpack.c.b16 %v2568, %v2568
      %v2601 = vpack.c.b16 %v2569, %v2569
      %v2602 = vpack.c.b16 %v2570, %v2570
      %v2603 = vpack.c.b16 %v2571, %v2571
      %v2604 = vpack.c.b16 %v2572, %v2572
      %v2605 = vpack.c.b16 %v2573, %v2573
      %v2606 = vpack.c.b16 %v2574, %v2574
      %v2607 = vpack.c.b16 %v2575, %v2575
      %v2608 = vpack.c.b16 %v2576, %v2576
      %v2609 = vpack.c.b16 %v2577, %v2577
      %v2610 = vpack.c.b16 %v2578, %v2578
      %v2611 = vpack.c.b16 %v2579, %v2579
      %v2612 = vpack.c.b16 %v2580, %v2580
      %v2613 = vpack.c.b16 %v2581, %v2581
      %v2614 = vpack.c.b16 %v2582, %v2582
      %v2615 = vpack.c.b16 %v2583, %v2583
      %v2616 = vpack.c.b16 %v2584, %v2584
      %v2617 = vpack.c.b16 %v2585, %v2585
      %v2618 = vpack.c.b16 %v2586, %v2586
      %v2619 = vpack.c.b16 %v2587, %v2587
      %v2620 = vpack.c.b16 %v2588, %v2588
      %v2621 = vpack.c.b16 %v2589, %v2589
      %v2622 = vpack.c.b16 %v2590, %v2590
      %v2623 = vpack.c.b16 %v2591, %v2591
      %v2624 = vpack.c.b16 %v2592, %v2592
      %v2625 = vpack.c.b16 %v2593, %v2593
      %v2626 = vpack.c.b16 %v2594, %v2594
      %v2627 = vpack.c.b16 %v2595, %v2595
      %v2628 = vpack.c.b16 %v2596, %v2596
      %v2629 = vpack.c.b16 %v2597, %v2597
      %2662 = vst [vmem:[%s177] sm:$0xf] %v2598
      %2663 = vst [vmem:[%s177 + $0x4] sm:$0xf] %v2599
      %2664 = vst [vmem:[%s177 + $0x8] sm:$0xf] %v2600
      %2665 = vst [vmem:[%s177 + $0xc] sm:$0xf] %v2601
      %2666 = vst [vmem:[%s177 + $0x10] sm:$0xf] %v2602
      %2667 = vst [vmem:[%s177 + $0x14] sm:$0xf] %v2603
      %2668 = vst [vmem:[%s177 + $0x18] sm:$0xf] %v2604
      %2669 = vst [vmem:[%s177 + $0x1c] sm:$0xf] %v2605
      %2670 = vst [vmem:[%s177 + $0x20] sm:$0xf] %v2606
      %2671 = vst [vmem:[%s177 + $0x24] sm:$0xf] %v2607
      %2672 = vst [vmem:[%s177 + $0x28] sm:$0xf] %v2608
      %2673 = vst [vmem:[%s177 + $0x2c] sm:$0xf] %v2609
      %2674 = vst [vmem:[%s177 + $0x30] sm:$0xf] %v2610
      %2675 = vst [vmem:[%s177 + $0x34] sm:$0xf] %v2611
      %2676 = vst [vmem:[%s177 + $0x38] sm:$0xf] %v2612
      %2677 = vst [vmem:[%s177 + $0x3c] sm:$0xf] %v2613
      %2678 = vst [vmem:[%s177 + $0x40] sm:$0xf] %v2614
      %2679 = vst [vmem:[%s177 + $0x44] sm:$0xf] %v2615
      %2680 = vst [vmem:[%s177 + $0x48] sm:$0xf] %v2616
      %2681 = vst [vmem:[%s177 + $0x4c] sm:$0xf] %v2617
      %2682 = vst [vmem:[%s177 + $0x50] sm:$0xf] %v2618
      %2683 = vst [vmem:[%s177 + $0x54] sm:$0xf] %v2619
      %2684 = vst [vmem:[%s177 + $0x58] sm:$0xf] %v2620
      %2685 = vst [vmem:[%s177 + $0x5c] sm:$0xf] %v2621
      %2686 = vst [vmem:[%s177 + $0x60] sm:$0xf] %v2622
      %2687 = vst [vmem:[%s177 + $0x64] sm:$0xf] %v2623
      %2688 = vst [vmem:[%s177 + $0x68] sm:$0xf] %v2624
      %2689 = vst [vmem:[%s177 + $0x6c] sm:$0xf] %v2625
      %2690 = vst [vmem:[%s177 + $0x70] sm:$0xf] %v2626
      %2691 = vst [vmem:[%s177 + $0x74] sm:$0xf] %v2627
      %2692 = vst [vmem:[%s177 + $0x78] sm:$0xf] %v2628
      %2693 = vst [vmem:[%s177 + $0x7c] sm:$0xf] %v2629
      %2694 = vst [vmem:[%s181] sm:$0xff] 0.0
      %v2695 = vadd.f32 %v2502, %v2503
      %v2696 = vadd.f32 %v2695, %v2504
      %v2697 = vadd.f32 %v2696, %v2505
      %v2698 = vadd.f32 %v2697, %v2506
      %v2699 = vadd.f32 %v2698, %v2507
      %v2700 = vadd.f32 %v2699, %v2508
      %v2701 = vadd.f32 %v2700, %v2509
      %v2702 = vadd.f32 %v2701, %v2510
      %v2703 = vadd.f32 %v2702, %v2511
      %v2704 = vadd.f32 %v2703, %v2512
      %v2705 = vadd.f32 %v2704, %v2513
      %v2706 = vadd.f32 %v2705, %v2514
      %v2707 = vadd.f32 %v2706, %v2515
      %v2708 = vadd.f32 %v2707, %v2516
      %v2709 = vadd.f32 %v2708, %v2517
      %v2710 = vadd.f32 %v2709, %v2518
      %v2711 = vadd.f32 %v2710, %v2519
      %v2712 = vadd.f32 %v2711, %v2520
      %v2713 = vadd.f32 %v2712, %v2521
      %v2714 = vadd.f32 %v2713, %v2522
      %v2715 = vadd.f32 %v2714, %v2523
      %v2716 = vadd.f32 %v2715, %v2524
      %v2717 = vadd.f32 %v2716, %v2525
      %v2718 = vadd.f32 %v2717, %v2526
      %v2719 = vadd.f32 %v2718, %v2527
      %v2720 = vadd.f32 %v2719, %v2528
      %v2721 = vadd.f32 %v2720, %v2529
      %v2722 = vadd.f32 %v2721, %v2530
      %v2723 = vadd.f32 %v2722, %v2531
      %v2724 = vadd.f32 %v2723, %v2532
      %v2725 = vadd.f32 %v2724, %v2533
      %v2726 = vrot.slane %v2725, 4
      %v2727 = vadd.f32 %v2725, %v2726
      %v2728 = vrot.slane %v2727, 2
      %v2729 = vadd.f32 %v2727, %v2728
      %v2730 = vrot.slane %v2729, 1
      %v2731 = vadd.f32 %v2729, %v2730
      %2732 = vst [vmem:[%s181] sm:$0x1] %v2731
      %v2733 = vmul.f32 %v2502, %v2502
      %v2734 = vmul.f32 %v2503, %v2503
      %v2735 = vmul.f32 %v2504, %v2504
      %v2736 = vmul.f32 %v2505, %v2505
      %v2737 = vmul.f32 %v2506, %v2506
      %v2738 = vmul.f32 %v2507, %v2507
      %v2739 = vmul.f32 %v2508, %v2508
      %v2740 = vmul.f32 %v2509, %v2509
      %v2741 = vmul.f32 %v2510, %v2510
      %v2742 = vmul.f32 %v2511, %v2511
      %v2743 = vmul.f32 %v2512, %v2512
      %v2744 = vmul.f32 %v2513, %v2513
      %v2745 = vmul.f32 %v2514, %v2514
      %v2746 = vmul.f32 %v2515, %v2515
      %v2747 = vmul.f32 %v2516, %v2516
      %v2748 = vmul.f32 %v2517, %v2517
      %v2749 = vmul.f32 %v2518, %v2518
      %v2750 = vmul.f32 %v2519, %v2519
      %v2751 = vmul.f32 %v2520, %v2520
      %v2752 = vmul.f32 %v2521, %v2521
      %v2753 = vmul.f32 %v2522, %v2522
      %v2754 = vmul.f32 %v2523, %v2523
      %v2755 = vmul.f32 %v2524, %v2524
      %v2756 = vmul.f32 %v2525, %v2525
      %v2757 = vmul.f32 %v2526, %v2526
      %v2758 = vmul.f32 %v2527, %v2527
      %v2759 = vmul.f32 %v2528, %v2528
      %v2760 = vmul.f32 %v2529, %v2529
      %v2761 = vmul.f32 %v2530, %v2530
      %v2762 = vmul.f32 %v2531, %v2531
      %v2763 = vmul.f32 %v2532, %v2532
      %v2764 = vmul.f32 %v2533, %v2533
      %v2765 = vadd.f32 %v2733, %v2734
      %v2766 = vadd.f32 %v2765, %v2735
      %v2767 = vadd.f32 %v2766, %v2736
      %v2768 = vadd.f32 %v2767, %v2737
      %v2769 = vadd.f32 %v2768, %v2738
      %v2770 = vadd.f32 %v2769, %v2739
      %v2771 = vadd.f32 %v2770, %v2740
      %v2772 = vadd.f32 %v2771, %v2741
      %v2773 = vadd.f32 %v2772, %v2742
      %v2774 = vadd.f32 %v2773, %v2743
      %v2775 = vadd.f32 %v2774, %v2744
      %v2776 = vadd.f32 %v2775, %v2745
      %v2777 = vadd.f32 %v2776, %v2746
      %v2778 = vadd.f32 %v2777, %v2747
      %v2779 = vadd.f32 %v2778, %v2748
      %v2780 = vadd.f32 %v2779, %v2749
      %v2781 = vadd.f32 %v2780, %v2750
      %v2782 = vadd.f32 %v2781, %v2751
      %v2783 = vadd.f32 %v2782, %v2752
      %v2784 = vadd.f32 %v2783, %v2753
      %v2785 = vadd.f32 %v2784, %v2754
      %v2786 = vadd.f32 %v2785, %v2755
      %v2787 = vadd.f32 %v2786, %v2756
      %v2788 = vadd.f32 %v2787, %v2757
      %v2789 = vadd.f32 %v2788, %v2758
      %v2790 = vadd.f32 %v2789, %v2759
      %v2791 = vadd.f32 %v2790, %v2760
      %v2792 = vadd.f32 %v2791, %v2761
      %v2793 = vadd.f32 %v2792, %v2762
      %v2794 = vadd.f32 %v2793, %v2763
      %v2795 = vadd.f32 %v2794, %v2764
      %v2796 = vrot.slane %v2795, 4
      %v2797 = vadd.f32 %v2795, %v2796
      %v2798 = vrot.slane %v2797, 2
      %v2799 = vadd.f32 %v2797, %v2798
      %v2800 = vrot.slane %v2799, 1
      %v2801 = vadd.f32 %v2799, %v2800
      %2802 = vst [vmem:[%s181 + $0x1] sm:$0x1] %v2801
      %p2803 = scmp.lt.s32.totalorder %s15, 1
      %s2804 = scalar_select %p2803, %s15, 1
      %s2805 = smul.addr %s2804, 32
      %s2806 = smul.addr %s2805, 4
      %s2807 = scalar_lea.vmem %s2, %s2806
      %p2808 = scmp.lt.s32.totalorder %s15, 1
      %s2809 = scalar_select %p2808, %s15, 1
      %s2810 = smul.addr %s2809, 8
      %s2811 = scalar_lea.vmem %s3, %s2810
      // Predicated region
      $region29: #{_lambda_.3} parent=27 // pred_check
        %p2812 = pneg %p80
      $region30: #{_lambda_.3} parent=27 // pred_check_branch
        %2814 = sbr.rel (%p2812) target = $region32
      $region31: #{_lambda_.3} parent=27 // pred_region
        _
      $region32: #{_lambda_.3} parent=27 // pred_fallthru
        _
      // Predicated region
      $region33: #{_lambda_.3} parent=27 // pred_check
        %p2815 = pneg %p106
      $region34: #{_lambda_.3} parent=27 // pred_check_branch
        %2817 = sbr.rel (%p2815) target = $region36
      $region35: #{_lambda_.3} parent=27 // pred_region
        _
      $region36: #{_lambda_.3} parent=27 // pred_fallthru
        _
    $region28: #{_lambda_.3} parent=5 // pred_fallthru
      _
    %p2818 = scmp.le.s32.totalorder 2, %s10
    // Predicated region
    $region37: #{_lambda_.3} parent=5 // pred_check
      %p2819 = pneg %p2818
    $region38: #{_lambda_.3} parent=5 // pred_check_branch
      %2821 = sbr.rel (%p2819) target = $region40
    $region39: #{_lambda_.3} parent=5 // pred_region
      %s2822 = ssub.s32 %s10, 2
      // Predicated region
      $region41: #{_lambda_.3} parent=39 // pred_check
        %p2823 = pneg %p86
      $region42: #{_lambda_.3} parent=39 // pred_check_branch
        %2825 = sbr.rel (%p2823) target = $region44
      $region43: #{_lambda_.3} parent=39 // pred_region
        %p2826 = scmp.lt.s32.totalorder %s16, 1
        %s2827 = scalar_select %p2826, %s16, 1
        %s2828 = smul.addr %s2827, 32
        %s2829 = smul.addr %s2828, 4
        %s2830 = scalar_lea.vmem %s2, %s2829
      $region44: #{_lambda_.3} parent=39 // pred_fallthru
        _
      // Predicated region
      $region45: #{_lambda_.3} parent=39 // pred_check
        %p2831 = pneg %p112
      $region46: #{_lambda_.3} parent=39 // pred_check_branch
        %2833 = sbr.rel (%p2831) target = $region48
      $region47: #{_lambda_.3} parent=39 // pred_region
        %p2834 = scmp.lt.s32.totalorder %s16, 1
        %s2835 = scalar_select %p2834, %s16, 1
        %s2836 = smul.addr %s2835, 8
        %s2837 = scalar_lea.vmem %s3, %s2836
      $region48: #{_lambda_.3} parent=39 // pred_fallthru
        _
    $region40: #{_lambda_.3} parent=5 // pred_fallthru
      _
  $region6: #{_lambda_.3} parent=0 // loop_footer
    %s14 = sadd.s32 1, %s10
  $region7: #{_lambda_.3} parent=0 // loop_footer_branch
    %9 = sbr.rel target = $region3
  $region8: #{_lambda_.3} parent=0 // loop_exit
    _

// kernel: _lambda_.5
$region0: #{_lambda_.5}
  #allocation0 [shape = 'u32[]', space=smem, size = 0x4, offset = 0x4, fixed_abs, tag = 'smem constant byte address 0x4 - core index']
  #allocation1 [shape = 'u32[144,128]{1,0:T(1,128)}', space=vmem, size = 0x12000, scoped, tag = 'internal scratch']
  %s0 = inlined_call_operand.vmem [shape: bf16[2,16,16,128], index: 0, kind: input, shape index: {}]
  %s1 = inlined_call_operand.vmem [shape: f32[1,1,1,128], index: 1, kind: input, shape index: {}]
  %s2 = inlined_call_operand.vmem [shape: f32[1,1,1,128], index: 2, kind: input, shape index: {}]
  %s3 = inlined_call_operand.vmem [shape: bf16[2,16,16,8], index: 3, kind: input, shape index: {}]
  %s4 = inlined_call_operand.vmem [shape: f32[8,128], index: 4, kind: input, shape index: {}]
  %s5 = inlined_call_operand.vmem [shape: bf16[2,16,16,128], index: 5, kind: output, shape index: {}]
  %s6 = sld [smem:[#allocation0]]
  $region53: #{_lambda_.5} parent=0
    _
  %s8 = ssub.s32 1, %s6
  %s9 = scalar_select 0, %s8, %s6
  loop: start=0, step=1, limit=4
  $region2: #{_lambda_.5} parent=0 // loop_pre_header
    _
  $region3: #{_lambda_.5} parent=0 // loop_header
    %s11 = sphi 0, %s15
    %p12 = scmp.ge.s32.totalorder %s11, 4
    %s21 = sphi 0, %s23
    %s24 = sphi 0, %s21
    %s25 = sphi 0, %s24
    %s41 = sphi 0, %s25
    %s45 = sphi 0, %s45
    %s47 = sphi 0, %s45
    %s48 = sphi 0, %s47
    %s62 = sphi 0, %s48
    %s66 = sphi 0, %s66
    %s68 = sphi 0, %s66
    %s69 = sphi 0, %s68
    %s83 = sphi 0, %s69
    %s89 = sphi 0, %s91
    %s92 = sphi 0, %s89
    %s93 = sphi 0, %s92
    %s109 = sphi 0, %s93
    %s113 = sphi 0, %s113
    %s115 = sphi 0, %s113
    %s116 = sphi 0, %s115
    %s130 = sphi 0, %s116
    %s136 = sphi 0, %s138
    %s139 = sphi 0, %s136
    %s140 = sphi 0, %s139
    %s156 = sphi 0, %s140
  $region4: #{_lambda_.5} parent=0 // loop_header_branch
    %14 = sbr.rel (%p12) target = $region8
  $region5: #{_lambda_.5} parent=0 // loop_body
    %s16 = ssub.s32 %s11, 1
    %s17 = ssub.s32 %s11, 2
    %s18 = sadd.s32 %s11, 1
    %s19 = ssub.s32 %s11, %s18
    %p20 = scmp.eq.s32.totalorder %s19, 0
    %s22 = sadd.s32 %s21, 1
    %s23 = scalar_select %p20, %s21, %s22
    %p26 = pneg %p20
    %p27 = scmp.eq.s32.totalorder %s11, 1
    %p28 = por %p26, %p27
    %p29 = scmp.ne.s32.totalorder %s21, %s24
    %p30 = scmp.eq.s32.totalorder %s11, 0
    %p31 = por %p29, %p30
    %p32 = scmp.ne.s32.totalorder %s21, %s24
    %p33 = scmp.eq.s32.totalorder %s16, 1
    %p34 = por %p32, %p33
    %p35 = scmp.ne.s32.totalorder %s24, %s25
    %p36 = scmp.eq.s32.totalorder %s16, 0
    %p37 = por %p35, %p36
    %p38 = scmp.ne.s32.totalorder %s24, %s25
    %p39 = scmp.eq.s32.totalorder %s17, 1
    %p40 = por %p38, %p39
    %p42 = scmp.ne.s32.totalorder %s25, %s41
    %p43 = scmp.eq.s32.totalorder %s17, 0
    %p44 = por %p42, %p43
    %s46 = sadd.s32 %s45, 1
    %p49 = scmp.eq.s32.totalorder %s11, 1
    %p50 = scmp.ne.s32.totalorder %s45, %s47
    %p51 = scmp.eq.s32.totalorder %s11, 0
    %p52 = por %p50, %p51
    %p53 = scmp.ne.s32.totalorder %s45, %s47
    %p54 = scmp.eq.s32.totalorder %s16, 1
    %p55 = por %p53, %p54
    %p56 = scmp.ne.s32.totalorder %s47, %s48
    %p57 = scmp.eq.s32.totalorder %s16, 0
    %p58 = por %p56, %p57
    %p59 = scmp.ne.s32.totalorder %s47, %s48
    %p60 = scmp.eq.s32.totalorder %s17, 1
    %p61 = por %p59, %p60
    %p63 = scmp.ne.s32.totalorder %s48, %s62
    %p64 = scmp.eq.s32.totalorder %s17, 0
    %p65 = por %p63, %p64
    %s67 = sadd.s32 %s66, 1
    %p70 = scmp.eq.s32.totalorder %s11, 1
    %p71 = scmp.ne.s32.totalorder %s66, %s68
    %p72 = scmp.eq.s32.totalorder %s11, 0
    %p73 = por %p71, %p72
    %p74 = scmp.ne.s32.totalorder %s66, %s68
    %p75 = scmp.eq.s32.totalorder %s16, 1
    %p76 = por %p74, %p75
    %p77 = scmp.ne.s32.totalorder %s68, %s69
    %p78 = scmp.eq.s32.totalorder %s16, 0
    %p79 = por %p77, %p78
    %p80 = scmp.ne.s32.totalorder %s68, %s69
    %p81 = scmp.eq.s32.totalorder %s17, 1
    %p82 = por %p80, %p81
    %p84 = scmp.ne.s32.totalorder %s69, %s83
    %p85 = scmp.eq.s32.totalorder %s17, 0
    %p86 = por %p84, %p85
    %s87 = ssub.s32 %s11, %s18
    %p88 = scmp.eq.s32.totalorder %s87, 0
    %s90 = sadd.s32 %s89, 1
    %s91 = scalar_select %p88, %s89, %s90
    %p94 = pneg %p88
    %p95 = scmp.eq.s32.totalorder %s11, 1
    %p96 = por %p94, %p95
    %p97 = scmp.ne.s32.totalorder %s89, %s92
    %p98 = scmp.eq.s32.totalorder %s11, 0
    %p99 = por %p97, %p98
    %p100 = scmp.ne.s32.totalorder %s89, %s92
    %p101 = scmp.eq.s32.totalorder %s16, 1
    %p102 = por %p100, %p101
    %p103 = scmp.ne.s32.totalorder %s92, %s93
    %p104 = scmp.eq.s32.totalorder %s16, 0
    %p105 = por %p103, %p104
    %p106 = scmp.ne.s32.totalorder %s92, %s93
    %p107 = scmp.eq.s32.totalorder %s17, 1
    %p108 = por %p106, %p107
    %p110 = scmp.ne.s32.totalorder %s93, %s109
    %p111 = scmp.eq.s32.totalorder %s17, 0
    %p112 = por %p110, %p111
    %s114 = sadd.s32 %s113, 1
    %p117 = scmp.eq.s32.totalorder %s11, 1
    %p118 = scmp.ne.s32.totalorder %s113, %s115
    %p119 = scmp.eq.s32.totalorder %s11, 0
    %p120 = por %p118, %p119
    %p121 = scmp.ne.s32.totalorder %s113, %s115
    %p122 = scmp.eq.s32.totalorder %s16, 1
    %p123 = por %p121, %p122
    %p124 = scmp.ne.s32.totalorder %s115, %s116
    %p125 = scmp.eq.s32.totalorder %s16, 0
    %p126 = por %p124, %p125
    %p127 = scmp.ne.s32.totalorder %s115, %s116
    %p128 = scmp.eq.s32.totalorder %s17, 1
    %p129 = por %p127, %p128
    %p131 = scmp.ne.s32.totalorder %s116, %s130
    %p132 = scmp.eq.s32.totalorder %s17, 0
    %p133 = por %p131, %p132
    %s134 = ssub.s32 %s11, %s18
    %p135 = scmp.eq.s32.totalorder %s134, 0
    %s137 = sadd.s32 %s136, 1
    %s138 = scalar_select %p135, %s136, %s137
    %p141 = pneg %p135
    %p142 = scmp.eq.s32.totalorder %s11, 1
    %p143 = por %p141, %p142
    %p144 = scmp.ne.s32.totalorder %s136, %s139
    %p145 = scmp.eq.s32.totalorder %s11, 0
    %p146 = por %p144, %p145
    %p147 = scmp.ne.s32.totalorder %s136, %s139
    %p148 = scmp.eq.s32.totalorder %s16, 1
    %p149 = por %p147, %p148
    %p150 = scmp.ne.s32.totalorder %s139, %s140
    %p151 = scmp.eq.s32.totalorder %s16, 0
    %p152 = por %p150, %p151
    %p153 = scmp.ne.s32.totalorder %s139, %s140
    %p154 = scmp.eq.s32.totalorder %s17, 1
    %p155 = por %p153, %p154
    %p157 = scmp.ne.s32.totalorder %s140, %s156
    %p158 = scmp.eq.s32.totalorder %s17, 0
    %p159 = por %p157, %p158
    %p160 = scmp.le.s32.totalorder 1, %s11
    %p161 = scmp.lt.s32.totalorder %s11, 3
    %p162 = pnand %p160, %p161
    %p163 = pneg %p162
    // Predicated region
    $region9: #{_lambda_.5} parent=5 // pred_check
      _
    $region10: #{_lambda_.5} parent=5 // pred_check_branch
      %165 = sbr.rel (%p162) target = $region12
    $region11: #{_lambda_.5} parent=5 // pred_region
      %s166 = ssub.s32 %s11, 1
      // Predicated region
      $region13: #{_lambda_.5} parent=11 // pred_check
        %p167 = pneg %p58
      $region14: #{_lambda_.5} parent=11 // pred_check_branch
        %169 = sbr.rel (%p167) target = $region16
      $region15: #{_lambda_.5} parent=11 // pred_region
        _
      $region16: #{_lambda_.5} parent=11 // pred_fallthru
        _
      // Predicated region
      $region17: #{_lambda_.5} parent=11 // pred_check
        %p170 = pneg %p79
      $region18: #{_lambda_.5} parent=11 // pred_check_branch
        %172 = sbr.rel (%p170) target = $region20
      $region19: #{_lambda_.5} parent=11 // pred_region
        _
      $region20: #{_lambda_.5} parent=11 // pred_fallthru
        _
      // Predicated region
      $region21: #{_lambda_.5} parent=11 // pred_check
        %p173 = pneg %p126
      $region22: #{_lambda_.5} parent=11 // pred_check_branch
        %175 = sbr.rel (%p173) target = $region24
      $region23: #{_lambda_.5} parent=11 // pred_region
        _
      $region24: #{_lambda_.5} parent=11 // pred_fallthru
        _
    $region12: #{_lambda_.5} parent=5 // pred_fallthru
      _
    %p176 = scmp.lt.s32.totalorder %s11, 2
    // Predicated region
    $region25: #{_lambda_.5} parent=5 // pred_check
      %p177 = pneg %p176
    $region26: #{_lambda_.5} parent=5 // pred_check_branch
      %179 = sbr.rel (%p177) target = $region28
    $region27: #{_lambda_.5} parent=5 // pred_region
      // Predicated region
      $region29: #{_lambda_.5} parent=27 // pred_check
        %p180 = pneg %p31
      $region30: #{_lambda_.5} parent=27 // pred_check_branch
        %182 = sbr.rel (%p180) target = $region32
      $region31: #{_lambda_.5} parent=27 // pred_region
        %p183 = scmp.lt.s32.totalorder %s11, 1
        %s184 = scalar_select %p183, %s11, 1
        %s185 = smul.addr %s184, 32
        %s186 = smul.addr %s185, 4
        %s187 = scalar_lea.vmem %s0, %s186
      $region32: #{_lambda_.5} parent=27 // pred_fallthru
        _
      // Predicated region
      $region33: #{_lambda_.5} parent=27 // pred_check
        %p188 = pneg %p99
      $region34: #{_lambda_.5} parent=27 // pred_check_branch
        %190 = sbr.rel (%p188) target = $region36
      $region35: #{_lambda_.5} parent=27 // pred_region
        %p191 = scmp.lt.s32.totalorder %s11, 1
        %s192 = scalar_select %p191, %s11, 1
        %s193 = smul.addr %s192, 32
        %s194 = smul.addr %s193, 4
        %s195 = scalar_lea.vmem %s3, %s194
      $region36: #{_lambda_.5} parent=27 // pred_fallthru
        _
    $region28: #{_lambda_.5} parent=5 // pred_fallthru
      _
    %p196 = scmp.le.s32.totalorder 1, %s11
    %p197 = scmp.lt.s32.totalorder %s11, 3
    %p198 = pnand %p196, %p197
    %p199 = pneg %p198
    // Predicated region
    $region37: #{_lambda_.5} parent=5 // pred_check
      _
    $region38: #{_lambda_.5} parent=5 // pred_check_branch
      %201 = sbr.rel (%p198) target = $region40
    $region39: #{_lambda_.5} parent=5 // pred_region
      %s202 = ssub.s32 %s11, 1
      %p203 = scmp.lt.s32.totalorder %s16, 1
      %s204 = scalar_select %p203, %s16, 1
      %s205 = smul.addr %s204, 32
      %s206 = smul.addr %s205, 4
      %s207 = scalar_lea.vmem %s0, %s206
      %p208 = pneg %p37
      %p209 = pneg %p34
      %p210 = pneg %p58
      %p211 = pneg %p55
      %p212 = pneg %p79
      %p213 = pneg %p76
      %p214 = scmp.lt.s32.totalorder %s16, 1
      %s215 = scalar_select %p214, %s16, 1
      %s216 = smul.addr %s215, 32
      %s217 = smul.addr %s216, 4
      %s218 = scalar_lea.vmem %s3, %s217
      %p219 = pneg %p105
      %p220 = pneg %p102
      %p221 = pneg %p126
      %p222 = pneg %p123
      %p223 = pneg %p152
      %p224 = pneg %p149
      %p225 = scmp.lt.s32.totalorder %s16, 1
      %s226 = scalar_select %p225, %s16, 1
      %s227 = smul.addr %s226, 32
      %s228 = smul.addr %s227, 4
      %s229 = scalar_lea.vmem %s5, %s228
      %p230 = scmp.lt.s32.totalorder %s16, 1
      %s231 = scalar_select %p230, %s16, 1
      %s232 = smul.addr %s231, 32
      %s233 = smul.addr %s232, 4
      %s234 = scalar_lea.vmem %s0, %s233
      %p235 = scmp.lt.s32.totalorder %s16, 1
      %s236 = scalar_select %p235, %s16, 1
      %s237 = smul.addr %s236, 32
      %s238 = smul.addr %s237, 4
      %s239 = scalar_lea.vmem %s3, %s238
      %p240 = scmp.lt.s32.totalorder %s16, 1
      %s241 = scalar_select %p240, %s16, 1
      %s242 = smul.addr %s241, 32
      %s243 = smul.addr %s242, 4
      %s244 = scalar_lea.vmem %s5, %s243
      %v245 = vld [vmem:[%s234] sm:$0xf]
      %v246 = vld [vmem:[%s234 + $0x4] sm:$0xf]
      %v247 = vld [vmem:[%s234 + $0x8] sm:$0xf]
      %v248 = vld [vmem:[%s234 + $0xc] sm:$0xf]
      %v249 = vld [vmem:[%s234 + $0x10] sm:$0xf]
      %v250 = vld [vmem:[%s234 + $0x14] sm:$0xf]
      %v251 = vld [vmem:[%s234 + $0x18] sm:$0xf]
      %v252 = vld [vmem:[%s234 + $0x1c] sm:$0xf]
      %v253 = vld [vmem:[%s234 + $0x20] sm:$0xf]
      %v254 = vld [vmem:[%s234 + $0x24] sm:$0xf]
      %v255 = vld [vmem:[%s234 + $0x28] sm:$0xf]
      %v256 = vld [vmem:[%s234 + $0x2c] sm:$0xf]
      %v257 = vld [vmem:[%s234 + $0x30] sm:$0xf]
      %v258 = vld [vmem:[%s234 + $0x34] sm:$0xf]
      %v259 = vld [vmem:[%s234 + $0x38] sm:$0xf]
      %v260 = vld [vmem:[%s234 + $0x3c] sm:$0xf]
      %v261 = vld [vmem:[%s234 + $0x40] sm:$0xf]
      %v262 = vld [vmem:[%s234 + $0x44] sm:$0xf]
      %v263 = vld [vmem:[%s234 + $0x48] sm:$0xf]
      %v264 = vld [vmem:[%s234 + $0x4c] sm:$0xf]
      %v265 = vld [vmem:[%s234 + $0x50] sm:$0xf]
      %v266 = vld [vmem:[%s234 + $0x54] sm:$0xf]
      %v267 = vld [vmem:[%s234 + $0x58] sm:$0xf]
      %v268 = vld [vmem:[%s234 + $0x5c] sm:$0xf]
      %v269 = vld [vmem:[%s234 + $0x60] sm:$0xf]
      %v270 = vld [vmem:[%s234 + $0x64] sm:$0xf]
      %v271 = vld [vmem:[%s234 + $0x68] sm:$0xf]
      %v272 = vld [vmem:[%s234 + $0x6c] sm:$0xf]
      %v273 = vld [vmem:[%s234 + $0x70] sm:$0xf]
      %v274 = vld [vmem:[%s234 + $0x74] sm:$0xf]
      %v275 = vld [vmem:[%s234 + $0x78] sm:$0xf]
      %v276 = vld [vmem:[%s234 + $0x7c] sm:$0xf]
      %v277 = vunpack.c.l.bf16 %v245
      %v278 = vunpack.c.l.bf16 %v246
      %v279 = vunpack.c.l.bf16 %v247
      %v280 = vunpack.c.l.bf16 %v248
      %v281 = vunpack.c.l.bf16 %v249
      %v282 = vunpack.c.l.bf16 %v250
      %v283 = vunpack.c.l.bf16 %v251
      %v284 = vunpack.c.l.bf16 %v252
      %v285 = vunpack.c.l.bf16 %v253
      %v286 = vunpack.c.l.bf16 %v254
      %v287 = vunpack.c.l.bf16 %v255
      %v288 = vunpack.c.l.bf16 %v256
      %v289 = vunpack.c.l.bf16 %v257
      %v290 = vunpack.c.l.bf16 %v258
      %v291 = vunpack.c.l.bf16 %v259
      %v292 = vunpack.c.l.bf16 %v260
      %v293 = vunpack.c.l.bf16 %v261
      %v294 = vunpack.c.l.bf16 %v262
      %v295 = vunpack.c.l.bf16 %v263
      %v296 = vunpack.c.l.bf16 %v264
      %v297 = vunpack.c.l.bf16 %v265
      %v298 = vunpack.c.l.bf16 %v266
      %v299 = vunpack.c.l.bf16 %v267
      %v300 = vunpack.c.l.bf16 %v268
      %v301 = vunpack.c.l.bf16 %v269
      %v302 = vunpack.c.l.bf16 %v270
      %v303 = vunpack.c.l.bf16 %v271
      %v304 = vunpack.c.l.bf16 %v272
      %v305 = vunpack.c.l.bf16 %v273
      %v306 = vunpack.c.l.bf16 %v274
      %v307 = vunpack.c.l.bf16 %v275
      %v308 = vunpack.c.l.bf16 %v276
      %v309 = vld [vmem:[%s1] sm:$0x1]
      %v311 = vlaneseq
      %v312 = vshrl.u32 %v311, 7
      %v313 = vsub.s32 0, %v312
      %v314 = vrot.slane %v309, %v313
      %v316 = vmul.f32 %v277, %v314
      %v317 = vmul.f32 %v278, %v314
      %v318 = vmul.f32 %v279, %v314
      %v319 = vmul.f32 %v280, %v314
      %v320 = vmul.f32 %v281, %v314
      %v321 = vmul.f32 %v282, %v314
      %v322 = vmul.f32 %v283, %v314
      %v323 = vmul.f32 %v284, %v314
      %v324 = vmul.f32 %v285, %v314
      %v325 = vmul.f32 %v286, %v314
      %v326 = vmul.f32 %v287, %v314
      %v327 = vmul.f32 %v288, %v314
      %v328 = vmul.f32 %v289, %v314
      %v329 = vmul.f32 %v290, %v314
      %v330 = vmul.f32 %v291, %v314
      %v331 = vmul.f32 %v292, %v314
      %v332 = vmul.f32 %v293, %v314
      %v333 = vmul.f32 %v294, %v314
      %v334 = vmul.f32 %v295, %v314
      %v335 = vmul.f32 %v296, %v314
      %v336 = vmul.f32 %v297, %v314
      %v337 = vmul.f32 %v298, %v314
      %v338 = vmul.f32 %v299, %v314
      %v339 = vmul.f32 %v300, %v314
      %v340 = vmul.f32 %v301, %v314
      %v341 = vmul.f32 %v302, %v314
      %v342 = vmul.f32 %v303, %v314
      %v343 = vmul.f32 %v304, %v314
      %v344 = vmul.f32 %v305, %v314
      %v345 = vmul.f32 %v306, %v314
      %v346 = vmul.f32 %v307, %v314
      %v347 = vmul.f32 %v308, %v314
      %v348 = vld [vmem:[%s2] sm:$0x1]
      %v350 = vlaneseq
      %v351 = vshrl.u32 %v350, 7
      %v352 = vsub.s32 0, %v351
      %v353 = vrot.slane %v348, %v352
      %v355 = vadd.f32 %v316, %v353
      %v356 = vadd.f32 %v317, %v353
      %v357 = vadd.f32 %v318, %v353
      %v358 = vadd.f32 %v319, %v353
      %v359 = vadd.f32 %v320, %v353
      %v360 = vadd.f32 %v321, %v353
      %v361 = vadd.f32 %v322, %v353
      %v362 = vadd.f32 %v323, %v353
      %v363 = vadd.f32 %v324, %v353
      %v364 = vadd.f32 %v325, %v353
      %v365 = vadd.f32 %v326, %v353
      %v366 = vadd.f32 %v327, %v353
      %v367 = vadd.f32 %v328, %v353
      %v368 = vadd.f32 %v329, %v353
      %v369 = vadd.f32 %v330, %v353
      %v370 = vadd.f32 %v331, %v353
      %v371 = vadd.f32 %v332, %v353
      %v372 = vadd.f32 %v333, %v353
      %v373 = vadd.f32 %v334, %v353
      %v374 = vadd.f32 %v335, %v353
      %v375 = vadd.f32 %v336, %v353
      %v376 = vadd.f32 %v337, %v353
      %v377 = vadd.f32 %v338, %v353
      %v378 = vadd.f32 %v339, %v353
      %v379 = vadd.f32 %v340, %v353
      %v380 = vadd.f32 %v341, %v353
      %v381 = vadd.f32 %v342, %v353
      %v382 = vadd.f32 %v343, %v353
      %v383 = vadd.f32 %v344, %v353
      %v384 = vadd.f32 %v345, %v353
      %v385 = vadd.f32 %v346, %v353
      %v386 = vadd.f32 %v347, %v353
      %v387 = vld [vmem:[%s239] sm:$0xf]
      %v388 = vld [vmem:[%s239 + $0x4] sm:$0xf]
      %v389 = vld [vmem:[%s239 + $0x8] sm:$0xf]
      %v390 = vld [vmem:[%s239 + $0xc] sm:$0xf]
      %v391 = vld [vmem:[%s239 + $0x10] sm:$0xf]
      %v392 = vld [vmem:[%s239 + $0x14] sm:$0xf]
      %v393 = vld [vmem:[%s239 + $0x18] sm:$0xf]
      %v394 = vld [vmem:[%s239 + $0x1c] sm:$0xf]
      %v395 = vld [vmem:[%s239 + $0x20] sm:$0xf]
      %v396 = vld [vmem:[%s239 + $0x24] sm:$0xf]
      %v397 = vld [vmem:[%s239 + $0x28] sm:$0xf]
      %v398 = vld [vmem:[%s239 + $0x2c] sm:$0xf]
      %v399 = vld [vmem:[%s239 + $0x30] sm:$0xf]
      %v400 = vld [vmem:[%s239 + $0x34] sm:$0xf]
      %v401 = vld [vmem:[%s239 + $0x38] sm:$0xf]
      %v402 = vld [vmem:[%s239 + $0x3c] sm:$0xf]
      %v403 = vld [vmem:[%s239 + $0x40] sm:$0xf]
      %v404 = vld [vmem:[%s239 + $0x44] sm:$0xf]
      %v405 = vld [vmem:[%s239 + $0x48] sm:$0xf]
      %v406 = vld [vmem:[%s239 + $0x4c] sm:$0xf]
      %v407 = vld [vmem:[%s239 + $0x50] sm:$0xf]
      %v408 = vld [vmem:[%s239 + $0x54] sm:$0xf]
      %v409 = vld [vmem:[%s239 + $0x58] sm:$0xf]
      %v410 = vld [vmem:[%s239 + $0x5c] sm:$0xf]
      %v411 = vld [vmem:[%s239 + $0x60] sm:$0xf]
      %v412 = vld [vmem:[%s239 + $0x64] sm:$0xf]
      %v413 = vld [vmem:[%s239 + $0x68] sm:$0xf]
      %v414 = vld [vmem:[%s239 + $0x6c] sm:$0xf]
      %v415 = vld [vmem:[%s239 + $0x70] sm:$0xf]
      %v416 = vld [vmem:[%s239 + $0x74] sm:$0xf]
      %v417 = vld [vmem:[%s239 + $0x78] sm:$0xf]
      %v418 = vld [vmem:[%s239 + $0x7c] sm:$0xf]
      %v419 = vunpack.c.l.bf16 %v387
      %v420 = vunpack.c.l.bf16 %v388
      %v421 = vunpack.c.l.bf16 %v389
      %v422 = vunpack.c.l.bf16 %v390
      %v423 = vunpack.c.l.bf16 %v391
      %v424 = vunpack.c.l.bf16 %v392
      %v425 = vunpack.c.l.bf16 %v393
      %v426 = vunpack.c.l.bf16 %v394
      %v427 = vunpack.c.l.bf16 %v395
      %v428 = vunpack.c.l.bf16 %v396
      %v429 = vunpack.c.l.bf16 %v397
      %v430 = vunpack.c.l.bf16 %v398
      %v431 = vunpack.c.l.bf16 %v399
      %v432 = vunpack.c.l.bf16 %v400
      %v433 = vunpack.c.l.bf16 %v401
      %v434 = vunpack.c.l.bf16 %v402
      %v435 = vunpack.c.l.bf16 %v403
      %v436 = vunpack.c.l.bf16 %v404
      %v437 = vunpack.c.l.bf16 %v405
      %v438 = vunpack.c.l.bf16 %v406
      %v439 = vunpack.c.l.bf16 %v407
      %v440 = vunpack.c.l.bf16 %v408
      %v441 = vunpack.c.l.bf16 %v409
      %v442 = vunpack.c.l.bf16 %v410
      %v443 = vunpack.c.l.bf16 %v411
      %v444 = vunpack.c.l.bf16 %v412
      %v445 = vunpack.c.l.bf16 %v413
      %v446 = vunpack.c.l.bf16 %v414
      %v447 = vunpack.c.l.bf16 %v415
      %v448 = vunpack.c.l.bf16 %v416
      %v449 = vunpack.c.l.bf16 %v417
      %v450 = vunpack.c.l.bf16 %v418
      %v451 = vld [vmem:[%s4] sm:$0xff]
      %vm452 = vcmask 64512
      %v454 = vsel %vm452, %v419, 0
      %v457 = vsel %vm452, %v420, 0
      %v460 = vsel %vm452, %v421, 0
      %v463 = vsel %vm452, %v422, 0
      %v466 = vsel %vm452, %v423, 0
      %v469 = vsel %vm452, %v424, 0
      %v472 = vsel %vm452, %v425, 0
      %v475 = vsel %vm452, %v426, 0
      %v478 = vsel %vm452, %v427, 0
      %v481 = vsel %vm452, %v428, 0
      %v484 = vsel %vm452, %v429, 0
      %v487 = vsel %vm452, %v430, 0
      %v490 = vsel %vm452, %v431, 0
      %v493 = vsel %vm452, %v432, 0
      %v496 = vsel %vm452, %v433, 0
      %v499 = vsel %vm452, %v434, 0
      %v502 = vsel %vm452, %v435, 0
      %v505 = vsel %vm452, %v436, 0
      %v508 = vsel %vm452, %v437, 0
      %v511 = vsel %vm452, %v438, 0
      %v514 = vsel %vm452, %v439, 0
      %v517 = vsel %vm452, %v440, 0
      %v520 = vsel %vm452, %v441, 0
      %v523 = vsel %vm452, %v442, 0
      %v526 = vsel %vm452, %v443, 0
      %v529 = vsel %vm452, %v444, 0
      %v532 = vsel %vm452, %v445, 0
      %v535 = vsel %vm452, %v446, 0
      %v538 = vsel %vm452, %v447, 0
      %v541 = vsel %vm452, %v448, 0
      %v544 = vsel %vm452, %v449, 0
      %v547 = vsel %vm452, %v450, 0
      %549 = vmatprep.subr.mxu0 0.0
      %550 = vmatpush1.msra.mxu0 0.0
      %551 = vmatprep.subr.mxu0 0.0
      %552 = vmatpush1.msra.mxu0 0.0
      %553 = vmatprep.subr.mxu0 0.0
      %554 = vmatpush1.msra.mxu0 0.0
      %555 = vmatprep.subr.mxu0 0.0
      %556 = vmatpush1.msra.mxu0 0.0
      %557 = vmatprep.subr.mxu0 0.0
      %558 = vmatpush1.msra.mxu0 0.0
      %559 = vmatprep.subr.mxu0 0.0
      %560 = vmatpush1.msra.mxu0 0.0
      %561 = vmatprep.subr.mxu0 0.0
      %562 = vmatpush1.msra.mxu0 0.0
      %563 = vmatprep.subr.mxu0 0.0
      %564 = vmatpush1.msra.mxu0 0.0
      %565 = vmatprep.subr.mxu0 0.0
      %566 = vmatpush1.msra.mxu0 0.0
      %567 = vmatprep.subr.mxu0 0.0
      %568 = vmatpush1.msra.mxu0 0.0
      %569 = vmatprep.subr.mxu0 0.0
      %570 = vmatpush1.msra.mxu0 0.0
      %571 = vmatprep.subr.mxu0 0.0
      %572 = vmatpush1.msra.mxu0 0.0
      %573 = vmatprep.subr.mxu0 0.0
      %574 = vmatpush1.msra.mxu0 0.0
      %575 = vmatprep.subr.mxu0 0.0
      %576 = vmatpush1.msra.mxu0 0.0
      %577 = vmatprep.subr.mxu0 0.0
      %578 = vmatpush1.msra.mxu0 0.0
      %579 = vmatprep.subr.mxu0 0.0
      %580 = vmatpush1.msra.mxu0 %v451
      %581 = vmatprep.subr.mxu0 0.0
      %582 = vmatpush2.msra.mxu0 0.0
      %583 = vmatprep.subr.mxu0 0.0
      %584 = vmatpush2.msra.mxu0 0.0
      %585 = vmatprep.subr.mxu0 0.0
      %586 = vmatpush2.msra.mxu0 0.0
      %587 = vmatprep.subr.mxu0 0.0
      %588 = vmatpush2.msra.mxu0 0.0
      %589 = vmatprep.subr.mxu0 0.0
      %590 = vmatpush2.msra.mxu0 0.0
      %591 = vmatprep.subr.mxu0 0.0
      %592 = vmatpush2.msra.mxu0 0.0
      %593 = vmatprep.subr.mxu0 0.0
      %594 = vmatpush2.msra.mxu0 0.0
      %595 = vmatprep.subr.mxu0 0.0
      %596 = vmatpush2.msra.mxu0 0.0
      %597 = vmatprep.subr.mxu0 0.0
      %598 = vmatpush2.msra.mxu0 0.0
      %599 = vmatprep.subr.mxu0 0.0
      %600 = vmatpush2.msra.mxu0 0.0
      %601 = vmatprep.subr.mxu0 0.0
      %602 = vmatpush2.msra.mxu0 0.0
      %603 = vmatprep.subr.mxu0 0.0
      %604 = vmatpush2.msra.mxu0 0.0
      %605 = vmatprep.subr.mxu0 0.0
      %606 = vmatpush2.msra.mxu0 0.0
      %607 = vmatprep.subr.mxu0 0.0
      %608 = vmatpush2.msra.mxu0 0.0
      %609 = vmatprep.subr.mxu0 0.0
      %610 = vmatpush2.msra.mxu0 0.0
      %611 = vmatprep.subr.mxu0 0.0
      %612 = vmatpush2.msra.mxu0 0.0
      %613 = vmatprep.mubr.f32.mxu0 0.0
      %614 = vmatmul.mubr.f32.gmra.mxu0 %v454
      %v615 = vpop.f32.mrf.mxu0
      %v616 = vadd.f32 0.0, %v615
      %v617 = vpop.f32.mrf.mxu0
      %618 = vmatprep.mubr.f32.mxu0 0.0
      %619 = vmatmul.mubr.f32.gmra.mxu0 %v457
      %v620 = vpop.f32.mrf.mxu0
      %v621 = vadd.f32 0.0, %v620
      %v622 = vpop.f32.mrf.mxu0
      %623 = vmatprep.mubr.f32.mxu0 0.0
      %624 = vmatmul.mubr.f32.gmra.mxu0 %v460
      %v625 = vpop.f32.mrf.mxu0
      %v626 = vadd.f32 0.0, %v625
      %v627 = vpop.f32.mrf.mxu0
      %628 = vmatprep.mubr.f32.mxu0 0.0
      %629 = vmatmul.mubr.f32.gmra.mxu0 %v463
      %v630 = vpop.f32.mrf.mxu0
      %v631 = vadd.f32 0.0, %v630
      %v632 = vpop.f32.mrf.mxu0
      %633 = vmatprep.mubr.f32.mxu0 0.0
      %634 = vmatmul.mubr.f32.gmra.mxu0 %v466
      %v635 = vpop.f32.mrf.mxu0
      %v636 = vadd.f32 0.0, %v635
      %v637 = vpop.f32.mrf.mxu0
      %638 = vmatprep.mubr.f32.mxu0 0.0
      %639 = vmatmul.mubr.f32.gmra.mxu0 %v469
      %v640 = vpop.f32.mrf.mxu0
      %v641 = vadd.f32 0.0, %v640
      %v642 = vpop.f32.mrf.mxu0
      %643 = vmatprep.mubr.f32.mxu0 0.0
      %644 = vmatmul.mubr.f32.gmra.mxu0 %v472
      %v645 = vpop.f32.mrf.mxu0
      %v646 = vadd.f32 0.0, %v645
      %v647 = vpop.f32.mrf.mxu0
      %648 = vmatprep.mubr.f32.mxu0 0.0
      %649 = vmatmul.mubr.f32.gmra.mxu0 %v475
      %v650 = vpop.f32.mrf.mxu0
      %v651 = vadd.f32 0.0, %v650
      %v652 = vpop.f32.mrf.mxu0
      %653 = vmatprep.mubr.f32.mxu0 0.0
      %654 = vmatmul.mubr.f32.gmra.mxu0 %v478
      %v655 = vpop.f32.mrf.mxu0
      %v656 = vadd.f32 0.0, %v655
      %v657 = vpop.f32.mrf.mxu0
      %658 = vmatprep.mubr.f32.mxu0 0.0
      %659 = vmatmul.mubr.f32.gmra.mxu0 %v481
      %v660 = vpop.f32.mrf.mxu0
      %v661 = vadd.f32 0.0, %v660
      %v662 = vpop.f32.mrf.mxu0
      %663 = vmatprep.mubr.f32.mxu0 0.0
      %664 = vmatmul.mubr.f32.gmra.mxu0 %v484
      %v665 = vpop.f32.mrf.mxu0
      %v666 = vadd.f32 0.0, %v665
      %v667 = vpop.f32.mrf.mxu0
      %668 = vmatprep.mubr.f32.mxu0 0.0
      %669 = vmatmul.mubr.f32.gmra.mxu0 %v487
      %v670 = vpop.f32.mrf.mxu0
      %v671 = vadd.f32 0.0, %v670
      %v672 = vpop.f32.mrf.mxu0
      %673 = vmatprep.mubr.f32.mxu0 0.0
      %674 = vmatmul.mubr.f32.gmra.mxu0 %v490
      %v675 = vpop.f32.mrf.mxu0
      %v676 = vadd.f32 0.0, %v675
      %v677 = vpop.f32.mrf.mxu0
      %678 = vmatprep.mubr.f32.mxu0 0.0
      %679 = vmatmul.mubr.f32.gmra.mxu0 %v493
      %v680 = vpop.f32.mrf.mxu0
      %v681 = vadd.f32 0.0, %v680
      %v682 = vpop.f32.mrf.mxu0
      %683 = vmatprep.mubr.f32.mxu0 0.0
      %684 = vmatmul.mubr.f32.gmra.mxu0 %v496
      %v685 = vpop.f32.mrf.mxu0
      %v686 = vadd.f32 0.0, %v685
      %v687 = vpop.f32.mrf.mxu0
      %688 = vmatprep.mubr.f32.mxu0 0.0
      %689 = vmatmul.mubr.f32.gmra.mxu0 %v499
      %v690 = vpop.f32.mrf.mxu0
      %v691 = vadd.f32 0.0, %v690
      %v692 = vpop.f32.mrf.mxu0
      %693 = vmatprep.mubr.f32.mxu0 0.0
      %694 = vmatmul.mubr.f32.gmra.mxu0 %v502
      %v695 = vpop.f32.mrf.mxu0
      %v696 = vadd.f32 0.0, %v695
      %v697 = vpop.f32.mrf.mxu0
      %698 = vmatprep.mubr.f32.mxu0 0.0
      %699 = vmatmul.mubr.f32.gmra.mxu0 %v505
      %v700 = vpop.f32.mrf.mxu0
      %v701 = vadd.f32 0.0, %v700
      %v702 = vpop.f32.mrf.mxu0
      %703 = vmatprep.mubr.f32.mxu0 0.0
      %704 = vmatmul.mubr.f32.gmra.mxu0 %v508
      %v705 = vpop.f32.mrf.mxu0
      %v706 = vadd.f32 0.0, %v705
      %v707 = vpop.f32.mrf.mxu0
      %708 = vmatprep.mubr.f32.mxu0 0.0
      %709 = vmatmul.mubr.f32.gmra.mxu0 %v511
      %v710 = vpop.f32.mrf.mxu0
      %v711 = vadd.f32 0.0, %v710
      %v712 = vpop.f32.mrf.mxu0
      %713 = vmatprep.mubr.f32.mxu0 0.0
      %714 = vmatmul.mubr.f32.gmra.mxu0 %v514
      %v715 = vpop.f32.mrf.mxu0
      %v716 = vadd.f32 0.0, %v715
      %v717 = vpop.f32.mrf.mxu0
      %718 = vmatprep.mubr.f32.mxu0 0.0
      %719 = vmatmul.mubr.f32.gmra.mxu0 %v517
      %v720 = vpop.f32.mrf.mxu0
      %v721 = vadd.f32 0.0, %v720
      %v722 = vpop.f32.mrf.mxu0
      %723 = vmatprep.mubr.f32.mxu0 0.0
      %724 = vmatmul.mubr.f32.gmra.mxu0 %v520
      %v725 = vpop.f32.mrf.mxu0
      %v726 = vadd.f32 0.0, %v725
      %v727 = vpop.f32.mrf.mxu0
      %728 = vmatprep.mubr.f32.mxu0 0.0
      %729 = vmatmul.mubr.f32.gmra.mxu0 %v523
      %v730 = vpop.f32.mrf.mxu0
      %v731 = vadd.f32 0.0, %v730
      %v732 = vpop.f32.mrf.mxu0
      %733 = vmatprep.mubr.f32.mxu0 0.0
      %734 = vmatmul.mubr.f32.gmra.mxu0 %v526
      %v735 = vpop.f32.mrf.mxu0
      %v736 = vadd.f32 0.0, %v735
      %v737 = vpop.f32.mrf.mxu0
      %738 = vmatprep.mubr.f32.mxu0 0.0
      %739 = vmatmul.mubr.f32.gmra.mxu0 %v529
      %v740 = vpop.f32.mrf.mxu0
      %v741 = vadd.f32 0.0, %v740
      %v742 = vpop.f32.mrf.mxu0
      %743 = vmatprep.mubr.f32.mxu0 0.0
      %744 = vmatmul.mubr.f32.gmra.mxu0 %v532
      %v745 = vpop.f32.mrf.mxu0
      %v746 = vadd.f32 0.0, %v745
      %v747 = vpop.f32.mrf.mxu0
      %748 = vmatprep.mubr.f32.mxu0 0.0
      %749 = vmatmul.mubr.f32.gmra.mxu0 %v535
      %v750 = vpop.f32.mrf.mxu0
      %v751 = vadd.f32 0.0, %v750
      %v752 = vpop.f32.mrf.mxu0
      %753 = vmatprep.mubr.f32.mxu0 0.0
      %754 = vmatmul.mubr.f32.gmra.mxu0 %v538
      %v755 = vpop.f32.mrf.mxu0
      %v756 = vadd.f32 0.0, %v755
      %v757 = vpop.f32.mrf.mxu0
      %758 = vmatprep.mubr.f32.mxu0 0.0
      %759 = vmatmul.mubr.f32.gmra.mxu0 %v541
      %v760 = vpop.f32.mrf.mxu0
      %v761 = vadd.f32 0.0, %v760
      %v762 = vpop.f32.mrf.mxu0
      %763 = vmatprep.mubr.f32.mxu0 0.0
      %764 = vmatmul.mubr.f32.gmra.mxu0 %v544
      %v765 = vpop.f32.mrf.mxu0
      %v766 = vadd.f32 0.0, %v765
      %v767 = vpop.f32.mrf.mxu0
      %768 = vmatprep.mubr.f32.mxu0 0.0
      %769 = vmatmul.mubr.f32.gmra.mxu0 %v547
      %v770 = vpop.f32.mrf.mxu0
      %v771 = vadd.f32 0.0, %v770
      %v772 = vpop.f32.mrf.mxu0
      %773 = vdwg.mxu0
      %v774 = vadd.f32 %v355, %v616
      %v775 = vadd.f32 %v356, %v621
      %v776 = vadd.f32 %v357, %v626
      %v777 = vadd.f32 %v358, %v631
      %v778 = vadd.f32 %v359, %v636
      %v779 = vadd.f32 %v360, %v641
      %v780 = vadd.f32 %v361, %v646
      %v781 = vadd.f32 %v362, %v651
      %v782 = vadd.f32 %v363, %v656
      %v783 = vadd.f32 %v364, %v661
      %v784 = vadd.f32 %v365, %v666
      %v785 = vadd.f32 %v366, %v671
      %v786 = vadd.f32 %v367, %v676
      %v787 = vadd.f32 %v368, %v681
      %v788 = vadd.f32 %v369, %v686
      %v789 = vadd.f32 %v370, %v691
      %v790 = vadd.f32 %v371, %v696
      %v791 = vadd.f32 %v372, %v701
      %v792 = vadd.f32 %v373, %v706
      %v793 = vadd.f32 %v374, %v711
      %v794 = vadd.f32 %v375, %v716
      %v795 = vadd.f32 %v376, %v721
      %v796 = vadd.f32 %v377, %v726
      %v797 = vadd.f32 %v378, %v731
      %v798 = vadd.f32 %v379, %v736
      %v799 = vadd.f32 %v380, %v741
      %v800 = vadd.f32 %v381, %v746
      %v801 = vadd.f32 %v382, %v751
      %v802 = vadd.f32 %v383, %v756
      %v803 = vadd.f32 %v384, %v761
      %v804 = vadd.f32 %v385, %v766
      %v805 = vadd.f32 %v386, %v771
      %v806 = vmax.f32 %v774, 0.0
      %v807 = vmax.f32 %v775, 0.0
      %v808 = vmax.f32 %v776, 0.0
      %v809 = vmax.f32 %v777, 0.0
      %v810 = vmax.f32 %v778, 0.0
      %v811 = vmax.f32 %v779, 0.0
      %v812 = vmax.f32 %v780, 0.0
      %v813 = vmax.f32 %v781, 0.0
      %v814 = vmax.f32 %v782, 0.0
      %v815 = vmax.f32 %v783, 0.0
      %v816 = vmax.f32 %v784, 0.0
      %v817 = vmax.f32 %v785, 0.0
      %v818 = vmax.f32 %v786, 0.0
      %v819 = vmax.f32 %v787, 0.0
      %v820 = vmax.f32 %v788, 0.0
      %v821 = vmax.f32 %v789, 0.0
      %v822 = vmax.f32 %v790, 0.0
      %v823 = vmax.f32 %v791, 0.0
      %v824 = vmax.f32 %v792, 0.0
      %v825 = vmax.f32 %v793, 0.0
      %v826 = vmax.f32 %v794, 0.0
      %v827 = vmax.f32 %v795, 0.0
      %v828 = vmax.f32 %v796, 0.0
      %v829 = vmax.f32 %v797, 0.0
      %v830 = vmax.f32 %v798, 0.0
      %v831 = vmax.f32 %v799, 0.0
      %v832 = vmax.f32 %v800, 0.0
      %v833 = vmax.f32 %v801, 0.0
      %v834 = vmax.f32 %v802, 0.0
      %v835 = vmax.f32 %v803, 0.0
      %v836 = vmax.f32 %v804, 0.0
      %v837 = vmax.f32 %v805, 0.0
      %v838 = vpack.c.bf16 %v807, %v806
      %v839 = vpack.c.bf16 %v809, %v808
      %v840 = vpack.c.bf16 %v811, %v810
      %v841 = vpack.c.bf16 %v813, %v812
      %v842 = vpack.c.bf16 %v815, %v814
      %v843 = vpack.c.bf16 %v817, %v816
      %v844 = vpack.c.bf16 %v819, %v818
      %v845 = vpack.c.bf16 %v821, %v820
      %v846 = vpack.c.bf16 %v823, %v822
      %v847 = vpack.c.bf16 %v825, %v824
      %v848 = vpack.c.bf16 %v827, %v826
      %v849 = vpack.c.bf16 %v829, %v828
      %v850 = vpack.c.bf16 %v831, %v830
      %v851 = vpack.c.bf16 %v833, %v832
      %v852 = vpack.c.bf16 %v835, %v834
      %v853 = vpack.c.bf16 %v837, %v836
      %v870 = vunpack.c.l.b16 %v838
      %v871 = vunpack.c.h.b16 %v838
      %v872 = vunpack.c.l.b16 %v839
      %v873 = vunpack.c.h.b16 %v839
      %v874 = vunpack.c.l.b16 %v840
      %v875 = vunpack.c.h.b16 %v840
      %v876 = vunpack.c.l.b16 %v841
      %v877 = vunpack.c.h.b16 %v841
      %v878 = vunpack.c.l.b16 %v842
      %v879 = vunpack.c.h.b16 %v842
      %v880 = vunpack.c.l.b16 %v843
      %v881 = vunpack.c.h.b16 %v843
      %v882 = vunpack.c.l.b16 %v844
      %v883 = vunpack.c.h.b16 %v844
      %v884 = vunpack.c.l.b16 %v845
      %v885 = vunpack.c.h.b16 %v845
      %v886 = vunpack.c.l.b16 %v846
      %v887 = vunpack.c.h.b16 %v846
      %v888 = vunpack.c.l.b16 %v847
      %v889 = vunpack.c.h.b16 %v847
      %v890 = vunpack.c.l.b16 %v848
      %v891 = vunpack.c.h.b16 %v848
      %v892 = vunpack.c.l.b16 %v849
      %v893 = vunpack.c.h.b16 %v849
      %v894 = vunpack.c.l.b16 %v850
      %v895 = vunpack.c.h.b16 %v850
      %v896 = vunpack.c.l.b16 %v851
      %v897 = vunpack.c.h.b16 %v851
      %v898 = vunpack.c.l.b16 %v852
      %v899 = vunpack.c.h.b16 %v852
      %v900 = vunpack.c.l.b16 %v853
      %v901 = vunpack.c.h.b16 %v853
      %v902 = vpack.c.b16 %v870, %v870
      %v903 = vpack.c.b16 %v871, %v871
      %v904 = vpack.c.b16 %v872, %v872
      %v905 = vpack.c.b16 %v873, %v873
      %v906 = vpack.c.b16 %v874, %v874
      %v907 = vpack.c.b16 %v875, %v875
      %v908 = vpack.c.b16 %v876, %v876
      %v909 = vpack.c.b16 %v877, %v877
      %v910 = vpack.c.b16 %v878, %v878
      %v911 = vpack.c.b16 %v879, %v879
      %v912 = vpack.c.b16 %v880, %v880
      %v913 = vpack.c.b16 %v881, %v881
      %v914 = vpack.c.b16 %v882, %v882
      %v915 = vpack.c.b16 %v883, %v883
      %v916 = vpack.c.b16 %v884, %v884
      %v917 = vpack.c.b16 %v885, %v885
      %v918 = vpack.c.b16 %v886, %v886
      %v919 = vpack.c.b16 %v887, %v887
      %v920 = vpack.c.b16 %v888, %v888
      %v921 = vpack.c.b16 %v889, %v889
      %v922 = vpack.c.b16 %v890, %v890
      %v923 = vpack.c.b16 %v891, %v891
      %v924 = vpack.c.b16 %v892, %v892
      %v925 = vpack.c.b16 %v893, %v893
      %v926 = vpack.c.b16 %v894, %v894
      %v927 = vpack.c.b16 %v895, %v895
      %v928 = vpack.c.b16 %v896, %v896
      %v929 = vpack.c.b16 %v897, %v897
      %v930 = vpack.c.b16 %v898, %v898
      %v931 = vpack.c.b16 %v899, %v899
      %v932 = vpack.c.b16 %v900, %v900
      %v933 = vpack.c.b16 %v901, %v901
      %966 = vst [vmem:[%s244] sm:$0xf] %v902
      %967 = vst [vmem:[%s244 + $0x4] sm:$0xf] %v903
      %968 = vst [vmem:[%s244 + $0x8] sm:$0xf] %v904
      %969 = vst [vmem:[%s244 + $0xc] sm:$0xf] %v905
      %970 = vst [vmem:[%s244 + $0x10] sm:$0xf] %v906
      %971 = vst [vmem:[%s244 + $0x14] sm:$0xf] %v907
      %972 = vst [vmem:[%s244 + $0x18] sm:$0xf] %v908
      %973 = vst [vmem:[%s244 + $0x1c] sm:$0xf] %v909
      %974 = vst [vmem:[%s244 + $0x20] sm:$0xf] %v910
      %975 = vst [vmem:[%s244 + $0x24] sm:$0xf] %v911
      %976 = vst [vmem:[%s244 + $0x28] sm:$0xf] %v912
      %977 = vst [vmem:[%s244 + $0x2c] sm:$0xf] %v913
      %978 = vst [vmem:[%s244 + $0x30] sm:$0xf] %v914
      %979 = vst [vmem:[%s244 + $0x34] sm:$0xf] %v915
      %980 = vst [vmem:[%s244 + $0x38] sm:$0xf] %v916
      %981 = vst [vmem:[%s244 + $0x3c] sm:$0xf] %v917
      %982 = vst [vmem:[%s244 + $0x40] sm:$0xf] %v918
      %983 = vst [vmem:[%s244 + $0x44] sm:$0xf] %v919
      %984 = vst [vmem:[%s244 + $0x48] sm:$0xf] %v920
      %985 = vst [vmem:[%s244 + $0x4c] sm:$0xf] %v921
      %986 = vst [vmem:[%s244 + $0x50] sm:$0xf] %v922
      %987 = vst [vmem:[%s244 + $0x54] sm:$0xf] %v923
      %988 = vst [vmem:[%s244 + $0x58] sm:$0xf] %v924
      %989 = vst [vmem:[%s244 + $0x5c] sm:$0xf] %v925
      %990 = vst [vmem:[%s244 + $0x60] sm:$0xf] %v926
      %991 = vst [vmem:[%s244 + $0x64] sm:$0xf] %v927
      %992 = vst [vmem:[%s244 + $0x68] sm:$0xf] %v928
      %993 = vst [vmem:[%s244 + $0x6c] sm:$0xf] %v929
      %994 = vst [vmem:[%s244 + $0x70] sm:$0xf] %v930
      %995 = vst [vmem:[%s244 + $0x74] sm:$0xf] %v931
      %996 = vst [vmem:[%s244 + $0x78] sm:$0xf] %v932
      %997 = vst [vmem:[%s244 + $0x7c] sm:$0xf] %v933
      %p998 = scmp.lt.s32.totalorder %s16, 1
      %s999 = scalar_select %p998, %s16, 1
      %s1000 = smul.addr %s999, 32
      %s1001 = smul.addr %s1000, 4
      %s1002 = scalar_lea.vmem %s5, %s1001
      // Predicated region
      $region41: #{_lambda_.5} parent=39 // pred_check
        %p1003 = pneg %p149
      $region42: #{_lambda_.5} parent=39 // pred_check_branch
        %1005 = sbr.rel (%p1003) target = $region44
      $region43: #{_lambda_.5} parent=39 // pred_region
        _
      $region44: #{_lambda_.5} parent=39 // pred_fallthru
        _
    $region40: #{_lambda_.5} parent=5 // pred_fallthru
      _
    %p1006 = scmp.le.s32.totalorder 2, %s11
    // Predicated region
    $region45: #{_lambda_.5} parent=5 // pred_check
      %p1007 = pneg %p1006
    $region46: #{_lambda_.5} parent=5 // pred_check_branch
      %1009 = sbr.rel (%p1007) target = $region48
    $region47: #{_lambda_.5} parent=5 // pred_region
      %s1010 = ssub.s32 %s11, 2
      // Predicated region
      $region49: #{_lambda_.5} parent=47 // pred_check
        %p1011 = pneg %p155
      $region50: #{_lambda_.5} parent=47 // pred_check_branch
        %1013 = sbr.rel (%p1011) target = $region52
      $region51: #{_lambda_.5} parent=47 // pred_region
        %p1014 = scmp.lt.s32.totalorder %s17, 1
        %s1015 = scalar_select %p1014, %s17, 1
        %s1016 = smul.addr %s1015, 32
        %s1017 = smul.addr %s1016, 4
        %s1018 = scalar_lea.vmem %s5, %s1017
      $region52: #{_lambda_.5} parent=47 // pred_fallthru
        _
    $region48: #{_lambda_.5} parent=5 // pred_fallthru
      _
  $region6: #{_lambda_.5} parent=0 // loop_footer
    %s15 = sadd.s32 1, %s11
  $region7: #{_lambda_.5} parent=0 // loop_footer_branch
    %10 = sbr.rel target = $region3
  $region8: #{_lambda_.5} parent=0 // loop_exit
    _

// kernel: _lambda_.4
$region0: #{_lambda_.4}
  #allocation0 [shape = 'u32[]', space=smem, size = 0x4, offset = 0x4, fixed_abs, tag = 'smem constant byte address 0x4 - core index']
  #allocation1 [shape = 'u32[144,128]{1,0:T(1,128)}', space=vmem, size = 0x12000, scoped, tag = 'internal scratch']
  %s0 = inlined_call_operand.vmem [shape: bf16[2,18,18,128], index: 0, kind: input, shape index: {}]
  %s1 = inlined_call_operand.vmem [shape: f32[1,1,1,128], index: 1, kind: input, shape index: {}]
  %s2 = inlined_call_operand.vmem [shape: f32[1,1,1,128], index: 2, kind: input, shape index: {}]
  %s3 = inlined_call_operand.vmem [shape: f32[1,18,18,1], index: 3, kind: input, shape index: {}]
  %s4 = inlined_call_operand.vmem [shape: bf16[9,128,128], index: 4, kind: input, shape index: {}]
  %s5 = inlined_call_operand.vmem [shape: bf16[2,16,16,128], index: 5, kind: output, shape index: {0}]
  %s6 = inlined_call_operand.vmem [shape: f32[16,128], index: 6, kind: output, shape index: {1}]
  %7 = xla_tuple %s5, %s6
  %s8 = sld [smem:[#allocation0]]
  $region61: #{_lambda_.4} parent=0
    _
  %s10 = ssub.s32 1, %s8
  %s11 = scalar_select 0, %s10, %s8
  loop: start=0, step=1, limit=4
  $region2: #{_lambda_.4} parent=0 // loop_pre_header
    _
  $region3: #{_lambda_.4} parent=0 // loop_header
    %s13 = sphi 0, %s17
    %p14 = scmp.ge.s32.totalorder %s13, 4
    %s23 = sphi 0, %s25
    %s26 = sphi 0, %s23
    %s27 = sphi 0, %s26
    %s43 = sphi 0, %s27
    %s47 = sphi 0, %s47
    %s49 = sphi 0, %s47
    %s50 = sphi 0, %s49
    %s64 = sphi 0, %s50
    %s68 = sphi 0, %s68
    %s70 = sphi 0, %s68
    %s71 = sphi 0, %s70
    %s85 = sphi 0, %s71
    %s89 = sphi 0, %s89
    %s91 = sphi 0, %s89
    %s92 = sphi 0, %s91
    %s106 = sphi 0, %s92
    %s110 = sphi 0, %s110
    %s112 = sphi 0, %s110
    %s113 = sphi 0, %s112
    %s127 = sphi 0, %s113
    %s133 = sphi 0, %s135
    %s136 = sphi 0, %s133
    %s137 = sphi 0, %s136
    %s153 = sphi 0, %s137
    %s159 = sphi 0, %s161
    %s162 = sphi 0, %s159
    %s163 = sphi 0, %s162
    %s179 = sphi 0, %s163
  $region4: #{_lambda_.4} parent=0 // loop_header_branch
    %16 = sbr.rel (%p14) target = $region8
  $region5: #{_lambda_.4} parent=0 // loop_body
    %s18 = ssub.s32 %s13, 1
    %s19 = ssub.s32 %s13, 2
    %s20 = sadd.s32 %s13, 1
    %s21 = ssub.s32 %s13, %s20
    %p22 = scmp.eq.s32.totalorder %s21, 0
    %s24 = sadd.s32 %s23, 1
    %s25 = scalar_select %p22, %s23, %s24
    %p28 = pneg %p22
    %p29 = scmp.eq.s32.totalorder %s13, 1
    %p30 = por %p28, %p29
    %p31 = scmp.ne.s32.totalorder %s23, %s26
    %p32 = scmp.eq.s32.totalorder %s13, 0
    %p33 = por %p31, %p32
    %p34 = scmp.ne.s32.totalorder %s23, %s26
    %p35 = scmp.eq.s32.totalorder %s18, 1
    %p36 = por %p34, %p35
    %p37 = scmp.ne.s32.totalorder %s26, %s27
    %p38 = scmp.eq.s32.totalorder %s18, 0
    %p39 = por %p37, %p38
    %p40 = scmp.ne.s32.totalorder %s26, %s27
    %p41 = scmp.eq.s32.totalorder %s19, 1
    %p42 = por %p40, %p41
    %p44 = scmp.ne.s32.totalorder %s27, %s43
    %p45 = scmp.eq.s32.totalorder %s19, 0
    %p46 = por %p44, %p45
    %s48 = sadd.s32 %s47, 1
    %p51 = scmp.eq.s32.totalorder %s13, 1
    %p52 = scmp.ne.s32.totalorder %s47, %s49
    %p53 = scmp.eq.s32.totalorder %s13, 0
    %p54 = por %p52, %p53
    %p55 = scmp.ne.s32.totalorder %s47, %s49
    %p56 = scmp.eq.s32.totalorder %s18, 1
    %p57 = por %p55, %p56
    %p58 = scmp.ne.s32.totalorder %s49, %s50
    %p59 = scmp.eq.s32.totalorder %s18, 0
    %p60 = por %p58, %p59
    %p61 = scmp.ne.s32.totalorder %s49, %s50
    %p62 = scmp.eq.s32.totalorder %s19, 1
    %p63 = por %p61, %p62
    %p65 = scmp.ne.s32.totalorder %s50, %s64
    %p66 = scmp.eq.s32.totalorder %s19, 0
    %p67 = por %p65, %p66
    %s69 = sadd.s32 %s68, 1
    %p72 = scmp.eq.s32.totalorder %s13, 1
    %p73 = scmp.ne.s32.totalorder %s68, %s70
    %p74 = scmp.eq.s32.totalorder %s13, 0
    %p75 = por %p73, %p74
    %p76 = scmp.ne.s32.totalorder %s68, %s70
    %p77 = scmp.eq.s32.totalorder %s18, 1
    %p78 = por %p76, %p77
    %p79 = scmp.ne.s32.totalorder %s70, %s71
    %p80 = scmp.eq.s32.totalorder %s18, 0
    %p81 = por %p79, %p80
    %p82 = scmp.ne.s32.totalorder %s70, %s71
    %p83 = scmp.eq.s32.totalorder %s19, 1
    %p84 = por %p82, %p83
    %p86 = scmp.ne.s32.totalorder %s71, %s85
    %p87 = scmp.eq.s32.totalorder %s19, 0
    %p88 = por %p86, %p87
    %s90 = sadd.s32 %s89, 1
    %p93 = scmp.eq.s32.totalorder %s13, 1
    %p94 = scmp.ne.s32.totalorder %s89, %s91
    %p95 = scmp.eq.s32.totalorder %s13, 0
    %p96 = por %p94, %p95
    %p97 = scmp.ne.s32.totalorder %s89, %s91
    %p98 = scmp.eq.s32.totalorder %s18, 1
    %p99 = por %p97, %p98
    %p100 = scmp.ne.s32.totalorder %s91, %s92
    %p101 = scmp.eq.s32.totalorder %s18, 0
    %p102 = por %p100, %p101
    %p103 = scmp.ne.s32.totalorder %s91, %s92
    %p104 = scmp.eq.s32.totalorder %s19, 1
    %p105 = por %p103, %p104
    %p107 = scmp.ne.s32.totalorder %s92, %s106
    %p108 = scmp.eq.s32.totalorder %s19, 0
    %p109 = por %p107, %p108
    %s111 = sadd.s32 %s110, 1
    %p114 = scmp.eq.s32.totalorder %s13, 1
    %p115 = scmp.ne.s32.totalorder %s110, %s112
    %p116 = scmp.eq.s32.totalorder %s13, 0
    %p117 = por %p115, %p116
    %p118 = scmp.ne.s32.totalorder %s110, %s112
    %p119 = scmp.eq.s32.totalorder %s18, 1
    %p120 = por %p118, %p119
    %p121 = scmp.ne.s32.totalorder %s112, %s113
    %p122 = scmp.eq.s32.totalorder %s18, 0
    %p123 = por %p121, %p122
    %p124 = scmp.ne.s32.totalorder %s112, %s113
    %p125 = scmp.eq.s32.totalorder %s19, 1
    %p126 = por %p124, %p125
    %p128 = scmp.ne.s32.totalorder %s113, %s127
    %p129 = scmp.eq.s32.totalorder %s19, 0
    %p130 = por %p128, %p129
    %s131 = ssub.s32 %s13, %s20
    %p132 = scmp.eq.s32.totalorder %s131, 0
    %s134 = sadd.s32 %s133, 1
    %s135 = scalar_select %p132, %s133, %s134
    %p138 = pneg %p132
    %p139 = scmp.eq.s32.totalorder %s13, 1
    %p140 = por %p138, %p139
    %p141 = scmp.ne.s32.totalorder %s133, %s136
    %p142 = scmp.eq.s32.totalorder %s13, 0
    %p143 = por %p141, %p142
    %p144 = scmp.ne.s32.totalorder %s133, %s136
    %p145 = scmp.eq.s32.totalorder %s18, 1
    %p146 = por %p144, %p145
    %p147 = scmp.ne.s32.totalorder %s136, %s137
    %p148 = scmp.eq.s32.totalorder %s18, 0
    %p149 = por %p147, %p148
    %p150 = scmp.ne.s32.totalorder %s136, %s137
    %p151 = scmp.eq.s32.totalorder %s19, 1
    %p152 = por %p150, %p151
    %p154 = scmp.ne.s32.totalorder %s137, %s153
    %p155 = scmp.eq.s32.totalorder %s19, 0
    %p156 = por %p154, %p155
    %s157 = ssub.s32 %s13, %s20
    %p158 = scmp.eq.s32.totalorder %s157, 0
    %s160 = sadd.s32 %s159, 1
    %s161 = scalar_select %p158, %s159, %s160
    %p164 = pneg %p158
    %p165 = scmp.eq.s32.totalorder %s13, 1
    %p166 = por %p164, %p165
    %p167 = scmp.ne.s32.totalorder %s159, %s162
    %p168 = scmp.eq.s32.totalorder %s13, 0
    %p169 = por %p167, %p168
    %p170 = scmp.ne.s32.totalorder %s159, %s162
    %p171 = scmp.eq.s32.totalorder %s18, 1
    %p172 = por %p170, %p171
    %p173 = scmp.ne.s32.totalorder %s162, %s163
    %p174 = scmp.eq.s32.totalorder %s18, 0
    %p175 = por %p173, %p174
    %p176 = scmp.ne.s32.totalorder %s162, %s163
    %p177 = scmp.eq.s32.totalorder %s19, 1
    %p178 = por %p176, %p177
    %p180 = scmp.ne.s32.totalorder %s163, %s179
    %p181 = scmp.eq.s32.totalorder %s19, 0
    %p182 = por %p180, %p181
    %p183 = scmp.le.s32.totalorder 1, %s13
    %p184 = scmp.lt.s32.totalorder %s13, 3
    %p185 = pnand %p183, %p184
    %p186 = pneg %p185
    // Predicated region
    $region9: #{_lambda_.4} parent=5 // pred_check
      _
    $region10: #{_lambda_.4} parent=5 // pred_check_branch
      %188 = sbr.rel (%p185) target = $region12
    $region11: #{_lambda_.4} parent=5 // pred_region
      %s189 = ssub.s32 %s13, 1
      // Predicated region
      $region13: #{_lambda_.4} parent=11 // pred_check
        %p190 = pneg %p60
      $region14: #{_lambda_.4} parent=11 // pred_check_branch
        %192 = sbr.rel (%p190) target = $region16
      $region15: #{_lambda_.4} parent=11 // pred_region
        _
      $region16: #{_lambda_.4} parent=11 // pred_fallthru
        _
      // Predicated region
      $region17: #{_lambda_.4} parent=11 // pred_check
        %p193 = pneg %p81
      $region18: #{_lambda_.4} parent=11 // pred_check_branch
        %195 = sbr.rel (%p193) target = $region20
      $region19: #{_lambda_.4} parent=11 // pred_region
        _
      $region20: #{_lambda_.4} parent=11 // pred_fallthru
        _
      // Predicated region
      $region21: #{_lambda_.4} parent=11 // pred_check
        %p196 = pneg %p102
      $region22: #{_lambda_.4} parent=11 // pred_check_branch
        %198 = sbr.rel (%p196) target = $region24
      $region23: #{_lambda_.4} parent=11 // pred_region
        _
      $region24: #{_lambda_.4} parent=11 // pred_fallthru
        _
      // Predicated region
      $region25: #{_lambda_.4} parent=11 // pred_check
        %p199 = pneg %p123
      $region26: #{_lambda_.4} parent=11 // pred_check_branch
        %201 = sbr.rel (%p199) target = $region28
      $region27: #{_lambda_.4} parent=11 // pred_region
        _
      $region28: #{_lambda_.4} parent=11 // pred_fallthru
        _
    $region12: #{_lambda_.4} parent=5 // pred_fallthru
      _
    %p202 = scmp.lt.s32.totalorder %s13, 2
    // Predicated region
    $region29: #{_lambda_.4} parent=5 // pred_check
      %p203 = pneg %p202
    $region30: #{_lambda_.4} parent=5 // pred_check_branch
      %205 = sbr.rel (%p203) target = $region32
    $region31: #{_lambda_.4} parent=5 // pred_region
      // Predicated region
      $region33: #{_lambda_.4} parent=31 // pred_check
        %p206 = pneg %p33
      $region34: #{_lambda_.4} parent=31 // pred_check_branch
        %208 = sbr.rel (%p206) target = $region36
      $region35: #{_lambda_.4} parent=31 // pred_region
        %p209 = scmp.lt.s32.totalorder %s13, 1
        %s210 = scalar_select %p209, %s13, 1
        %s211 = smul.addr %s210, 54
        %s212 = smul.addr %s211, 4
        %s213 = scalar_lea.vmem %s0, %s212
      $region36: #{_lambda_.4} parent=31 // pred_fallthru
        _
    $region32: #{_lambda_.4} parent=5 // pred_fallthru
      _
    %p214 = scmp.le.s32.totalorder 1, %s13
    %p215 = scmp.lt.s32.totalorder %s13, 3
    %p216 = pnand %p214, %p215
    %p217 = pneg %p216
    // Predicated region
    $region37: #{_lambda_.4} parent=5 // pred_check
      _
    $region38: #{_lambda_.4} parent=5 // pred_check_branch
      %219 = sbr.rel (%p216) target = $region40
    $region39: #{_lambda_.4} parent=5 // pred_region
      %s220 = ssub.s32 %s13, 1
      %p221 = scmp.lt.s32.totalorder %s18, 1
      %s222 = scalar_select %p221, %s18, 1
      %s223 = smul.addr %s222, 54
      %s224 = smul.addr %s223, 4
      %s225 = scalar_lea.vmem %s0, %s224
      %p226 = pneg %p39
      %p227 = pneg %p36
      %p228 = pneg %p60
      %p229 = pneg %p57
      %p230 = pneg %p81
      %p231 = pneg %p78
      %p232 = pneg %p102
      %p233 = pneg %p99
      %p234 = pneg %p123
      %p235 = pneg %p120
      %p236 = pneg %p149
      %p237 = pneg %p146
      %p238 = scmp.lt.s32.totalorder %s18, 1
      %s239 = scalar_select %p238, %s18, 1
      %s240 = smul.addr %s239, 32
      %s241 = smul.addr %s240, 4
      %s242 = scalar_lea.vmem %s5, %s241
      %p243 = pneg %p175
      %p244 = pneg %p172
      %p245 = scmp.lt.s32.totalorder %s18, 1
      %s246 = scalar_select %p245, %s18, 1
      %s247 = smul.addr %s246, 8
      %s248 = scalar_lea.vmem %s6, %s247
      %p249 = scmp.lt.s32.totalorder %s18, 1
      %s250 = scalar_select %p249, %s18, 1
      %s251 = smul.addr %s250, 54
      %s252 = smul.addr %s251, 4
      %s253 = scalar_lea.vmem %s0, %s252
      %p254 = scmp.lt.s32.totalorder %s18, 1
      %s255 = scalar_select %p254, %s18, 1
      %s256 = smul.addr %s255, 32
      %s257 = smul.addr %s256, 4
      %s258 = scalar_lea.vmem %s5, %s257
      %p259 = scmp.lt.s32.totalorder %s18, 1
      %s260 = scalar_select %p259, %s18, 1
      %s261 = smul.addr %s260, 8
      %s262 = scalar_lea.vmem %s6, %s261
      %v264 = vld [vmem:[%s253] sm:$0xf]
      %v265 = vld [vmem:[%s253 + $0x4] sm:$0xf]
      %v266 = vld [vmem:[%s253 + $0x8] sm:$0x1]
      %v267 = vld [vmem:[%s253 + $0xc] sm:$0xf]
      %v268 = vld [vmem:[%s253 + $0x10] sm:$0xf]
      %v269 = vld [vmem:[%s253 + $0x14] sm:$0x1]
      %v270 = vld [vmem:[%s253 + $0x18] sm:$0xf]
      %v271 = vld [vmem:[%s253 + $0x1c] sm:$0xf]
      %v272 = vld [vmem:[%s253 + $0x20] sm:$0x1]
      %v273 = vld [vmem:[%s253 + $0x24] sm:$0xf]
      %v274 = vld [vmem:[%s253 + $0x28] sm:$0xf]
      %v275 = vld [vmem:[%s253 + $0x2c] sm:$0x1]
      %v276 = vld [vmem:[%s253 + $0x30] sm:$0xf]
      %v277 = vld [vmem:[%s253 + $0x34] sm:$0xf]
      %v278 = vld [vmem:[%s253 + $0x38] sm:$0x1]
      %v279 = vld [vmem:[%s253 + $0x3c] sm:$0xf]
      %v280 = vld [vmem:[%s253 + $0x40] sm:$0xf]
      %v281 = vld [vmem:[%s253 + $0x44] sm:$0x1]
      %v282 = vld [vmem:[%s253 + $0x48] sm:$0xf]
      %v283 = vld [vmem:[%s253 + $0x4c] sm:$0xf]
      %v284 = vld [vmem:[%s253 + $0x50] sm:$0x1]
      %v285 = vld [vmem:[%s253 + $0x54] sm:$0xf]
      %v286 = vld [vmem:[%s253 + $0x58] sm:$0xf]
      %v287 = vld [vmem:[%s253 + $0x5c] sm:$0x1]
      %v288 = vld [vmem:[%s253 + $0x60] sm:$0xf]
      %v289 = vld [vmem:[%s253 + $0x64] sm:$0xf]
      %v290 = vld [vmem:[%s253 + $0x68] sm:$0x1]
      %v291 = vld [vmem:[%s253 + $0x6c] sm:$0xf]
      %v292 = vld [vmem:[%s253 + $0x70] sm:$0xf]
      %v293 = vld [vmem:[%s253 + $0x74] sm:$0x1]
      %v294 = vld [vmem:[%s253 + $0x78] sm:$0xf]
      %v295 = vld [vmem:[%s253 + $0x7c] sm:$0xf]
      %v296 = vld [vmem:[%s253 + $0x80] sm:$0x1]
      %v297 = vld [vmem:[%s253 + $0x84] sm:$0xf]
      %v298 = vld [vmem:[%s253 + $0x88] sm:$0xf]
      %v299 = vld [vmem:[%s253 + $0x8c] sm:$0x1]
      %v300 = vld [vmem:[%s253 + $0x90] sm:$0xf]
      %v301 = vld [vmem:[%s253 + $0x94] sm:$0xf]
      %v302 = vld [vmem:[%s253 + $0x98] sm:$0x1]
      %v303 = vld [vmem:[%s253 + $0x9c] sm:$0xf]
      %v304 = vld [vmem:[%s253 + $0xa0] sm:$0xf]
      %v305 = vld [vmem:[%s253 + $0xa4] sm:$0x1]
      %v306 = vld [vmem:[%s253 + $0xa8] sm:$0xf]
      %v307 = vld [vmem:[%s253 + $0xac] sm:$0xf]
      %v308 = vld [vmem:[%s253 + $0xb0] sm:$0x1]
      %v309 = vld [vmem:[%s253 + $0xb4] sm:$0xf]
      %v310 = vld [vmem:[%s253 + $0xb8] sm:$0xf]
      %v311 = vld [vmem:[%s253 + $0xbc] sm:$0x1]
      %v312 = vld [vmem:[%s253 + $0xc0] sm:$0xf]
      %v313 = vld [vmem:[%s253 + $0xc4] sm:$0xf]
      %v314 = vld [vmem:[%s253 + $0xc8] sm:$0x1]
      %v315 = vld [vmem:[%s253 + $0xcc] sm:$0xf]
      %v316 = vld [vmem:[%s253 + $0xd0] sm:$0xf]
      %v317 = vld [vmem:[%s253 + $0xd4] sm:$0x1]
      %v318 = vunpack.c.l.bf16 %v264
      %v319 = vunpack.c.l.bf16 %v265
      %v320 = vunpack.c.l.bf16 %v266
      %v321 = vunpack.c.l.bf16 %v267
      %v322 = vunpack.c.l.bf16 %v268
      %v323 = vunpack.c.l.bf16 %v269
      %v324 = vunpack.c.l.bf16 %v270
      %v325 = vunpack.c.l.bf16 %v271
      %v326 = vunpack.c.l.bf16 %v272
      %v327 = vunpack.c.l.bf16 %v273
      %v328 = vunpack.c.l.bf16 %v274
      %v329 = vunpack.c.l.bf16 %v275
      %v330 = vunpack.c.l.bf16 %v276
      %v331 = vunpack.c.l.bf16 %v277
      %v332 = vunpack.c.l.bf16 %v278
      %v333 = vunpack.c.l.bf16 %v279
      %v334 = vunpack.c.l.bf16 %v280
      %v335 = vunpack.c.l.bf16 %v281
      %v336 = vunpack.c.l.bf16 %v282
      %v337 = vunpack.c.l.bf16 %v283
      %v338 = vunpack.c.l.bf16 %v284
      %v339 = vunpack.c.l.bf16 %v285
      %v340 = vunpack.c.l.bf16 %v286
      %v341 = vunpack.c.l.bf16 %v287
      %v342 = vunpack.c.l.bf16 %v288
      %v343 = vunpack.c.l.bf16 %v289
      %v344 = vunpack.c.l.bf16 %v290
      %v345 = vunpack.c.l.bf16 %v291
      %v346 = vunpack.c.l.bf16 %v292
      %v347 = vunpack.c.l.bf16 %v293
      %v348 = vunpack.c.l.bf16 %v294
      %v349 = vunpack.c.l.bf16 %v295
      %v350 = vunpack.c.l.bf16 %v296
      %v351 = vunpack.c.l.bf16 %v297
      %v352 = vunpack.c.l.bf16 %v298
      %v353 = vunpack.c.l.bf16 %v299
      %v354 = vunpack.c.l.bf16 %v300
      %v355 = vunpack.c.l.bf16 %v301
      %v356 = vunpack.c.l.bf16 %v302
      %v357 = vunpack.c.l.bf16 %v303
      %v358 = vunpack.c.l.bf16 %v304
      %v359 = vunpack.c.l.bf16 %v305
      %v360 = vunpack.c.l.bf16 %v306
      %v361 = vunpack.c.l.bf16 %v307
      %v362 = vunpack.c.l.bf16 %v308
      %v363 = vunpack.c.l.bf16 %v309
      %v364 = vunpack.c.l.bf16 %v310
      %v365 = vunpack.c.l.bf16 %v311
      %v366 = vunpack.c.l.bf16 %v312
      %v367 = vunpack.c.l.bf16 %v313
      %v368 = vunpack.c.l.bf16 %v314
      %v369 = vunpack.c.l.bf16 %v315
      %v370 = vunpack.c.l.bf16 %v316
      %v371 = vunpack.c.l.bf16 %v317
      %v372 = vld [vmem:[%s1] sm:$0x1]
      %v374 = vlaneseq
      %v375 = vshrl.u32 %v374, 7
      %v376 = vsub.s32 0, %v375
      %v377 = vrot.slane %v372, %v376
      %v379 = vmul.f32 %v318, %v377
      %v380 = vmul.f32 %v319, %v377
      %v381 = vmul.f32 %v320, %v377
      %v382 = vmul.f32 %v321, %v377
      %v383 = vmul.f32 %v322, %v377
      %v384 = vmul.f32 %v323, %v377
      %v385 = vmul.f32 %v324, %v377
      %v386 = vmul.f32 %v325, %v377
      %v387 = vmul.f32 %v326, %v377
      %v388 = vmul.f32 %v327, %v377
      %v389 = vmul.f32 %v328, %v377
      %v390 = vmul.f32 %v329, %v377
      %v391 = vmul.f32 %v330, %v377
      %v392 = vmul.f32 %v331, %v377
      %v393 = vmul.f32 %v332, %v377
      %v394 = vmul.f32 %v333, %v377
      %v395 = vmul.f32 %v334, %v377
      %v396 = vmul.f32 %v335, %v377
      %v397 = vmul.f32 %v336, %v377
      %v398 = vmul.f32 %v337, %v377
      %v399 = vmul.f32 %v338, %v377
      %v400 = vmul.f32 %v339, %v377
      %v401 = vmul.f32 %v340, %v377
      %v402 = vmul.f32 %v341, %v377
      %v403 = vmul.f32 %v342, %v377
      %v404 = vmul.f32 %v343, %v377
      %v405 = vmul.f32 %v344, %v377
      %v406 = vmul.f32 %v345, %v377
      %v407 = vmul.f32 %v346, %v377
      %v408 = vmul.f32 %v347, %v377
      %v409 = vmul.f32 %v348, %v377
      %v410 = vmul.f32 %v349, %v377
      %v411 = vmul.f32 %v350, %v377
      %v412 = vmul.f32 %v351, %v377
      %v413 = vmul.f32 %v352, %v377
      %v414 = vmul.f32 %v353, %v377
      %v415 = vmul.f32 %v354, %v377
      %v416 = vmul.f32 %v355, %v377
      %v417 = vmul.f32 %v356, %v377
      %v418 = vmul.f32 %v357, %v377
      %v419 = vmul.f32 %v358, %v377
      %v420 = vmul.f32 %v359, %v377
      %v421 = vmul.f32 %v360, %v377
      %v422 = vmul.f32 %v361, %v377
      %v423 = vmul.f32 %v362, %v377
      %v424 = vmul.f32 %v363, %v377
      %v425 = vmul.f32 %v364, %v377
      %v426 = vmul.f32 %v365, %v377
      %v427 = vmul.f32 %v366, %v377
      %v428 = vmul.f32 %v367, %v377
      %v429 = vmul.f32 %v368, %v377
      %v430 = vmul.f32 %v369, %v377
      %v431 = vmul.f32 %v370, %v377
      %v432 = vmul.f32 %v371, %v377
      %v433 = vld [vmem:[%s2] sm:$0x1]
      %v435 = vlaneseq
      %v436 = vshrl.u32 %v435, 7
      %v437 = vsub.s32 0, %v436
      %v438 = vrot.slane %v433, %v437
      %v440 = vadd.f32 %v379, %v438
      %v441 = vadd.f32 %v380, %v438
      %v442 = vadd.f32 %v381, %v438
      %v443 = vadd.f32 %v382, %v438
      %v444 = vadd.f32 %v383, %v438
      %v445 = vadd.f32 %v384, %v438
      %v446 = vadd.f32 %v385, %v438
      %v447 = vadd.f32 %v386, %v438
      %v448 = vadd.f32 %v387, %v438
      %v449 = vadd.f32 %v388, %v438
      %v450 = vadd.f32 %v389, %v438
      %v451 = vadd.f32 %v390, %v438
      %v452 = vadd.f32 %v391, %v438
      %v453 = vadd.f32 %v392, %v438
      %v454 = vadd.f32 %v393, %v438
      %v455 = vadd.f32 %v394, %v438
      %v456 = vadd.f32 %v395, %v438
      %v457 = vadd.f32 %v396, %v438
      %v458 = vadd.f32 %v397, %v438
      %v459 = vadd.f32 %v398, %v438
      %v460 = vadd.f32 %v399, %v438
      %v461 = vadd.f32 %v400, %v438
      %v462 = vadd.f32 %v401, %v438
      %v463 = vadd.f32 %v402, %v438
      %v464 = vadd.f32 %v403, %v438
      %v465 = vadd.f32 %v404, %v438
      %v466 = vadd.f32 %v405, %v438
      %v467 = vadd.f32 %v406, %v438
      %v468 = vadd.f32 %v407, %v438
      %v469 = vadd.f32 %v408, %v438
      %v470 = vadd.f32 %v409, %v438
      %v471 = vadd.f32 %v410, %v438
      %v472 = vadd.f32 %v411, %v438
      %v473 = vadd.f32 %v412, %v438
      %v474 = vadd.f32 %v413, %v438
      %v475 = vadd.f32 %v414, %v438
      %v476 = vadd.f32 %v415, %v438
      %v477 = vadd.f32 %v416, %v438
      %v478 = vadd.f32 %v417, %v438
      %v479 = vadd.f32 %v418, %v438
      %v480 = vadd.f32 %v419, %v438
      %v481 = vadd.f32 %v420, %v438
      %v482 = vadd.f32 %v421, %v438
      %v483 = vadd.f32 %v422, %v438
      %v484 = vadd.f32 %v423, %v438
      %v485 = vadd.f32 %v424, %v438
      %v486 = vadd.f32 %v425, %v438
      %v487 = vadd.f32 %v426, %v438
      %v488 = vadd.f32 %v427, %v438
      %v489 = vadd.f32 %v428, %v438
      %v490 = vadd.f32 %v429, %v438
      %v491 = vadd.f32 %v430, %v438
      %v492 = vadd.f32 %v431, %v438
      %v493 = vadd.f32 %v432, %v438
      %v494 = vmax.f32 %v440, 0.0
      %v495 = vmax.f32 %v441, 0.0
      %v496 = vmax.f32 %v442, 0.0
      %v497 = vmax.f32 %v443, 0.0
      %v498 = vmax.f32 %v444, 0.0
      %v499 = vmax.f32 %v445, 0.0
      %v500 = vmax.f32 %v446, 0.0
      %v501 = vmax.f32 %v447, 0.0
      %v502 = vmax.f32 %v448, 0.0
      %v503 = vmax.f32 %v449, 0.0
      %v504 = vmax.f32 %v450, 0.0
      %v505 = vmax.f32 %v451, 0.0
      %v506 = vmax.f32 %v452, 0.0
      %v507 = vmax.f32 %v453, 0.0
      %v508 = vmax.f32 %v454, 0.0
      %v509 = vmax.f32 %v455, 0.0
      %v510 = vmax.f32 %v456, 0.0
      %v511 = vmax.f32 %v457, 0.0
      %v512 = vmax.f32 %v458, 0.0
      %v513 = vmax.f32 %v459, 0.0
      %v514 = vmax.f32 %v460, 0.0
      %v515 = vmax.f32 %v461, 0.0
      %v516 = vmax.f32 %v462, 0.0
      %v517 = vmax.f32 %v463, 0.0
      %v518 = vmax.f32 %v464, 0.0
      %v519 = vmax.f32 %v465, 0.0
      %v520 = vmax.f32 %v466, 0.0
      %v521 = vmax.f32 %v467, 0.0
      %v522 = vmax.f32 %v468, 0.0
      %v523 = vmax.f32 %v469, 0.0
      %v524 = vmax.f32 %v470, 0.0
      %v525 = vmax.f32 %v471, 0.0
      %v526 = vmax.f32 %v472, 0.0
      %v527 = vmax.f32 %v473, 0.0
      %v528 = vmax.f32 %v474, 0.0
      %v529 = vmax.f32 %v475, 0.0
      %v530 = vmax.f32 %v476, 0.0
      %v531 = vmax.f32 %v477, 0.0
      %v532 = vmax.f32 %v478, 0.0
      %v533 = vmax.f32 %v479, 0.0
      %v534 = vmax.f32 %v480, 0.0
      %v535 = vmax.f32 %v481, 0.0
      %v536 = vmax.f32 %v482, 0.0
      %v537 = vmax.f32 %v483, 0.0
      %v538 = vmax.f32 %v484, 0.0
      %v539 = vmax.f32 %v485, 0.0
      %v540 = vmax.f32 %v486, 0.0
      %v541 = vmax.f32 %v487, 0.0
      %v542 = vmax.f32 %v488, 0.0
      %v543 = vmax.f32 %v489, 0.0
      %v544 = vmax.f32 %v490, 0.0
      %v545 = vmax.f32 %v491, 0.0
      %v546 = vmax.f32 %v492, 0.0
      %v547 = vmax.f32 %v493, 0.0
      %v548 = vld [vmem:[%s3] sm:$0xff]
      %v549 = vld [vmem:[%s3 + $0x8] sm:$0xff]
      %v550 = vld [vmem:[%s3 + $0x10] sm:$0x3]
      %v551 = vld [vmem:[%s3 + $0x18] sm:$0xff]
      %v552 = vld [vmem:[%s3 + $0x20] sm:$0xff]
      %v553 = vld [vmem:[%s3 + $0x28] sm:$0x3]
      %v554 = vld [vmem:[%s3 + $0x30] sm:$0xff]
      %v555 = vld [vmem:[%s3 + $0x38] sm:$0xff]
      %v556 = vld [vmem:[%s3 + $0x40] sm:$0x3]
      %v557 = vld [vmem:[%s3 + $0x48] sm:$0xff]
      %v558 = vld [vmem:[%s3 + $0x50] sm:$0xff]
      %v559 = vld [vmem:[%s3 + $0x58] sm:$0x3]
      %v560 = vld [vmem:[%s3 + $0x60] sm:$0xff]
      %v561 = vld [vmem:[%s3 + $0x68] sm:$0xff]
      %v562 = vld [vmem:[%s3 + $0x70] sm:$0x3]
      %v563 = vld [vmem:[%s3 + $0x78] sm:$0xff]
      %v564 = vld [vmem:[%s3 + $0x80] sm:$0xff]
      %v565 = vld [vmem:[%s3 + $0x88] sm:$0x3]
      %v566 = vld [vmem:[%s3 + $0x90] sm:$0xff]
      %v567 = vld [vmem:[%s3 + $0x98] sm:$0xff]
      %v568 = vld [vmem:[%s3 + $0xa0] sm:$0x3]
      %v569 = vld [vmem:[%s3 + $0xa8] sm:$0xff]
      %v570 = vld [vmem:[%s3 + $0xb0] sm:$0xff]
      %v571 = vld [vmem:[%s3 + $0xb8] sm:$0x3]
      %v572 = vld [vmem:[%s3 + $0xc0] sm:$0xff]
      %v573 = vld [vmem:[%s3 + $0xc8] sm:$0xff]
      %v574 = vld [vmem:[%s3 + $0xd0] sm:$0x3]
      %v575 = vld [vmem:[%s3 + $0xd8] sm:$0xff]
      %v576 = vld [vmem:[%s3 + $0xe0] sm:$0xff]
      %v577 = vld [vmem:[%s3 + $0xe8] sm:$0x3]
      %v578 = vld [vmem:[%s3 + $0xf0] sm:$0xff]
      %v579 = vld [vmem:[%s3 + $0xf8] sm:$0xff]
      %v580 = vld [vmem:[%s3 + $0x100] sm:$0x3]
      %v581 = vld [vmem:[%s3 + $0x108] sm:$0xff]
      %v582 = vld [vmem:[%s3 + $0x110] sm:$0xff]
      %v583 = vld [vmem:[%s3 + $0x118] sm:$0x3]
      %v584 = vld [vmem:[%s3 + $0x120] sm:$0xff]
      %v585 = vld [vmem:[%s3 + $0x128] sm:$0xff]
      %v586 = vld [vmem:[%s3 + $0x130] sm:$0x3]
      %v587 = vld [vmem:[%s3 + $0x138] sm:$0xff]
      %v588 = vld [vmem:[%s3 + $0x140] sm:$0xff]
      %v589 = vld [vmem:[%s3 + $0x148] sm:$0x3]
      %v590 = vld [vmem:[%s3 + $0x150] sm:$0xff]
      %v591 = vld [vmem:[%s3 + $0x158] sm:$0xff]
      %v592 = vld [vmem:[%s3 + $0x160] sm:$0x3]
      %v593 = vld [vmem:[%s3 + $0x168] sm:$0xff]
      %v594 = vld [vmem:[%s3 + $0x170] sm:$0xff]
      %v595 = vld [vmem:[%s3 + $0x178] sm:$0x3]
      %v596 = vld [vmem:[%s3 + $0x180] sm:$0xff]
      %v597 = vld [vmem:[%s3 + $0x188] sm:$0xff]
      %v598 = vld [vmem:[%s3 + $0x190] sm:$0x3]
      %v599 = vld [vmem:[%s3 + $0x198] sm:$0xff]
      %v600 = vld [vmem:[%s3 + $0x1a0] sm:$0xff]
      %v601 = vld [vmem:[%s3 + $0x1a8] sm:$0x3]
      %603 = vset.pattern.permute.xlu0 0
      %604 = vperm.xlu0 %603, %v548
      %v605 = vpop.permute.xlu0 %604
      %608 = vset.pattern.permute.xlu0 0
      %609 = vperm.xlu0 %608, %v549
      %v610 = vpop.permute.xlu0 %609
      %613 = vset.pattern.permute.xlu0 0
      %614 = vperm.xlu0 %613, %v550
      %v615 = vpop.permute.xlu0 %614
      %618 = vset.pattern.permute.xlu0 0
      %619 = vperm.xlu0 %618, %v551
      %v620 = vpop.permute.xlu0 %619
      %623 = vset.pattern.permute.xlu0 0
      %624 = vperm.xlu0 %623, %v552
      %v625 = vpop.permute.xlu0 %624
      %628 = vset.pattern.permute.xlu0 0
      %629 = vperm.xlu0 %628, %v553
      %v630 = vpop.permute.xlu0 %629
      %633 = vset.pattern.permute.xlu0 0
      %634 = vperm.xlu0 %633, %v554
      %v635 = vpop.permute.xlu0 %634
      %638 = vset.pattern.permute.xlu0 0
      %639 = vperm.xlu0 %638, %v555
      %v640 = vpop.permute.xlu0 %639
      %643 = vset.pattern.permute.xlu0 0
      %644 = vperm.xlu0 %643, %v556
      %v645 = vpop.permute.xlu0 %644
      %648 = vset.pattern.permute.xlu0 0
      %649 = vperm.xlu0 %648, %v557
      %v650 = vpop.permute.xlu0 %649
      %653 = vset.pattern.permute.xlu0 0
      %654 = vperm.xlu0 %653, %v558
      %v655 = vpop.permute.xlu0 %654
      %658 = vset.pattern.permute.xlu0 0
      %659 = vperm.xlu0 %658, %v559
      %v660 = vpop.permute.xlu0 %659
      %663 = vset.pattern.permute.xlu0 0
      %664 = vperm.xlu0 %663, %v560
      %v665 = vpop.permute.xlu0 %664
      %668 = vset.pattern.permute.xlu0 0
      %669 = vperm.xlu0 %668, %v561
      %v670 = vpop.permute.xlu0 %669
      %673 = vset.pattern.permute.xlu0 0
      %674 = vperm.xlu0 %673, %v562
      %v675 = vpop.permute.xlu0 %674
      %678 = vset.pattern.permute.xlu0 0
      %679 = vperm.xlu0 %678, %v563
      %v680 = vpop.permute.xlu0 %679
      %683 = vset.pattern.permute.xlu0 0
      %684 = vperm.xlu0 %683, %v564
      %v685 = vpop.permute.xlu0 %684
      %688 = vset.pattern.permute.xlu0 0
      %689 = vperm.xlu0 %688, %v565
      %v690 = vpop.permute.xlu0 %689
      %693 = vset.pattern.permute.xlu0 0
      %694 = vperm.xlu0 %693, %v566
      %v695 = vpop.permute.xlu0 %694
      %698 = vset.pattern.permute.xlu0 0
      %699 = vperm.xlu0 %698, %v567
      %v700 = vpop.permute.xlu0 %699
      %703 = vset.pattern.permute.xlu0 0
      %704 = vperm.xlu0 %703, %v568
      %v705 = vpop.permute.xlu0 %704
      %708 = vset.pattern.permute.xlu0 0
      %709 = vperm.xlu0 %708, %v569
      %v710 = vpop.permute.xlu0 %709
      %713 = vset.pattern.permute.xlu0 0
      %714 = vperm.xlu0 %713, %v570
      %v715 = vpop.permute.xlu0 %714
      %718 = vset.pattern.permute.xlu0 0
      %719 = vperm.xlu0 %718, %v571
      %v720 = vpop.permute.xlu0 %719
      %723 = vset.pattern.permute.xlu0 0
      %724 = vperm.xlu0 %723, %v572
      %v725 = vpop.permute.xlu0 %724
      %728 = vset.pattern.permute.xlu0 0
      %729 = vperm.xlu0 %728, %v573
      %v730 = vpop.permute.xlu0 %729
      %733 = vset.pattern.permute.xlu0 0
      %734 = vperm.xlu0 %733, %v574
      %v735 = vpop.permute.xlu0 %734
      %738 = vset.pattern.permute.xlu0 0
      %739 = vperm.xlu0 %738, %v575
      %v740 = vpop.permute.xlu0 %739
      %743 = vset.pattern.permute.xlu0 0
      %744 = vperm.xlu0 %743, %v576
      %v745 = vpop.permute.xlu0 %744
      %748 = vset.pattern.permute.xlu0 0
      %749 = vperm.xlu0 %748, %v577
      %v750 = vpop.permute.xlu0 %749
      %753 = vset.pattern.permute.xlu0 0
      %754 = vperm.xlu0 %753, %v578
      %v755 = vpop.permute.xlu0 %754
      %758 = vset.pattern.permute.xlu0 0
      %759 = vperm.xlu0 %758, %v579
      %v760 = vpop.permute.xlu0 %759
      %763 = vset.pattern.permute.xlu0 0
      %764 = vperm.xlu0 %763, %v580
      %v765 = vpop.permute.xlu0 %764
      %768 = vset.pattern.permute.xlu0 0
      %769 = vperm.xlu0 %768, %v581
      %v770 = vpop.permute.xlu0 %769
      %773 = vset.pattern.permute.xlu0 0
      %774 = vperm.xlu0 %773, %v582
      %v775 = vpop.permute.xlu0 %774
      %778 = vset.pattern.permute.xlu0 0
      %779 = vperm.xlu0 %778, %v583
      %v780 = vpop.permute.xlu0 %779
      %783 = vset.pattern.permute.xlu0 0
      %784 = vperm.xlu0 %783, %v584
      %v785 = vpop.permute.xlu0 %784
      %788 = vset.pattern.permute.xlu0 0
      %789 = vperm.xlu0 %788, %v585
      %v790 = vpop.permute.xlu0 %789
      %793 = vset.pattern.permute.xlu0 0
      %794 = vperm.xlu0 %793, %v586
      %v795 = vpop.permute.xlu0 %794
      %798 = vset.pattern.permute.xlu0 0
      %799 = vperm.xlu0 %798, %v587
      %v800 = vpop.permute.xlu0 %799
      %803 = vset.pattern.permute.xlu0 0
      %804 = vperm.xlu0 %803, %v588
      %v805 = vpop.permute.xlu0 %804
      %808 = vset.pattern.permute.xlu0 0
      %809 = vperm.xlu0 %808, %v589
      %v810 = vpop.permute.xlu0 %809
      %813 = vset.pattern.permute.xlu0 0
      %814 = vperm.xlu0 %813, %v590
      %v815 = vpop.permute.xlu0 %814
      %818 = vset.pattern.permute.xlu0 0
      %819 = vperm.xlu0 %818, %v591
      %v820 = vpop.permute.xlu0 %819
      %823 = vset.pattern.permute.xlu0 0
      %824 = vperm.xlu0 %823, %v592
      %v825 = vpop.permute.xlu0 %824
      %828 = vset.pattern.permute.xlu0 0
      %829 = vperm.xlu0 %828, %v593
      %v830 = vpop.permute.xlu0 %829
      %833 = vset.pattern.permute.xlu0 0
      %834 = vperm.xlu0 %833, %v594
      %v835 = vpop.permute.xlu0 %834
      %838 = vset.pattern.permute.xlu0 0
      %839 = vperm.xlu0 %838, %v595
      %v840 = vpop.permute.xlu0 %839
      %843 = vset.pattern.permute.xlu0 0
      %844 = vperm.xlu0 %843, %v596
      %v845 = vpop.permute.xlu0 %844
      %848 = vset.pattern.permute.xlu0 0
      %849 = vperm.xlu0 %848, %v597
      %v850 = vpop.permute.xlu0 %849
      %853 = vset.pattern.permute.xlu0 0
      %854 = vperm.xlu0 %853, %v598
      %v855 = vpop.permute.xlu0 %854
      %858 = vset.pattern.permute.xlu0 0
      %859 = vperm.xlu0 %858, %v599
      %v860 = vpop.permute.xlu0 %859
      %863 = vset.pattern.permute.xlu0 0
      %864 = vperm.xlu0 %863, %v600
      %v865 = vpop.permute.xlu0 %864
      %868 = vset.pattern.permute.xlu0 0
      %869 = vperm.xlu0 %868, %v601
      %v870 = vpop.permute.xlu0 %869
      %v872 = vmul.f32 %v494, %v605
      %v873 = vmul.f32 %v495, %v610
      %v874 = vmul.f32 %v496, %v615
      %v875 = vmul.f32 %v497, %v620
      %v876 = vmul.f32 %v498, %v625
      %v877 = vmul.f32 %v499, %v630
      %v878 = vmul.f32 %v500, %v635
      %v879 = vmul.f32 %v501, %v640
      %v880 = vmul.f32 %v502, %v645
      %v881 = vmul.f32 %v503, %v650
      %v882 = vmul.f32 %v504, %v655
      %v883 = vmul.f32 %v505, %v660
      %v884 = vmul.f32 %v506, %v665
      %v885 = vmul.f32 %v507, %v670
      %v886 = vmul.f32 %v508, %v675
      %v887 = vmul.f32 %v509, %v680
      %v888 = vmul.f32 %v510, %v685
      %v889 = vmul.f32 %v511, %v690
      %v890 = vmul.f32 %v512, %v695
      %v891 = vmul.f32 %v513, %v700
      %v892 = vmul.f32 %v514, %v705
      %v893 = vmul.f32 %v515, %v710
      %v894 = vmul.f32 %v516, %v715
      %v895 = vmul.f32 %v517, %v720
      %v896 = vmul.f32 %v518, %v725
      %v897 = vmul.f32 %v519, %v730
      %v898 = vmul.f32 %v520, %v735
      %v899 = vmul.f32 %v521, %v740
      %v900 = vmul.f32 %v522, %v745
      %v901 = vmul.f32 %v523, %v750
      %v902 = vmul.f32 %v524, %v755
      %v903 = vmul.f32 %v525, %v760
      %v904 = vmul.f32 %v526, %v765
      %v905 = vmul.f32 %v527, %v770
      %v906 = vmul.f32 %v528, %v775
      %v907 = vmul.f32 %v529, %v780
      %v908 = vmul.f32 %v530, %v785
      %v909 = vmul.f32 %v531, %v790
      %v910 = vmul.f32 %v532, %v795
      %v911 = vmul.f32 %v533, %v800
      %v912 = vmul.f32 %v534, %v805
      %v913 = vmul.f32 %v535, %v810
      %v914 = vmul.f32 %v536, %v815
      %v915 = vmul.f32 %v537, %v820
      %v916 = vmul.f32 %v538, %v825
      %v917 = vmul.f32 %v539, %v830
      %v918 = vmul.f32 %v540, %v835
      %v919 = vmul.f32 %v541, %v840
      %v920 = vmul.f32 %v542, %v845
      %v921 = vmul.f32 %v543, %v850
      %v922 = vmul.f32 %v544, %v855
      %v923 = vmul.f32 %v545, %v860
      %v924 = vmul.f32 %v546, %v865
      %v925 = vmul.f32 %v547, %v870
      %v926 = vpack.c.bf16 %v873, %v872
      %v927 = vpack.c.bf16 %v876, %v875
      %v928 = vpack.c.bf16 %v879, %v878
      %v929 = vpack.c.bf16 %v882, %v881
      %v930 = vpack.c.bf16 %v885, %v884
      %v931 = vpack.c.bf16 %v888, %v887
      %v932 = vpack.c.bf16 %v891, %v890
      %v933 = vpack.c.bf16 %v894, %v893
      %v934 = vpack.c.bf16 %v897, %v896
      %v935 = vpack.c.bf16 %v900, %v899
      %v936 = vpack.c.bf16 %v903, %v902
      %v937 = vpack.c.bf16 %v906, %v905
      %v938 = vpack.c.bf16 %v909, %v908
      %v939 = vpack.c.bf16 %v912, %v911
      %v940 = vpack.c.bf16 %v915, %v914
      %v941 = vpack.c.bf16 %v918, %v917
      %v942 = vld [vmem:[%s4] sm:$0xf]
      %v943 = vld [vmem:[%s4 + $0x4] sm:$0xf]
      %v944 = vld [vmem:[%s4 + $0x8] sm:$0xf]
      %v945 = vld [vmem:[%s4 + $0xc] sm:$0xf]
      %v946 = vld [vmem:[%s4 + $0x10] sm:$0xf]
      %v947 = vld [vmem:[%s4 + $0x14] sm:$0xf]
      %v948 = vld [vmem:[%s4 + $0x18] sm:$0xf]
      %v949 = vld [vmem:[%s4 + $0x1c] sm:$0xf]
      %v950 = vld [vmem:[%s4 + $0x20] sm:$0xf]
      %v951 = vld [vmem:[%s4 + $0x24] sm:$0xf]
      %v952 = vld [vmem:[%s4 + $0x28] sm:$0xf]
      %v953 = vld [vmem:[%s4 + $0x2c] sm:$0xf]
      %v954 = vld [vmem:[%s4 + $0x30] sm:$0xf]
      %v955 = vld [vmem:[%s4 + $0x34] sm:$0xf]
      %v956 = vld [vmem:[%s4 + $0x38] sm:$0xf]
      %v957 = vld [vmem:[%s4 + $0x3c] sm:$0xf]
      %vm1006 = vcmask 1046528
      %v1007 = vrot.slane %v872, 1
      %v1008 = vrot.slane %v873, 1
      %v1009 = vsel %vm1006, %v1007, %v1008
      %v1010 = vrot.slane %v874, 1
      %v1011 = vsel %vm1006, %v1008, %v1010
      %v1012 = vrot.slane %v875, 1
      %v1013 = vrot.slane %v876, 1
      %v1014 = vsel %vm1006, %v1012, %v1013
      %v1015 = vrot.slane %v877, 1
      %v1016 = vsel %vm1006, %v1013, %v1015
      %v1017 = vrot.slane %v878, 1
      %v1018 = vrot.slane %v879, 1
      %v1019 = vsel %vm1006, %v1017, %v1018
      %v1020 = vrot.slane %v880, 1
      %v1021 = vsel %vm1006, %v1018, %v1020
      %v1022 = vrot.slane %v881, 1
      %v1023 = vrot.slane %v882, 1
      %v1024 = vsel %vm1006, %v1022, %v1023
      %v1025 = vrot.slane %v883, 1
      %v1026 = vsel %vm1006, %v1023, %v1025
      %v1027 = vrot.slane %v884, 1
      %v1028 = vrot.slane %v885, 1
      %v1029 = vsel %vm1006, %v1027, %v1028
      %v1030 = vrot.slane %v886, 1
      %v1031 = vsel %vm1006, %v1028, %v1030
      %v1032 = vrot.slane %v887, 1
      %v1033 = vrot.slane %v888, 1
      %v1034 = vsel %vm1006, %v1032, %v1033
      %v1035 = vrot.slane %v889, 1
      %v1036 = vsel %vm1006, %v1033, %v1035
      %v1037 = vrot.slane %v890, 1
      %v1038 = vrot.slane %v891, 1
      %v1039 = vsel %vm1006, %v1037, %v1038
      %v1040 = vrot.slane %v892, 1
      %v1041 = vsel %vm1006, %v1038, %v1040
      %v1042 = vrot.slane %v893, 1
      %v1043 = vrot.slane %v894, 1
      %v1044 = vsel %vm1006, %v1042, %v1043
      %v1045 = vrot.slane %v895, 1
      %v1046 = vsel %vm1006, %v1043, %v1045
      %v1047 = vrot.slane %v896, 1
      %v1048 = vrot.slane %v897, 1
      %v1049 = vsel %vm1006, %v1047, %v1048
      %v1050 = vrot.slane %v898, 1
      %v1051 = vsel %vm1006, %v1048, %v1050
      %v1052 = vrot.slane %v899, 1
      %v1053 = vrot.slane %v900, 1
      %v1054 = vsel %vm1006, %v1052, %v1053
      %v1055 = vrot.slane %v901, 1
      %v1056 = vsel %vm1006, %v1053, %v1055
      %v1057 = vrot.slane %v902, 1
      %v1058 = vrot.slane %v903, 1
      %v1059 = vsel %vm1006, %v1057, %v1058
      %v1060 = vrot.slane %v904, 1
      %v1061 = vsel %vm1006, %v1058, %v1060
      %v1062 = vrot.slane %v905, 1
      %v1063 = vrot.slane %v906, 1
      %v1064 = vsel %vm1006, %v1062, %v1063
      %v1065 = vrot.slane %v907, 1
      %v1066 = vsel %vm1006, %v1063, %v1065
      %v1067 = vrot.slane %v908, 1
      %v1068 = vrot.slane %v909, 1
      %v1069 = vsel %vm1006, %v1067, %v1068
      %v1070 = vrot.slane %v910, 1
      %v1071 = vsel %vm1006, %v1068, %v1070
      %v1072 = vrot.slane %v911, 1
      %v1073 = vrot.slane %v912, 1
      %v1074 = vsel %vm1006, %v1072, %v1073
      %v1075 = vrot.slane %v913, 1
      %v1076 = vsel %vm1006, %v1073, %v1075
      %v1077 = vrot.slane %v914, 1
      %v1078 = vrot.slane %v915, 1
      %v1079 = vsel %vm1006, %v1077, %v1078
      %v1080 = vrot.slane %v916, 1
      %v1081 = vsel %vm1006, %v1078, %v1080
      %v1082 = vrot.slane %v917, 1
      %v1083 = vrot.slane %v918, 1
      %v1084 = vsel %vm1006, %v1082, %v1083
      %v1085 = vrot.slane %v919, 1
      %v1086 = vsel %vm1006, %v1083, %v1085
      %v1119 = vpack.c.bf16 %v1011, %v1009
      %v1120 = vpack.c.bf16 %v1016, %v1014
      %v1121 = vpack.c.bf16 %v1021, %v1019
      %v1122 = vpack.c.bf16 %v1026, %v1024
      %v1123 = vpack.c.bf16 %v1031, %v1029
      %v1124 = vpack.c.bf16 %v1036, %v1034
      %v1125 = vpack.c.bf16 %v1041, %v1039
      %v1126 = vpack.c.bf16 %v1046, %v1044
      %v1127 = vpack.c.bf16 %v1051, %v1049
      %v1128 = vpack.c.bf16 %v1056, %v1054
      %v1129 = vpack.c.bf16 %v1061, %v1059
      %v1130 = vpack.c.bf16 %v1066, %v1064
      %v1131 = vpack.c.bf16 %v1071, %v1069
      %v1132 = vpack.c.bf16 %v1076, %v1074
      %v1133 = vpack.c.bf16 %v1081, %v1079
      %v1134 = vpack.c.bf16 %v1086, %v1084
      %s1135 = scalar_lea.vmem %s4, 64
      %v1136 = vld [vmem:[%s1135] sm:$0xf]
      %v1137 = vld [vmem:[%s1135 + $0x4] sm:$0xf]
      %v1138 = vld [vmem:[%s1135 + $0x8] sm:$0xf]
      %v1139 = vld [vmem:[%s1135 + $0xc] sm:$0xf]
      %v1140 = vld [vmem:[%s1135 + $0x10] sm:$0xf]
      %v1141 = vld [vmem:[%s1135 + $0x14] sm:$0xf]
      %v1142 = vld [vmem:[%s1135 + $0x18] sm:$0xf]
      %v1143 = vld [vmem:[%s1135 + $0x1c] sm:$0xf]
      %v1144 = vld [vmem:[%s1135 + $0x20] sm:$0xf]
      %v1145 = vld [vmem:[%s1135 + $0x24] sm:$0xf]
      %v1146 = vld [vmem:[%s1135 + $0x28] sm:$0xf]
      %v1147 = vld [vmem:[%s1135 + $0x2c] sm:$0xf]
      %v1148 = vld [vmem:[%s1135 + $0x30] sm:$0xf]
      %v1149 = vld [vmem:[%s1135 + $0x34] sm:$0xf]
      %v1150 = vld [vmem:[%s1135 + $0x38] sm:$0xf]
      %v1151 = vld [vmem:[%s1135 + $0x3c] sm:$0xf]
      %v1168 = vunpack.c.l.b16 %v1136
      %v1169 = vunpack.c.l.b16 %v1137
      %v1170 = vunpack.c.l.b16 %v1138
      %v1171 = vunpack.c.l.b16 %v1139
      %v1172 = vunpack.c.l.b16 %v1140
      %v1173 = vunpack.c.l.b16 %v1141
      %v1174 = vunpack.c.l.b16 %v1142
      %v1175 = vunpack.c.l.b16 %v1143
      %v1176 = vunpack.c.l.b16 %v1144
      %v1177 = vunpack.c.l.b16 %v1145
      %v1178 = vunpack.c.l.b16 %v1146
      %v1179 = vunpack.c.l.b16 %v1147
      %v1180 = vunpack.c.l.b16 %v1148
      %v1181 = vunpack.c.l.b16 %v1149
      %v1182 = vunpack.c.l.b16 %v1150
      %v1183 = vunpack.c.l.b16 %v1151
      %v1184 = vpack.c.b16 %v1169, %v1168
      %v1185 = vpack.c.b16 %v1171, %v1170
      %v1186 = vpack.c.b16 %v1173, %v1172
      %v1187 = vpack.c.b16 %v1175, %v1174
      %v1188 = vpack.c.b16 %v1177, %v1176
      %v1189 = vpack.c.b16 %v1179, %v1178
      %v1190 = vpack.c.b16 %v1181, %v1180
      %v1191 = vpack.c.b16 %v1183, %v1182
      %1200 = vmatprep.subr.bf16.mxu0 0
      %1201 = vmatpush1.bf16.msra.mxu0 %v1191
      %1202 = vmatprep.subr.bf16.mxu0 0
      %1203 = vmatpush1.bf16.msra.mxu0 %v1190
      %1204 = vmatprep.subr.bf16.mxu0 0
      %1205 = vmatpush1.bf16.msra.mxu0 %v1189
      %1206 = vmatprep.subr.bf16.mxu0 0
      %1207 = vmatpush1.bf16.msra.mxu0 %v1188
      %1208 = vmatprep.subr.bf16.mxu0 0
      %1209 = vmatpush1.bf16.msra.mxu0 %v1187
      %1210 = vmatprep.subr.bf16.mxu0 0
      %1211 = vmatpush1.bf16.msra.mxu0 %v1186
      %1212 = vmatprep.subr.bf16.mxu0 0
      %1213 = vmatpush1.bf16.msra.mxu0 %v1185
      %1214 = vmatprep.subr.bf16.mxu0 0
      %1215 = vmatpush1.bf16.msra.mxu0 %v1184
      %1216 = vmatprep.subr.bf16.mxu0 0
      %1217 = vmatpush2.bf16.msra.mxu0 0
      %1218 = vmatprep.subr.bf16.mxu0 0
      %1219 = vmatpush2.bf16.msra.mxu0 0
      %1220 = vmatprep.subr.bf16.mxu0 0
      %1221 = vmatpush2.bf16.msra.mxu0 0
      %1222 = vmatprep.subr.bf16.mxu0 0
      %1223 = vmatpush2.bf16.msra.mxu0 0
      %1224 = vmatprep.subr.bf16.mxu0 0
      %1225 = vmatpush2.bf16.msra.mxu0 0
      %1226 = vmatprep.subr.bf16.mxu0 0
      %1227 = vmatpush2.bf16.msra.mxu0 0
      %1228 = vmatprep.subr.bf16.mxu0 0
      %1229 = vmatpush2.bf16.msra.mxu0 0
      %1230 = vmatprep.subr.bf16.mxu0 0
      %1231 = vmatpush2.bf16.msra.mxu0 0
      %1232 = vmatprep.mubr.bf16.mxu0 0
      %1233 = vmatmul.mubr.bf16.gmra.mxu0 %v1119
      %v1234 = vpop.f32.mrf.mxu0
      %v1235 = vadd.f32 0.0, %v1234
      %v1236 = vpop.f32.mrf.mxu0
      %v1237 = vpop.f32.mrf.mxu0
      %v1238 = vadd.f32 0.0, %v1237
      %v1239 = vpop.f32.mrf.mxu0
      %1240 = vmatprep.mubr.bf16.mxu0 0
      %1241 = vmatmul.mubr.bf16.gmra.mxu0 %v1120
      %v1242 = vpop.f32.mrf.mxu0
      %v1243 = vadd.f32 0.0, %v1242
      %v1244 = vpop.f32.mrf.mxu0
      %v1245 = vpop.f32.mrf.mxu0
      %v1246 = vadd.f32 0.0, %v1245
      %v1247 = vpop.f32.mrf.mxu0
      %1248 = vmatprep.mubr.bf16.mxu0 0
      %1249 = vmatmul.mubr.bf16.gmra.mxu0 %v1121
      %v1250 = vpop.f32.mrf.mxu0
      %v1251 = vadd.f32 0.0, %v1250
      %v1252 = vpop.f32.mrf.mxu0
      %v1253 = vpop.f32.mrf.mxu0
      %v1254 = vadd.f32 0.0, %v1253
      %v1255 = vpop.f32.mrf.mxu0
      %1256 = vmatprep.mubr.bf16.mxu0 0
      %1257 = vmatmul.mubr.bf16.gmra.mxu0 %v1122
      %v1258 = vpop.f32.mrf.mxu0
      %v1259 = vadd.f32 0.0, %v1258
      %v1260 = vpop.f32.mrf.mxu0
      %v1261 = vpop.f32.mrf.mxu0
      %v1262 = vadd.f32 0.0, %v1261
      %v1263 = vpop.f32.mrf.mxu0
      %1264 = vmatprep.mubr.bf16.mxu0 0
      %1265 = vmatmul.mubr.bf16.gmra.mxu0 %v1123
      %v1266 = vpop.f32.mrf.mxu0
      %v1267 = vadd.f32 0.0, %v1266
      %v1268 = vpop.f32.mrf.mxu0
      %v1269 = vpop.f32.mrf.mxu0
      %v1270 = vadd.f32 0.0, %v1269
      %v1271 = vpop.f32.mrf.mxu0
      %1272 = vmatprep.mubr.bf16.mxu0 0
      %1273 = vmatmul.mubr.bf16.gmra.mxu0 %v1124
      %v1274 = vpop.f32.mrf.mxu0
      %v1275 = vadd.f32 0.0, %v1274
      %v1276 = vpop.f32.mrf.mxu0
      %v1277 = vpop.f32.mrf.mxu0
      %v1278 = vadd.f32 0.0, %v1277
      %v1279 = vpop.f32.mrf.mxu0
      %1280 = vmatprep.mubr.bf16.mxu0 0
      %1281 = vmatmul.mubr.bf16.gmra.mxu0 %v1125
      %v1282 = vpop.f32.mrf.mxu0
      %v1283 = vadd.f32 0.0, %v1282
      %v1284 = vpop.f32.mrf.mxu0
      %v1285 = vpop.f32.mrf.mxu0
      %v1286 = vadd.f32 0.0, %v1285
      %v1287 = vpop.f32.mrf.mxu0
      %1288 = vmatprep.mubr.bf16.mxu0 0
      %1289 = vmatmul.mubr.bf16.gmra.mxu0 %v1126
      %v1290 = vpop.f32.mrf.mxu0
      %v1291 = vadd.f32 0.0, %v1290
      %v1292 = vpop.f32.mrf.mxu0
      %v1293 = vpop.f32.mrf.mxu0
      %v1294 = vadd.f32 0.0, %v1293
      %v1295 = vpop.f32.mrf.mxu0
      %1296 = vmatprep.mubr.bf16.mxu0 0
      %1297 = vmatmul.mubr.bf16.gmra.mxu0 %v1127
      %v1298 = vpop.f32.mrf.mxu0
      %v1299 = vadd.f32 0.0, %v1298
      %v1300 = vpop.f32.mrf.mxu0
      %v1301 = vpop.f32.mrf.mxu0
      %v1302 = vadd.f32 0.0, %v1301
      %v1303 = vpop.f32.mrf.mxu0
      %1304 = vmatprep.mubr.bf16.mxu0 0
      %1305 = vmatmul.mubr.bf16.gmra.mxu0 %v1128
      %v1306 = vpop.f32.mrf.mxu0
      %v1307 = vadd.f32 0.0, %v1306
      %v1308 = vpop.f32.mrf.mxu0
      %v1309 = vpop.f32.mrf.mxu0
      %v1310 = vadd.f32 0.0, %v1309
      %v1311 = vpop.f32.mrf.mxu0
      %1312 = vmatprep.mubr.bf16.mxu0 0
      %1313 = vmatmul.mubr.bf16.gmra.mxu0 %v1129
      %v1314 = vpop.f32.mrf.mxu0
      %v1315 = vadd.f32 0.0, %v1314
      %v1316 = vpop.f32.mrf.mxu0
      %v1317 = vpop.f32.mrf.mxu0
      %v1318 = vadd.f32 0.0, %v1317
      %v1319 = vpop.f32.mrf.mxu0
      %1320 = vmatprep.mubr.bf16.mxu0 0
      %1321 = vmatmul.mubr.bf16.gmra.mxu0 %v1130
      %v1322 = vpop.f32.mrf.mxu0
      %v1323 = vadd.f32 0.0, %v1322
      %v1324 = vpop.f32.mrf.mxu0
      %v1325 = vpop.f32.mrf.mxu0
      %v1326 = vadd.f32 0.0, %v1325
      %v1327 = vpop.f32.mrf.mxu0
      %1328 = vmatprep.mubr.bf16.mxu0 0
      %1329 = vmatmul.mubr.bf16.gmra.mxu0 %v1131
      %v1330 = vpop.f32.mrf.mxu0
      %v1331 = vadd.f32 0.0, %v1330
      %v1332 = vpop.f32.mrf.mxu0
      %v1333 = vpop.f32.mrf.mxu0
      %v1334 = vadd.f32 0.0, %v1333
      %v1335 = vpop.f32.mrf.mxu0
      %1336 = vmatprep.mubr.bf16.mxu0 0
      %1337 = vmatmul.mubr.bf16.gmra.mxu0 %v1132
      %v1338 = vpop.f32.mrf.mxu0
      %v1339 = vadd.f32 0.0, %v1338
      %v1340 = vpop.f32.mrf.mxu0
      %v1341 = vpop.f32.mrf.mxu0
      %v1342 = vadd.f32 0.0, %v1341
      %v1343 = vpop.f32.mrf.mxu0
      %1344 = vmatprep.mubr.bf16.mxu0 0
      %1345 = vmatmul.mubr.bf16.gmra.mxu0 %v1133
      %v1346 = vpop.f32.mrf.mxu0
      %v1347 = vadd.f32 0.0, %v1346
      %v1348 = vpop.f32.mrf.mxu0
      %v1349 = vpop.f32.mrf.mxu0
      %v1350 = vadd.f32 0.0, %v1349
      %v1351 = vpop.f32.mrf.mxu0
      %1352 = vmatprep.mubr.bf16.mxu0 0
      %1353 = vmatmul.mubr.bf16.gmra.mxu0 %v1134
      %v1354 = vpop.f32.mrf.mxu0
      %v1355 = vadd.f32 0.0, %v1354
      %v1356 = vpop.f32.mrf.mxu0
      %v1357 = vpop.f32.mrf.mxu0
      %v1358 = vadd.f32 0.0, %v1357
      %v1359 = vpop.f32.mrf.mxu0
      %1360 = vdwg.mxu0
      %v1377 = vunpack.c.l.b16 %v942
      %v1378 = vunpack.c.l.b16 %v943
      %v1379 = vunpack.c.l.b16 %v944
      %v1380 = vunpack.c.l.b16 %v945
      %v1381 = vunpack.c.l.b16 %v946
      %v1382 = vunpack.c.l.b16 %v947
      %v1383 = vunpack.c.l.b16 %v948
      %v1384 = vunpack.c.l.b16 %v949
      %v1385 = vunpack.c.l.b16 %v950
      %v1386 = vunpack.c.l.b16 %v951
      %v1387 = vunpack.c.l.b16 %v952
      %v1388 = vunpack.c.l.b16 %v953
      %v1389 = vunpack.c.l.b16 %v954
      %v1390 = vunpack.c.l.b16 %v955
      %v1391 = vunpack.c.l.b16 %v956
      %v1392 = vunpack.c.l.b16 %v957
      %v1393 = vpack.c.b16 %v1378, %v1377
      %v1394 = vpack.c.b16 %v1380, %v1379
      %v1395 = vpack.c.b16 %v1382, %v1381
      %v1396 = vpack.c.b16 %v1384, %v1383
      %v1397 = vpack.c.b16 %v1386, %v1385
      %v1398 = vpack.c.b16 %v1388, %v1387
      %v1399 = vpack.c.b16 %v1390, %v1389
      %v1400 = vpack.c.b16 %v1392, %v1391
      %1409 = vmatprep.subr.bf16.mxu0 0
      %1410 = vmatpush1.bf16.msra.mxu0 %v1400
      %1411 = vmatprep.subr.bf16.mxu0 0
      %1412 = vmatpush1.bf16.msra.mxu0 %v1399
      %1413 = vmatprep.subr.bf16.mxu0 0
      %1414 = vmatpush1.bf16.msra.mxu0 %v1398
      %1415 = vmatprep.subr.bf16.mxu0 0
      %1416 = vmatpush1.bf16.msra.mxu0 %v1397
      %1417 = vmatprep.subr.bf16.mxu0 0
      %1418 = vmatpush1.bf16.msra.mxu0 %v1396
      %1419 = vmatprep.subr.bf16.mxu0 0
      %1420 = vmatpush1.bf16.msra.mxu0 %v1395
      %1421 = vmatprep.subr.bf16.mxu0 0
      %1422 = vmatpush1.bf16.msra.mxu0 %v1394
      %1423 = vmatprep.subr.bf16.mxu0 0
      %1424 = vmatpush1.bf16.msra.mxu0 %v1393
      %1425 = vmatprep.subr.bf16.mxu0 0
      %1426 = vmatpush2.bf16.msra.mxu0 0
      %1427 = vmatprep.subr.bf16.mxu0 0
      %1428 = vmatpush2.bf16.msra.mxu0 0
      %1429 = vmatprep.subr.bf16.mxu0 0
      %1430 = vmatpush2.bf16.msra.mxu0 0
      %1431 = vmatprep.subr.bf16.mxu0 0
      %1432 = vmatpush2.bf16.msra.mxu0 0
      %1433 = vmatprep.subr.bf16.mxu0 0
      %1434 = vmatpush2.bf16.msra.mxu0 0
      %1435 = vmatprep.subr.bf16.mxu0 0
      %1436 = vmatpush2.bf16.msra.mxu0 0
      %1437 = vmatprep.subr.bf16.mxu0 0
      %1438 = vmatpush2.bf16.msra.mxu0 0
      %1439 = vmatprep.subr.bf16.mxu0 0
      %1440 = vmatpush2.bf16.msra.mxu0 0
      %1441 = vmatprep.mubr.bf16.mxu0 0
      %1442 = vmatmul.mubr.bf16.gmra.mxu0 %v926
      %v1443 = vpop.f32.mrf.mxu0
      %v1444 = vadd.f32 %v1235, %v1443
      %v1445 = vpop.f32.mrf.mxu0
      %v1446 = vpop.f32.mrf.mxu0
      %v1447 = vadd.f32 %v1238, %v1446
      %v1448 = vpop.f32.mrf.mxu0
      %1449 = vmatprep.mubr.bf16.mxu0 0
      %1450 = vmatmul.mubr.bf16.gmra.mxu0 %v927
      %v1451 = vpop.f32.mrf.mxu0
      %v1452 = vadd.f32 %v1243, %v1451
      %v1453 = vpop.f32.mrf.mxu0
      %v1454 = vpop.f32.mrf.mxu0
      %v1455 = vadd.f32 %v1246, %v1454
      %v1456 = vpop.f32.mrf.mxu0
      %1457 = vmatprep.mubr.bf16.mxu0 0
      %1458 = vmatmul.mubr.bf16.gmra.mxu0 %v928
      %v1459 = vpop.f32.mrf.mxu0
      %v1460 = vadd.f32 %v1251, %v1459
      %v1461 = vpop.f32.mrf.mxu0
      %v1462 = vpop.f32.mrf.mxu0
      %v1463 = vadd.f32 %v1254, %v1462
      %v1464 = vpop.f32.mrf.mxu0
      %1465 = vmatprep.mubr.bf16.mxu0 0
      %1466 = vmatmul.mubr.bf16.gmra.mxu0 %v929
      %v1467 = vpop.f32.mrf.mxu0
      %v1468 = vadd.f32 %v1259, %v1467
      %v1469 = vpop.f32.mrf.mxu0
      %v1470 = vpop.f32.mrf.mxu0
      %v1471 = vadd.f32 %v1262, %v1470
      %v1472 = vpop.f32.mrf.mxu0
      %1473 = vmatprep.mubr.bf16.mxu0 0
      %1474 = vmatmul.mubr.bf16.gmra.mxu0 %v930
      %v1475 = vpop.f32.mrf.mxu0
      %v1476 = vadd.f32 %v1267, %v1475
      %v1477 = vpop.f32.mrf.mxu0
      %v1478 = vpop.f32.mrf.mxu0
      %v1479 = vadd.f32 %v1270, %v1478
      %v1480 = vpop.f32.mrf.mxu0
      %1481 = vmatprep.mubr.bf16.mxu0 0
      %1482 = vmatmul.mubr.bf16.gmra.mxu0 %v931
      %v1483 = vpop.f32.mrf.mxu0
      %v1484 = vadd.f32 %v1275, %v1483
      %v1485 = vpop.f32.mrf.mxu0
      %v1486 = vpop.f32.mrf.mxu0
      %v1487 = vadd.f32 %v1278, %v1486
      %v1488 = vpop.f32.mrf.mxu0
      %1489 = vmatprep.mubr.bf16.mxu0 0
      %1490 = vmatmul.mubr.bf16.gmra.mxu0 %v932
      %v1491 = vpop.f32.mrf.mxu0
      %v1492 = vadd.f32 %v1283, %v1491
      %v1493 = vpop.f32.mrf.mxu0
      %v1494 = vpop.f32.mrf.mxu0
      %v1495 = vadd.f32 %v1286, %v1494
      %v1496 = vpop.f32.mrf.mxu0
      %1497 = vmatprep.mubr.bf16.mxu0 0
      %1498 = vmatmul.mubr.bf16.gmra.mxu0 %v933
      %v1499 = vpop.f32.mrf.mxu0
      %v1500 = vadd.f32 %v1291, %v1499
      %v1501 = vpop.f32.mrf.mxu0
      %v1502 = vpop.f32.mrf.mxu0
      %v1503 = vadd.f32 %v1294, %v1502
      %v1504 = vpop.f32.mrf.mxu0
      %1505 = vmatprep.mubr.bf16.mxu0 0
      %1506 = vmatmul.mubr.bf16.gmra.mxu0 %v934
      %v1507 = vpop.f32.mrf.mxu0
      %v1508 = vadd.f32 %v1299, %v1507
      %v1509 = vpop.f32.mrf.mxu0
      %v1510 = vpop.f32.mrf.mxu0
      %v1511 = vadd.f32 %v1302, %v1510
      %v1512 = vpop.f32.mrf.mxu0
      %1513 = vmatprep.mubr.bf16.mxu0 0
      %1514 = vmatmul.mubr.bf16.gmra.mxu0 %v935
      %v1515 = vpop.f32.mrf.mxu0
      %v1516 = vadd.f32 %v1307, %v1515
      %v1517 = vpop.f32.mrf.mxu0
      %v1518 = vpop.f32.mrf.mxu0
      %v1519 = vadd.f32 %v1310, %v1518
      %v1520 = vpop.f32.mrf.mxu0
      %1521 = vmatprep.mubr.bf16.mxu0 0
      %1522 = vmatmul.mubr.bf16.gmra.mxu0 %v936
      %v1523 = vpop.f32.mrf.mxu0
      %v1524 = vadd.f32 %v1315, %v1523
      %v1525 = vpop.f32.mrf.mxu0
      %v1526 = vpop.f32.mrf.mxu0
      %v1527 = vadd.f32 %v1318, %v1526
      %v1528 = vpop.f32.mrf.mxu0
      %1529 = vmatprep.mubr.bf16.mxu0 0
      %1530 = vmatmul.mubr.bf16.gmra.mxu0 %v937
      %v1531 = vpop.f32.mrf.mxu0
      %v1532 = vadd.f32 %v1323, %v1531
      %v1533 = vpop.f32.mrf.mxu0
      %v1534 = vpop.f32.mrf.mxu0
      %v1535 = vadd.f32 %v1326, %v1534
      %v1536 = vpop.f32.mrf.mxu0
      %1537 = vmatprep.mubr.bf16.mxu0 0
      %1538 = vmatmul.mubr.bf16.gmra.mxu0 %v938
      %v1539 = vpop.f32.mrf.mxu0
      %v1540 = vadd.f32 %v1331, %v1539
      %v1541 = vpop.f32.mrf.mxu0
      %v1542 = vpop.f32.mrf.mxu0
      %v1543 = vadd.f32 %v1334, %v1542
      %v1544 = vpop.f32.mrf.mxu0
      %1545 = vmatprep.mubr.bf16.mxu0 0
      %1546 = vmatmul.mubr.bf16.gmra.mxu0 %v939
      %v1547 = vpop.f32.mrf.mxu0
      %v1548 = vadd.f32 %v1339, %v1547
      %v1549 = vpop.f32.mrf.mxu0
      %v1550 = vpop.f32.mrf.mxu0
      %v1551 = vadd.f32 %v1342, %v1550
      %v1552 = vpop.f32.mrf.mxu0
      %1553 = vmatprep.mubr.bf16.mxu0 0
      %1554 = vmatmul.mubr.bf16.gmra.mxu0 %v940
      %v1555 = vpop.f32.mrf.mxu0
      %v1556 = vadd.f32 %v1347, %v1555
      %v1557 = vpop.f32.mrf.mxu0
      %v1558 = vpop.f32.mrf.mxu0
      %v1559 = vadd.f32 %v1350, %v1558
      %v1560 = vpop.f32.mrf.mxu0
      %1561 = vmatprep.mubr.bf16.mxu0 0
      %1562 = vmatmul.mubr.bf16.gmra.mxu0 %v941
      %v1563 = vpop.f32.mrf.mxu0
      %v1564 = vadd.f32 %v1355, %v1563
      %v1565 = vpop.f32.mrf.mxu0
      %v1566 = vpop.f32.mrf.mxu0
      %v1567 = vadd.f32 %v1358, %v1566
      %v1568 = vpop.f32.mrf.mxu0
      %1569 = vdwg.mxu0
      %vm1570 = vcmask 1045504
      %v1571 = vrot.slane %v872, 2
      %v1572 = vrot.slane %v873, 2
      %v1573 = vsel %vm1570, %v1571, %v1572
      %v1574 = vrot.slane %v874, 2
      %v1575 = vsel %vm1570, %v1572, %v1574
      %v1576 = vrot.slane %v875, 2
      %v1577 = vrot.slane %v876, 2
      %v1578 = vsel %vm1570, %v1576, %v1577
      %v1579 = vrot.slane %v877, 2
      %v1580 = vsel %vm1570, %v1577, %v1579
      %v1581 = vrot.slane %v878, 2
      %v1582 = vrot.slane %v879, 2
      %v1583 = vsel %vm1570, %v1581, %v1582
      %v1584 = vrot.slane %v880, 2
      %v1585 = vsel %vm1570, %v1582, %v1584
      %v1586 = vrot.slane %v881, 2
      %v1587 = vrot.slane %v882, 2
      %v1588 = vsel %vm1570, %v1586, %v1587
      %v1589 = vrot.slane %v883, 2
      %v1590 = vsel %vm1570, %v1587, %v1589
      %v1591 = vrot.slane %v884, 2
      %v1592 = vrot.slane %v885, 2
      %v1593 = vsel %vm1570, %v1591, %v1592
      %v1594 = vrot.slane %v886, 2
      %v1595 = vsel %vm1570, %v1592, %v1594
      %v1596 = vrot.slane %v887, 2
      %v1597 = vrot.slane %v888, 2
      %v1598 = vsel %vm1570, %v1596, %v1597
      %v1599 = vrot.slane %v889, 2
      %v1600 = vsel %vm1570, %v1597, %v1599
      %v1601 = vrot.slane %v890, 2
      %v1602 = vrot.slane %v891, 2
      %v1603 = vsel %vm1570, %v1601, %v1602
      %v1604 = vrot.slane %v892, 2
      %v1605 = vsel %vm1570, %v1602, %v1604
      %v1606 = vrot.slane %v893, 2
      %v1607 = vrot.slane %v894, 2
      %v1608 = vsel %vm1570, %v1606, %v1607
      %v1609 = vrot.slane %v895, 2
      %v1610 = vsel %vm1570, %v1607, %v1609
      %v1611 = vrot.slane %v896, 2
      %v1612 = vrot.slane %v897, 2
      %v1613 = vsel %vm1570, %v1611, %v1612
      %v1614 = vrot.slane %v898, 2
      %v1615 = vsel %vm1570, %v1612, %v1614
      %v1616 = vrot.slane %v899, 2
      %v1617 = vrot.slane %v900, 2
      %v1618 = vsel %vm1570, %v1616, %v1617
      %v1619 = vrot.slane %v901, 2
      %v1620 = vsel %vm1570, %v1617, %v1619
      %v1621 = vrot.slane %v902, 2
      %v1622 = vrot.slane %v903, 2
      %v1623 = vsel %vm1570, %v1621, %v1622
      %v1624 = vrot.slane %v904, 2
      %v1625 = vsel %vm1570, %v1622, %v1624
      %v1626 = vrot.slane %v905, 2
      %v1627 = vrot.slane %v906, 2
      %v1628 = vsel %vm1570, %v1626, %v1627
      %v1629 = vrot.slane %v907, 2
      %v1630 = vsel %vm1570, %v1627, %v1629
      %v1631 = vrot.slane %v908, 2
      %v1632 = vrot.slane %v909, 2
      %v1633 = vsel %vm1570, %v1631, %v1632
      %v1634 = vrot.slane %v910, 2
      %v1635 = vsel %vm1570, %v1632, %v1634
      %v1636 = vrot.slane %v911, 2
      %v1637 = vrot.slane %v912, 2
      %v1638 = vsel %vm1570, %v1636, %v1637
      %v1639 = vrot.slane %v913, 2
      %v1640 = vsel %vm1570, %v1637, %v1639
      %v1641 = vrot.slane %v914, 2
      %v1642 = vrot.slane %v915, 2
      %v1643 = vsel %vm1570, %v1641, %v1642
      %v1644 = vrot.slane %v916, 2
      %v1645 = vsel %vm1570, %v1642, %v1644
      %v1646 = vrot.slane %v917, 2
      %v1647 = vrot.slane %v918, 2
      %v1648 = vsel %vm1570, %v1646, %v1647
      %v1649 = vrot.slane %v919, 2
      %v1650 = vsel %vm1570, %v1647, %v1649
      %v1683 = vpack.c.bf16 %v1575, %v1573
      %v1684 = vpack.c.bf16 %v1580, %v1578
      %v1685 = vpack.c.bf16 %v1585, %v1583
      %v1686 = vpack.c.bf16 %v1590, %v1588
      %v1687 = vpack.c.bf16 %v1595, %v1593
      %v1688 = vpack.c.bf16 %v1600, %v1598
      %v1689 = vpack.c.bf16 %v1605, %v1603
      %v1690 = vpack.c.bf16 %v1610, %v1608
      %v1691 = vpack.c.bf16 %v1615, %v1613
      %v1692 = vpack.c.bf16 %v1620, %v1618
      %v1693 = vpack.c.bf16 %v1625, %v1623
      %v1694 = vpack.c.bf16 %v1630, %v1628
      %v1695 = vpack.c.bf16 %v1635, %v1633
      %v1696 = vpack.c.bf16 %v1640, %v1638
      %v1697 = vpack.c.bf16 %v1645, %v1643
      %v1698 = vpack.c.bf16 %v1650, %v1648
      %s1699 = scalar_lea.vmem %s4, 128
      %v1700 = vld [vmem:[%s1699] sm:$0xf]
      %v1701 = vld [vmem:[%s1699 + $0x4] sm:$0xf]
      %v1702 = vld [vmem:[%s1699 + $0x8] sm:$0xf]
      %v1703 = vld [vmem:[%s1699 + $0xc] sm:$0xf]
      %v1704 = vld [vmem:[%s1699 + $0x10] sm:$0xf]
      %v1705 = vld [vmem:[%s1699 + $0x14] sm:$0xf]
      %v1706 = vld [vmem:[%s1699 + $0x18] sm:$0xf]
      %v1707 = vld [vmem:[%s1699 + $0x1c] sm:$0xf]
      %v1708 = vld [vmem:[%s1699 + $0x20] sm:$0xf]
      %v1709 = vld [vmem:[%s1699 + $0x24] sm:$0xf]
      %v1710 = vld [vmem:[%s1699 + $0x28] sm:$0xf]
      %v1711 = vld [vmem:[%s1699 + $0x2c] sm:$0xf]
      %v1712 = vld [vmem:[%s1699 + $0x30] sm:$0xf]
      %v1713 = vld [vmem:[%s1699 + $0x34] sm:$0xf]
      %v1714 = vld [vmem:[%s1699 + $0x38] sm:$0xf]
      %v1715 = vld [vmem:[%s1699 + $0x3c] sm:$0xf]
      %v1732 = vunpack.c.l.b16 %v1700
      %v1733 = vunpack.c.l.b16 %v1701
      %v1734 = vunpack.c.l.b16 %v1702
      %v1735 = vunpack.c.l.b16 %v1703
      %v1736 = vunpack.c.l.b16 %v1704
      %v1737 = vunpack.c.l.b16 %v1705
      %v1738 = vunpack.c.l.b16 %v1706
      %v1739 = vunpack.c.l.b16 %v1707
      %v1740 = vunpack.c.l.b16 %v1708
      %v1741 = vunpack.c.l.b16 %v1709
      %v1742 = vunpack.c.l.b16 %v1710
      %v1743 = vunpack.c.l.b16 %v1711
      %v1744 = vunpack.c.l.b16 %v1712
      %v1745 = vunpack.c.l.b16 %v1713
      %v1746 = vunpack.c.l.b16 %v1714
      %v1747 = vunpack.c.l.b16 %v1715
      %v1748 = vpack.c.b16 %v1733, %v1732
      %v1749 = vpack.c.b16 %v1735, %v1734
      %v1750 = vpack.c.b16 %v1737, %v1736
      %v1751 = vpack.c.b16 %v1739, %v1738
      %v1752 = vpack.c.b16 %v1741, %v1740
      %v1753 = vpack.c.b16 %v1743, %v1742
      %v1754 = vpack.c.b16 %v1745, %v1744
      %v1755 = vpack.c.b16 %v1747, %v1746
      %1764 = vmatprep.subr.bf16.mxu0 0
      %1765 = vmatpush1.bf16.msra.mxu0 %v1755
      %1766 = vmatprep.subr.bf16.mxu0 0
      %1767 = vmatpush1.bf16.msra.mxu0 %v1754
      %1768 = vmatprep.subr.bf16.mxu0 0
      %1769 = vmatpush1.bf16.msra.mxu0 %v1753
      %1770 = vmatprep.subr.bf16.mxu0 0
      %1771 = vmatpush1.bf16.msra.mxu0 %v1752
      %1772 = vmatprep.subr.bf16.mxu0 0
      %1773 = vmatpush1.bf16.msra.mxu0 %v1751
      %1774 = vmatprep.subr.bf16.mxu0 0
      %1775 = vmatpush1.bf16.msra.mxu0 %v1750
      %1776 = vmatprep.subr.bf16.mxu0 0
      %1777 = vmatpush1.bf16.msra.mxu0 %v1749
      %1778 = vmatprep.subr.bf16.mxu0 0
      %1779 = vmatpush1.bf16.msra.mxu0 %v1748
      %1780 = vmatprep.subr.bf16.mxu0 0
      %1781 = vmatpush2.bf16.msra.mxu0 0
      %1782 = vmatprep.subr.bf16.mxu0 0
      %1783 = vmatpush2.bf16.msra.mxu0 0
      %1784 = vmatprep.subr.bf16.mxu0 0
      %1785 = vmatpush2.bf16.msra.mxu0 0
      %1786 = vmatprep.subr.bf16.mxu0 0
      %1787 = vmatpush2.bf16.msra.mxu0 0
      %1788 = vmatprep.subr.bf16.mxu0 0
      %1789 = vmatpush2.bf16.msra.mxu0 0
      %1790 = vmatprep.subr.bf16.mxu0 0
      %1791 = vmatpush2.bf16.msra.mxu0 0
      %1792 = vmatprep.subr.bf16.mxu0 0
      %1793 = vmatpush2.bf16.msra.mxu0 0
      %1794 = vmatprep.subr.bf16.mxu0 0
      %1795 = vmatpush2.bf16.msra.mxu0 0
      %1796 = vmatprep.mubr.bf16.mxu0 0
      %1797 = vmatmul.mubr.bf16.gmra.mxu0 %v1683
      %v1798 = vpop.f32.mrf.mxu0
      %v1799 = vadd.f32 0.0, %v1798
      %v1800 = vpop.f32.mrf.mxu0
      %v1801 = vpop.f32.mrf.mxu0
      %v1802 = vadd.f32 0.0, %v1801
      %v1803 = vpop.f32.mrf.mxu0
      %1804 = vmatprep.mubr.bf16.mxu0 0
      %1805 = vmatmul.mubr.bf16.gmra.mxu0 %v1684
      %v1806 = vpop.f32.mrf.mxu0
      %v1807 = vadd.f32 0.0, %v1806
      %v1808 = vpop.f32.mrf.mxu0
      %v1809 = vpop.f32.mrf.mxu0
      %v1810 = vadd.f32 0.0, %v1809
      %v1811 = vpop.f32.mrf.mxu0
      %1812 = vmatprep.mubr.bf16.mxu0 0
      %1813 = vmatmul.mubr.bf16.gmra.mxu0 %v1685
      %v1814 = vpop.f32.mrf.mxu0
      %v1815 = vadd.f32 0.0, %v1814
      %v1816 = vpop.f32.mrf.mxu0
      %v1817 = vpop.f32.mrf.mxu0
      %v1818 = vadd.f32 0.0, %v1817
      %v1819 = vpop.f32.mrf.mxu0
      %1820 = vmatprep.mubr.bf16.mxu0 0
      %1821 = vmatmul.mubr.bf16.gmra.mxu0 %v1686
      %v1822 = vpop.f32.mrf.mxu0
      %v1823 = vadd.f32 0.0, %v1822
      %v1824 = vpop.f32.mrf.mxu0
      %v1825 = vpop.f32.mrf.mxu0
      %v1826 = vadd.f32 0.0, %v1825
      %v1827 = vpop.f32.mrf.mxu0
      %1828 = vmatprep.mubr.bf16.mxu0 0
      %1829 = vmatmul.mubr.bf16.gmra.mxu0 %v1687
      %v1830 = vpop.f32.mrf.mxu0
      %v1831 = vadd.f32 0.0, %v1830
      %v1832 = vpop.f32.mrf.mxu0
      %v1833 = vpop.f32.mrf.mxu0
      %v1834 = vadd.f32 0.0, %v1833
      %v1835 = vpop.f32.mrf.mxu0
      %1836 = vmatprep.mubr.bf16.mxu0 0
      %1837 = vmatmul.mubr.bf16.gmra.mxu0 %v1688
      %v1838 = vpop.f32.mrf.mxu0
      %v1839 = vadd.f32 0.0, %v1838
      %v1840 = vpop.f32.mrf.mxu0
      %v1841 = vpop.f32.mrf.mxu0
      %v1842 = vadd.f32 0.0, %v1841
      %v1843 = vpop.f32.mrf.mxu0
      %1844 = vmatprep.mubr.bf16.mxu0 0
      %1845 = vmatmul.mubr.bf16.gmra.mxu0 %v1689
      %v1846 = vpop.f32.mrf.mxu0
      %v1847 = vadd.f32 0.0, %v1846
      %v1848 = vpop.f32.mrf.mxu0
      %v1849 = vpop.f32.mrf.mxu0
      %v1850 = vadd.f32 0.0, %v1849
      %v1851 = vpop.f32.mrf.mxu0
      %1852 = vmatprep.mubr.bf16.mxu0 0
      %1853 = vmatmul.mubr.bf16.gmra.mxu0 %v1690
      %v1854 = vpop.f32.mrf.mxu0
      %v1855 = vadd.f32 0.0, %v1854
      %v1856 = vpop.f32.mrf.mxu0
      %v1857 = vpop.f32.mrf.mxu0
      %v1858 = vadd.f32 0.0, %v1857
      %v1859 = vpop.f32.mrf.mxu0
      %1860 = vmatprep.mubr.bf16.mxu0 0
      %1861 = vmatmul.mubr.bf16.gmra.mxu0 %v1691
      %v1862 = vpop.f32.mrf.mxu0
      %v1863 = vadd.f32 0.0, %v1862
      %v1864 = vpop.f32.mrf.mxu0
      %v1865 = vpop.f32.mrf.mxu0
      %v1866 = vadd.f32 0.0, %v1865
      %v1867 = vpop.f32.mrf.mxu0
      %1868 = vmatprep.mubr.bf16.mxu0 0
      %1869 = vmatmul.mubr.bf16.gmra.mxu0 %v1692
      %v1870 = vpop.f32.mrf.mxu0
      %v1871 = vadd.f32 0.0, %v1870
      %v1872 = vpop.f32.mrf.mxu0
      %v1873 = vpop.f32.mrf.mxu0
      %v1874 = vadd.f32 0.0, %v1873
      %v1875 = vpop.f32.mrf.mxu0
      %1876 = vmatprep.mubr.bf16.mxu0 0
      %1877 = vmatmul.mubr.bf16.gmra.mxu0 %v1693
      %v1878 = vpop.f32.mrf.mxu0
      %v1879 = vadd.f32 0.0, %v1878
      %v1880 = vpop.f32.mrf.mxu0
      %v1881 = vpop.f32.mrf.mxu0
      %v1882 = vadd.f32 0.0, %v1881
      %v1883 = vpop.f32.mrf.mxu0
      %1884 = vmatprep.mubr.bf16.mxu0 0
      %1885 = vmatmul.mubr.bf16.gmra.mxu0 %v1694
      %v1886 = vpop.f32.mrf.mxu0
      %v1887 = vadd.f32 0.0, %v1886
      %v1888 = vpop.f32.mrf.mxu0
      %v1889 = vpop.f32.mrf.mxu0
      %v1890 = vadd.f32 0.0, %v1889
      %v1891 = vpop.f32.mrf.mxu0
      %1892 = vmatprep.mubr.bf16.mxu0 0
      %1893 = vmatmul.mubr.bf16.gmra.mxu0 %v1695
      %v1894 = vpop.f32.mrf.mxu0
      %v1895 = vadd.f32 0.0, %v1894
      %v1896 = vpop.f32.mrf.mxu0
      %v1897 = vpop.f32.mrf.mxu0
      %v1898 = vadd.f32 0.0, %v1897
      %v1899 = vpop.f32.mrf.mxu0
      %1900 = vmatprep.mubr.bf16.mxu0 0
      %1901 = vmatmul.mubr.bf16.gmra.mxu0 %v1696
      %v1902 = vpop.f32.mrf.mxu0
      %v1903 = vadd.f32 0.0, %v1902
      %v1904 = vpop.f32.mrf.mxu0
      %v1905 = vpop.f32.mrf.mxu0
      %v1906 = vadd.f32 0.0, %v1905
      %v1907 = vpop.f32.mrf.mxu0
      %1908 = vmatprep.mubr.bf16.mxu0 0
      %1909 = vmatmul.mubr.bf16.gmra.mxu0 %v1697
      %v1910 = vpop.f32.mrf.mxu0
      %v1911 = vadd.f32 0.0, %v1910
      %v1912 = vpop.f32.mrf.mxu0
      %v1913 = vpop.f32.mrf.mxu0
      %v1914 = vadd.f32 0.0, %v1913
      %v1915 = vpop.f32.mrf.mxu0
      %1916 = vmatprep.mubr.bf16.mxu0 0
      %1917 = vmatmul.mubr.bf16.gmra.mxu0 %v1698
      %v1918 = vpop.f32.mrf.mxu0
      %v1919 = vadd.f32 0.0, %v1918
      %v1920 = vpop.f32.mrf.mxu0
      %v1921 = vpop.f32.mrf.mxu0
      %v1922 = vadd.f32 0.0, %v1921
      %v1923 = vpop.f32.mrf.mxu0
      %1924 = vdwg.mxu0
      %v1925 = vadd.f32 %v1444, %v1799
      %v1926 = vadd.f32 %v1447, %v1802
      %v1927 = vadd.f32 %v1452, %v1807
      %v1928 = vadd.f32 %v1455, %v1810
      %v1929 = vadd.f32 %v1460, %v1815
      %v1930 = vadd.f32 %v1463, %v1818
      %v1931 = vadd.f32 %v1468, %v1823
      %v1932 = vadd.f32 %v1471, %v1826
      %v1933 = vadd.f32 %v1476, %v1831
      %v1934 = vadd.f32 %v1479, %v1834
      %v1935 = vadd.f32 %v1484, %v1839
      %v1936 = vadd.f32 %v1487, %v1842
      %v1937 = vadd.f32 %v1492, %v1847
      %v1938 = vadd.f32 %v1495, %v1850
      %v1939 = vadd.f32 %v1500, %v1855
      %v1940 = vadd.f32 %v1503, %v1858
      %v1941 = vadd.f32 %v1508, %v1863
      %v1942 = vadd.f32 %v1511, %v1866
      %v1943 = vadd.f32 %v1516, %v1871
      %v1944 = vadd.f32 %v1519, %v1874
      %v1945 = vadd.f32 %v1524, %v1879
      %v1946 = vadd.f32 %v1527, %v1882
      %v1947 = vadd.f32 %v1532, %v1887
      %v1948 = vadd.f32 %v1535, %v1890
      %v1949 = vadd.f32 %v1540, %v1895
      %v1950 = vadd.f32 %v1543, %v1898
      %v1951 = vadd.f32 %v1548, %v1903
      %v1952 = vadd.f32 %v1551, %v1906
      %v1953 = vadd.f32 %v1556, %v1911
      %v1954 = vadd.f32 %v1559, %v1914
      %v1955 = vadd.f32 %v1564, %v1919
      %v1956 = vadd.f32 %v1567, %v1922
      %v1957 = vpack.c.bf16 %v921, %v920
      %s1958 = scalar_lea.vmem %s4, 192
      %v1959 = vld [vmem:[%s1958] sm:$0xf]
      %v1960 = vld [vmem:[%s1958 + $0x4] sm:$0xf]
      %v1961 = vld [vmem:[%s1958 + $0x8] sm:$0xf]
      %v1962 = vld [vmem:[%s1958 + $0xc] sm:$0xf]
      %v1963 = vld [vmem:[%s1958 + $0x10] sm:$0xf]
      %v1964 = vld [vmem:[%s1958 + $0x14] sm:$0xf]
      %v1965 = vld [vmem:[%s1958 + $0x18] sm:$0xf]
      %v1966 = vld [vmem:[%s1958 + $0x1c] sm:$0xf]
      %v1967 = vld [vmem:[%s1958 + $0x20] sm:$0xf]
      %v1968 = vld [vmem:[%s1958 + $0x24] sm:$0xf]
      %v1969 = vld [vmem:[%s1958 + $0x28] sm:$0xf]
      %v1970 = vld [vmem:[%s1958 + $0x2c] sm:$0xf]
      %v1971 = vld [vmem:[%s1958 + $0x30] sm:$0xf]
      %v1972 = vld [vmem:[%s1958 + $0x34] sm:$0xf]
      %v1973 = vld [vmem:[%s1958 + $0x38] sm:$0xf]
      %v1974 = vld [vmem:[%s1958 + $0x3c] sm:$0xf]
      %v1991 = vunpack.c.l.b16 %v1959
      %v1992 = vunpack.c.l.b16 %v1960
      %v1993 = vunpack.c.l.b16 %v1961
      %v1994 = vunpack.c.l.b16 %v1962
      %v1995 = vunpack.c.l.b16 %v1963
      %v1996 = vunpack.c.l.b16 %v1964
      %v1997 = vunpack.c.l.b16 %v1965
      %v1998 = vunpack.c.l.b16 %v1966
      %v1999 = vunpack.c.l.b16 %v1967
      %v2000 = vunpack.c.l.b16 %v1968
      %v2001 = vunpack.c.l.b16 %v1969
      %v2002 = vunpack.c.l.b16 %v1970
      %v2003 = vunpack.c.l.b16 %v1971
      %v2004 = vunpack.c.l.b16 %v1972
      %v2005 = vunpack.c.l.b16 %v1973
      %v2006 = vunpack.c.l.b16 %v1974
      %v2007 = vpack.c.b16 %v1992, %v1991
      %v2008 = vpack.c.b16 %v1994, %v1993
      %v2009 = vpack.c.b16 %v1996, %v1995
      %v2010 = vpack.c.b16 %v1998, %v1997
      %v2011 = vpack.c.b16 %v2000, %v1999
      %v2012 = vpack.c.b16 %v2002, %v2001
      %v2013 = vpack.c.b16 %v2004, %v2003
      %v2014 = vpack.c.b16 %v2006, %v2005
      %2023 = vmatprep.subr.bf16.mxu0 0
      %2024 = vmatpush1.bf16.msra.mxu0 %v2014
      %2025 = vmatprep.subr.bf16.mxu0 0
      %2026 = vmatpush1.bf16.msra.mxu0 %v2013
      %2027 = vmatprep.subr.bf16.mxu0 0
      %2028 = vmatpush1.bf16.msra.mxu0 %v2012
      %2029 = vmatprep.subr.bf16.mxu0 0
      %2030 = vmatpush1.bf16.msra.mxu0 %v2011
      %2031 = vmatprep.subr.bf16.mxu0 0
      %2032 = vmatpush1.bf16.msra.mxu0 %v2010
      %2033 = vmatprep.subr.bf16.mxu0 0
      %2034 = vmatpush1.bf16.msra.mxu0 %v2009
      %2035 = vmatprep.subr.bf16.mxu0 0
      %2036 = vmatpush1.bf16.msra.mxu0 %v2008
      %2037 = vmatprep.subr.bf16.mxu0 0
      %2038 = vmatpush1.bf16.msra.mxu0 %v2007
      %2039 = vmatprep.subr.bf16.mxu0 0
      %2040 = vmatpush2.bf16.msra.mxu0 0
      %2041 = vmatprep.subr.bf16.mxu0 0
      %2042 = vmatpush2.bf16.msra.mxu0 0
      %2043 = vmatprep.subr.bf16.mxu0 0
      %2044 = vmatpush2.bf16.msra.mxu0 0
      %2045 = vmatprep.subr.bf16.mxu0 0
      %2046 = vmatpush2.bf16.msra.mxu0 0
      %2047 = vmatprep.subr.bf16.mxu0 0
      %2048 = vmatpush2.bf16.msra.mxu0 0
      %2049 = vmatprep.subr.bf16.mxu0 0
      %2050 = vmatpush2.bf16.msra.mxu0 0
      %2051 = vmatprep.subr.bf16.mxu0 0
      %2052 = vmatpush2.bf16.msra.mxu0 0
      %2053 = vmatprep.subr.bf16.mxu0 0
      %2054 = vmatpush2.bf16.msra.mxu0 0
      %2055 = vmatprep.mubr.bf16.mxu0 0
      %2056 = vmatmul.mubr.bf16.gmra.mxu0 %v927
      %v2057 = vpop.f32.mrf.mxu0
      %v2058 = vadd.f32 0.0, %v2057
      %v2059 = vpop.f32.mrf.mxu0
      %v2060 = vpop.f32.mrf.mxu0
      %v2061 = vadd.f32 0.0, %v2060
      %v2062 = vpop.f32.mrf.mxu0
      %2063 = vmatprep.mubr.bf16.mxu0 0
      %2064 = vmatmul.mubr.bf16.gmra.mxu0 %v928
      %v2065 = vpop.f32.mrf.mxu0
      %v2066 = vadd.f32 0.0, %v2065
      %v2067 = vpop.f32.mrf.mxu0
      %v2068 = vpop.f32.mrf.mxu0
      %v2069 = vadd.f32 0.0, %v2068
      %v2070 = vpop.f32.mrf.mxu0
      %2071 = vmatprep.mubr.bf16.mxu0 0
      %2072 = vmatmul.mubr.bf16.gmra.mxu0 %v929
      %v2073 = vpop.f32.mrf.mxu0
      %v2074 = vadd.f32 0.0, %v2073
      %v2075 = vpop.f32.mrf.mxu0
      %v2076 = vpop.f32.mrf.mxu0
      %v2077 = vadd.f32 0.0, %v2076
      %v2078 = vpop.f32.mrf.mxu0
      %2079 = vmatprep.mubr.bf16.mxu0 0
      %2080 = vmatmul.mubr.bf16.gmra.mxu0 %v930
      %v2081 = vpop.f32.mrf.mxu0
      %v2082 = vadd.f32 0.0, %v2081
      %v2083 = vpop.f32.mrf.mxu0
      %v2084 = vpop.f32.mrf.mxu0
      %v2085 = vadd.f32 0.0, %v2084
      %v2086 = vpop.f32.mrf.mxu0
      %2087 = vmatprep.mubr.bf16.mxu0 0
      %2088 = vmatmul.mubr.bf16.gmra.mxu0 %v931
      %v2089 = vpop.f32.mrf.mxu0
      %v2090 = vadd.f32 0.0, %v2089
      %v2091 = vpop.f32.mrf.mxu0
      %v2092 = vpop.f32.mrf.mxu0
      %v2093 = vadd.f32 0.0, %v2092
      %v2094 = vpop.f32.mrf.mxu0
      %2095 = vmatprep.mubr.bf16.mxu0 0
      %2096 = vmatmul.mubr.bf16.gmra.mxu0 %v932
      %v2097 = vpop.f32.mrf.mxu0
      %v2098 = vadd.f32 0.0, %v2097
      %v2099 = vpop.f32.mrf.mxu0
      %v2100 = vpop.f32.mrf.mxu0
      %v2101 = vadd.f32 0.0, %v2100
      %v2102 = vpop.f32.mrf.mxu0
      %2103 = vmatprep.mubr.bf16.mxu0 0
      %2104 = vmatmul.mubr.bf16.gmra.mxu0 %v933
      %v2105 = vpop.f32.mrf.mxu0
      %v2106 = vadd.f32 0.0, %v2105
      %v2107 = vpop.f32.mrf.mxu0
      %v2108 = vpop.f32.mrf.mxu0
      %v2109 = vadd.f32 0.0, %v2108
      %v2110 = vpop.f32.mrf.mxu0
      %2111 = vmatprep.mubr.bf16.mxu0 0
      %2112 = vmatmul.mubr.bf16.gmra.mxu0 %v934
      %v2113 = vpop.f32.mrf.mxu0
      %v2114 = vadd.f32 0.0, %v2113
      %v2115 = vpop.f32.mrf.mxu0
      %v2116 = vpop.f32.mrf.mxu0
      %v2117 = vadd.f32 0.0, %v2116
      %v2118 = vpop.f32.mrf.mxu0
      %2119 = vmatprep.mubr.bf16.mxu0 0
      %2120 = vmatmul.mubr.bf16.gmra.mxu0 %v935
      %v2121 = vpop.f32.mrf.mxu0
      %v2122 = vadd.f32 0.0, %v2121
      %v2123 = vpop.f32.mrf.mxu0
      %v2124 = vpop.f32.mrf.mxu0
      %v2125 = vadd.f32 0.0, %v2124
      %v2126 = vpop.f32.mrf.mxu0
      %2127 = vmatprep.mubr.bf16.mxu0 0
      %2128 = vmatmul.mubr.bf16.gmra.mxu0 %v936
      %v2129 = vpop.f32.mrf.mxu0
      %v2130 = vadd.f32 0.0, %v2129
      %v2131 = vpop.f32.mrf.mxu0
      %v2132 = vpop.f32.mrf.mxu0
      %v2133 = vadd.f32 0.0, %v2132
      %v2134 = vpop.f32.mrf.mxu0
      %2135 = vmatprep.mubr.bf16.mxu0 0
      %2136 = vmatmul.mubr.bf16.gmra.mxu0 %v937
      %v2137 = vpop.f32.mrf.mxu0
      %v2138 = vadd.f32 0.0, %v2137
      %v2139 = vpop.f32.mrf.mxu0
      %v2140 = vpop.f32.mrf.mxu0
      %v2141 = vadd.f32 0.0, %v2140
      %v2142 = vpop.f32.mrf.mxu0
      %2143 = vmatprep.mubr.bf16.mxu0 0
      %2144 = vmatmul.mubr.bf16.gmra.mxu0 %v938
      %v2145 = vpop.f32.mrf.mxu0
      %v2146 = vadd.f32 0.0, %v2145
      %v2147 = vpop.f32.mrf.mxu0
      %v2148 = vpop.f32.mrf.mxu0
      %v2149 = vadd.f32 0.0, %v2148
      %v2150 = vpop.f32.mrf.mxu0
      %2151 = vmatprep.mubr.bf16.mxu0 0
      %2152 = vmatmul.mubr.bf16.gmra.mxu0 %v939
      %v2153 = vpop.f32.mrf.mxu0
      %v2154 = vadd.f32 0.0, %v2153
      %v2155 = vpop.f32.mrf.mxu0
      %v2156 = vpop.f32.mrf.mxu0
      %v2157 = vadd.f32 0.0, %v2156
      %v2158 = vpop.f32.mrf.mxu0
      %2159 = vmatprep.mubr.bf16.mxu0 0
      %2160 = vmatmul.mubr.bf16.gmra.mxu0 %v940
      %v2161 = vpop.f32.mrf.mxu0
      %v2162 = vadd.f32 0.0, %v2161
      %v2163 = vpop.f32.mrf.mxu0
      %v2164 = vpop.f32.mrf.mxu0
      %v2165 = vadd.f32 0.0, %v2164
      %v2166 = vpop.f32.mrf.mxu0
      %2167 = vmatprep.mubr.bf16.mxu0 0
      %2168 = vmatmul.mubr.bf16.gmra.mxu0 %v941
      %v2169 = vpop.f32.mrf.mxu0
      %v2170 = vadd.f32 0.0, %v2169
      %v2171 = vpop.f32.mrf.mxu0
      %v2172 = vpop.f32.mrf.mxu0
      %v2173 = vadd.f32 0.0, %v2172
      %v2174 = vpop.f32.mrf.mxu0
      %2175 = vmatprep.mubr.bf16.mxu0 0
      %2176 = vmatmul.mubr.bf16.gmra.mxu0 %v1957
      %v2177 = vpop.f32.mrf.mxu0
      %v2178 = vadd.f32 0.0, %v2177
      %v2179 = vpop.f32.mrf.mxu0
      %v2180 = vpop.f32.mrf.mxu0
      %v2181 = vadd.f32 0.0, %v2180
      %v2182 = vpop.f32.mrf.mxu0
      %2183 = vdwg.mxu0
      %v2184 = vadd.f32 %v1925, %v2058
      %v2185 = vadd.f32 %v1926, %v2061
      %v2186 = vadd.f32 %v1927, %v2066
      %v2187 = vadd.f32 %v1928, %v2069
      %v2188 = vadd.f32 %v1929, %v2074
      %v2189 = vadd.f32 %v1930, %v2077
      %v2190 = vadd.f32 %v1931, %v2082
      %v2191 = vadd.f32 %v1932, %v2085
      %v2192 = vadd.f32 %v1933, %v2090
      %v2193 = vadd.f32 %v1934, %v2093
      %v2194 = vadd.f32 %v1935, %v2098
      %v2195 = vadd.f32 %v1936, %v2101
      %v2196 = vadd.f32 %v1937, %v2106
      %v2197 = vadd.f32 %v1938, %v2109
      %v2198 = vadd.f32 %v1939, %v2114
      %v2199 = vadd.f32 %v1940, %v2117
      %v2200 = vadd.f32 %v1941, %v2122
      %v2201 = vadd.f32 %v1942, %v2125
      %v2202 = vadd.f32 %v1943, %v2130
      %v2203 = vadd.f32 %v1944, %v2133
      %v2204 = vadd.f32 %v1945, %v2138
      %v2205 = vadd.f32 %v1946, %v2141
      %v2206 = vadd.f32 %v1947, %v2146
      %v2207 = vadd.f32 %v1948, %v2149
      %v2208 = vadd.f32 %v1949, %v2154
      %v2209 = vadd.f32 %v1950, %v2157
      %v2210 = vadd.f32 %v1951, %v2162
      %v2211 = vadd.f32 %v1952, %v2165
      %v2212 = vadd.f32 %v1953, %v2170
      %v2213 = vadd.f32 %v1954, %v2173
      %v2214 = vadd.f32 %v1955, %v2178
      %v2215 = vadd.f32 %v1956, %v2181
      %v2219 = vrot.slane %v920, 1
      %v2220 = vrot.slane %v921, 1
      %v2221 = vsel %vm1006, %v2219, %v2220
      %v2222 = vrot.slane %v922, 1
      %v2223 = vsel %vm1006, %v2220, %v2222
      %v2226 = vpack.c.bf16 %v2223, %v2221
      %s2227 = scalar_lea.vmem %s4, 256
      %v2228 = vld [vmem:[%s2227] sm:$0xf]
      %v2229 = vld [vmem:[%s2227 + $0x4] sm:$0xf]
      %v2230 = vld [vmem:[%s2227 + $0x8] sm:$0xf]
      %v2231 = vld [vmem:[%s2227 + $0xc] sm:$0xf]
      %v2232 = vld [vmem:[%s2227 + $0x10] sm:$0xf]
      %v2233 = vld [vmem:[%s2227 + $0x14] sm:$0xf]
      %v2234 = vld [vmem:[%s2227 + $0x18] sm:$0xf]
      %v2235 = vld [vmem:[%s2227 + $0x1c] sm:$0xf]
      %v2236 = vld [vmem:[%s2227 + $0x20] sm:$0xf]
      %v2237 = vld [vmem:[%s2227 + $0x24] sm:$0xf]
      %v2238 = vld [vmem:[%s2227 + $0x28] sm:$0xf]
      %v2239 = vld [vmem:[%s2227 + $0x2c] sm:$0xf]
      %v2240 = vld [vmem:[%s2227 + $0x30] sm:$0xf]
      %v2241 = vld [vmem:[%s2227 + $0x34] sm:$0xf]
      %v2242 = vld [vmem:[%s2227 + $0x38] sm:$0xf]
      %v2243 = vld [vmem:[%s2227 + $0x3c] sm:$0xf]
      %v2260 = vunpack.c.l.b16 %v2228
      %v2261 = vunpack.c.l.b16 %v2229
      %v2262 = vunpack.c.l.b16 %v2230
      %v2263 = vunpack.c.l.b16 %v2231
      %v2264 = vunpack.c.l.b16 %v2232
      %v2265 = vunpack.c.l.b16 %v2233
      %v2266 = vunpack.c.l.b16 %v2234
      %v2267 = vunpack.c.l.b16 %v2235
      %v2268 = vunpack.c.l.b16 %v2236
      %v2269 = vunpack.c.l.b16 %v2237
      %v2270 = vunpack.c.l.b16 %v2238
      %v2271 = vunpack.c.l.b16 %v2239
      %v2272 = vunpack.c.l.b16 %v2240
      %v2273 = vunpack.c.l.b16 %v2241
      %v2274 = vunpack.c.l.b16 %v2242
      %v2275 = vunpack.c.l.b16 %v2243
      %v2276 = vpack.c.b16 %v2261, %v2260
      %v2277 = vpack.c.b16 %v2263, %v2262
      %v2278 = vpack.c.b16 %v2265, %v2264
      %v2279 = vpack.c.b16 %v2267, %v2266
      %v2280 = vpack.c.b16 %v2269, %v2268
      %v2281 = vpack.c.b16 %v2271, %v2270
      %v2282 = vpack.c.b16 %v2273, %v2272
      %v2283 = vpack.c.b16 %v2275, %v2274
      %2292 = vmatprep.subr.bf16.mxu0 0
      %2293 = vmatpush1.bf16.msra.mxu0 %v2283
      %2294 = vmatprep.subr.bf16.mxu0 0
      %2295 = vmatpush1.bf16.msra.mxu0 %v2282
      %2296 = vmatprep.subr.bf16.mxu0 0
      %2297 = vmatpush1.bf16.msra.mxu0 %v2281
      %2298 = vmatprep.subr.bf16.mxu0 0
      %2299 = vmatpush1.bf16.msra.mxu0 %v2280
      %2300 = vmatprep.subr.bf16.mxu0 0
      %2301 = vmatpush1.bf16.msra.mxu0 %v2279
      %2302 = vmatprep.subr.bf16.mxu0 0
      %2303 = vmatpush1.bf16.msra.mxu0 %v2278
      %2304 = vmatprep.subr.bf16.mxu0 0
      %2305 = vmatpush1.bf16.msra.mxu0 %v2277
      %2306 = vmatprep.subr.bf16.mxu0 0
      %2307 = vmatpush1.bf16.msra.mxu0 %v2276
      %2308 = vmatprep.subr.bf16.mxu0 0
      %2309 = vmatpush2.bf16.msra.mxu0 0
      %2310 = vmatprep.subr.bf16.mxu0 0
      %2311 = vmatpush2.bf16.msra.mxu0 0
      %2312 = vmatprep.subr.bf16.mxu0 0
      %2313 = vmatpush2.bf16.msra.mxu0 0
      %2314 = vmatprep.subr.bf16.mxu0 0
      %2315 = vmatpush2.bf16.msra.mxu0 0
      %2316 = vmatprep.subr.bf16.mxu0 0
      %2317 = vmatpush2.bf16.msra.mxu0 0
      %2318 = vmatprep.subr.bf16.mxu0 0
      %2319 = vmatpush2.bf16.msra.mxu0 0
      %2320 = vmatprep.subr.bf16.mxu0 0
      %2321 = vmatpush2.bf16.msra.mxu0 0
      %2322 = vmatprep.subr.bf16.mxu0 0
      %2323 = vmatpush2.bf16.msra.mxu0 0
      %2324 = vmatprep.mubr.bf16.mxu0 0
      %2325 = vmatmul.mubr.bf16.gmra.mxu0 %v1120
      %v2326 = vpop.f32.mrf.mxu0
      %v2327 = vadd.f32 0.0, %v2326
      %v2328 = vpop.f32.mrf.mxu0
      %v2329 = vpop.f32.mrf.mxu0
      %v2330 = vadd.f32 0.0, %v2329
      %v2331 = vpop.f32.mrf.mxu0
      %2332 = vmatprep.mubr.bf16.mxu0 0
      %2333 = vmatmul.mubr.bf16.gmra.mxu0 %v1121
      %v2334 = vpop.f32.mrf.mxu0
      %v2335 = vadd.f32 0.0, %v2334
      %v2336 = vpop.f32.mrf.mxu0
      %v2337 = vpop.f32.mrf.mxu0
      %v2338 = vadd.f32 0.0, %v2337
      %v2339 = vpop.f32.mrf.mxu0
      %2340 = vmatprep.mubr.bf16.mxu0 0
      %2341 = vmatmul.mubr.bf16.gmra.mxu0 %v1122
      %v2342 = vpop.f32.mrf.mxu0
      %v2343 = vadd.f32 0.0, %v2342
      %v2344 = vpop.f32.mrf.mxu0
      %v2345 = vpop.f32.mrf.mxu0
      %v2346 = vadd.f32 0.0, %v2345
      %v2347 = vpop.f32.mrf.mxu0
      %2348 = vmatprep.mubr.bf16.mxu0 0
      %2349 = vmatmul.mubr.bf16.gmra.mxu0 %v1123
      %v2350 = vpop.f32.mrf.mxu0
      %v2351 = vadd.f32 0.0, %v2350
      %v2352 = vpop.f32.mrf.mxu0
      %v2353 = vpop.f32.mrf.mxu0
      %v2354 = vadd.f32 0.0, %v2353
      %v2355 = vpop.f32.mrf.mxu0
      %2356 = vmatprep.mubr.bf16.mxu0 0
      %2357 = vmatmul.mubr.bf16.gmra.mxu0 %v1124
      %v2358 = vpop.f32.mrf.mxu0
      %v2359 = vadd.f32 0.0, %v2358
      %v2360 = vpop.f32.mrf.mxu0
      %v2361 = vpop.f32.mrf.mxu0
      %v2362 = vadd.f32 0.0, %v2361
      %v2363 = vpop.f32.mrf.mxu0
      %2364 = vmatprep.mubr.bf16.mxu0 0
      %2365 = vmatmul.mubr.bf16.gmra.mxu0 %v1125
      %v2366 = vpop.f32.mrf.mxu0
      %v2367 = vadd.f32 0.0, %v2366
      %v2368 = vpop.f32.mrf.mxu0
      %v2369 = vpop.f32.mrf.mxu0
      %v2370 = vadd.f32 0.0, %v2369
      %v2371 = vpop.f32.mrf.mxu0
      %2372 = vmatprep.mubr.bf16.mxu0 0
      %2373 = vmatmul.mubr.bf16.gmra.mxu0 %v1126
      %v2374 = vpop.f32.mrf.mxu0
      %v2375 = vadd.f32 0.0, %v2374
      %v2376 = vpop.f32.mrf.mxu0
      %v2377 = vpop.f32.mrf.mxu0
      %v2378 = vadd.f32 0.0, %v2377
      %v2379 = vpop.f32.mrf.mxu0
      %2380 = vmatprep.mubr.bf16.mxu0 0
      %2381 = vmatmul.mubr.bf16.gmra.mxu0 %v1127
      %v2382 = vpop.f32.mrf.mxu0
      %v2383 = vadd.f32 0.0, %v2382
      %v2384 = vpop.f32.mrf.mxu0
      %v2385 = vpop.f32.mrf.mxu0
      %v2386 = vadd.f32 0.0, %v2385
      %v2387 = vpop.f32.mrf.mxu0
      %2388 = vmatprep.mubr.bf16.mxu0 0
      %2389 = vmatmul.mubr.bf16.gmra.mxu0 %v1128
      %v2390 = vpop.f32.mrf.mxu0
      %v2391 = vadd.f32 0.0, %v2390
      %v2392 = vpop.f32.mrf.mxu0
      %v2393 = vpop.f32.mrf.mxu0
      %v2394 = vadd.f32 0.0, %v2393
      %v2395 = vpop.f32.mrf.mxu0
      %2396 = vmatprep.mubr.bf16.mxu0 0
      %2397 = vmatmul.mubr.bf16.gmra.mxu0 %v1129
      %v2398 = vpop.f32.mrf.mxu0
      %v2399 = vadd.f32 0.0, %v2398
      %v2400 = vpop.f32.mrf.mxu0
      %v2401 = vpop.f32.mrf.mxu0
      %v2402 = vadd.f32 0.0, %v2401
      %v2403 = vpop.f32.mrf.mxu0
      %2404 = vmatprep.mubr.bf16.mxu0 0
      %2405 = vmatmul.mubr.bf16.gmra.mxu0 %v1130
      %v2406 = vpop.f32.mrf.mxu0
      %v2407 = vadd.f32 0.0, %v2406
      %v2408 = vpop.f32.mrf.mxu0
      %v2409 = vpop.f32.mrf.mxu0
      %v2410 = vadd.f32 0.0, %v2409
      %v2411 = vpop.f32.mrf.mxu0
      %2412 = vmatprep.mubr.bf16.mxu0 0
      %2413 = vmatmul.mubr.bf16.gmra.mxu0 %v1131
      %v2414 = vpop.f32.mrf.mxu0
      %v2415 = vadd.f32 0.0, %v2414
      %v2416 = vpop.f32.mrf.mxu0
      %v2417 = vpop.f32.mrf.mxu0
      %v2418 = vadd.f32 0.0, %v2417
      %v2419 = vpop.f32.mrf.mxu0
      %2420 = vmatprep.mubr.bf16.mxu0 0
      %2421 = vmatmul.mubr.bf16.gmra.mxu0 %v1132
      %v2422 = vpop.f32.mrf.mxu0
      %v2423 = vadd.f32 0.0, %v2422
      %v2424 = vpop.f32.mrf.mxu0
      %v2425 = vpop.f32.mrf.mxu0
      %v2426 = vadd.f32 0.0, %v2425
      %v2427 = vpop.f32.mrf.mxu0
      %2428 = vmatprep.mubr.bf16.mxu0 0
      %2429 = vmatmul.mubr.bf16.gmra.mxu0 %v1133
      %v2430 = vpop.f32.mrf.mxu0
      %v2431 = vadd.f32 0.0, %v2430
      %v2432 = vpop.f32.mrf.mxu0
      %v2433 = vpop.f32.mrf.mxu0
      %v2434 = vadd.f32 0.0, %v2433
      %v2435 = vpop.f32.mrf.mxu0
      %2436 = vmatprep.mubr.bf16.mxu0 0
      %2437 = vmatmul.mubr.bf16.gmra.mxu0 %v1134
      %v2438 = vpop.f32.mrf.mxu0
      %v2439 = vadd.f32 0.0, %v2438
      %v2440 = vpop.f32.mrf.mxu0
      %v2441 = vpop.f32.mrf.mxu0
      %v2442 = vadd.f32 0.0, %v2441
      %v2443 = vpop.f32.mrf.mxu0
      %2444 = vmatprep.mubr.bf16.mxu0 0
      %2445 = vmatmul.mubr.bf16.gmra.mxu0 %v2226
      %v2446 = vpop.f32.mrf.mxu0
      %v2447 = vadd.f32 0.0, %v2446
      %v2448 = vpop.f32.mrf.mxu0
      %v2449 = vpop.f32.mrf.mxu0
      %v2450 = vadd.f32 0.0, %v2449
      %v2451 = vpop.f32.mrf.mxu0
      %2452 = vdwg.mxu0
      %v2453 = vadd.f32 %v2184, %v2327
      %v2454 = vadd.f32 %v2185, %v2330
      %v2455 = vadd.f32 %v2186, %v2335
      %v2456 = vadd.f32 %v2187, %v2338
      %v2457 = vadd.f32 %v2188, %v2343
      %v2458 = vadd.f32 %v2189, %v2346
      %v2459 = vadd.f32 %v2190, %v2351
      %v2460 = vadd.f32 %v2191, %v2354
      %v2461 = vadd.f32 %v2192, %v2359
      %v2462 = vadd.f32 %v2193, %v2362
      %v2463 = vadd.f32 %v2194, %v2367
      %v2464 = vadd.f32 %v2195, %v2370
      %v2465 = vadd.f32 %v2196, %v2375
      %v2466 = vadd.f32 %v2197, %v2378
      %v2467 = vadd.f32 %v2198, %v2383
      %v2468 = vadd.f32 %v2199, %v2386
      %v2469 = vadd.f32 %v2200, %v2391
      %v2470 = vadd.f32 %v2201, %v2394
      %v2471 = vadd.f32 %v2202, %v2399
      %v2472 = vadd.f32 %v2203, %v2402
      %v2473 = vadd.f32 %v2204, %v2407
      %v2474 = vadd.f32 %v2205, %v2410
      %v2475 = vadd.f32 %v2206, %v2415
      %v2476 = vadd.f32 %v2207, %v2418
      %v2477 = vadd.f32 %v2208, %v2423
      %v2478 = vadd.f32 %v2209, %v2426
      %v2479 = vadd.f32 %v2210, %v2431
      %v2480 = vadd.f32 %v2211, %v2434
      %v2481 = vadd.f32 %v2212, %v2439
      %v2482 = vadd.f32 %v2213, %v2442
      %v2483 = vadd.f32 %v2214, %v2447
      %v2484 = vadd.f32 %v2215, %v2450
      %v2485 = vrot.slane %v920, 2
      %v2486 = vrot.slane %v921, 2
      %v2487 = vsel %vm1570, %v2485, %v2486
      %v2488 = vrot.slane %v922, 2
      %v2489 = vsel %vm1570, %v2486, %v2488
      %v2492 = vpack.c.bf16 %v2489, %v2487
      %s2493 = scalar_lea.vmem %s4, 320
      %v2494 = vld [vmem:[%s2493] sm:$0xf]
      %v2495 = vld [vmem:[%s2493 + $0x4] sm:$0xf]
      %v2496 = vld [vmem:[%s2493 + $0x8] sm:$0xf]
      %v2497 = vld [vmem:[%s2493 + $0xc] sm:$0xf]
      %v2498 = vld [vmem:[%s2493 + $0x10] sm:$0xf]
      %v2499 = vld [vmem:[%s2493 + $0x14] sm:$0xf]
      %v2500 = vld [vmem:[%s2493 + $0x18] sm:$0xf]
      %v2501 = vld [vmem:[%s2493 + $0x1c] sm:$0xf]
      %v2502 = vld [vmem:[%s2493 + $0x20] sm:$0xf]
      %v2503 = vld [vmem:[%s2493 + $0x24] sm:$0xf]
      %v2504 = vld [vmem:[%s2493 + $0x28] sm:$0xf]
      %v2505 = vld [vmem:[%s2493 + $0x2c] sm:$0xf]
      %v2506 = vld [vmem:[%s2493 + $0x30] sm:$0xf]
      %v2507 = vld [vmem:[%s2493 + $0x34] sm:$0xf]
      %v2508 = vld [vmem:[%s2493 + $0x38] sm:$0xf]
      %v2509 = vld [vmem:[%s2493 + $0x3c] sm:$0xf]
      %v2526 = vunpack.c.l.b16 %v2494
      %v2527 = vunpack.c.l.b16 %v2495
      %v2528 = vunpack.c.l.b16 %v2496
      %v2529 = vunpack.c.l.b16 %v2497
      %v2530 = vunpack.c.l.b16 %v2498
      %v2531 = vunpack.c.l.b16 %v2499
      %v2532 = vunpack.c.l.b16 %v2500
      %v2533 = vunpack.c.l.b16 %v2501
      %v2534 = vunpack.c.l.b16 %v2502
      %v2535 = vunpack.c.l.b16 %v2503
      %v2536 = vunpack.c.l.b16 %v2504
      %v2537 = vunpack.c.l.b16 %v2505
      %v2538 = vunpack.c.l.b16 %v2506
      %v2539 = vunpack.c.l.b16 %v2507
      %v2540 = vunpack.c.l.b16 %v2508
      %v2541 = vunpack.c.l.b16 %v2509
      %v2542 = vpack.c.b16 %v2527, %v2526
      %v2543 = vpack.c.b16 %v2529, %v2528
      %v2544 = vpack.c.b16 %v2531, %v2530
      %v2545 = vpack.c.b16 %v2533, %v2532
      %v2546 = vpack.c.b16 %v2535, %v2534
      %v2547 = vpack.c.b16 %v2537, %v2536
      %v2548 = vpack.c.b16 %v2539, %v2538
      %v2549 = vpack.c.b16 %v2541, %v2540
      %2558 = vmatprep.subr.bf16.mxu0 0
      %2559 = vmatpush1.bf16.msra.mxu0 %v2549
      %2560 = vmatprep.subr.bf16.mxu0 0
      %2561 = vmatpush1.bf16.msra.mxu0 %v2548
      %2562 = vmatprep.subr.bf16.mxu0 0
      %2563 = vmatpush1.bf16.msra.mxu0 %v2547
      %2564 = vmatprep.subr.bf16.mxu0 0
      %2565 = vmatpush1.bf16.msra.mxu0 %v2546
      %2566 = vmatprep.subr.bf16.mxu0 0
      %2567 = vmatpush1.bf16.msra.mxu0 %v2545
      %2568 = vmatprep.subr.bf16.mxu0 0
      %2569 = vmatpush1.bf16.msra.mxu0 %v2544
      %2570 = vmatprep.subr.bf16.mxu0 0
      %2571 = vmatpush1.bf16.msra.mxu0 %v2543
      %2572 = vmatprep.subr.bf16.mxu0 0
      %2573 = vmatpush1.bf16.msra.mxu0 %v2542
      %2574 = vmatprep.subr.bf16.mxu0 0
      %2575 = vmatpush2.bf16.msra.mxu0 0
      %2576 = vmatprep.subr.bf16.mxu0 0
      %2577 = vmatpush2.bf16.msra.mxu0 0
      %2578 = vmatprep.subr.bf16.mxu0 0
      %2579 = vmatpush2.bf16.msra.mxu0 0
      %2580 = vmatprep.subr.bf16.mxu0 0
      %2581 = vmatpush2.bf16.msra.mxu0 0
      %2582 = vmatprep.subr.bf16.mxu0 0
      %2583 = vmatpush2.bf16.msra.mxu0 0
      %2584 = vmatprep.subr.bf16.mxu0 0
      %2585 = vmatpush2.bf16.msra.mxu0 0
      %2586 = vmatprep.subr.bf16.mxu0 0
      %2587 = vmatpush2.bf16.msra.mxu0 0
      %2588 = vmatprep.subr.bf16.mxu0 0
      %2589 = vmatpush2.bf16.msra.mxu0 0
      %2590 = vmatprep.mubr.bf16.mxu0 0
      %2591 = vmatmul.mubr.bf16.gmra.mxu0 %v1684
      %v2592 = vpop.f32.mrf.mxu0
      %v2593 = vadd.f32 0.0, %v2592
      %v2594 = vpop.f32.mrf.mxu0
      %v2595 = vpop.f32.mrf.mxu0
      %v2596 = vadd.f32 0.0, %v2595
      %v2597 = vpop.f32.mrf.mxu0
      %2598 = vmatprep.mubr.bf16.mxu0 0
      %2599 = vmatmul.mubr.bf16.gmra.mxu0 %v1685
      %v2600 = vpop.f32.mrf.mxu0
      %v2601 = vadd.f32 0.0, %v2600
      %v2602 = vpop.f32.mrf.mxu0
      %v2603 = vpop.f32.mrf.mxu0
      %v2604 = vadd.f32 0.0, %v2603
      %v2605 = vpop.f32.mrf.mxu0
      %2606 = vmatprep.mubr.bf16.mxu0 0
      %2607 = vmatmul.mubr.bf16.gmra.mxu0 %v1686
      %v2608 = vpop.f32.mrf.mxu0
      %v2609 = vadd.f32 0.0, %v2608
      %v2610 = vpop.f32.mrf.mxu0
      %v2611 = vpop.f32.mrf.mxu0
      %v2612 = vadd.f32 0.0, %v2611
      %v2613 = vpop.f32.mrf.mxu0
      %2614 = vmatprep.mubr.bf16.mxu0 0
      %2615 = vmatmul.mubr.bf16.gmra.mxu0 %v1687
      %v2616 = vpop.f32.mrf.mxu0
      %v2617 = vadd.f32 0.0, %v2616
      %v2618 = vpop.f32.mrf.mxu0
      %v2619 = vpop.f32.mrf.mxu0
      %v2620 = vadd.f32 0.0, %v2619
      %v2621 = vpop.f32.mrf.mxu0
      %2622 = vmatprep.mubr.bf16.mxu0 0
      %2623 = vmatmul.mubr.bf16.gmra.mxu0 %v1688
      %v2624 = vpop.f32.mrf.mxu0
      %v2625 = vadd.f32 0.0, %v2624
      %v2626 = vpop.f32.mrf.mxu0
      %v2627 = vpop.f32.mrf.mxu0
      %v2628 = vadd.f32 0.0, %v2627
      %v2629 = vpop.f32.mrf.mxu0
      %2630 = vmatprep.mubr.bf16.mxu0 0
      %2631 = vmatmul.mubr.bf16.gmra.mxu0 %v1689
      %v2632 = vpop.f32.mrf.mxu0
      %v2633 = vadd.f32 0.0, %v2632
      %v2634 = vpop.f32.mrf.mxu0
      %v2635 = vpop.f32.mrf.mxu0
      %v2636 = vadd.f32 0.0, %v2635
      %v2637 = vpop.f32.mrf.mxu0
      %2638 = vmatprep.mubr.bf16.mxu0 0
      %2639 = vmatmul.mubr.bf16.gmra.mxu0 %v1690
      %v2640 = vpop.f32.mrf.mxu0
      %v2641 = vadd.f32 0.0, %v2640
      %v2642 = vpop.f32.mrf.mxu0
      %v2643 = vpop.f32.mrf.mxu0
      %v2644 = vadd.f32 0.0, %v2643
      %v2645 = vpop.f32.mrf.mxu0
      %2646 = vmatprep.mubr.bf16.mxu0 0
      %2647 = vmatmul.mubr.bf16.gmra.mxu0 %v1691
      %v2648 = vpop.f32.mrf.mxu0
      %v2649 = vadd.f32 0.0, %v2648
      %v2650 = vpop.f32.mrf.mxu0
      %v2651 = vpop.f32.mrf.mxu0
      %v2652 = vadd.f32 0.0, %v2651
      %v2653 = vpop.f32.mrf.mxu0
      %2654 = vmatprep.mubr.bf16.mxu0 0
      %2655 = vmatmul.mubr.bf16.gmra.mxu0 %v1692
      %v2656 = vpop.f32.mrf.mxu0
      %v2657 = vadd.f32 0.0, %v2656
      %v2658 = vpop.f32.mrf.mxu0
      %v2659 = vpop.f32.mrf.mxu0
      %v2660 = vadd.f32 0.0, %v2659
      %v2661 = vpop.f32.mrf.mxu0
      %2662 = vmatprep.mubr.bf16.mxu0 0
      %2663 = vmatmul.mubr.bf16.gmra.mxu0 %v1693
      %v2664 = vpop.f32.mrf.mxu0
      %v2665 = vadd.f32 0.0, %v2664
      %v2666 = vpop.f32.mrf.mxu0
      %v2667 = vpop.f32.mrf.mxu0
      %v2668 = vadd.f32 0.0, %v2667
      %v2669 = vpop.f32.mrf.mxu0
      %2670 = vmatprep.mubr.bf16.mxu0 0
      %2671 = vmatmul.mubr.bf16.gmra.mxu0 %v1694
      %v2672 = vpop.f32.mrf.mxu0
      %v2673 = vadd.f32 0.0, %v2672
      %v2674 = vpop.f32.mrf.mxu0
      %v2675 = vpop.f32.mrf.mxu0
      %v2676 = vadd.f32 0.0, %v2675
      %v2677 = vpop.f32.mrf.mxu0
      %2678 = vmatprep.mubr.bf16.mxu0 0
      %2679 = vmatmul.mubr.bf16.gmra.mxu0 %v1695
      %v2680 = vpop.f32.mrf.mxu0
      %v2681 = vadd.f32 0.0, %v2680
      %v2682 = vpop.f32.mrf.mxu0
      %v2683 = vpop.f32.mrf.mxu0
      %v2684 = vadd.f32 0.0, %v2683
      %v2685 = vpop.f32.mrf.mxu0
      %2686 = vmatprep.mubr.bf16.mxu0 0
      %2687 = vmatmul.mubr.bf16.gmra.mxu0 %v1696
      %v2688 = vpop.f32.mrf.mxu0
      %v2689 = vadd.f32 0.0, %v2688
      %v2690 = vpop.f32.mrf.mxu0
      %v2691 = vpop.f32.mrf.mxu0
      %v2692 = vadd.f32 0.0, %v2691
      %v2693 = vpop.f32.mrf.mxu0
      %2694 = vmatprep.mubr.bf16.mxu0 0
      %2695 = vmatmul.mubr.bf16.gmra.mxu0 %v1697
      %v2696 = vpop.f32.mrf.mxu0
      %v2697 = vadd.f32 0.0, %v2696
      %v2698 = vpop.f32.mrf.mxu0
      %v2699 = vpop.f32.mrf.mxu0
      %v2700 = vadd.f32 0.0, %v2699
      %v2701 = vpop.f32.mrf.mxu0
      %2702 = vmatprep.mubr.bf16.mxu0 0
      %2703 = vmatmul.mubr.bf16.gmra.mxu0 %v1698
      %v2704 = vpop.f32.mrf.mxu0
      %v2705 = vadd.f32 0.0, %v2704
      %v2706 = vpop.f32.mrf.mxu0
      %v2707 = vpop.f32.mrf.mxu0
      %v2708 = vadd.f32 0.0, %v2707
      %v2709 = vpop.f32.mrf.mxu0
      %2710 = vmatprep.mubr.bf16.mxu0 0
      %2711 = vmatmul.mubr.bf16.gmra.mxu0 %v2492
      %v2712 = vpop.f32.mrf.mxu0
      %v2713 = vadd.f32 0.0, %v2712
      %v2714 = vpop.f32.mrf.mxu0
      %v2715 = vpop.f32.mrf.mxu0
      %v2716 = vadd.f32 0.0, %v2715
      %v2717 = vpop.f32.mrf.mxu0
      %2718 = vdwg.mxu0
      %v2719 = vadd.f32 %v2453, %v2593
      %v2720 = vadd.f32 %v2454, %v2596
      %v2721 = vadd.f32 %v2455, %v2601
      %v2722 = vadd.f32 %v2456, %v2604
      %v2723 = vadd.f32 %v2457, %v2609
      %v2724 = vadd.f32 %v2458, %v2612
      %v2725 = vadd.f32 %v2459, %v2617
      %v2726 = vadd.f32 %v2460, %v2620
      %v2727 = vadd.f32 %v2461, %v2625
      %v2728 = vadd.f32 %v2462, %v2628
      %v2729 = vadd.f32 %v2463, %v2633
      %v2730 = vadd.f32 %v2464, %v2636
      %v2731 = vadd.f32 %v2465, %v2641
      %v2732 = vadd.f32 %v2466, %v2644
      %v2733 = vadd.f32 %v2467, %v2649
      %v2734 = vadd.f32 %v2468, %v2652
      %v2735 = vadd.f32 %v2469, %v2657
      %v2736 = vadd.f32 %v2470, %v2660
      %v2737 = vadd.f32 %v2471, %v2665
      %v2738 = vadd.f32 %v2472, %v2668
      %v2739 = vadd.f32 %v2473, %v2673
      %v2740 = vadd.f32 %v2474, %v2676
      %v2741 = vadd.f32 %v2475, %v2681
      %v2742 = vadd.f32 %v2476, %v2684
      %v2743 = vadd.f32 %v2477, %v2689
      %v2744 = vadd.f32 %v2478, %v2692
      %v2745 = vadd.f32 %v2479, %v2697
      %v2746 = vadd.f32 %v2480, %v2700
      %v2747 = vadd.f32 %v2481, %v2705
      %v2748 = vadd.f32 %v2482, %v2708
      %v2749 = vadd.f32 %v2483, %v2713
      %v2750 = vadd.f32 %v2484, %v2716
      %v2751 = vpack.c.bf16 %v924, %v923
      %s2752 = scalar_lea.vmem %s4, 384
      %v2753 = vld [vmem:[%s2752] sm:$0xf]
      %v2754 = vld [vmem:[%s2752 + $0x4] sm:$0xf]
      %v2755 = vld [vmem:[%s2752 + $0x8] sm:$0xf]
      %v2756 = vld [vmem:[%s2752 + $0xc] sm:$0xf]
      %v2757 = vld [vmem:[%s2752 + $0x10] sm:$0xf]
      %v2758 = vld [vmem:[%s2752 + $0x14] sm:$0xf]
      %v2759 = vld [vmem:[%s2752 + $0x18] sm:$0xf]
      %v2760 = vld [vmem:[%s2752 + $0x1c] sm:$0xf]
      %v2761 = vld [vmem:[%s2752 + $0x20] sm:$0xf]
      %v2762 = vld [vmem:[%s2752 + $0x24] sm:$0xf]
      %v2763 = vld [vmem:[%s2752 + $0x28] sm:$0xf]
      %v2764 = vld [vmem:[%s2752 + $0x2c] sm:$0xf]
      %v2765 = vld [vmem:[%s2752 + $0x30] sm:$0xf]
      %v2766 = vld [vmem:[%s2752 + $0x34] sm:$0xf]
      %v2767 = vld [vmem:[%s2752 + $0x38] sm:$0xf]
      %v2768 = vld [vmem:[%s2752 + $0x3c] sm:$0xf]
      %v2785 = vunpack.c.l.b16 %v2753
      %v2786 = vunpack.c.l.b16 %v2754
      %v2787 = vunpack.c.l.b16 %v2755
      %v2788 = vunpack.c.l.b16 %v2756
      %v2789 = vunpack.c.l.b16 %v2757
      %v2790 = vunpack.c.l.b16 %v2758
      %v2791 = vunpack.c.l.b16 %v2759
      %v2792 = vunpack.c.l.b16 %v2760
      %v2793 = vunpack.c.l.b16 %v2761
      %v2794 = vunpack.c.l.b16 %v2762
      %v2795 = vunpack.c.l.b16 %v2763
      %v2796 = vunpack.c.l.b16 %v2764
      %v2797 = vunpack.c.l.b16 %v2765
      %v2798 = vunpack.c.l.b16 %v2766
      %v2799 = vunpack.c.l.b16 %v2767
      %v2800 = vunpack.c.l.b16 %v2768
      %v2801 = vpack.c.b16 %v2786, %v2785
      %v2802 = vpack.c.b16 %v2788, %v2787
      %v2803 = vpack.c.b16 %v2790, %v2789
      %v2804 = vpack.c.b16 %v2792, %v2791
      %v2805 = vpack.c.b16 %v2794, %v2793
      %v2806 = vpack.c.b16 %v2796, %v2795
      %v2807 = vpack.c.b16 %v2798, %v2797
      %v2808 = vpack.c.b16 %v2800, %v2799
      %2817 = vmatprep.subr.bf16.mxu0 0
      %2818 = vmatpush1.bf16.msra.mxu0 %v2808
      %2819 = vmatprep.subr.bf16.mxu0 0
      %2820 = vmatpush1.bf16.msra.mxu0 %v2807
      %2821 = vmatprep.subr.bf16.mxu0 0
      %2822 = vmatpush1.bf16.msra.mxu0 %v2806
      %2823 = vmatprep.subr.bf16.mxu0 0
      %2824 = vmatpush1.bf16.msra.mxu0 %v2805
      %2825 = vmatprep.subr.bf16.mxu0 0
      %2826 = vmatpush1.bf16.msra.mxu0 %v2804
      %2827 = vmatprep.subr.bf16.mxu0 0
      %2828 = vmatpush1.bf16.msra.mxu0 %v2803
      %2829 = vmatprep.subr.bf16.mxu0 0
      %2830 = vmatpush1.bf16.msra.mxu0 %v2802
      %2831 = vmatprep.subr.bf16.mxu0 0
      %2832 = vmatpush1.bf16.msra.mxu0 %v2801
      %2833 = vmatprep.subr.bf16.mxu0 0
      %2834 = vmatpush2.bf16.msra.mxu0 0
      %2835 = vmatprep.subr.bf16.mxu0 0
      %2836 = vmatpush2.bf16.msra.mxu0 0
      %2837 = vmatprep.subr.bf16.mxu0 0
      %2838 = vmatpush2.bf16.msra.mxu0 0
      %2839 = vmatprep.subr.bf16.mxu0 0
      %2840 = vmatpush2.bf16.msra.mxu0 0
      %2841 = vmatprep.subr.bf16.mxu0 0
      %2842 = vmatpush2.bf16.msra.mxu0 0
      %2843 = vmatprep.subr.bf16.mxu0 0
      %2844 = vmatpush2.bf16.msra.mxu0 0
      %2845 = vmatprep.subr.bf16.mxu0 0
      %2846 = vmatpush2.bf16.msra.mxu0 0
      %2847 = vmatprep.subr.bf16.mxu0 0
      %2848 = vmatpush2.bf16.msra.mxu0 0
      %2849 = vmatprep.mubr.bf16.mxu0 0
      %2850 = vmatmul.mubr.bf16.gmra.mxu0 %v928
      %v2851 = vpop.f32.mrf.mxu0
      %v2852 = vadd.f32 0.0, %v2851
      %v2853 = vpop.f32.mrf.mxu0
      %v2854 = vpop.f32.mrf.mxu0
      %v2855 = vadd.f32 0.0, %v2854
      %v2856 = vpop.f32.mrf.mxu0
      %2857 = vmatprep.mubr.bf16.mxu0 0
      %2858 = vmatmul.mubr.bf16.gmra.mxu0 %v929
      %v2859 = vpop.f32.mrf.mxu0
      %v2860 = vadd.f32 0.0, %v2859
      %v2861 = vpop.f32.mrf.mxu0
      %v2862 = vpop.f32.mrf.mxu0
      %v2863 = vadd.f32 0.0, %v2862
      %v2864 = vpop.f32.mrf.mxu0
      %2865 = vmatprep.mubr.bf16.mxu0 0
      %2866 = vmatmul.mubr.bf16.gmra.mxu0 %v930
      %v2867 = vpop.f32.mrf.mxu0
      %v2868 = vadd.f32 0.0, %v2867
      %v2869 = vpop.f32.mrf.mxu0
      %v2870 = vpop.f32.mrf.mxu0
      %v2871 = vadd.f32 0.0, %v2870
      %v2872 = vpop.f32.mrf.mxu0
      %2873 = vmatprep.mubr.bf16.mxu0 0
      %2874 = vmatmul.mubr.bf16.gmra.mxu0 %v931
      %v2875 = vpop.f32.mrf.mxu0
      %v2876 = vadd.f32 0.0, %v2875
      %v2877 = vpop.f32.mrf.mxu0
      %v2878 = vpop.f32.mrf.mxu0
      %v2879 = vadd.f32 0.0, %v2878
      %v2880 = vpop.f32.mrf.mxu0
      %2881 = vmatprep.mubr.bf16.mxu0 0
      %2882 = vmatmul.mubr.bf16.gmra.mxu0 %v932
      %v2883 = vpop.f32.mrf.mxu0
      %v2884 = vadd.f32 0.0, %v2883
      %v2885 = vpop.f32.mrf.mxu0
      %v2886 = vpop.f32.mrf.mxu0
      %v2887 = vadd.f32 0.0, %v2886
      %v2888 = vpop.f32.mrf.mxu0
      %2889 = vmatprep.mubr.bf16.mxu0 0
      %2890 = vmatmul.mubr.bf16.gmra.mxu0 %v933
      %v2891 = vpop.f32.mrf.mxu0
      %v2892 = vadd.f32 0.0, %v2891
      %v2893 = vpop.f32.mrf.mxu0
      %v2894 = vpop.f32.mrf.mxu0
      %v2895 = vadd.f32 0.0, %v2894
      %v2896 = vpop.f32.mrf.mxu0
      %2897 = vmatprep.mubr.bf16.mxu0 0
      %2898 = vmatmul.mubr.bf16.gmra.mxu0 %v934
      %v2899 = vpop.f32.mrf.mxu0
      %v2900 = vadd.f32 0.0, %v2899
      %v2901 = vpop.f32.mrf.mxu0
      %v2902 = vpop.f32.mrf.mxu0
      %v2903 = vadd.f32 0.0, %v2902
      %v2904 = vpop.f32.mrf.mxu0
      %2905 = vmatprep.mubr.bf16.mxu0 0
      %2906 = vmatmul.mubr.bf16.gmra.mxu0 %v935
      %v2907 = vpop.f32.mrf.mxu0
      %v2908 = vadd.f32 0.0, %v2907
      %v2909 = vpop.f32.mrf.mxu0
      %v2910 = vpop.f32.mrf.mxu0
      %v2911 = vadd.f32 0.0, %v2910
      %v2912 = vpop.f32.mrf.mxu0
      %2913 = vmatprep.mubr.bf16.mxu0 0
      %2914 = vmatmul.mubr.bf16.gmra.mxu0 %v936
      %v2915 = vpop.f32.mrf.mxu0
      %v2916 = vadd.f32 0.0, %v2915
      %v2917 = vpop.f32.mrf.mxu0
      %v2918 = vpop.f32.mrf.mxu0
      %v2919 = vadd.f32 0.0, %v2918
      %v2920 = vpop.f32.mrf.mxu0
      %2921 = vmatprep.mubr.bf16.mxu0 0
      %2922 = vmatmul.mubr.bf16.gmra.mxu0 %v937
      %v2923 = vpop.f32.mrf.mxu0
      %v2924 = vadd.f32 0.0, %v2923
      %v2925 = vpop.f32.mrf.mxu0
      %v2926 = vpop.f32.mrf.mxu0
      %v2927 = vadd.f32 0.0, %v2926
      %v2928 = vpop.f32.mrf.mxu0
      %2929 = vmatprep.mubr.bf16.mxu0 0
      %2930 = vmatmul.mubr.bf16.gmra.mxu0 %v938
      %v2931 = vpop.f32.mrf.mxu0
      %v2932 = vadd.f32 0.0, %v2931
      %v2933 = vpop.f32.mrf.mxu0
      %v2934 = vpop.f32.mrf.mxu0
      %v2935 = vadd.f32 0.0, %v2934
      %v2936 = vpop.f32.mrf.mxu0
      %2937 = vmatprep.mubr.bf16.mxu0 0
      %2938 = vmatmul.mubr.bf16.gmra.mxu0 %v939
      %v2939 = vpop.f32.mrf.mxu0
      %v2940 = vadd.f32 0.0, %v2939
      %v2941 = vpop.f32.mrf.mxu0
      %v2942 = vpop.f32.mrf.mxu0
      %v2943 = vadd.f32 0.0, %v2942
      %v2944 = vpop.f32.mrf.mxu0
      %2945 = vmatprep.mubr.bf16.mxu0 0
      %2946 = vmatmul.mubr.bf16.gmra.mxu0 %v940
      %v2947 = vpop.f32.mrf.mxu0
      %v2948 = vadd.f32 0.0, %v2947
      %v2949 = vpop.f32.mrf.mxu0
      %v2950 = vpop.f32.mrf.mxu0
      %v2951 = vadd.f32 0.0, %v2950
      %v2952 = vpop.f32.mrf.mxu0
      %2953 = vmatprep.mubr.bf16.mxu0 0
      %2954 = vmatmul.mubr.bf16.gmra.mxu0 %v941
      %v2955 = vpop.f32.mrf.mxu0
      %v2956 = vadd.f32 0.0, %v2955
      %v2957 = vpop.f32.mrf.mxu0
      %v2958 = vpop.f32.mrf.mxu0
      %v2959 = vadd.f32 0.0, %v2958
      %v2960 = vpop.f32.mrf.mxu0
      %2961 = vmatprep.mubr.bf16.mxu0 0
      %2962 = vmatmul.mubr.bf16.gmra.mxu0 %v1957
      %v2963 = vpop.f32.mrf.mxu0
      %v2964 = vadd.f32 0.0, %v2963
      %v2965 = vpop.f32.mrf.mxu0
      %v2966 = vpop.f32.mrf.mxu0
      %v2967 = vadd.f32 0.0, %v2966
      %v2968 = vpop.f32.mrf.mxu0
      %2969 = vmatprep.mubr.bf16.mxu0 0
      %2970 = vmatmul.mubr.bf16.gmra.mxu0 %v2751
      %v2971 = vpop.f32.mrf.mxu0
      %v2972 = vadd.f32 0.0, %v2971
      %v2973 = vpop.f32.mrf.mxu0
      %v2974 = vpop.f32.mrf.mxu0
      %v2975 = vadd.f32 0.0, %v2974
      %v2976 = vpop.f32.mrf.mxu0
      %2977 = vdwg.mxu0
      %v2978 = vadd.f32 %v2719, %v2852
      %v2979 = vadd.f32 %v2720, %v2855
      %v2980 = vadd.f32 %v2721, %v2860
      %v2981 = vadd.f32 %v2722, %v2863
      %v2982 = vadd.f32 %v2723, %v2868
      %v2983 = vadd.f32 %v2724, %v2871
      %v2984 = vadd.f32 %v2725, %v2876
      %v2985 = vadd.f32 %v2726, %v2879
      %v2986 = vadd.f32 %v2727, %v2884
      %v2987 = vadd.f32 %v2728, %v2887
      %v2988 = vadd.f32 %v2729, %v2892
      %v2989 = vadd.f32 %v2730, %v2895
      %v2990 = vadd.f32 %v2731, %v2900
      %v2991 = vadd.f32 %v2732, %v2903
      %v2992 = vadd.f32 %v2733, %v2908
      %v2993 = vadd.f32 %v2734, %v2911
      %v2994 = vadd.f32 %v2735, %v2916
      %v2995 = vadd.f32 %v2736, %v2919
      %v2996 = vadd.f32 %v2737, %v2924
      %v2997 = vadd.f32 %v2738, %v2927
      %v2998 = vadd.f32 %v2739, %v2932
      %v2999 = vadd.f32 %v2740, %v2935
      %v3000 = vadd.f32 %v2741, %v2940
      %v3001 = vadd.f32 %v2742, %v2943
      %v3002 = vadd.f32 %v2743, %v2948
      %v3003 = vadd.f32 %v2744, %v2951
      %v3004 = vadd.f32 %v2745, %v2956
      %v3005 = vadd.f32 %v2746, %v2959
      %v3006 = vadd.f32 %v2747, %v2964
      %v3007 = vadd.f32 %v2748, %v2967
      %v3008 = vadd.f32 %v2749, %v2972
      %v3009 = vadd.f32 %v2750, %v2975
      %v3013 = vrot.slane %v923, 1
      %v3014 = vrot.slane %v924, 1
      %v3015 = vsel %vm1006, %v3013, %v3014
      %v3016 = vrot.slane %v925, 1
      %v3017 = vsel %vm1006, %v3014, %v3016
      %v3020 = vpack.c.bf16 %v3017, %v3015
      %s3021 = scalar_lea.vmem %s4, 448
      %v3022 = vld [vmem:[%s3021] sm:$0xf]
      %v3023 = vld [vmem:[%s3021 + $0x4] sm:$0xf]
      %v3024 = vld [vmem:[%s3021 + $0x8] sm:$0xf]
      %v3025 = vld [vmem:[%s3021 + $0xc] sm:$0xf]
      %v3026 = vld [vmem:[%s3021 + $0x10] sm:$0xf]
      %v3027 = vld [vmem:[%s3021 + $0x14] sm:$0xf]
      %v3028 = vld [vmem:[%s3021 + $0x18] sm:$0xf]
      %v3029 = vld [vmem:[%s3021 + $0x1c] sm:$0xf]
      %v3030 = vld [vmem:[%s3021 + $0x20] sm:$0xf]
      %v3031 = vld [vmem:[%s3021 + $0x24] sm:$0xf]
      %v3032 = vld [vmem:[%s3021 + $0x28] sm:$0xf]
      %v3033 = vld [vmem:[%s3021 + $0x2c] sm:$0xf]
      %v3034 = vld [vmem:[%s3021 + $0x30] sm:$0xf]
      %v3035 = vld [vmem:[%s3021 + $0x34] sm:$0xf]
      %v3036 = vld [vmem:[%s3021 + $0x38] sm:$0xf]
      %v3037 = vld [vmem:[%s3021 + $0x3c] sm:$0xf]
      %v3054 = vunpack.c.l.b16 %v3022
      %v3055 = vunpack.c.l.b16 %v3023
      %v3056 = vunpack.c.l.b16 %v3024
      %v3057 = vunpack.c.l.b16 %v3025
      %v3058 = vunpack.c.l.b16 %v3026
      %v3059 = vunpack.c.l.b16 %v3027
      %v3060 = vunpack.c.l.b16 %v3028
      %v3061 = vunpack.c.l.b16 %v3029
      %v3062 = vunpack.c.l.b16 %v3030
      %v3063 = vunpack.c.l.b16 %v3031
      %v3064 = vunpack.c.l.b16 %v3032
      %v3065 = vunpack.c.l.b16 %v3033
      %v3066 = vunpack.c.l.b16 %v3034
      %v3067 = vunpack.c.l.b16 %v3035
      %v3068 = vunpack.c.l.b16 %v3036
      %v3069 = vunpack.c.l.b16 %v3037
      %v3070 = vpack.c.b16 %v3055, %v3054
      %v3071 = vpack.c.b16 %v3057, %v3056
      %v3072 = vpack.c.b16 %v3059, %v3058
      %v3073 = vpack.c.b16 %v3061, %v3060
      %v3074 = vpack.c.b16 %v3063, %v3062
      %v3075 = vpack.c.b16 %v3065, %v3064
      %v3076 = vpack.c.b16 %v3067, %v3066
      %v3077 = vpack.c.b16 %v3069, %v3068
      %3086 = vmatprep.subr.bf16.mxu0 0
      %3087 = vmatpush1.bf16.msra.mxu0 %v3077
      %3088 = vmatprep.subr.bf16.mxu0 0
      %3089 = vmatpush1.bf16.msra.mxu0 %v3076
      %3090 = vmatprep.subr.bf16.mxu0 0
      %3091 = vmatpush1.bf16.msra.mxu0 %v3075
      %3092 = vmatprep.subr.bf16.mxu0 0
      %3093 = vmatpush1.bf16.msra.mxu0 %v3074
      %3094 = vmatprep.subr.bf16.mxu0 0
      %3095 = vmatpush1.bf16.msra.mxu0 %v3073
      %3096 = vmatprep.subr.bf16.mxu0 0
      %3097 = vmatpush1.bf16.msra.mxu0 %v3072
      %3098 = vmatprep.subr.bf16.mxu0 0
      %3099 = vmatpush1.bf16.msra.mxu0 %v3071
      %3100 = vmatprep.subr.bf16.mxu0 0
      %3101 = vmatpush1.bf16.msra.mxu0 %v3070
      %3102 = vmatprep.subr.bf16.mxu0 0
      %3103 = vmatpush2.bf16.msra.mxu0 0
      %3104 = vmatprep.subr.bf16.mxu0 0
      %3105 = vmatpush2.bf16.msra.mxu0 0
      %3106 = vmatprep.subr.bf16.mxu0 0
      %3107 = vmatpush2.bf16.msra.mxu0 0
      %3108 = vmatprep.subr.bf16.mxu0 0
      %3109 = vmatpush2.bf16.msra.mxu0 0
      %3110 = vmatprep.subr.bf16.mxu0 0
      %3111 = vmatpush2.bf16.msra.mxu0 0
      %3112 = vmatprep.subr.bf16.mxu0 0
      %3113 = vmatpush2.bf16.msra.mxu0 0
      %3114 = vmatprep.subr.bf16.mxu0 0
      %3115 = vmatpush2.bf16.msra.mxu0 0
      %3116 = vmatprep.subr.bf16.mxu0 0
      %3117 = vmatpush2.bf16.msra.mxu0 0
      %3118 = vmatprep.mubr.bf16.mxu0 0
      %3119 = vmatmul.mubr.bf16.gmra.mxu0 %v1121
      %v3120 = vpop.f32.mrf.mxu0
      %v3121 = vadd.f32 0.0, %v3120
      %v3122 = vpop.f32.mrf.mxu0
      %v3123 = vpop.f32.mrf.mxu0
      %v3124 = vadd.f32 0.0, %v3123
      %v3125 = vpop.f32.mrf.mxu0
      %3126 = vmatprep.mubr.bf16.mxu0 0
      %3127 = vmatmul.mubr.bf16.gmra.mxu0 %v1122
      %v3128 = vpop.f32.mrf.mxu0
      %v3129 = vadd.f32 0.0, %v3128
      %v3130 = vpop.f32.mrf.mxu0
      %v3131 = vpop.f32.mrf.mxu0
      %v3132 = vadd.f32 0.0, %v3131
      %v3133 = vpop.f32.mrf.mxu0
      %3134 = vmatprep.mubr.bf16.mxu0 0
      %3135 = vmatmul.mubr.bf16.gmra.mxu0 %v1123
      %v3136 = vpop.f32.mrf.mxu0
      %v3137 = vadd.f32 0.0, %v3136
      %v3138 = vpop.f32.mrf.mxu0
      %v3139 = vpop.f32.mrf.mxu0
      %v3140 = vadd.f32 0.0, %v3139
      %v3141 = vpop.f32.mrf.mxu0
      %3142 = vmatprep.mubr.bf16.mxu0 0
      %3143 = vmatmul.mubr.bf16.gmra.mxu0 %v1124
      %v3144 = vpop.f32.mrf.mxu0
      %v3145 = vadd.f32 0.0, %v3144
      %v3146 = vpop.f32.mrf.mxu0
      %v3147 = vpop.f32.mrf.mxu0
      %v3148 = vadd.f32 0.0, %v3147
      %v3149 = vpop.f32.mrf.mxu0
      %3150 = vmatprep.mubr.bf16.mxu0 0
      %3151 = vmatmul.mubr.bf16.gmra.mxu0 %v1125
      %v3152 = vpop.f32.mrf.mxu0
      %v3153 = vadd.f32 0.0, %v3152
      %v3154 = vpop.f32.mrf.mxu0
      %v3155 = vpop.f32.mrf.mxu0
      %v3156 = vadd.f32 0.0, %v3155
      %v3157 = vpop.f32.mrf.mxu0
      %3158 = vmatprep.mubr.bf16.mxu0 0
      %3159 = vmatmul.mubr.bf16.gmra.mxu0 %v1126
      %v3160 = vpop.f32.mrf.mxu0
      %v3161 = vadd.f32 0.0, %v3160
      %v3162 = vpop.f32.mrf.mxu0
      %v3163 = vpop.f32.mrf.mxu0
      %v3164 = vadd.f32 0.0, %v3163
      %v3165 = vpop.f32.mrf.mxu0
      %3166 = vmatprep.mubr.bf16.mxu0 0
      %3167 = vmatmul.mubr.bf16.gmra.mxu0 %v1127
      %v3168 = vpop.f32.mrf.mxu0
      %v3169 = vadd.f32 0.0, %v3168
      %v3170 = vpop.f32.mrf.mxu0
      %v3171 = vpop.f32.mrf.mxu0
      %v3172 = vadd.f32 0.0, %v3171
      %v3173 = vpop.f32.mrf.mxu0
      %3174 = vmatprep.mubr.bf16.mxu0 0
      %3175 = vmatmul.mubr.bf16.gmra.mxu0 %v1128
      %v3176 = vpop.f32.mrf.mxu0
      %v3177 = vadd.f32 0.0, %v3176
      %v3178 = vpop.f32.mrf.mxu0
      %v3179 = vpop.f32.mrf.mxu0
      %v3180 = vadd.f32 0.0, %v3179
      %v3181 = vpop.f32.mrf.mxu0
      %3182 = vmatprep.mubr.bf16.mxu0 0
      %3183 = vmatmul.mubr.bf16.gmra.mxu0 %v1129
      %v3184 = vpop.f32.mrf.mxu0
      %v3185 = vadd.f32 0.0, %v3184
      %v3186 = vpop.f32.mrf.mxu0
      %v3187 = vpop.f32.mrf.mxu0
      %v3188 = vadd.f32 0.0, %v3187
      %v3189 = vpop.f32.mrf.mxu0
      %3190 = vmatprep.mubr.bf16.mxu0 0
      %3191 = vmatmul.mubr.bf16.gmra.mxu0 %v1130
      %v3192 = vpop.f32.mrf.mxu0
      %v3193 = vadd.f32 0.0, %v3192
      %v3194 = vpop.f32.mrf.mxu0
      %v3195 = vpop.f32.mrf.mxu0
      %v3196 = vadd.f32 0.0, %v3195
      %v3197 = vpop.f32.mrf.mxu0
      %3198 = vmatprep.mubr.bf16.mxu0 0
      %3199 = vmatmul.mubr.bf16.gmra.mxu0 %v1131
      %v3200 = vpop.f32.mrf.mxu0
      %v3201 = vadd.f32 0.0, %v3200
      %v3202 = vpop.f32.mrf.mxu0
      %v3203 = vpop.f32.mrf.mxu0
      %v3204 = vadd.f32 0.0, %v3203
      %v3205 = vpop.f32.mrf.mxu0
      %3206 = vmatprep.mubr.bf16.mxu0 0
      %3207 = vmatmul.mubr.bf16.gmra.mxu0 %v1132
      %v3208 = vpop.f32.mrf.mxu0
      %v3209 = vadd.f32 0.0, %v3208
      %v3210 = vpop.f32.mrf.mxu0
      %v3211 = vpop.f32.mrf.mxu0
      %v3212 = vadd.f32 0.0, %v3211
      %v3213 = vpop.f32.mrf.mxu0
      %3214 = vmatprep.mubr.bf16.mxu0 0
      %3215 = vmatmul.mubr.bf16.gmra.mxu0 %v1133
      %v3216 = vpop.f32.mrf.mxu0
      %v3217 = vadd.f32 0.0, %v3216
      %v3218 = vpop.f32.mrf.mxu0
      %v3219 = vpop.f32.mrf.mxu0
      %v3220 = vadd.f32 0.0, %v3219
      %v3221 = vpop.f32.mrf.mxu0
      %3222 = vmatprep.mubr.bf16.mxu0 0
      %3223 = vmatmul.mubr.bf16.gmra.mxu0 %v1134
      %v3224 = vpop.f32.mrf.mxu0
      %v3225 = vadd.f32 0.0, %v3224
      %v3226 = vpop.f32.mrf.mxu0
      %v3227 = vpop.f32.mrf.mxu0
      %v3228 = vadd.f32 0.0, %v3227
      %v3229 = vpop.f32.mrf.mxu0
      %3230 = vmatprep.mubr.bf16.mxu0 0
      %3231 = vmatmul.mubr.bf16.gmra.mxu0 %v2226
      %v3232 = vpop.f32.mrf.mxu0
      %v3233 = vadd.f32 0.0, %v3232
      %v3234 = vpop.f32.mrf.mxu0
      %v3235 = vpop.f32.mrf.mxu0
      %v3236 = vadd.f32 0.0, %v3235
      %v3237 = vpop.f32.mrf.mxu0
      %3238 = vmatprep.mubr.bf16.mxu0 0
      %3239 = vmatmul.mubr.bf16.gmra.mxu0 %v3020
      %v3240 = vpop.f32.mrf.mxu0
      %v3241 = vadd.f32 0.0, %v3240
      %v3242 = vpop.f32.mrf.mxu0
      %v3243 = vpop.f32.mrf.mxu0
      %v3244 = vadd.f32 0.0, %v3243
      %v3245 = vpop.f32.mrf.mxu0
      %3246 = vdwg.mxu0
      %v3247 = vadd.f32 %v2978, %v3121
      %v3248 = vadd.f32 %v2979, %v3124
      %v3249 = vadd.f32 %v2980, %v3129
      %v3250 = vadd.f32 %v2981, %v3132
      %v3251 = vadd.f32 %v2982, %v3137
      %v3252 = vadd.f32 %v2983, %v3140
      %v3253 = vadd.f32 %v2984, %v3145
      %v3254 = vadd.f32 %v2985, %v3148
      %v3255 = vadd.f32 %v2986, %v3153
      %v3256 = vadd.f32 %v2987, %v3156
      %v3257 = vadd.f32 %v2988, %v3161
      %v3258 = vadd.f32 %v2989, %v3164
      %v3259 = vadd.f32 %v2990, %v3169
      %v3260 = vadd.f32 %v2991, %v3172
      %v3261 = vadd.f32 %v2992, %v3177
      %v3262 = vadd.f32 %v2993, %v3180
      %v3263 = vadd.f32 %v2994, %v3185
      %v3264 = vadd.f32 %v2995, %v3188
      %v3265 = vadd.f32 %v2996, %v3193
      %v3266 = vadd.f32 %v2997, %v3196
      %v3267 = vadd.f32 %v2998, %v3201
      %v3268 = vadd.f32 %v2999, %v3204
      %v3269 = vadd.f32 %v3000, %v3209
      %v3270 = vadd.f32 %v3001, %v3212
      %v3271 = vadd.f32 %v3002, %v3217
      %v3272 = vadd.f32 %v3003, %v3220
      %v3273 = vadd.f32 %v3004, %v3225
      %v3274 = vadd.f32 %v3005, %v3228
      %v3275 = vadd.f32 %v3006, %v3233
      %v3276 = vadd.f32 %v3007, %v3236
      %v3277 = vadd.f32 %v3008, %v3241
      %v3278 = vadd.f32 %v3009, %v3244
      %v3279 = vrot.slane %v923, 2
      %v3280 = vrot.slane %v924, 2
      %v3281 = vsel %vm1570, %v3279, %v3280
      %v3282 = vrot.slane %v925, 2
      %v3283 = vsel %vm1570, %v3280, %v3282
      %v3286 = vpack.c.bf16 %v3283, %v3281
      %s3287 = scalar_lea.vmem %s4, 512
      %v3288 = vld [vmem:[%s3287] sm:$0xf]
      %v3289 = vld [vmem:[%s3287 + $0x4] sm:$0xf]
      %v3290 = vld [vmem:[%s3287 + $0x8] sm:$0xf]
      %v3291 = vld [vmem:[%s3287 + $0xc] sm:$0xf]
      %v3292 = vld [vmem:[%s3287 + $0x10] sm:$0xf]
      %v3293 = vld [vmem:[%s3287 + $0x14] sm:$0xf]
      %v3294 = vld [vmem:[%s3287 + $0x18] sm:$0xf]
      %v3295 = vld [vmem:[%s3287 + $0x1c] sm:$0xf]
      %v3296 = vld [vmem:[%s3287 + $0x20] sm:$0xf]
      %v3297 = vld [vmem:[%s3287 + $0x24] sm:$0xf]
      %v3298 = vld [vmem:[%s3287 + $0x28] sm:$0xf]
      %v3299 = vld [vmem:[%s3287 + $0x2c] sm:$0xf]
      %v3300 = vld [vmem:[%s3287 + $0x30] sm:$0xf]
      %v3301 = vld [vmem:[%s3287 + $0x34] sm:$0xf]
      %v3302 = vld [vmem:[%s3287 + $0x38] sm:$0xf]
      %v3303 = vld [vmem:[%s3287 + $0x3c] sm:$0xf]
      %v3320 = vunpack.c.l.b16 %v3288
      %v3321 = vunpack.c.l.b16 %v3289
      %v3322 = vunpack.c.l.b16 %v3290
      %v3323 = vunpack.c.l.b16 %v3291
      %v3324 = vunpack.c.l.b16 %v3292
      %v3325 = vunpack.c.l.b16 %v3293
      %v3326 = vunpack.c.l.b16 %v3294
      %v3327 = vunpack.c.l.b16 %v3295
      %v3328 = vunpack.c.l.b16 %v3296
      %v3329 = vunpack.c.l.b16 %v3297
      %v3330 = vunpack.c.l.b16 %v3298
      %v3331 = vunpack.c.l.b16 %v3299
      %v3332 = vunpack.c.l.b16 %v3300
      %v3333 = vunpack.c.l.b16 %v3301
      %v3334 = vunpack.c.l.b16 %v3302
      %v3335 = vunpack.c.l.b16 %v3303
      %v3336 = vpack.c.b16 %v3321, %v3320
      %v3337 = vpack.c.b16 %v3323, %v3322
      %v3338 = vpack.c.b16 %v3325, %v3324
      %v3339 = vpack.c.b16 %v3327, %v3326
      %v3340 = vpack.c.b16 %v3329, %v3328
      %v3341 = vpack.c.b16 %v3331, %v3330
      %v3342 = vpack.c.b16 %v3333, %v3332
      %v3343 = vpack.c.b16 %v3335, %v3334
      %3352 = vmatprep.subr.bf16.mxu0 0
      %3353 = vmatpush1.bf16.msra.mxu0 %v3343
      %3354 = vmatprep.subr.bf16.mxu0 0
      %3355 = vmatpush1.bf16.msra.mxu0 %v3342
      %3356 = vmatprep.subr.bf16.mxu0 0
      %3357 = vmatpush1.bf16.msra.mxu0 %v3341
      %3358 = vmatprep.subr.bf16.mxu0 0
      %3359 = vmatpush1.bf16.msra.mxu0 %v3340
      %3360 = vmatprep.subr.bf16.mxu0 0
      %3361 = vmatpush1.bf16.msra.mxu0 %v3339
      %3362 = vmatprep.subr.bf16.mxu0 0
      %3363 = vmatpush1.bf16.msra.mxu0 %v3338
      %3364 = vmatprep.subr.bf16.mxu0 0
      %3365 = vmatpush1.bf16.msra.mxu0 %v3337
      %3366 = vmatprep.subr.bf16.mxu0 0
      %3367 = vmatpush1.bf16.msra.mxu0 %v3336
      %3368 = vmatprep.subr.bf16.mxu0 0
      %3369 = vmatpush2.bf16.msra.mxu0 0
      %3370 = vmatprep.subr.bf16.mxu0 0
      %3371 = vmatpush2.bf16.msra.mxu0 0
      %3372 = vmatprep.subr.bf16.mxu0 0
      %3373 = vmatpush2.bf16.msra.mxu0 0
      %3374 = vmatprep.subr.bf16.mxu0 0
      %3375 = vmatpush2.bf16.msra.mxu0 0
      %3376 = vmatprep.subr.bf16.mxu0 0
      %3377 = vmatpush2.bf16.msra.mxu0 0
      %3378 = vmatprep.subr.bf16.mxu0 0
      %3379 = vmatpush2.bf16.msra.mxu0 0
      %3380 = vmatprep.subr.bf16.mxu0 0
      %3381 = vmatpush2.bf16.msra.mxu0 0
      %3382 = vmatprep.subr.bf16.mxu0 0
      %3383 = vmatpush2.bf16.msra.mxu0 0
      %3384 = vmatprep.mubr.bf16.mxu0 0
      %3385 = vmatmul.mubr.bf16.gmra.mxu0 %v1685
      %v3386 = vpop.f32.mrf.mxu0
      %v3387 = vadd.f32 0.0, %v3386
      %v3388 = vpop.f32.mrf.mxu0
      %v3389 = vpop.f32.mrf.mxu0
      %v3390 = vadd.f32 0.0, %v3389
      %v3391 = vpop.f32.mrf.mxu0
      %3392 = vmatprep.mubr.bf16.mxu0 0
      %3393 = vmatmul.mubr.bf16.gmra.mxu0 %v1686
      %v3394 = vpop.f32.mrf.mxu0
      %v3395 = vadd.f32 0.0, %v3394
      %v3396 = vpop.f32.mrf.mxu0
      %v3397 = vpop.f32.mrf.mxu0
      %v3398 = vadd.f32 0.0, %v3397
      %v3399 = vpop.f32.mrf.mxu0
      %3400 = vmatprep.mubr.bf16.mxu0 0
      %3401 = vmatmul.mubr.bf16.gmra.mxu0 %v1687
      %v3402 = vpop.f32.mrf.mxu0
      %v3403 = vadd.f32 0.0, %v3402
      %v3404 = vpop.f32.mrf.mxu0
      %v3405 = vpop.f32.mrf.mxu0
      %v3406 = vadd.f32 0.0, %v3405
      %v3407 = vpop.f32.mrf.mxu0
      %3408 = vmatprep.mubr.bf16.mxu0 0
      %3409 = vmatmul.mubr.bf16.gmra.mxu0 %v1688
      %v3410 = vpop.f32.mrf.mxu0
      %v3411 = vadd.f32 0.0, %v3410
      %v3412 = vpop.f32.mrf.mxu0
      %v3413 = vpop.f32.mrf.mxu0
      %v3414 = vadd.f32 0.0, %v3413
      %v3415 = vpop.f32.mrf.mxu0
      %3416 = vmatprep.mubr.bf16.mxu0 0
      %3417 = vmatmul.mubr.bf16.gmra.mxu0 %v1689
      %v3418 = vpop.f32.mrf.mxu0
      %v3419 = vadd.f32 0.0, %v3418
      %v3420 = vpop.f32.mrf.mxu0
      %v3421 = vpop.f32.mrf.mxu0
      %v3422 = vadd.f32 0.0, %v3421
      %v3423 = vpop.f32.mrf.mxu0
      %3424 = vmatprep.mubr.bf16.mxu0 0
      %3425 = vmatmul.mubr.bf16.gmra.mxu0 %v1690
      %v3426 = vpop.f32.mrf.mxu0
      %v3427 = vadd.f32 0.0, %v3426
      %v3428 = vpop.f32.mrf.mxu0
      %v3429 = vpop.f32.mrf.mxu0
      %v3430 = vadd.f32 0.0, %v3429
      %v3431 = vpop.f32.mrf.mxu0
      %3432 = vmatprep.mubr.bf16.mxu0 0
      %3433 = vmatmul.mubr.bf16.gmra.mxu0 %v1691
      %v3434 = vpop.f32.mrf.mxu0
      %v3435 = vadd.f32 0.0, %v3434
      %v3436 = vpop.f32.mrf.mxu0
      %v3437 = vpop.f32.mrf.mxu0
      %v3438 = vadd.f32 0.0, %v3437
      %v3439 = vpop.f32.mrf.mxu0
      %3440 = vmatprep.mubr.bf16.mxu0 0
      %3441 = vmatmul.mubr.bf16.gmra.mxu0 %v1692
      %v3442 = vpop.f32.mrf.mxu0
      %v3443 = vadd.f32 0.0, %v3442
      %v3444 = vpop.f32.mrf.mxu0
      %v3445 = vpop.f32.mrf.mxu0
      %v3446 = vadd.f32 0.0, %v3445
      %v3447 = vpop.f32.mrf.mxu0
      %3448 = vmatprep.mubr.bf16.mxu0 0
      %3449 = vmatmul.mubr.bf16.gmra.mxu0 %v1693
      %v3450 = vpop.f32.mrf.mxu0
      %v3451 = vadd.f32 0.0, %v3450
      %v3452 = vpop.f32.mrf.mxu0
      %v3453 = vpop.f32.mrf.mxu0
      %v3454 = vadd.f32 0.0, %v3453
      %v3455 = vpop.f32.mrf.mxu0
      %3456 = vmatprep.mubr.bf16.mxu0 0
      %3457 = vmatmul.mubr.bf16.gmra.mxu0 %v1694
      %v3458 = vpop.f32.mrf.mxu0
      %v3459 = vadd.f32 0.0, %v3458
      %v3460 = vpop.f32.mrf.mxu0
      %v3461 = vpop.f32.mrf.mxu0
      %v3462 = vadd.f32 0.0, %v3461
      %v3463 = vpop.f32.mrf.mxu0
      %3464 = vmatprep.mubr.bf16.mxu0 0
      %3465 = vmatmul.mubr.bf16.gmra.mxu0 %v1695
      %v3466 = vpop.f32.mrf.mxu0
      %v3467 = vadd.f32 0.0, %v3466
      %v3468 = vpop.f32.mrf.mxu0
      %v3469 = vpop.f32.mrf.mxu0
      %v3470 = vadd.f32 0.0, %v3469
      %v3471 = vpop.f32.mrf.mxu0
      %3472 = vmatprep.mubr.bf16.mxu0 0
      %3473 = vmatmul.mubr.bf16.gmra.mxu0 %v1696
      %v3474 = vpop.f32.mrf.mxu0
      %v3475 = vadd.f32 0.0, %v3474
      %v3476 = vpop.f32.mrf.mxu0
      %v3477 = vpop.f32.mrf.mxu0
      %v3478 = vadd.f32 0.0, %v3477
      %v3479 = vpop.f32.mrf.mxu0
      %3480 = vmatprep.mubr.bf16.mxu0 0
      %3481 = vmatmul.mubr.bf16.gmra.mxu0 %v1697
      %v3482 = vpop.f32.mrf.mxu0
      %v3483 = vadd.f32 0.0, %v3482
      %v3484 = vpop.f32.mrf.mxu0
      %v3485 = vpop.f32.mrf.mxu0
      %v3486 = vadd.f32 0.0, %v3485
      %v3487 = vpop.f32.mrf.mxu0
      %3488 = vmatprep.mubr.bf16.mxu0 0
      %3489 = vmatmul.mubr.bf16.gmra.mxu0 %v1698
      %v3490 = vpop.f32.mrf.mxu0
      %v3491 = vadd.f32 0.0, %v3490
      %v3492 = vpop.f32.mrf.mxu0
      %v3493 = vpop.f32.mrf.mxu0
      %v3494 = vadd.f32 0.0, %v3493
      %v3495 = vpop.f32.mrf.mxu0
      %3496 = vmatprep.mubr.bf16.mxu0 0
      %3497 = vmatmul.mubr.bf16.gmra.mxu0 %v2492
      %v3498 = vpop.f32.mrf.mxu0
      %v3499 = vadd.f32 0.0, %v3498
      %v3500 = vpop.f32.mrf.mxu0
      %v3501 = vpop.f32.mrf.mxu0
      %v3502 = vadd.f32 0.0, %v3501
      %v3503 = vpop.f32.mrf.mxu0
      %3504 = vmatprep.mubr.bf16.mxu0 0
      %3505 = vmatmul.mubr.bf16.gmra.mxu0 %v3286
      %v3506 = vpop.f32.mrf.mxu0
      %v3507 = vadd.f32 0.0, %v3506
      %v3508 = vpop.f32.mrf.mxu0
      %v3509 = vpop.f32.mrf.mxu0
      %v3510 = vadd.f32 0.0, %v3509
      %v3511 = vpop.f32.mrf.mxu0
      %3512 = vdwg.mxu0
      %v3513 = vadd.f32 %v3247, %v3387
      %v3514 = vadd.f32 %v3248, %v3390
      %v3515 = vadd.f32 %v3249, %v3395
      %v3516 = vadd.f32 %v3250, %v3398
      %v3517 = vadd.f32 %v3251, %v3403
      %v3518 = vadd.f32 %v3252, %v3406
      %v3519 = vadd.f32 %v3253, %v3411
      %v3520 = vadd.f32 %v3254, %v3414
      %v3521 = vadd.f32 %v3255, %v3419
      %v3522 = vadd.f32 %v3256, %v3422
      %v3523 = vadd.f32 %v3257, %v3427
      %v3524 = vadd.f32 %v3258, %v3430
      %v3525 = vadd.f32 %v3259, %v3435
      %v3526 = vadd.f32 %v3260, %v3438
      %v3527 = vadd.f32 %v3261, %v3443
      %v3528 = vadd.f32 %v3262, %v3446
      %v3529 = vadd.f32 %v3263, %v3451
      %v3530 = vadd.f32 %v3264, %v3454
      %v3531 = vadd.f32 %v3265, %v3459
      %v3532 = vadd.f32 %v3266, %v3462
      %v3533 = vadd.f32 %v3267, %v3467
      %v3534 = vadd.f32 %v3268, %v3470
      %v3535 = vadd.f32 %v3269, %v3475
      %v3536 = vadd.f32 %v3270, %v3478
      %v3537 = vadd.f32 %v3271, %v3483
      %v3538 = vadd.f32 %v3272, %v3486
      %v3539 = vadd.f32 %v3273, %v3491
      %v3540 = vadd.f32 %v3274, %v3494
      %v3541 = vadd.f32 %v3275, %v3499
      %v3542 = vadd.f32 %v3276, %v3502
      %v3543 = vadd.f32 %v3277, %v3507
      %v3544 = vadd.f32 %v3278, %v3510
      %v3545 = vpack.c.bf16 %v3514, %v3513
      %v3546 = vpack.c.bf16 %v3516, %v3515
      %v3547 = vpack.c.bf16 %v3518, %v3517
      %v3548 = vpack.c.bf16 %v3520, %v3519
      %v3549 = vpack.c.bf16 %v3522, %v3521
      %v3550 = vpack.c.bf16 %v3524, %v3523
      %v3551 = vpack.c.bf16 %v3526, %v3525
      %v3552 = vpack.c.bf16 %v3528, %v3527
      %v3553 = vpack.c.bf16 %v3530, %v3529
      %v3554 = vpack.c.bf16 %v3532, %v3531
      %v3555 = vpack.c.bf16 %v3534, %v3533
      %v3556 = vpack.c.bf16 %v3536, %v3535
      %v3557 = vpack.c.bf16 %v3538, %v3537
      %v3558 = vpack.c.bf16 %v3540, %v3539
      %v3559 = vpack.c.bf16 %v3542, %v3541
      %v3560 = vpack.c.bf16 %v3544, %v3543
      %v3577 = vunpack.c.l.b16 %v3545
      %v3578 = vunpack.c.h.b16 %v3545
      %v3579 = vunpack.c.l.b16 %v3546
      %v3580 = vunpack.c.h.b16 %v3546
      %v3581 = vunpack.c.l.b16 %v3547
      %v3582 = vunpack.c.h.b16 %v3547
      %v3583 = vunpack.c.l.b16 %v3548
      %v3584 = vunpack.c.h.b16 %v3548
      %v3585 = vunpack.c.l.b16 %v3549
      %v3586 = vunpack.c.h.b16 %v3549
      %v3587 = vunpack.c.l.b16 %v3550
      %v3588 = vunpack.c.h.b16 %v3550
      %v3589 = vunpack.c.l.b16 %v3551
      %v3590 = vunpack.c.h.b16 %v3551
      %v3591 = vunpack.c.l.b16 %v3552
      %v3592 = vunpack.c.h.b16 %v3552
      %v3593 = vunpack.c.l.b16 %v3553
      %v3594 = vunpack.c.h.b16 %v3553
      %v3595 = vunpack.c.l.b16 %v3554
      %v3596 = vunpack.c.h.b16 %v3554
      %v3597 = vunpack.c.l.b16 %v3555
      %v3598 = vunpack.c.h.b16 %v3555
      %v3599 = vunpack.c.l.b16 %v3556
      %v3600 = vunpack.c.h.b16 %v3556
      %v3601 = vunpack.c.l.b16 %v3557
      %v3602 = vunpack.c.h.b16 %v3557
      %v3603 = vunpack.c.l.b16 %v3558
      %v3604 = vunpack.c.h.b16 %v3558
      %v3605 = vunpack.c.l.b16 %v3559
      %v3606 = vunpack.c.h.b16 %v3559
      %v3607 = vunpack.c.l.b16 %v3560
      %v3608 = vunpack.c.h.b16 %v3560
      %v3609 = vpack.c.b16 %v3577, %v3577
      %v3610 = vpack.c.b16 %v3578, %v3578
      %v3611 = vpack.c.b16 %v3579, %v3579
      %v3612 = vpack.c.b16 %v3580, %v3580
      %v3613 = vpack.c.b16 %v3581, %v3581
      %v3614 = vpack.c.b16 %v3582, %v3582
      %v3615 = vpack.c.b16 %v3583, %v3583
      %v3616 = vpack.c.b16 %v3584, %v3584
      %v3617 = vpack.c.b16 %v3585, %v3585
      %v3618 = vpack.c.b16 %v3586, %v3586
      %v3619 = vpack.c.b16 %v3587, %v3587
      %v3620 = vpack.c.b16 %v3588, %v3588
      %v3621 = vpack.c.b16 %v3589, %v3589
      %v3622 = vpack.c.b16 %v3590, %v3590
      %v3623 = vpack.c.b16 %v3591, %v3591
      %v3624 = vpack.c.b16 %v3592, %v3592
      %v3625 = vpack.c.b16 %v3593, %v3593
      %v3626 = vpack.c.b16 %v3594, %v3594
      %v3627 = vpack.c.b16 %v3595, %v3595
      %v3628 = vpack.c.b16 %v3596, %v3596
      %v3629 = vpack.c.b16 %v3597, %v3597
      %v3630 = vpack.c.b16 %v3598, %v3598
      %v3631 = vpack.c.b16 %v3599, %v3599
      %v3632 = vpack.c.b16 %v3600, %v3600
      %v3633 = vpack.c.b16 %v3601, %v3601
      %v3634 = vpack.c.b16 %v3602, %v3602
      %v3635 = vpack.c.b16 %v3603, %v3603
      %v3636 = vpack.c.b16 %v3604, %v3604
      %v3637 = vpack.c.b16 %v3605, %v3605
      %v3638 = vpack.c.b16 %v3606, %v3606
      %v3639 = vpack.c.b16 %v3607, %v3607
      %v3640 = vpack.c.b16 %v3608, %v3608
      %3673 = vst [vmem:[%s258] sm:$0xf] %v3609
      %3674 = vst [vmem:[%s258 + $0x4] sm:$0xf] %v3610
      %3675 = vst [vmem:[%s258 + $0x8] sm:$0xf] %v3611
      %3676 = vst [vmem:[%s258 + $0xc] sm:$0xf] %v3612
      %3677 = vst [vmem:[%s258 + $0x10] sm:$0xf] %v3613
      %3678 = vst [vmem:[%s258 + $0x14] sm:$0xf] %v3614
      %3679 = vst [vmem:[%s258 + $0x18] sm:$0xf] %v3615
      %3680 = vst [vmem:[%s258 + $0x1c] sm:$0xf] %v3616
      %3681 = vst [vmem:[%s258 + $0x20] sm:$0xf] %v3617
      %3682 = vst [vmem:[%s258 + $0x24] sm:$0xf] %v3618
      %3683 = vst [vmem:[%s258 + $0x28] sm:$0xf] %v3619
      %3684 = vst [vmem:[%s258 + $0x2c] sm:$0xf] %v3620
      %3685 = vst [vmem:[%s258 + $0x30] sm:$0xf] %v3621
      %3686 = vst [vmem:[%s258 + $0x34] sm:$0xf] %v3622
      %3687 = vst [vmem:[%s258 + $0x38] sm:$0xf] %v3623
      %3688 = vst [vmem:[%s258 + $0x3c] sm:$0xf] %v3624
      %3689 = vst [vmem:[%s258 + $0x40] sm:$0xf] %v3625
      %3690 = vst [vmem:[%s258 + $0x44] sm:$0xf] %v3626
      %3691 = vst [vmem:[%s258 + $0x48] sm:$0xf] %v3627
      %3692 = vst [vmem:[%s258 + $0x4c] sm:$0xf] %v3628
      %3693 = vst [vmem:[%s258 + $0x50] sm:$0xf] %v3629
      %3694 = vst [vmem:[%s258 + $0x54] sm:$0xf] %v3630
      %3695 = vst [vmem:[%s258 + $0x58] sm:$0xf] %v3631
      %3696 = vst [vmem:[%s258 + $0x5c] sm:$0xf] %v3632
      %3697 = vst [vmem:[%s258 + $0x60] sm:$0xf] %v3633
      %3698 = vst [vmem:[%s258 + $0x64] sm:$0xf] %v3634
      %3699 = vst [vmem:[%s258 + $0x68] sm:$0xf] %v3635
      %3700 = vst [vmem:[%s258 + $0x6c] sm:$0xf] %v3636
      %3701 = vst [vmem:[%s258 + $0x70] sm:$0xf] %v3637
      %3702 = vst [vmem:[%s258 + $0x74] sm:$0xf] %v3638
      %3703 = vst [vmem:[%s258 + $0x78] sm:$0xf] %v3639
      %3704 = vst [vmem:[%s258 + $0x7c] sm:$0xf] %v3640
      %3705 = vst [vmem:[%s262] sm:$0xff] 0.0
      %v3706 = vadd.f32 %v3513, %v3514
      %v3707 = vadd.f32 %v3706, %v3515
      %v3708 = vadd.f32 %v3707, %v3516
      %v3709 = vadd.f32 %v3708, %v3517
      %v3710 = vadd.f32 %v3709, %v3518
      %v3711 = vadd.f32 %v3710, %v3519
      %v3712 = vadd.f32 %v3711, %v3520
      %v3713 = vadd.f32 %v3712, %v3521
      %v3714 = vadd.f32 %v3713, %v3522
      %v3715 = vadd.f32 %v3714, %v3523
      %v3716 = vadd.f32 %v3715, %v3524
      %v3717 = vadd.f32 %v3716, %v3525
      %v3718 = vadd.f32 %v3717, %v3526
      %v3719 = vadd.f32 %v3718, %v3527
      %v3720 = vadd.f32 %v3719, %v3528
      %v3721 = vadd.f32 %v3720, %v3529
      %v3722 = vadd.f32 %v3721, %v3530
      %v3723 = vadd.f32 %v3722, %v3531
      %v3724 = vadd.f32 %v3723, %v3532
      %v3725 = vadd.f32 %v3724, %v3533
      %v3726 = vadd.f32 %v3725, %v3534
      %v3727 = vadd.f32 %v3726, %v3535
      %v3728 = vadd.f32 %v3727, %v3536
      %v3729 = vadd.f32 %v3728, %v3537
      %v3730 = vadd.f32 %v3729, %v3538
      %v3731 = vadd.f32 %v3730, %v3539
      %v3732 = vadd.f32 %v3731, %v3540
      %v3733 = vadd.f32 %v3732, %v3541
      %v3734 = vadd.f32 %v3733, %v3542
      %v3735 = vadd.f32 %v3734, %v3543
      %v3736 = vadd.f32 %v3735, %v3544
      %v3737 = vrot.slane %v3736, 4
      %v3738 = vadd.f32 %v3736, %v3737
      %v3739 = vrot.slane %v3738, 2
      %v3740 = vadd.f32 %v3738, %v3739
      %v3741 = vrot.slane %v3740, 1
      %v3742 = vadd.f32 %v3740, %v3741
      %3743 = vst [vmem:[%s262] sm:$0x1] %v3742
      %v3744 = vmul.f32 %v3513, %v3513
      %v3745 = vmul.f32 %v3514, %v3514
      %v3746 = vmul.f32 %v3515, %v3515
      %v3747 = vmul.f32 %v3516, %v3516
      %v3748 = vmul.f32 %v3517, %v3517
      %v3749 = vmul.f32 %v3518, %v3518
      %v3750 = vmul.f32 %v3519, %v3519
      %v3751 = vmul.f32 %v3520, %v3520
      %v3752 = vmul.f32 %v3521, %v3521
      %v3753 = vmul.f32 %v3522, %v3522
      %v3754 = vmul.f32 %v3523, %v3523
      %v3755 = vmul.f32 %v3524, %v3524
      %v3756 = vmul.f32 %v3525, %v3525
      %v3757 = vmul.f32 %v3526, %v3526
      %v3758 = vmul.f32 %v3527, %v3527
      %v3759 = vmul.f32 %v3528, %v3528
      %v3760 = vmul.f32 %v3529, %v3529
      %v3761 = vmul.f32 %v3530, %v3530
      %v3762 = vmul.f32 %v3531, %v3531
      %v3763 = vmul.f32 %v3532, %v3532
      %v3764 = vmul.f32 %v3533, %v3533
      %v3765 = vmul.f32 %v3534, %v3534
      %v3766 = vmul.f32 %v3535, %v3535
      %v3767 = vmul.f32 %v3536, %v3536
      %v3768 = vmul.f32 %v3537, %v3537
      %v3769 = vmul.f32 %v3538, %v3538
      %v3770 = vmul.f32 %v3539, %v3539
      %v3771 = vmul.f32 %v3540, %v3540
      %v3772 = vmul.f32 %v3541, %v3541
      %v3773 = vmul.f32 %v3542, %v3542
      %v3774 = vmul.f32 %v3543, %v3543
      %v3775 = vmul.f32 %v3544, %v3544
      %v3776 = vadd.f32 %v3744, %v3745
      %v3777 = vadd.f32 %v3776, %v3746
      %v3778 = vadd.f32 %v3777, %v3747
      %v3779 = vadd.f32 %v3778, %v3748
      %v3780 = vadd.f32 %v3779, %v3749
      %v3781 = vadd.f32 %v3780, %v3750
      %v3782 = vadd.f32 %v3781, %v3751
      %v3783 = vadd.f32 %v3782, %v3752
      %v3784 = vadd.f32 %v3783, %v3753
      %v3785 = vadd.f32 %v3784, %v3754
      %v3786 = vadd.f32 %v3785, %v3755
      %v3787 = vadd.f32 %v3786, %v3756
      %v3788 = vadd.f32 %v3787, %v3757
      %v3789 = vadd.f32 %v3788, %v3758
      %v3790 = vadd.f32 %v3789, %v3759
      %v3791 = vadd.f32 %v3790, %v3760
      %v3792 = vadd.f32 %v3791, %v3761
      %v3793 = vadd.f32 %v3792, %v3762
      %v3794 = vadd.f32 %v3793, %v3763
      %v3795 = vadd.f32 %v3794, %v3764
      %v3796 = vadd.f32 %v3795, %v3765
      %v3797 = vadd.f32 %v3796, %v3766
      %v3798 = vadd.f32 %v3797, %v3767
      %v3799 = vadd.f32 %v3798, %v3768
      %v3800 = vadd.f32 %v3799, %v3769
      %v3801 = vadd.f32 %v3800, %v3770
      %v3802 = vadd.f32 %v3801, %v3771
      %v3803 = vadd.f32 %v3802, %v3772
      %v3804 = vadd.f32 %v3803, %v3773
      %v3805 = vadd.f32 %v3804, %v3774
      %v3806 = vadd.f32 %v3805, %v3775
      %v3807 = vrot.slane %v3806, 4
      %v3808 = vadd.f32 %v3806, %v3807
      %v3809 = vrot.slane %v3808, 2
      %v3810 = vadd.f32 %v3808, %v3809
      %v3811 = vrot.slane %v3810, 1
      %v3812 = vadd.f32 %v3810, %v3811
      %3813 = vst [vmem:[%s262 + $0x1] sm:$0x1] %v3812
      %p3814 = scmp.lt.s32.totalorder %s18, 1
      %s3815 = scalar_select %p3814, %s18, 1
      %s3816 = smul.addr %s3815, 32
      %s3817 = smul.addr %s3816, 4
      %s3818 = scalar_lea.vmem %s5, %s3817
      %p3819 = scmp.lt.s32.totalorder %s18, 1
      %s3820 = scalar_select %p3819, %s18, 1
      %s3821 = smul.addr %s3820, 8
      %s3822 = scalar_lea.vmem %s6, %s3821
      // Predicated region
      $region41: #{_lambda_.4} parent=39 // pred_check
        %p3823 = pneg %p146
      $region42: #{_lambda_.4} parent=39 // pred_check_branch
        %3825 = sbr.rel (%p3823) target = $region44
      $region43: #{_lambda_.4} parent=39 // pred_region
        _
      $region44: #{_lambda_.4} parent=39 // pred_fallthru
        _
      // Predicated region
      $region45: #{_lambda_.4} parent=39 // pred_check
        %p3826 = pneg %p172
      $region46: #{_lambda_.4} parent=39 // pred_check_branch
        %3828 = sbr.rel (%p3826) target = $region48
      $region47: #{_lambda_.4} parent=39 // pred_region
        _
      $region48: #{_lambda_.4} parent=39 // pred_fallthru
        _
    $region40: #{_lambda_.4} parent=5 // pred_fallthru
      _
    %p3829 = scmp.le.s32.totalorder 2, %s13
    // Predicated region
    $region49: #{_lambda_.4} parent=5 // pred_check
      %p3830 = pneg %p3829
    $region50: #{_lambda_.4} parent=5 // pred_check_branch
      %3832 = sbr.rel (%p3830) target = $region52
    $region51: #{_lambda_.4} parent=5 // pred_region
      %s3833 = ssub.s32 %s13, 2
      // Predicated region
      $region53: #{_lambda_.4} parent=51 // pred_check
        %p3834 = pneg %p152
      $region54: #{_lambda_.4} parent=51 // pred_check_branch
        %3836 = sbr.rel (%p3834) target = $region56
      $region55: #{_lambda_.4} parent=51 // pred_region
        %p3837 = scmp.lt.s32.totalorder %s19, 1
        %s3838 = scalar_select %p3837, %s19, 1
        %s3839 = smul.addr %s3838, 32
        %s3840 = smul.addr %s3839, 4
        %s3841 = scalar_lea.vmem %s5, %s3840
      $region56: #{_lambda_.4} parent=51 // pred_fallthru
        _
      // Predicated region
      $region57: #{_lambda_.4} parent=51 // pred_check
        %p3842 = pneg %p178
      $region58: #{_lambda_.4} parent=51 // pred_check_branch
        %3844 = sbr.rel (%p3842) target = $region60
      $region59: #{_lambda_.4} parent=51 // pred_region
        %p3845 = scmp.lt.s32.totalorder %s19, 1
        %s3846 = scalar_select %p3845, %s19, 1
        %s3847 = smul.addr %s3846, 8
        %s3848 = scalar_lea.vmem %s6, %s3847
      $region60: #{_lambda_.4} parent=51 // pred_fallthru
        _
    $region52: #{_lambda_.4} parent=5 // pred_fallthru
      _
  $region6: #{_lambda_.4} parent=0 // loop_footer
    %s17 = sadd.s32 1, %s13
  $region7: #{_lambda_.4} parent=0 // loop_footer_branch
    %12 = sbr.rel target = $region3
  $region8: #{_lambda_.4} parent=0 // loop_exit
    _

</llo_original>
